<compile_context>
chip_gen: v5e
topology: v5e:2x2
jax: 0.10.0
libtpu: 0.0.40
codegen_flags: <defaults>
</compile_context>

<pallas_src>
import numpy as np
import jax
import jax.numpy as jnp
from jax.experimental import pallas as pl
from jax.experimental.pallas import tpu as pltpu


# Position-space offsets (units of the original 28x28 grid, flat p = 28*h + w).
# Stage 1 conv taps and pool corners sit on the unit grid; after each pool the
# stored grid spacing doubles, so stage-2 offsets are 2x and stage-3 are 4x.
_OFF1 = (0, 1, 28, 29)      # (kh*28 + kw)           taps & pool corners, stage 1
_OFF2 = (0, 2, 56, 58)      # (2*kh*28 + 2*kw)       taps & pool corners, stage 2
_OFF3 = (0, 4, 112, 116)    # (4*kh*28 + 4*kw)       taps, stage 3


# ------------------------------ fused kernel --------------------------------

def _make_forward(B):
    """Builds the jitted fused forward for batch size B (input 3x28x28)."""

    # Lane lengths (lane = B*position + b).  Each array only needs to cover the
    # lanes its consumers read; consumers read at lane offsets <= B*max_offset.
    n_y3 = B * 465                 # last valid conv3 lane: B*(112*4 + 4*4) + B-1
    n_y2 = n_y3 + B * 116
    n_c2 = n_y2 + B * 58
    n_y1 = n_c2 + B * 58
    n_c1 = n_y1 + B * 29
    n_x = B * 28 * 28              # >= n_c1 + B*29 for any B

    def kernel(x_ref, w1_ref, b1_ref, w2_ref, b2_ref, w3_ref, b3_ref,
               wf1_hbm, bf1_ref, wf2_ref, bf2_ref, wf3_ref, bf3_ref,
               wf4_ref, bf4_ref, o_ref, wf1_vmem, feats_ref, dma_sem):
        # Kick off the fc1-weight fetch so the 1.6 MB DMA overlaps the convs.
        wf1_copy = pltpu.make_async_copy(wf1_hbm, wf1_vmem, dma_sem)
        wf1_copy.start()

        def conv_relu(h, w_ref, b_ref, offsets, n_out):
            """2x2 conv + bias + ReLU as 4 lane-shifted matmuls (f32 accum)."""
            acc = None
            for t, dp in enumerate(offsets):
                part = jnp.dot(w_ref[t], h[:, B * dp: B * dp + n_out],
                               preferred_element_type=jnp.float32)
                acc = part if acc is None else acc + part
            return jnp.maximum(acc + b_ref[...], 0.0)

        def pool_max(h, offsets, n_out):
            """2x2 / stride-2 max pool = max of 4 lane-shifted views."""
            out = None
            for dp in offsets:
                s = h[:, B * dp: B * dp + n_out]
                out = s if out is None else jnp.maximum(out, s)
            return out

        xv = x_ref[...]                                            # (3, n_x) bf16
        c1 = conv_relu(xv, w1_ref, b1_ref, _OFF1, n_c1)            # (16, n_c1) f32
        y1 = pool_max(c1, _OFF1, n_y1).astype(jnp.bfloat16)        # (16, n_y1)
        c2 = conv_relu(y1, w2_ref, b2_ref, _OFF2, n_c2)            # (32, n_c2)
        y2 = pool_max(c2, _OFF2, n_y2).astype(jnp.bfloat16)        # (32, n_y2)
        y3 = conv_relu(y2, w3_ref, b3_ref, _OFF3, n_y3)            # (64, n_y3) f32

        # Flatten: valid conv3 outputs live at physical (4u, 4v), u,v in [0,5),
        # i.e. lanes B*(112u + 4v) + b.  Store the (64, B) channel block of each
        # of the 25 positions at 64-aligned rows of the feats scratch; fc1's
        # columns were permuted at prep time to this (u, v, c) order (matching
        # PyTorch's NCHW flatten semantics).
        for u in range(5):
            for v in range(5):
                lane = B * (112 * u + 4 * v)
                s = u * 5 + v
                feats_ref[64 * s: 64 * (s + 1), :] = y3[:, lane: lane + B]

        wf1_copy.wait()
        feats = feats_ref[...].astype(jnp.bfloat16)                # (1600, B)

        def fc(w_ref, h, b_ref):
            return jnp.dot(w_ref[...], h.astype(jnp.bfloat16),
                           preferred_element_type=jnp.float32) + b_ref[...]

        h = jnp.maximum(fc(wf1_vmem, feats, bf1_ref), 0.0)         # (512, B)
        # TODO(synk): nn.Dropout is identity at inference; training-mode RNG
        # dropout is not implemented here.
        h = jnp.maximum(fc(wf2_ref, h, bf2_ref), 0.0)              # (256, B)
        h = jnp.maximum(fc(wf3_ref, h, bf3_ref), 0.0)              # (128, B)
        h = fc(wf4_ref, h, bf4_ref)                                # (8,   B)
        o_ref[...] = h

    vmem_spec = pl.BlockSpec(memory_space=pltpu.MemorySpace.VMEM)
    any_spec = pl.BlockSpec(memory_space=pl.ANY)

    @jax.jit
    def forward(x_nchw, q):
        assert x_nchw.shape[1:] == (3, 28, 28) and x_nchw.shape[0] == B
        # NCHW -> channels x (position, batch)-interleaved lanes.
        x = x_nchw.astype(jnp.float32)
        x_phys = jnp.transpose(x, (1, 2, 3, 0)).reshape(3, n_x)
        x_phys = x_phys.astype(jnp.bfloat16)

        out = pl.pallas_call(
            kernel,
            out_shape=jax.ShapeDtypeStruct((8, B), jnp.float32),
            in_specs=[vmem_spec] * 7 + [any_spec] + [vmem_spec] * 7,
            out_specs=vmem_spec,
            scratch_shapes=[
                pltpu.VMEM((512, 1600), jnp.bfloat16),   # fc1 weight landing pad
                pltpu.VMEM((1600, B), jnp.float32),      # flattened features
                pltpu.SemaphoreType.DMA,                 # fc1 prefetch semaphore
            ],
        )(x_phys, q["w1"], q["b1"], q["w2"], q["b2"], q["w3"], q["b3"],
          q["wf1"], q["bf1"], q["wf2"], q["bf2"], q["wf3"], q["bf3"],
          q["wf4"], q["bf4"])
        return out.T                                      # (B, 8)

    return forward


# --------------------------- parameter preparation --------------------------

def prepare_params(p):
    """One-time weight repacking (layout + dtype); done outside the forward."""
    def conv_taps(w):     # OIHW (Cout, Cin, 2, 2) -> (4, Cout, Cin), t = kh*2+kw
        return (jnp.transpose(w, (2, 3, 0, 1))
                .reshape(4, w.shape[0], w.shape[1]).astype(jnp.bfloat16))

    q = {}
    q["w1"], q["b1"] = conv_taps(p["w1"]), p["b1"].reshape(-1, 1)
    q["w2"], q["b2"] = conv_taps(p["w2"]), p["b2"].reshape(-1, 1)
    q["w3"], q["b3"] = conv_taps(p["w3"]), p["b3"].reshape(-1, 1)

    # fc1: PyTorch flattens NCHW (feature k = c*25 + u*5 + v); the kernel
    # produces features in (u*5+v)*64 + c order, so permute the columns once.
    wf1 = p["wf1"].reshape(512, 64, 25)                    # (n, c, s)
    q["wf1"] = (jnp.transpose(wf1, (0, 2, 1))
                .reshape(512, 1600).astype(jnp.bfloat16))  # cols = s*64 + c
    q["bf1"] = p["bf1"].reshape(-1, 1)
    q["wf2"], q["bf2"] = p["wf2"].astype(jnp.bfloat16), p["bf2"].reshape(-1, 1)
    q["wf3"], q["bf3"] = p["wf3"].astype(jnp.bfloat16), p["bf3"].reshape(-1, 1)
    q["wf4"], q["bf4"] = p["wf4"].astype(jnp.bfloat16), p["bf4"].reshape(-1, 1)
    return q


# --------------------------- deterministic params ---------------------------

def init_params(key):
    # PyTorch default init: U(-1/sqrt(fan_in), 1/sqrt(fan_in)); shapes from __init__.
    specs = {
        "w1": ((16, 3, 2, 2), 3 * 4),   "b1": ((16,), 3 * 4),
        "w2": ((32, 16, 2, 2), 16 * 4), "b2": ((32,), 16 * 4),
        "w3": ((64, 32, 2, 2), 32 * 4), "b3": ((64,), 32 * 4),
        "wf1": ((512, 1600), 1600),     "bf1": ((512,), 1600),
        "wf2": ((256, 512), 512),       "bf2": ((256,), 512),
        "wf3": ((128, 256), 256),       "bf3": ((128,), 256),
        "wf4": ((8, 128), 128),         "bf4": ((8,), 128),
    }
    keys = jax.random.split(key, len(specs))
    params = {}
    for k, (name, (shape, fan_in)) in zip(keys, specs.items()):
        bound = 1.0 / float(np.sqrt(fan_in))
        params[name] = jax.random.uniform(k, shape, jnp.float32, -bound, bound)
    return params


# ------------------------------ JAX reference -------------------------------

def reference_forward(x, p):
    relu = lambda v: jnp.maximum(v, 0.0)

    def conv(x, w, b):
        y = jax.lax.conv_general_dilated(
            x, w, window_strides=(1, 1), padding="VALID",
            dimension_numbers=("NCHW", "OIHW", "NCHW"),
            precision=jax.lax.Precision.HIGHEST)
        return y + b.reshape(1, -1, 1, 1)

    def pool(x):
        return jax.lax.reduce_window(x, -jnp.inf, jax.lax.max,
                                     (1, 1, 2, 2), (1, 1, 2, 2), "VALID")

    fc = lambda v, w, b: jnp.dot(v, w.T, precision=jax.lax.Precision.HIGHEST) + b

    x = pool(relu(conv(x, p["w1"], p["b1"])))
    x = pool(relu(conv(x, p["w2"], p["b2"])))
    x = relu(conv(x, p["w3"], p["b3"]))
    x = x.reshape(x.shape[0], -1)
    x = relu(fc(x, p["wf1"], p["bf1"]))
    x = relu(fc(x, p["wf2"], p["bf2"]))
    x = relu(fc(x, p["wf3"], p["bf3"]))
    x = fc(x, p["wf4"], p["bf4"])
    return x


if __name__ == "__main__":
    key = jax.random.PRNGKey(0)
    pkey, xkey = jax.random.split(key)
    params = init_params(pkey)
    prepped = prepare_params(params)

    # Input must be (B, 3, 28, 28): 28 ->conv 27 ->pool 13 ->conv 12 ->pool 6
    # ->conv 5, so the flatten gives 64*5*5 = 1600 as fc1 expects.
    B = 2
    x = jax.random.normal(xkey, (B, 3, 28, 28), dtype=jnp.float32)

    cnn_forward = _make_forward(B)
    out = jax.block_until_ready(cnn_forward(x, prepped))
    assert out.shape == (B, 8), out.shape

    ref = jax.block_until_ready(reference_forward(x, params))
    if not np.allclose(np.asarray(out), np.asarray(ref), rtol=5e-2, atol=5e-2):
        err = float(np.max(np.abs(np.asarray(out) - np.asarray(ref))))
        raise AssertionError(f"Pallas output does not match JAX reference (max err {err})")

    print("KERNEL_OK")
</pallas_src>

<mosaic_0001>
module attributes {stable_mosaic.version = 11 : i64} {
  func.func @kernel(%arg0: memref<3x1568xbf16, #tpu.memory_space<vmem>>, %arg1: memref<4x16x3xbf16, #tpu.memory_space<vmem>>, %arg2: memref<16x1xf32, #tpu.memory_space<vmem>>, %arg3: memref<4x32x16xbf16, #tpu.memory_space<vmem>>, %arg4: memref<32x1xf32, #tpu.memory_space<vmem>>, %arg5: memref<4x64x32xbf16, #tpu.memory_space<vmem>>, %arg6: memref<64x1xf32, #tpu.memory_space<vmem>>, %arg7: memref<512x1600xbf16, #tpu.memory_space<any>>, %arg8: memref<512x1xf32, #tpu.memory_space<vmem>>, %arg9: memref<256x512xbf16, #tpu.memory_space<vmem>>, %arg10: memref<256x1xf32, #tpu.memory_space<vmem>>, %arg11: memref<128x256xbf16, #tpu.memory_space<vmem>>, %arg12: memref<128x1xf32, #tpu.memory_space<vmem>>, %arg13: memref<8x128xbf16, #tpu.memory_space<vmem>>, %arg14: memref<8x1xf32, #tpu.memory_space<vmem>>, %arg15: memref<8x2xf32, #tpu.memory_space<vmem>>, %arg16: memref<512x1600xbf16, #tpu.memory_space<vmem>>, %arg17: memref<1600x2xf32, #tpu.memory_space<vmem>>, %arg18: memref<!tpu.dma_semaphore, #tpu.memory_space<semaphore_mem>>) attributes {dimension_semantics = [], scalar_prefetch = 0 : i64, scratch_operands = 3 : i64, tpu.core_type = #tpu.core_type<tc>} {
    tpu.enqueue_dma source(%arg7 : memref<512x1600xbf16, #tpu.memory_space<any>>) target(%arg16 : memref<512x1600xbf16, #tpu.memory_space<vmem>>) target_semaphore(%arg18 : memref<!tpu.dma_semaphore, #tpu.memory_space<semaphore_mem>>)
    %c0 = arith.constant 0 : index
    %c0_0 = arith.constant 0 : index
    %0 = vector.load %arg0[%c0, %c0_0] : memref<3x1568xbf16, #tpu.memory_space<vmem>>, vector<3x1568xbf16>
    %c0_1 = arith.constant 0 : index
    %c0_2 = arith.constant 0 : index
    %c0_3 = arith.constant 0 : index
    %1 = vector.load %arg1[%c0_1, %c0_2, %c0_3] : memref<4x16x3xbf16, #tpu.memory_space<vmem>>, vector<1x16x3xbf16>
    %2 = vector.shape_cast %1 : vector<1x16x3xbf16> to vector<16x3xbf16>
    %3 = vector.extract_strided_slice %0 {offsets = [0, 0], sizes = [3, 1452], strides = [1, 1]} : vector<3x1568xbf16> to vector<3x1452xbf16>
    %cst = arith.constant dense<0.000000e+00> : vector<16x1452xf32>
    %4 = tpu.matmul %2, %3, %cst {dimension_numbers = #tpu.dot_dimension_numbers<[1], [0], [0], [1], [0, 0, 1, 1], [], []>} : vector<16x3xbf16>, vector<3x1452xbf16>, vector<16x1452xf32> -> vector<16x1452xf32>
    %c1 = arith.constant 1 : index
    %c0_4 = arith.constant 0 : index
    %c0_5 = arith.constant 0 : index
    %5 = vector.load %arg1[%c1, %c0_4, %c0_5] : memref<4x16x3xbf16, #tpu.memory_space<vmem>>, vector<1x16x3xbf16>
    %6 = vector.shape_cast %5 : vector<1x16x3xbf16> to vector<16x3xbf16>
    %7 = vector.extract_strided_slice %0 {offsets = [0, 2], sizes = [3, 1452], strides = [1, 1]} : vector<3x1568xbf16> to vector<3x1452xbf16>
    %cst_6 = arith.constant dense<0.000000e+00> : vector<16x1452xf32>
    %8 = tpu.matmul %6, %7, %cst_6 {dimension_numbers = #tpu.dot_dimension_numbers<[1], [0], [0], [1], [0, 0, 1, 1], [], []>} : vector<16x3xbf16>, vector<3x1452xbf16>, vector<16x1452xf32> -> vector<16x1452xf32>
    %9 = arith.addf %4, %8 : vector<16x1452xf32>
    %c2 = arith.constant 2 : index
    %c0_7 = arith.constant 0 : index
    %c0_8 = arith.constant 0 : index
    %10 = vector.load %arg1[%c2, %c0_7, %c0_8] : memref<4x16x3xbf16, #tpu.memory_space<vmem>>, vector<1x16x3xbf16>
    %11 = vector.shape_cast %10 : vector<1x16x3xbf16> to vector<16x3xbf16>
    %12 = vector.extract_strided_slice %0 {offsets = [0, 56], sizes = [3, 1452], strides = [1, 1]} : vector<3x1568xbf16> to vector<3x1452xbf16>
    %cst_9 = arith.constant dense<0.000000e+00> : vector<16x1452xf32>
    %13 = tpu.matmul %11, %12, %cst_9 {dimension_numbers = #tpu.dot_dimension_numbers<[1], [0], [0], [1], [0, 0, 1, 1], [], []>} : vector<16x3xbf16>, vector<3x1452xbf16>, vector<16x1452xf32> -> vector<16x1452xf32>
    %14 = arith.addf %9, %13 : vector<16x1452xf32>
    %c3 = arith.constant 3 : index
    %c0_10 = arith.constant 0 : index
    %c0_11 = arith.constant 0 : index
    %15 = vector.load %arg1[%c3, %c0_10, %c0_11] : memref<4x16x3xbf16, #tpu.memory_space<vmem>>, vector<1x16x3xbf16>
    %16 = vector.shape_cast %15 : vector<1x16x3xbf16> to vector<16x3xbf16>
    %17 = vector.extract_strided_slice %0 {offsets = [0, 58], sizes = [3, 1452], strides = [1, 1]} : vector<3x1568xbf16> to vector<3x1452xbf16>
    %cst_12 = arith.constant dense<0.000000e+00> : vector<16x1452xf32>
    %18 = tpu.matmul %16, %17, %cst_12 {dimension_numbers = #tpu.dot_dimension_numbers<[1], [0], [0], [1], [0, 0, 1, 1], [], []>} : vector<16x3xbf16>, vector<3x1452xbf16>, vector<16x1452xf32> -> vector<16x1452xf32>
    %19 = arith.addf %14, %18 : vector<16x1452xf32>
    %c0_13 = arith.constant 0 : index
    %c0_14 = arith.constant 0 : index
    %20 = vector.load %arg2[%c0_13, %c0_14] : memref<16x1xf32, #tpu.memory_space<vmem>>, vector<16x1xf32>
    %21 = vector.broadcast %20 : vector<16x1xf32> to vector<16x1452xf32>
    %22 = arith.addf %19, %21 : vector<16x1452xf32>
    %cst_15 = arith.constant 0.000000e+00 : f32
    %23 = vector.broadcast %cst_15 : f32 to vector<16x1452xf32>
    %24 = arith.maximumf %22, %23 : vector<16x1452xf32>
    %25 = vector.extract_strided_slice %24 {offsets = [0, 0], sizes = [16, 1394], strides = [1, 1]} : vector<16x1452xf32> to vector<16x1394xf32>
    %26 = vector.extract_strided_slice %24 {offsets = [0, 2], sizes = [16, 1394], strides = [1, 1]} : vector<16x1452xf32> to vector<16x1394xf32>
    %27 = arith.maximumf %25, %26 : vector<16x1394xf32>
    %28 = vector.extract_strided_slice %24 {offsets = [0, 56], sizes = [16, 1394], strides = [1, 1]} : vector<16x1452xf32> to vector<16x1394xf32>
    %29 = arith.maximumf %27, %28 : vector<16x1394xf32>
    %30 = vector.extract_strided_slice %24 {offsets = [0, 58], sizes = [16, 1394], strides = [1, 1]} : vector<16x1452xf32> to vector<16x1394xf32>
    %31 = arith.maximumf %29, %30 : vector<16x1394xf32>
    %32 = arith.truncf %31 : vector<16x1394xf32> to vector<16x1394xbf16>
    %c0_16 = arith.constant 0 : index
    %c0_17 = arith.constant 0 : index
    %c0_18 = arith.constant 0 : index
    %33 = vector.load %arg3[%c0_16, %c0_17, %c0_18] : memref<4x32x16xbf16, #tpu.memory_space<vmem>>, vector<1x32x16xbf16>
    %34 = vector.shape_cast %33 : vector<1x32x16xbf16> to vector<32x16xbf16>
    %35 = vector.extract_strided_slice %32 {offsets = [0, 0], sizes = [16, 1278], strides = [1, 1]} : vector<16x1394xbf16> to vector<16x1278xbf16>
    %cst_19 = arith.constant dense<0.000000e+00> : vector<32x1278xf32>
    %36 = tpu.matmul %34, %35, %cst_19 {dimension_numbers = #tpu.dot_dimension_numbers<[1], [0], [0], [1], [0, 0, 1, 1], [], []>} : vector<32x16xbf16>, vector<16x1278xbf16>, vector<32x1278xf32> -> vector<32x1278xf32>
    %c1_20 = arith.constant 1 : index
    %c0_21 = arith.constant 0 : index
    %c0_22 = arith.constant 0 : index
    %37 = vector.load %arg3[%c1_20, %c0_21, %c0_22] : memref<4x32x16xbf16, #tpu.memory_space<vmem>>, vector<1x32x16xbf16>
    %38 = vector.shape_cast %37 : vector<1x32x16xbf16> to vector<32x16xbf16>
    %39 = vector.extract_strided_slice %32 {offsets = [0, 4], sizes = [16, 1278], strides = [1, 1]} : vector<16x1394xbf16> to vector<16x1278xbf16>
    %cst_23 = arith.constant dense<0.000000e+00> : vector<32x1278xf32>
    %40 = tpu.matmul %38, %39, %cst_23 {dimension_numbers = #tpu.dot_dimension_numbers<[1], [0], [0], [1], [0, 0, 1, 1], [], []>} : vector<32x16xbf16>, vector<16x1278xbf16>, vector<32x1278xf32> -> vector<32x1278xf32>
    %41 = arith.addf %36, %40 : vector<32x1278xf32>
    %c2_24 = arith.constant 2 : index
    %c0_25 = arith.constant 0 : index
    %c0_26 = arith.constant 0 : index
    %42 = vector.load %arg3[%c2_24, %c0_25, %c0_26] : memref<4x32x16xbf16, #tpu.memory_space<vmem>>, vector<1x32x16xbf16>
    %43 = vector.shape_cast %42 : vector<1x32x16xbf16> to vector<32x16xbf16>
    %44 = vector.extract_strided_slice %32 {offsets = [0, 112], sizes = [16, 1278], strides = [1, 1]} : vector<16x1394xbf16> to vector<16x1278xbf16>
    %cst_27 = arith.constant dense<0.000000e+00> : vector<32x1278xf32>
    %45 = tpu.matmul %43, %44, %cst_27 {dimension_numbers = #tpu.dot_dimension_numbers<[1], [0], [0], [1], [0, 0, 1, 1], [], []>} : vector<32x16xbf16>, vector<16x1278xbf16>, vector<32x1278xf32> -> vector<32x1278xf32>
    %46 = arith.addf %41, %45 : vector<32x1278xf32>
    %c3_28 = arith.constant 3 : index
    %c0_29 = arith.constant 0 : index
    %c0_30 = arith.constant 0 : index
    %47 = vector.load %arg3[%c3_28, %c0_29, %c0_30] : memref<4x32x16xbf16, #tpu.memory_space<vmem>>, vector<1x32x16xbf16>
    %48 = vector.shape_cast %47 : vector<1x32x16xbf16> to vector<32x16xbf16>
    %49 = vector.extract_strided_slice %32 {offsets = [0, 116], sizes = [16, 1278], strides = [1, 1]} : vector<16x1394xbf16> to vector<16x1278xbf16>
    %cst_31 = arith.constant dense<0.000000e+00> : vector<32x1278xf32>
    %50 = tpu.matmul %48, %49, %cst_31 {dimension_numbers = #tpu.dot_dimension_numbers<[1], [0], [0], [1], [0, 0, 1, 1], [], []>} : vector<32x16xbf16>, vector<16x1278xbf16>, vector<32x1278xf32> -> vector<32x1278xf32>
    %51 = arith.addf %46, %50 : vector<32x1278xf32>
    %c0_32 = arith.constant 0 : index
    %c0_33 = arith.constant 0 : index
    %52 = vector.load %arg4[%c0_32, %c0_33] : memref<32x1xf32, #tpu.memory_space<vmem>>, vector<32x1xf32>
    %53 = vector.broadcast %52 : vector<32x1xf32> to vector<32x1278xf32>
    %54 = arith.addf %51, %53 : vector<32x1278xf32>
    %cst_34 = arith.constant 0.000000e+00 : f32
    %55 = vector.broadcast %cst_34 : f32 to vector<32x1278xf32>
    %56 = arith.maximumf %54, %55 : vector<32x1278xf32>
    %57 = vector.extract_strided_slice %56 {offsets = [0, 0], sizes = [32, 1162], strides = [1, 1]} : vector<32x1278xf32> to vector<32x1162xf32>
    %58 = vector.extract_strided_slice %56 {offsets = [0, 4], sizes = [32, 1162], strides = [1, 1]} : vector<32x1278xf32> to vector<32x1162xf32>
    %59 = arith.maximumf %57, %58 : vector<32x1162xf32>
    %60 = vector.extract_strided_slice %56 {offsets = [0, 112], sizes = [32, 1162], strides = [1, 1]} : vector<32x1278xf32> to vector<32x1162xf32>
    %61 = arith.maximumf %59, %60 : vector<32x1162xf32>
    %62 = vector.extract_strided_slice %56 {offsets = [0, 116], sizes = [32, 1162], strides = [1, 1]} : vector<32x1278xf32> to vector<32x1162xf32>
    %63 = arith.maximumf %61, %62 : vector<32x1162xf32>
    %64 = arith.truncf %63 : vector<32x1162xf32> to vector<32x1162xbf16>
    %c0_35 = arith.constant 0 : index
    %c0_36 = arith.constant 0 : index
    %c0_37 = arith.constant 0 : index
    %65 = vector.load %arg5[%c0_35, %c0_36, %c0_37] : memref<4x64x32xbf16, #tpu.memory_space<vmem>>, vector<1x64x32xbf16>
    %66 = vector.shape_cast %65 : vector<1x64x32xbf16> to vector<64x32xbf16>
    %67 = vector.extract_strided_slice %64 {offsets = [0, 0], sizes = [32, 930], strides = [1, 1]} : vector<32x1162xbf16> to vector<32x930xbf16>
    %cst_38 = arith.constant dense<0.000000e+00> : vector<64x930xf32>
    %68 = tpu.matmul %66, %67, %cst_38 {dimension_numbers = #tpu.dot_dimension_numbers<[1], [0], [0], [1], [0, 0, 1, 1], [], []>} : vector<64x32xbf16>, vector<32x930xbf16>, vector<64x930xf32> -> vector<64x930xf32>
    %c1_39 = arith.constant 1 : index
    %c0_40 = arith.constant 0 : index
    %c0_41 = arith.constant 0 : index
    %69 = vector.load %arg5[%c1_39, %c0_40, %c0_41] : memref<4x64x32xbf16, #tpu.memory_space<vmem>>, vector<1x64x32xbf16>
    %70 = vector.shape_cast %69 : vector<1x64x32xbf16> to vector<64x32xbf16>
    %71 = vector.extract_strided_slice %64 {offsets = [0, 8], sizes = [32, 930], strides = [1, 1]} : vector<32x1162xbf16> to vector<32x930xbf16>
    %cst_42 = arith.constant dense<0.000000e+00> : vector<64x930xf32>
    %72 = tpu.matmul %70, %71, %cst_42 {dimension_numbers = #tpu.dot_dimension_numbers<[1], [0], [0], [1], [0, 0, 1, 1], [], []>} : vector<64x32xbf16>, vector<32x930xbf16>, vector<64x930xf32> -> vector<64x930xf32>
    %73 = arith.addf %68, %72 : vector<64x930xf32>
    %c2_43 = arith.constant 2 : index
    %c0_44 = arith.constant 0 : index
    %c0_45 = arith.constant 0 : index
    %74 = vector.load %arg5[%c2_43, %c0_44, %c0_45] : memref<4x64x32xbf16, #tpu.memory_space<vmem>>, vector<1x64x32xbf16>
    %75 = vector.shape_cast %74 : vector<1x64x32xbf16> to vector<64x32xbf16>
    %76 = vector.extract_strided_slice %64 {offsets = [0, 224], sizes = [32, 930], strides = [1, 1]} : vector<32x1162xbf16> to vector<32x930xbf16>
    %cst_46 = arith.constant dense<0.000000e+00> : vector<64x930xf32>
    %77 = tpu.matmul %75, %76, %cst_46 {dimension_numbers = #tpu.dot_dimension_numbers<[1], [0], [0], [1], [0, 0, 1, 1], [], []>} : vector<64x32xbf16>, vector<32x930xbf16>, vector<64x930xf32> -> vector<64x930xf32>
    %78 = arith.addf %73, %77 : vector<64x930xf32>
    %c3_47 = arith.constant 3 : index
    %c0_48 = arith.constant 0 : index
    %c0_49 = arith.constant 0 : index
    %79 = vector.load %arg5[%c3_47, %c0_48, %c0_49] : memref<4x64x32xbf16, #tpu.memory_space<vmem>>, vector<1x64x32xbf16>
    %80 = vector.shape_cast %79 : vector<1x64x32xbf16> to vector<64x32xbf16>
    %81 = vector.extract_strided_slice %64 {offsets = [0, 232], sizes = [32, 930], strides = [1, 1]} : vector<32x1162xbf16> to vector<32x930xbf16>
    %cst_50 = arith.constant dense<0.000000e+00> : vector<64x930xf32>
    %82 = tpu.matmul %80, %81, %cst_50 {dimension_numbers = #tpu.dot_dimension_numbers<[1], [0], [0], [1], [0, 0, 1, 1], [], []>} : vector<64x32xbf16>, vector<32x930xbf16>, vector<64x930xf32> -> vector<64x930xf32>
    %83 = arith.addf %78, %82 : vector<64x930xf32>
    %c0_51 = arith.constant 0 : index
    %c0_52 = arith.constant 0 : index
    %84 = vector.load %arg6[%c0_51, %c0_52] : memref<64x1xf32, #tpu.memory_space<vmem>>, vector<64x1xf32>
    %85 = vector.broadcast %84 : vector<64x1xf32> to vector<64x930xf32>
    %86 = arith.addf %83, %85 : vector<64x930xf32>
    %cst_53 = arith.constant 0.000000e+00 : f32
    %87 = vector.broadcast %cst_53 : f32 to vector<64x930xf32>
    %88 = arith.maximumf %86, %87 : vector<64x930xf32>
    %89 = vector.extract_strided_slice %88 {offsets = [0, 0], sizes = [64, 2], strides = [1, 1]} : vector<64x930xf32> to vector<64x2xf32>
    %c0_54 = arith.constant 0 : index
    %c0_55 = arith.constant 0 : index
    %90 = vector.load %arg17[%c0_54, %c0_55] : memref<1600x2xf32, #tpu.memory_space<vmem>>, vector<64x2xf32>
    tpu.vector_store %arg17[%c0_54, %c0_55], %89 {strides = array<i32>} : memref<1600x2xf32, #tpu.memory_space<vmem>>, vector<64x2xf32>,
    %91 = vector.extract_strided_slice %88 {offsets = [0, 8], sizes = [64, 2], strides = [1, 1]} : vector<64x930xf32> to vector<64x2xf32>
    %c64 = arith.constant 64 : index
    %c0_56 = arith.constant 0 : index
    %92 = vector.load %arg17[%c64, %c0_56] : memref<1600x2xf32, #tpu.memory_space<vmem>>, vector<64x2xf32>
    tpu.vector_store %arg17[%c64, %c0_56], %91 {strides = array<i32>} : memref<1600x2xf32, #tpu.memory_space<vmem>>, vector<64x2xf32>,
    %93 = vector.extract_strided_slice %88 {offsets = [0, 16], sizes = [64, 2], strides = [1, 1]} : vector<64x930xf32> to vector<64x2xf32>
    %c128 = arith.constant 128 : index
    %c0_57 = arith.constant 0 : index
    %94 = vector.load %arg17[%c128, %c0_57] : memref<1600x2xf32, #tpu.memory_space<vmem>>, vector<64x2xf32>
    tpu.vector_store %arg17[%c128, %c0_57], %93 {strides = array<i32>} : memref<1600x2xf32, #tpu.memory_space<vmem>>, vector<64x2xf32>,
    %95 = vector.extract_strided_slice %88 {offsets = [0, 24], sizes = [64, 2], strides = [1, 1]} : vector<64x930xf32> to vector<64x2xf32>
    %c192 = arith.constant 192 : index
    %c0_58 = arith.constant 0 : index
    %96 = vector.load %arg17[%c192, %c0_58] : memref<1600x2xf32, #tpu.memory_space<vmem>>, vector<64x2xf32>
    tpu.vector_store %arg17[%c192, %c0_58], %95 {strides = array<i32>} : memref<1600x2xf32, #tpu.memory_space<vmem>>, vector<64x2xf32>,
    %97 = vector.extract_strided_slice %88 {offsets = [0, 32], sizes = [64, 2], strides = [1, 1]} : vector<64x930xf32> to vector<64x2xf32>
    %c256 = arith.constant 256 : index
    %c0_59 = arith.constant 0 : index
    %98 = vector.load %arg17[%c256, %c0_59] : memref<1600x2xf32, #tpu.memory_space<vmem>>, vector<64x2xf32>
    tpu.vector_store %arg17[%c256, %c0_59], %97 {strides = array<i32>} : memref<1600x2xf32, #tpu.memory_space<vmem>>, vector<64x2xf32>,
    %99 = vector.extract_strided_slice %88 {offsets = [0, 224], sizes = [64, 2], strides = [1, 1]} : vector<64x930xf32> to vector<64x2xf32>
    %c320 = arith.constant 320 : index
    %c0_60 = arith.constant 0 : index
    %100 = vector.load %arg17[%c320, %c0_60] : memref<1600x2xf32, #tpu.memory_space<vmem>>, vector<64x2xf32>
    tpu.vector_store %arg17[%c320, %c0_60], %99 {strides = array<i32>} : memref<1600x2xf32, #tpu.memory_space<vmem>>, vector<64x2xf32>,
    %101 = vector.extract_strided_slice %88 {offsets = [0, 232], sizes = [64, 2], strides = [1, 1]} : vector<64x930xf32> to vector<64x2xf32>
    %c384 = arith.constant 384 : index
    %c0_61 = arith.constant 0 : index
    %102 = vector.load %arg17[%c384, %c0_61] : memref<1600x2xf32, #tpu.memory_space<vmem>>, vector<64x2xf32>
    tpu.vector_store %arg17[%c384, %c0_61], %101 {strides = array<i32>} : memref<1600x2xf32, #tpu.memory_space<vmem>>, vector<64x2xf32>,
    %103 = vector.extract_strided_slice %88 {offsets = [0, 240], sizes = [64, 2], strides = [1, 1]} : vector<64x930xf32> to vector<64x2xf32>
    %c448 = arith.constant 448 : index
    %c0_62 = arith.constant 0 : index
    %104 = vector.load %arg17[%c448, %c0_62] : memref<1600x2xf32, #tpu.memory_space<vmem>>, vector<64x2xf32>
    tpu.vector_store %arg17[%c448, %c0_62], %103 {strides = array<i32>} : memref<1600x2xf32, #tpu.memory_space<vmem>>, vector<64x2xf32>,
    %105 = vector.extract_strided_slice %88 {offsets = [0, 248], sizes = [64, 2], strides = [1, 1]} : vector<64x930xf32> to vector<64x2xf32>
    %c512 = arith.constant 512 : index
    %c0_63 = arith.constant 0 : index
    %106 = vector.load %arg17[%c512, %c0_63] : memref<1600x2xf32, #tpu.memory_space<vmem>>, vector<64x2xf32>
    tpu.vector_store %arg17[%c512, %c0_63], %105 {strides = array<i32>} : memref<1600x2xf32, #tpu.memory_space<vmem>>, vector<64x2xf32>,
    %107 = vector.extract_strided_slice %88 {offsets = [0, 256], sizes = [64, 2], strides = [1, 1]} : vector<64x930xf32> to vector<64x2xf32>
    %c576 = arith.constant 576 : index
    %c0_64 = arith.constant 0 : index
    %108 = vector.load %arg17[%c576, %c0_64] : memref<1600x2xf32, #tpu.memory_space<vmem>>, vector<64x2xf32>
    tpu.vector_store %arg17[%c576, %c0_64], %107 {strides = array<i32>} : memref<1600x2xf32, #tpu.memory_space<vmem>>, vector<64x2xf32>,
    %109 = vector.extract_strided_slice %88 {offsets = [0, 448], sizes = [64, 2], strides = [1, 1]} : vector<64x930xf32> to vector<64x2xf32>
    %c640 = arith.constant 640 : index
    %c0_65 = arith.constant 0 : index
    %110 = vector.load %arg17[%c640, %c0_65] : memref<1600x2xf32, #tpu.memory_space<vmem>>, vector<64x2xf32>
    tpu.vector_store %arg17[%c640, %c0_65], %109 {strides = array<i32>} : memref<1600x2xf32, #tpu.memory_space<vmem>>, vector<64x2xf32>,
    %111 = vector.extract_strided_slice %88 {offsets = [0, 456], sizes = [64, 2], strides = [1, 1]} : vector<64x930xf32> to vector<64x2xf32>
    %c704 = arith.constant 704 : index
    %c0_66 = arith.constant 0 : index
    %112 = vector.load %arg17[%c704, %c0_66] : memref<1600x2xf32, #tpu.memory_space<vmem>>, vector<64x2xf32>
    tpu.vector_store %arg17[%c704, %c0_66], %111 {strides = array<i32>} : memref<1600x2xf32, #tpu.memory_space<vmem>>, vector<64x2xf32>,
    %113 = vector.extract_strided_slice %88 {offsets = [0, 464], sizes = [64, 2], strides = [1, 1]} : vector<64x930xf32> to vector<64x2xf32>
    %c768 = arith.constant 768 : index
    %c0_67 = arith.constant 0 : index
    %114 = vector.load %arg17[%c768, %c0_67] : memref<1600x2xf32, #tpu.memory_space<vmem>>, vector<64x2xf32>
    tpu.vector_store %arg17[%c768, %c0_67], %113 {strides = array<i32>} : memref<1600x2xf32, #tpu.memory_space<vmem>>, vector<64x2xf32>,
    %115 = vector.extract_strided_slice %88 {offsets = [0, 472], sizes = [64, 2], strides = [1, 1]} : vector<64x930xf32> to vector<64x2xf32>
    %c832 = arith.constant 832 : index
    %c0_68 = arith.constant 0 : index
    %116 = vector.load %arg17[%c832, %c0_68] : memref<1600x2xf32, #tpu.memory_space<vmem>>, vector<64x2xf32>
    tpu.vector_store %arg17[%c832, %c0_68], %115 {strides = array<i32>} : memref<1600x2xf32, #tpu.memory_space<vmem>>, vector<64x2xf32>,
    %117 = vector.extract_strided_slice %88 {offsets = [0, 480], sizes = [64, 2], strides = [1, 1]} : vector<64x930xf32> to vector<64x2xf32>
    %c896 = arith.constant 896 : index
    %c0_69 = arith.constant 0 : index
    %118 = vector.load %arg17[%c896, %c0_69] : memref<1600x2xf32, #tpu.memory_space<vmem>>, vector<64x2xf32>
    tpu.vector_store %arg17[%c896, %c0_69], %117 {strides = array<i32>} : memref<1600x2xf32, #tpu.memory_space<vmem>>, vector<64x2xf32>,
    %119 = vector.extract_strided_slice %88 {offsets = [0, 672], sizes = [64, 2], strides = [1, 1]} : vector<64x930xf32> to vector<64x2xf32>
    %c960 = arith.constant 960 : index
    %c0_70 = arith.constant 0 : index
    %120 = vector.load %arg17[%c960, %c0_70] : memref<1600x2xf32, #tpu.memory_space<vmem>>, vector<64x2xf32>
    tpu.vector_store %arg17[%c960, %c0_70], %119 {strides = array<i32>} : memref<1600x2xf32, #tpu.memory_space<vmem>>, vector<64x2xf32>,
    %121 = vector.extract_strided_slice %88 {offsets = [0, 680], sizes = [64, 2], strides = [1, 1]} : vector<64x930xf32> to vector<64x2xf32>
    %c1024 = arith.constant 1024 : index
    %c0_71 = arith.constant 0 : index
    %122 = vector.load %arg17[%c1024, %c0_71] : memref<1600x2xf32, #tpu.memory_space<vmem>>, vector<64x2xf32>
    tpu.vector_store %arg17[%c1024, %c0_71], %121 {strides = array<i32>} : memref<1600x2xf32, #tpu.memory_space<vmem>>, vector<64x2xf32>,
    %123 = vector.extract_strided_slice %88 {offsets = [0, 688], sizes = [64, 2], strides = [1, 1]} : vector<64x930xf32> to vector<64x2xf32>
    %c1088 = arith.constant 1088 : index
    %c0_72 = arith.constant 0 : index
    %124 = vector.load %arg17[%c1088, %c0_72] : memref<1600x2xf32, #tpu.memory_space<vmem>>, vector<64x2xf32>
    tpu.vector_store %arg17[%c1088, %c0_72], %123 {strides = array<i32>} : memref<1600x2xf32, #tpu.memory_space<vmem>>, vector<64x2xf32>,
    %125 = vector.extract_strided_slice %88 {offsets = [0, 696], sizes = [64, 2], strides = [1, 1]} : vector<64x930xf32> to vector<64x2xf32>
    %c1152 = arith.constant 1152 : index
    %c0_73 = arith.constant 0 : index
    %126 = vector.load %arg17[%c1152, %c0_73] : memref<1600x2xf32, #tpu.memory_space<vmem>>, vector<64x2xf32>
    tpu.vector_store %arg17[%c1152, %c0_73], %125 {strides = array<i32>} : memref<1600x2xf32, #tpu.memory_space<vmem>>, vector<64x2xf32>,
    %127 = vector.extract_strided_slice %88 {offsets = [0, 704], sizes = [64, 2], strides = [1, 1]} : vector<64x930xf32> to vector<64x2xf32>
    %c1216 = arith.constant 1216 : index
    %c0_74 = arith.constant 0 : index
    %128 = vector.load %arg17[%c1216, %c0_74] : memref<1600x2xf32, #tpu.memory_space<vmem>>, vector<64x2xf32>
    tpu.vector_store %arg17[%c1216, %c0_74], %127 {strides = array<i32>} : memref<1600x2xf32, #tpu.memory_space<vmem>>, vector<64x2xf32>,
    %129 = vector.extract_strided_slice %88 {offsets = [0, 896], sizes = [64, 2], strides = [1, 1]} : vector<64x930xf32> to vector<64x2xf32>
    %c1280 = arith.constant 1280 : index
    %c0_75 = arith.constant 0 : index
    %130 = vector.load %arg17[%c1280, %c0_75] : memref<1600x2xf32, #tpu.memory_space<vmem>>, vector<64x2xf32>
    tpu.vector_store %arg17[%c1280, %c0_75], %129 {strides = array<i32>} : memref<1600x2xf32, #tpu.memory_space<vmem>>, vector<64x2xf32>,
    %131 = vector.extract_strided_slice %88 {offsets = [0, 904], sizes = [64, 2], strides = [1, 1]} : vector<64x930xf32> to vector<64x2xf32>
    %c1344 = arith.constant 1344 : index
    %c0_76 = arith.constant 0 : index
    %132 = vector.load %arg17[%c1344, %c0_76] : memref<1600x2xf32, #tpu.memory_space<vmem>>, vector<64x2xf32>
    tpu.vector_store %arg17[%c1344, %c0_76], %131 {strides = array<i32>} : memref<1600x2xf32, #tpu.memory_space<vmem>>, vector<64x2xf32>,
    %133 = vector.extract_strided_slice %88 {offsets = [0, 912], sizes = [64, 2], strides = [1, 1]} : vector<64x930xf32> to vector<64x2xf32>
    %c1408 = arith.constant 1408 : index
    %c0_77 = arith.constant 0 : index
    %134 = vector.load %arg17[%c1408, %c0_77] : memref<1600x2xf32, #tpu.memory_space<vmem>>, vector<64x2xf32>
    tpu.vector_store %arg17[%c1408, %c0_77], %133 {strides = array<i32>} : memref<1600x2xf32, #tpu.memory_space<vmem>>, vector<64x2xf32>,
    %135 = vector.extract_strided_slice %88 {offsets = [0, 920], sizes = [64, 2], strides = [1, 1]} : vector<64x930xf32> to vector<64x2xf32>
    %c1472 = arith.constant 1472 : index
    %c0_78 = arith.constant 0 : index
    %136 = vector.load %arg17[%c1472, %c0_78] : memref<1600x2xf32, #tpu.memory_space<vmem>>, vector<64x2xf32>
    tpu.vector_store %arg17[%c1472, %c0_78], %135 {strides = array<i32>} : memref<1600x2xf32, #tpu.memory_space<vmem>>, vector<64x2xf32>,
    %137 = vector.extract_strided_slice %88 {offsets = [0, 928], sizes = [64, 2], strides = [1, 1]} : vector<64x930xf32> to vector<64x2xf32>
    %c1536 = arith.constant 1536 : index
    %c0_79 = arith.constant 0 : index
    %138 = vector.load %arg17[%c1536, %c0_79] : memref<1600x2xf32, #tpu.memory_space<vmem>>, vector<64x2xf32>
    tpu.vector_store %arg17[%c1536, %c0_79], %137 {strides = array<i32>} : memref<1600x2xf32, #tpu.memory_space<vmem>>, vector<64x2xf32>,
    tpu.wait_dma2 semaphore(%arg18 : memref<!tpu.dma_semaphore, #tpu.memory_space<semaphore_mem>>) src(%arg7 : memref<512x1600xbf16, #tpu.memory_space<any>>) dst(%arg16 : memref<512x1600xbf16, #tpu.memory_space<vmem>>)
    %c0_80 = arith.constant 0 : index
    %c0_81 = arith.constant 0 : index
    %139 = vector.load %arg17[%c0_80, %c0_81] : memref<1600x2xf32, #tpu.memory_space<vmem>>, vector<1600x2xf32>
    %140 = arith.truncf %139 : vector<1600x2xf32> to vector<1600x2xbf16>
    %c0_82 = arith.constant 0 : index
    %c0_83 = arith.constant 0 : index
    %141 = vector.load %arg16[%c0_82, %c0_83] : memref<512x1600xbf16, #tpu.memory_space<vmem>>, vector<512x1600xbf16>
    %cst_84 = arith.constant dense<0.000000e+00> : vector<512x2xf32>
    %142 = tpu.matmul %141, %140, %cst_84 {dimension_numbers = #tpu.dot_dimension_numbers<[1], [0], [0], [1], [0, 0, 1, 1], [], []>} : vector<512x1600xbf16>, vector<1600x2xbf16>, vector<512x2xf32> -> vector<512x2xf32>
    %c0_85 = arith.constant 0 : index
    %c0_86 = arith.constant 0 : index
    %143 = vector.load %arg8[%c0_85, %c0_86] : memref<512x1xf32, #tpu.memory_space<vmem>>, vector<512x1xf32>
    %144 = vector.broadcast %143 : vector<512x1xf32> to vector<512x2xf32>
    %145 = arith.addf %142, %144 : vector<512x2xf32>
    %cst_87 = arith.constant 0.000000e+00 : f32
    %146 = vector.broadcast %cst_87 : f32 to vector<512x2xf32>
    %147 = arith.maximumf %145, %146 : vector<512x2xf32>
    %c0_88 = arith.constant 0 : index
    %c0_89 = arith.constant 0 : index
    %148 = vector.load %arg9[%c0_88, %c0_89] : memref<256x512xbf16, #tpu.memory_space<vmem>>, vector<256x512xbf16>
    %149 = arith.truncf %147 : vector<512x2xf32> to vector<512x2xbf16>
    %cst_90 = arith.constant dense<0.000000e+00> : vector<256x2xf32>
    %150 = tpu.matmul %148, %149, %cst_90 {dimension_numbers = #tpu.dot_dimension_numbers<[1], [0], [0], [1], [0, 0, 1, 1], [], []>} : vector<256x512xbf16>, vector<512x2xbf16>, vector<256x2xf32> -> vector<256x2xf32>
    %c0_91 = arith.constant 0 : index
    %c0_92 = arith.constant 0 : index
    %151 = vector.load %arg10[%c0_91, %c0_92] : memref<256x1xf32, #tpu.memory_space<vmem>>, vector<256x1xf32>
    %152 = vector.broadcast %151 : vector<256x1xf32> to vector<256x2xf32>
    %153 = arith.addf %150, %152 : vector<256x2xf32>
    %cst_93 = arith.constant 0.000000e+00 : f32
    %154 = vector.broadcast %cst_93 : f32 to vector<256x2xf32>
    %155 = arith.maximumf %153, %154 : vector<256x2xf32>
    %c0_94 = arith.constant 0 : index
    %c0_95 = arith.constant 0 : index
    %156 = vector.load %arg11[%c0_94, %c0_95] : memref<128x256xbf16, #tpu.memory_space<vmem>>, vector<128x256xbf16>
    %157 = arith.truncf %155 : vector<256x2xf32> to vector<256x2xbf16>
    %cst_96 = arith.constant dense<0.000000e+00> : vector<128x2xf32>
    %158 = tpu.matmul %156, %157, %cst_96 {dimension_numbers = #tpu.dot_dimension_numbers<[1], [0], [0], [1], [0, 0, 1, 1], [], []>} : vector<128x256xbf16>, vector<256x2xbf16>, vector<128x2xf32> -> vector<128x2xf32>
    %c0_97 = arith.constant 0 : index
    %c0_98 = arith.constant 0 : index
    %159 = vector.load %arg12[%c0_97, %c0_98] : memref<128x1xf32, #tpu.memory_space<vmem>>, vector<128x1xf32>
    %160 = vector.broadcast %159 : vector<128x1xf32> to vector<128x2xf32>
    %161 = arith.addf %158, %160 : vector<128x2xf32>
    %cst_99 = arith.constant 0.000000e+00 : f32
    %162 = vector.broadcast %cst_99 : f32 to vector<128x2xf32>
    %163 = arith.maximumf %161, %162 : vector<128x2xf32>
    %c0_100 = arith.constant 0 : index
    %c0_101 = arith.constant 0 : index
    %164 = vector.load %arg13[%c0_100, %c0_101] : memref<8x128xbf16, #tpu.memory_space<vmem>>, vector<8x128xbf16>
    %165 = arith.truncf %163 : vector<128x2xf32> to vector<128x2xbf16>
    %cst_102 = arith.constant dense<0.000000e+00> : vector<8x2xf32>
    %166 = tpu.matmul %164, %165, %cst_102 {dimension_numbers = #tpu.dot_dimension_numbers<[1], [0], [0], [1], [0, 0, 1, 1], [], []>} : vector<8x128xbf16>, vector<128x2xbf16>, vector<8x2xf32> -> vector<8x2xf32>
    %c0_103 = arith.constant 0 : index
    %c0_104 = arith.constant 0 : index
    %167 = vector.load %arg14[%c0_103, %c0_104] : memref<8x1xf32, #tpu.memory_space<vmem>>, vector<8x1xf32>
    %168 = vector.broadcast %167 : vector<8x1xf32> to vector<8x2xf32>
    %169 = arith.addf %166, %168 : vector<8x2xf32>
    %c0_105 = arith.constant 0 : index
    %c0_106 = arith.constant 0 : index
    %170 = vector.load %arg15[%c0_105, %c0_106] : memref<8x2xf32, #tpu.memory_space<vmem>>, vector<8x2xf32>
    tpu.vector_store %arg15[%c0_105, %c0_106], %169 {strides = array<i32>} : memref<8x2xf32, #tpu.memory_space<vmem>>, vector<8x2xf32>,
    return
  }
}

</mosaic_0001>

<llo_original>
// kernel: forward.1
$region0: #{forward.1}
  #allocation0 [shape = 'u32[]', space=smem, size = 0x4, offset = 0x4, fixed_abs, tag = 'smem constant byte address 0x4 - core index']
  #allocation1 [shape = 'u32[72,128]{1,0:T(1,128)}', space=vmem, size = 0x9000, scoped, tag = 'internal scratch']
  #allocation2 [shape = 'bf16[512,1600]{1,0:T(8,128)(2,1)}', space=vmem, size = 0x1a0000, scoped, tag = 'scratch operand']
  #allocation3 [shape = 'f32[1600,2]{1,0:T(8,128)}', space=vmem, size = 0xc8000, scoped, tag = 'scratch operand']
  #allocation4 [shape = 's32[1]{0}', space=sflag, size = 0x4, scoped, tag = 'scratch operand']
  #allocation5 [shape = 's32[]', space=sflag, size = 0x4, offset = 0, fixed_abs, tag = 'sflag constant byte address 0x0 - dummy sync flag']
  %s0 = inlined_call_operand.vmem [shape: bf16[3,1568], index: 0, kind: input, shape index: {}]
  %s1 = inlined_call_operand.vmem [shape: bf16[4,16,3], index: 1, kind: input, shape index: {}]
  %s2 = inlined_call_operand.vmem [shape: f32[16,1], index: 2, kind: input, shape index: {}]
  %s3 = inlined_call_operand.vmem [shape: bf16[4,32,16], index: 3, kind: input, shape index: {}]
  %s4 = inlined_call_operand.vmem [shape: f32[32,1], index: 4, kind: input, shape index: {}]
  %s5 = inlined_call_operand.vmem [shape: bf16[4,64,32], index: 5, kind: input, shape index: {}]
  %s6 = inlined_call_operand.vmem [shape: f32[64,1], index: 6, kind: input, shape index: {}]
  %s7 = inlined_call_operand.vmem [shape: bf16[512,1600], index: 7, kind: input, shape index: {}]
  %s8 = inlined_call_operand.vmem [shape: f32[512,1], index: 8, kind: input, shape index: {}]
  %s9 = inlined_call_operand.vmem [shape: bf16[256,512], index: 9, kind: input, shape index: {}]
  %s10 = inlined_call_operand.vmem [shape: f32[256,1], index: 10, kind: input, shape index: {}]
  %s11 = inlined_call_operand.vmem [shape: bf16[128,256], index: 11, kind: input, shape index: {}]
  %s12 = inlined_call_operand.vmem [shape: f32[128,1], index: 12, kind: input, shape index: {}]
  %s13 = inlined_call_operand.vmem [shape: bf16[8,128], index: 13, kind: input, shape index: {}]
  %s14 = inlined_call_operand.vmem [shape: f32[8,1], index: 14, kind: input, shape index: {}]
  %s15 = inlined_call_operand.vmem [shape: f32[8,2], index: 15, kind: output, shape index: {}]
  %s16 = sld [smem:[#allocation0]]
  $region85: #{forward.1} parent=0
    _
  %s18 = ssub.s32 1, %s16
  %s19 = scalar_select 0, %s18, %s16
  // Predicated region
  $region2: #{forward.1} parent=0 // pred_check
    _
  $region3: #{forward.1} parent=0 // pred_check_branch
    %21 = sbr.rel (0) target = $region5
  $region4: #{forward.1} parent=0 // pred_region
    _
  $region5: #{forward.1} parent=0 // pred_fallthru
    _
  // Predicated region
  $region6: #{forward.1} parent=0 // pred_check
    _
  $region7: #{forward.1} parent=0 // pred_check_branch
    %23 = sbr.rel (0) target = $region9
  $region8: #{forward.1} parent=0 // pred_region
    _
  $region9: #{forward.1} parent=0 // pred_fallthru
    _
  // Predicated region
  $region10: #{forward.1} parent=0 // pred_check
    _
  $region11: #{forward.1} parent=0 // pred_check_branch
    %25 = sbr.rel (0) target = $region13
  $region12: #{forward.1} parent=0 // pred_region
    _
  $region13: #{forward.1} parent=0 // pred_fallthru
    _
  // Predicated region
  $region14: #{forward.1} parent=0 // pred_check
    _
  $region15: #{forward.1} parent=0 // pred_check_branch
    %27 = sbr.rel (0) target = $region17
  $region16: #{forward.1} parent=0 // pred_region
    _
  $region17: #{forward.1} parent=0 // pred_fallthru
    _
  // Predicated region
  $region18: #{forward.1} parent=0 // pred_check
    _
  $region19: #{forward.1} parent=0 // pred_check_branch
    %29 = sbr.rel (0) target = $region21
  $region20: #{forward.1} parent=0 // pred_region
    _
  $region21: #{forward.1} parent=0 // pred_fallthru
    _
  // Predicated region
  $region22: #{forward.1} parent=0 // pred_check
    _
  $region23: #{forward.1} parent=0 // pred_check_branch
    %31 = sbr.rel (0) target = $region25
  $region24: #{forward.1} parent=0 // pred_region
    _
  $region25: #{forward.1} parent=0 // pred_fallthru
    _
  // Predicated region
  $region26: #{forward.1} parent=0 // pred_check
    _
  $region27: #{forward.1} parent=0 // pred_check_branch
    %33 = sbr.rel (0) target = $region29
  $region28: #{forward.1} parent=0 // pred_region
    _
  $region29: #{forward.1} parent=0 // pred_fallthru
    _
  // Predicated region
  $region30: #{forward.1} parent=0 // pred_check
    _
  $region31: #{forward.1} parent=0 // pred_check_branch
    %35 = sbr.rel (0) target = $region33
  $region32: #{forward.1} parent=0 // pred_region
    _
  $region33: #{forward.1} parent=0 // pred_fallthru
    _
  // Predicated region
  $region34: #{forward.1} parent=0 // pred_check
    _
  $region35: #{forward.1} parent=0 // pred_check_branch
    %37 = sbr.rel (0) target = $region37
  $region36: #{forward.1} parent=0 // pred_region
    _
  $region37: #{forward.1} parent=0 // pred_fallthru
    _
  // Predicated region
  $region38: #{forward.1} parent=0 // pred_check
    _
  $region39: #{forward.1} parent=0 // pred_check_branch
    %39 = sbr.rel (0) target = $region41
  $region40: #{forward.1} parent=0 // pred_region
    _
  $region41: #{forward.1} parent=0 // pred_fallthru
    _
  // Predicated region
  $region42: #{forward.1} parent=0 // pred_check
    _
  $region43: #{forward.1} parent=0 // pred_check_branch
    %41 = sbr.rel (0) target = $region45
  $region44: #{forward.1} parent=0 // pred_region
    _
  $region45: #{forward.1} parent=0 // pred_fallthru
    _
  // Predicated region
  $region46: #{forward.1} parent=0 // pred_check
    _
  $region47: #{forward.1} parent=0 // pred_check_branch
    %43 = sbr.rel (0) target = $region49
  $region48: #{forward.1} parent=0 // pred_region
    _
  $region49: #{forward.1} parent=0 // pred_fallthru
    _
  // Predicated region
  $region50: #{forward.1} parent=0 // pred_check
    _
  $region51: #{forward.1} parent=0 // pred_check_branch
    %45 = sbr.rel (0) target = $region53
  $region52: #{forward.1} parent=0 // pred_region
    _
  $region53: #{forward.1} parent=0 // pred_fallthru
    _
  // Predicated region
  $region54: #{forward.1} parent=0 // pred_check
    _
  $region55: #{forward.1} parent=0 // pred_check_branch
    %47 = sbr.rel (0) target = $region57
  $region56: #{forward.1} parent=0 // pred_region
    _
  $region57: #{forward.1} parent=0 // pred_fallthru
    _
  // Predicated region
  $region58: #{forward.1} parent=0 // pred_check
    _
  $region59: #{forward.1} parent=0 // pred_check_branch
    %50 = sbr.rel (0) target = $region61
  $region60: #{forward.1} parent=0 // pred_region
    loop: start=0, step=1, limit=1
    $region62: #{forward.1} parent=60 // loop_pre_header
      _
    $region63: #{forward.1} parent=60 // loop_header
      %s52 = sphi 0, %s56
      %p53 = scmp.ge.s32.totalorder %s52, 1
      %s57 = sphi %s7, %s7
      %s58 = sphi [#allocation2], [#allocation2]
    $region64: #{forward.1} parent=60 // loop_header_branch
      %55 = sbr.rel (%p53) target = $region68
    $region65: #{forward.1} parent=60 // loop_body
      %v59 = vld [vmem:[%s57] sm:$0xff]
      %60 = vst [vmem:[%s58] sm:$0xff] %v59
      %v61 = vld [vmem:[%s57 + $0x8] sm:$0xff]
      %62 = vst [vmem:[%s58 + $0x8] sm:$0xff] %v61
      %v63 = vld [vmem:[%s57 + $0x10] sm:$0xff]
      %64 = vst [vmem:[%s58 + $0x10] sm:$0xff] %v63
      %v65 = vld [vmem:[%s57 + $0x18] sm:$0xff]
      %66 = vst [vmem:[%s58 + $0x18] sm:$0xff] %v65
      %v67 = vld [vmem:[%s57 + $0x20] sm:$0xff]
      %68 = vst [vmem:[%s58 + $0x20] sm:$0xff] %v67
      %v69 = vld [vmem:[%s57 + $0x28] sm:$0xff]
      %70 = vst [vmem:[%s58 + $0x28] sm:$0xff] %v69
      %v71 = vld [vmem:[%s57 + $0x30] sm:$0xff]
      %72 = vst [vmem:[%s58 + $0x30] sm:$0xff] %v71
      %v73 = vld [vmem:[%s57 + $0x38] sm:$0xff]
      %74 = vst [vmem:[%s58 + $0x38] sm:$0xff] %v73
      %v75 = vld [vmem:[%s57 + $0x40] sm:$0xff]
      %76 = vst [vmem:[%s58 + $0x40] sm:$0xff] %v75
      %v77 = vld [vmem:[%s57 + $0x48] sm:$0xff]
      %78 = vst [vmem:[%s58 + $0x48] sm:$0xff] %v77
      %v79 = vld [vmem:[%s57 + $0x50] sm:$0xff]
      %80 = vst [vmem:[%s58 + $0x50] sm:$0xff] %v79
      %v81 = vld [vmem:[%s57 + $0x58] sm:$0xff]
      %82 = vst [vmem:[%s58 + $0x58] sm:$0xff] %v81
      %v83 = vld [vmem:[%s57 + $0x60] sm:$0xff]
      %84 = vst [vmem:[%s58 + $0x60] sm:$0xff] %v83
      %v85 = vld [vmem:[%s57 + $0x68] sm:$0xff]
      %86 = vst [vmem:[%s58 + $0x68] sm:$0xff] %v85
      %v87 = vld [vmem:[%s57 + $0x70] sm:$0xff]
      %88 = vst [vmem:[%s58 + $0x70] sm:$0xff] %v87
      %v89 = vld [vmem:[%s57 + $0x78] sm:$0xff]
      %90 = vst [vmem:[%s58 + $0x78] sm:$0xff] %v89
      %v91 = vld [vmem:[%s57 + $0x80] sm:$0xff]
      %92 = vst [vmem:[%s58 + $0x80] sm:$0xff] %v91
      %v93 = vld [vmem:[%s57 + $0x88] sm:$0xff]
      %94 = vst [vmem:[%s58 + $0x88] sm:$0xff] %v93
      %v95 = vld [vmem:[%s57 + $0x90] sm:$0xff]
      %96 = vst [vmem:[%s58 + $0x90] sm:$0xff] %v95
      %v97 = vld [vmem:[%s57 + $0x98] sm:$0xff]
      %98 = vst [vmem:[%s58 + $0x98] sm:$0xff] %v97
      %v99 = vld [vmem:[%s57 + $0xa0] sm:$0xff]
      %100 = vst [vmem:[%s58 + $0xa0] sm:$0xff] %v99
      %v101 = vld [vmem:[%s57 + $0xa8] sm:$0xff]
      %102 = vst [vmem:[%s58 + $0xa8] sm:$0xff] %v101
      %v103 = vld [vmem:[%s57 + $0xb0] sm:$0xff]
      %104 = vst [vmem:[%s58 + $0xb0] sm:$0xff] %v103
      %v105 = vld [vmem:[%s57 + $0xb8] sm:$0xff]
      %106 = vst [vmem:[%s58 + $0xb8] sm:$0xff] %v105
      %v107 = vld [vmem:[%s57 + $0xc0] sm:$0xff]
      %108 = vst [vmem:[%s58 + $0xc0] sm:$0xff] %v107
      %v109 = vld [vmem:[%s57 + $0xc8] sm:$0xff]
      %110 = vst [vmem:[%s58 + $0xc8] sm:$0xff] %v109
      %v111 = vld [vmem:[%s57 + $0xd0] sm:$0xff]
      %112 = vst [vmem:[%s58 + $0xd0] sm:$0xff] %v111
      %v113 = vld [vmem:[%s57 + $0xd8] sm:$0xff]
      %114 = vst [vmem:[%s58 + $0xd8] sm:$0xff] %v113
      %v115 = vld [vmem:[%s57 + $0xe0] sm:$0xff]
      %116 = vst [vmem:[%s58 + $0xe0] sm:$0xff] %v115
      %v117 = vld [vmem:[%s57 + $0xe8] sm:$0xff]
      %118 = vst [vmem:[%s58 + $0xe8] sm:$0xff] %v117
      %v119 = vld [vmem:[%s57 + $0xf0] sm:$0xff]
      %120 = vst [vmem:[%s58 + $0xf0] sm:$0xff] %v119
      %v121 = vld [vmem:[%s57 + $0xf8] sm:$0xff]
      %122 = vst [vmem:[%s58 + $0xf8] sm:$0xff] %v121
      %v123 = vld [vmem:[%s57 + $0x100] sm:$0xff]
      %124 = vst [vmem:[%s58 + $0x100] sm:$0xff] %v123
      %v125 = vld [vmem:[%s57 + $0x108] sm:$0xff]
      %126 = vst [vmem:[%s58 + $0x108] sm:$0xff] %v125
      %v127 = vld [vmem:[%s57 + $0x110] sm:$0xff]
      %128 = vst [vmem:[%s58 + $0x110] sm:$0xff] %v127
      %v129 = vld [vmem:[%s57 + $0x118] sm:$0xff]
      %130 = vst [vmem:[%s58 + $0x118] sm:$0xff] %v129
      %v131 = vld [vmem:[%s57 + $0x120] sm:$0xff]
      %132 = vst [vmem:[%s58 + $0x120] sm:$0xff] %v131
      %v133 = vld [vmem:[%s57 + $0x128] sm:$0xff]
      %134 = vst [vmem:[%s58 + $0x128] sm:$0xff] %v133
      %v135 = vld [vmem:[%s57 + $0x130] sm:$0xff]
      %136 = vst [vmem:[%s58 + $0x130] sm:$0xff] %v135
      %v137 = vld [vmem:[%s57 + $0x138] sm:$0xff]
      %138 = vst [vmem:[%s58 + $0x138] sm:$0xff] %v137
      %v139 = vld [vmem:[%s57 + $0x140] sm:$0xff]
      %140 = vst [vmem:[%s58 + $0x140] sm:$0xff] %v139
      %v141 = vld [vmem:[%s57 + $0x148] sm:$0xff]
      %142 = vst [vmem:[%s58 + $0x148] sm:$0xff] %v141
      %v143 = vld [vmem:[%s57 + $0x150] sm:$0xff]
      %144 = vst [vmem:[%s58 + $0x150] sm:$0xff] %v143
      %v145 = vld [vmem:[%s57 + $0x158] sm:$0xff]
      %146 = vst [vmem:[%s58 + $0x158] sm:$0xff] %v145
      %v147 = vld [vmem:[%s57 + $0x160] sm:$0xff]
      %148 = vst [vmem:[%s58 + $0x160] sm:$0xff] %v147
      %v149 = vld [vmem:[%s57 + $0x168] sm:$0xff]
      %150 = vst [vmem:[%s58 + $0x168] sm:$0xff] %v149
      %v151 = vld [vmem:[%s57 + $0x170] sm:$0xff]
      %152 = vst [vmem:[%s58 + $0x170] sm:$0xff] %v151
      %v153 = vld [vmem:[%s57 + $0x178] sm:$0xff]
      %154 = vst [vmem:[%s58 + $0x178] sm:$0xff] %v153
      %v155 = vld [vmem:[%s57 + $0x180] sm:$0xff]
      %156 = vst [vmem:[%s58 + $0x180] sm:$0xff] %v155
      %v157 = vld [vmem:[%s57 + $0x188] sm:$0xff]
      %158 = vst [vmem:[%s58 + $0x188] sm:$0xff] %v157
      %v159 = vld [vmem:[%s57 + $0x190] sm:$0xff]
      %160 = vst [vmem:[%s58 + $0x190] sm:$0xff] %v159
      %v161 = vld [vmem:[%s57 + $0x198] sm:$0xff]
      %162 = vst [vmem:[%s58 + $0x198] sm:$0xff] %v161
      %v163 = vld [vmem:[%s57 + $0x1a0] sm:$0xff]
      %164 = vst [vmem:[%s58 + $0x1a0] sm:$0xff] %v163
      %v165 = vld [vmem:[%s57 + $0x1a8] sm:$0xff]
      %166 = vst [vmem:[%s58 + $0x1a8] sm:$0xff] %v165
      %v167 = vld [vmem:[%s57 + $0x1b0] sm:$0xff]
      %168 = vst [vmem:[%s58 + $0x1b0] sm:$0xff] %v167
      %v169 = vld [vmem:[%s57 + $0x1b8] sm:$0xff]
      %170 = vst [vmem:[%s58 + $0x1b8] sm:$0xff] %v169
      %v171 = vld [vmem:[%s57 + $0x1c0] sm:$0xff]
      %172 = vst [vmem:[%s58 + $0x1c0] sm:$0xff] %v171
      %v173 = vld [vmem:[%s57 + $0x1c8] sm:$0xff]
      %174 = vst [vmem:[%s58 + $0x1c8] sm:$0xff] %v173
      %v175 = vld [vmem:[%s57 + $0x1d0] sm:$0xff]
      %176 = vst [vmem:[%s58 + $0x1d0] sm:$0xff] %v175
      %v177 = vld [vmem:[%s57 + $0x1d8] sm:$0xff]
      %178 = vst [vmem:[%s58 + $0x1d8] sm:$0xff] %v177
      %v179 = vld [vmem:[%s57 + $0x1e0] sm:$0xff]
      %180 = vst [vmem:[%s58 + $0x1e0] sm:$0xff] %v179
      %v181 = vld [vmem:[%s57 + $0x1e8] sm:$0xff]
      %182 = vst [vmem:[%s58 + $0x1e8] sm:$0xff] %v181
      %v183 = vld [vmem:[%s57 + $0x1f0] sm:$0xff]
      %184 = vst [vmem:[%s58 + $0x1f0] sm:$0xff] %v183
      %v185 = vld [vmem:[%s57 + $0x1f8] sm:$0xff]
      %186 = vst [vmem:[%s58 + $0x1f8] sm:$0xff] %v185
      %v187 = vld [vmem:[%s57 + $0x200] sm:$0xff]
      %188 = vst [vmem:[%s58 + $0x200] sm:$0xff] %v187
      %v189 = vld [vmem:[%s57 + $0x208] sm:$0xff]
      %190 = vst [vmem:[%s58 + $0x208] sm:$0xff] %v189
      %v191 = vld [vmem:[%s57 + $0x210] sm:$0xff]
      %192 = vst [vmem:[%s58 + $0x210] sm:$0xff] %v191
      %v193 = vld [vmem:[%s57 + $0x218] sm:$0xff]
      %194 = vst [vmem:[%s58 + $0x218] sm:$0xff] %v193
      %v195 = vld [vmem:[%s57 + $0x220] sm:$0xff]
      %196 = vst [vmem:[%s58 + $0x220] sm:$0xff] %v195
      %v197 = vld [vmem:[%s57 + $0x228] sm:$0xff]
      %198 = vst [vmem:[%s58 + $0x228] sm:$0xff] %v197
      %v199 = vld [vmem:[%s57 + $0x230] sm:$0xff]
      %200 = vst [vmem:[%s58 + $0x230] sm:$0xff] %v199
      %v201 = vld [vmem:[%s57 + $0x238] sm:$0xff]
      %202 = vst [vmem:[%s58 + $0x238] sm:$0xff] %v201
      %v203 = vld [vmem:[%s57 + $0x240] sm:$0xff]
      %204 = vst [vmem:[%s58 + $0x240] sm:$0xff] %v203
      %v205 = vld [vmem:[%s57 + $0x248] sm:$0xff]
      %206 = vst [vmem:[%s58 + $0x248] sm:$0xff] %v205
      %v207 = vld [vmem:[%s57 + $0x250] sm:$0xff]
      %208 = vst [vmem:[%s58 + $0x250] sm:$0xff] %v207
      %v209 = vld [vmem:[%s57 + $0x258] sm:$0xff]
      %210 = vst [vmem:[%s58 + $0x258] sm:$0xff] %v209
      %v211 = vld [vmem:[%s57 + $0x260] sm:$0xff]
      %212 = vst [vmem:[%s58 + $0x260] sm:$0xff] %v211
      %v213 = vld [vmem:[%s57 + $0x268] sm:$0xff]
      %214 = vst [vmem:[%s58 + $0x268] sm:$0xff] %v213
      %v215 = vld [vmem:[%s57 + $0x270] sm:$0xff]
      %216 = vst [vmem:[%s58 + $0x270] sm:$0xff] %v215
      %v217 = vld [vmem:[%s57 + $0x278] sm:$0xff]
      %218 = vst [vmem:[%s58 + $0x278] sm:$0xff] %v217
      %v219 = vld [vmem:[%s57 + $0x280] sm:$0xff]
      %220 = vst [vmem:[%s58 + $0x280] sm:$0xff] %v219
      %v221 = vld [vmem:[%s57 + $0x288] sm:$0xff]
      %222 = vst [vmem:[%s58 + $0x288] sm:$0xff] %v221
      %v223 = vld [vmem:[%s57 + $0x290] sm:$0xff]
      %224 = vst [vmem:[%s58 + $0x290] sm:$0xff] %v223
      %v225 = vld [vmem:[%s57 + $0x298] sm:$0xff]
      %226 = vst [vmem:[%s58 + $0x298] sm:$0xff] %v225
      %v227 = vld [vmem:[%s57 + $0x2a0] sm:$0xff]
      %228 = vst [vmem:[%s58 + $0x2a0] sm:$0xff] %v227
      %v229 = vld [vmem:[%s57 + $0x2a8] sm:$0xff]
      %230 = vst [vmem:[%s58 + $0x2a8] sm:$0xff] %v229
      %v231 = vld [vmem:[%s57 + $0x2b0] sm:$0xff]
      %232 = vst [vmem:[%s58 + $0x2b0] sm:$0xff] %v231
      %v233 = vld [vmem:[%s57 + $0x2b8] sm:$0xff]
      %234 = vst [vmem:[%s58 + $0x2b8] sm:$0xff] %v233
      %v235 = vld [vmem:[%s57 + $0x2c0] sm:$0xff]
      %236 = vst [vmem:[%s58 + $0x2c0] sm:$0xff] %v235
      %v237 = vld [vmem:[%s57 + $0x2c8] sm:$0xff]
      %238 = vst [vmem:[%s58 + $0x2c8] sm:$0xff] %v237
      %v239 = vld [vmem:[%s57 + $0x2d0] sm:$0xff]
      %240 = vst [vmem:[%s58 + $0x2d0] sm:$0xff] %v239
      %v241 = vld [vmem:[%s57 + $0x2d8] sm:$0xff]
      %242 = vst [vmem:[%s58 + $0x2d8] sm:$0xff] %v241
      %v243 = vld [vmem:[%s57 + $0x2e0] sm:$0xff]
      %244 = vst [vmem:[%s58 + $0x2e0] sm:$0xff] %v243
      %v245 = vld [vmem:[%s57 + $0x2e8] sm:$0xff]
      %246 = vst [vmem:[%s58 + $0x2e8] sm:$0xff] %v245
      %v247 = vld [vmem:[%s57 + $0x2f0] sm:$0xff]
      %248 = vst [vmem:[%s58 + $0x2f0] sm:$0xff] %v247
      %v249 = vld [vmem:[%s57 + $0x2f8] sm:$0xff]
      %250 = vst [vmem:[%s58 + $0x2f8] sm:$0xff] %v249
      %v251 = vld [vmem:[%s57 + $0x300] sm:$0xff]
      %252 = vst [vmem:[%s58 + $0x300] sm:$0xff] %v251
      %v253 = vld [vmem:[%s57 + $0x308] sm:$0xff]
      %254 = vst [vmem:[%s58 + $0x308] sm:$0xff] %v253
      %v255 = vld [vmem:[%s57 + $0x310] sm:$0xff]
      %256 = vst [vmem:[%s58 + $0x310] sm:$0xff] %v255
      %v257 = vld [vmem:[%s57 + $0x318] sm:$0xff]
      %258 = vst [vmem:[%s58 + $0x318] sm:$0xff] %v257
      %v259 = vld [vmem:[%s57 + $0x320] sm:$0xff]
      %260 = vst [vmem:[%s58 + $0x320] sm:$0xff] %v259
      %v261 = vld [vmem:[%s57 + $0x328] sm:$0xff]
      %262 = vst [vmem:[%s58 + $0x328] sm:$0xff] %v261
      %v263 = vld [vmem:[%s57 + $0x330] sm:$0xff]
      %264 = vst [vmem:[%s58 + $0x330] sm:$0xff] %v263
      %v265 = vld [vmem:[%s57 + $0x338] sm:$0xff]
      %266 = vst [vmem:[%s58 + $0x338] sm:$0xff] %v265
      %v267 = vld [vmem:[%s57 + $0x340] sm:$0xff]
      %268 = vst [vmem:[%s58 + $0x340] sm:$0xff] %v267
      %v269 = vld [vmem:[%s57 + $0x348] sm:$0xff]
      %270 = vst [vmem:[%s58 + $0x348] sm:$0xff] %v269
      %v271 = vld [vmem:[%s57 + $0x350] sm:$0xff]
      %272 = vst [vmem:[%s58 + $0x350] sm:$0xff] %v271
      %v273 = vld [vmem:[%s57 + $0x358] sm:$0xff]
      %274 = vst [vmem:[%s58 + $0x358] sm:$0xff] %v273
      %v275 = vld [vmem:[%s57 + $0x360] sm:$0xff]
      %276 = vst [vmem:[%s58 + $0x360] sm:$0xff] %v275
      %v277 = vld [vmem:[%s57 + $0x368] sm:$0xff]
      %278 = vst [vmem:[%s58 + $0x368] sm:$0xff] %v277
      %v279 = vld [vmem:[%s57 + $0x370] sm:$0xff]
      %280 = vst [vmem:[%s58 + $0x370] sm:$0xff] %v279
      %v281 = vld [vmem:[%s57 + $0x378] sm:$0xff]
      %282 = vst [vmem:[%s58 + $0x378] sm:$0xff] %v281
      %v283 = vld [vmem:[%s57 + $0x380] sm:$0xff]
      %284 = vst [vmem:[%s58 + $0x380] sm:$0xff] %v283
      %v285 = vld [vmem:[%s57 + $0x388] sm:$0xff]
      %286 = vst [vmem:[%s58 + $0x388] sm:$0xff] %v285
      %v287 = vld [vmem:[%s57 + $0x390] sm:$0xff]
      %288 = vst [vmem:[%s58 + $0x390] sm:$0xff] %v287
      %v289 = vld [vmem:[%s57 + $0x398] sm:$0xff]
      %290 = vst [vmem:[%s58 + $0x398] sm:$0xff] %v289
      %v291 = vld [vmem:[%s57 + $0x3a0] sm:$0xff]
      %292 = vst [vmem:[%s58 + $0x3a0] sm:$0xff] %v291
      %v293 = vld [vmem:[%s57 + $0x3a8] sm:$0xff]
      %294 = vst [vmem:[%s58 + $0x3a8] sm:$0xff] %v293
      %v295 = vld [vmem:[%s57 + $0x3b0] sm:$0xff]
      %296 = vst [vmem:[%s58 + $0x3b0] sm:$0xff] %v295
      %v297 = vld [vmem:[%s57 + $0x3b8] sm:$0xff]
      %298 = vst [vmem:[%s58 + $0x3b8] sm:$0xff] %v297
      %v299 = vld [vmem:[%s57 + $0x3c0] sm:$0xff]
      %300 = vst [vmem:[%s58 + $0x3c0] sm:$0xff] %v299
      %v301 = vld [vmem:[%s57 + $0x3c8] sm:$0xff]
      %302 = vst [vmem:[%s58 + $0x3c8] sm:$0xff] %v301
      %v303 = vld [vmem:[%s57 + $0x3d0] sm:$0xff]
      %304 = vst [vmem:[%s58 + $0x3d0] sm:$0xff] %v303
      %v305 = vld [vmem:[%s57 + $0x3d8] sm:$0xff]
      %306 = vst [vmem:[%s58 + $0x3d8] sm:$0xff] %v305
      %v307 = vld [vmem:[%s57 + $0x3e0] sm:$0xff]
      %308 = vst [vmem:[%s58 + $0x3e0] sm:$0xff] %v307
      %v309 = vld [vmem:[%s57 + $0x3e8] sm:$0xff]
      %310 = vst [vmem:[%s58 + $0x3e8] sm:$0xff] %v309
      %v311 = vld [vmem:[%s57 + $0x3f0] sm:$0xff]
      %312 = vst [vmem:[%s58 + $0x3f0] sm:$0xff] %v311
      %v313 = vld [vmem:[%s57 + $0x3f8] sm:$0xff]
      %314 = vst [vmem:[%s58 + $0x3f8] sm:$0xff] %v313
      %v315 = vld [vmem:[%s57 + $0x400] sm:$0xff]
      %316 = vst [vmem:[%s58 + $0x400] sm:$0xff] %v315
      %v317 = vld [vmem:[%s57 + $0x408] sm:$0xff]
      %318 = vst [vmem:[%s58 + $0x408] sm:$0xff] %v317
      %v319 = vld [vmem:[%s57 + $0x410] sm:$0xff]
      %320 = vst [vmem:[%s58 + $0x410] sm:$0xff] %v319
      %v321 = vld [vmem:[%s57 + $0x418] sm:$0xff]
      %322 = vst [vmem:[%s58 + $0x418] sm:$0xff] %v321
      %v323 = vld [vmem:[%s57 + $0x420] sm:$0xff]
      %324 = vst [vmem:[%s58 + $0x420] sm:$0xff] %v323
      %v325 = vld [vmem:[%s57 + $0x428] sm:$0xff]
      %326 = vst [vmem:[%s58 + $0x428] sm:$0xff] %v325
      %v327 = vld [vmem:[%s57 + $0x430] sm:$0xff]
      %328 = vst [vmem:[%s58 + $0x430] sm:$0xff] %v327
      %v329 = vld [vmem:[%s57 + $0x438] sm:$0xff]
      %330 = vst [vmem:[%s58 + $0x438] sm:$0xff] %v329
      %v331 = vld [vmem:[%s57 + $0x440] sm:$0xff]
      %332 = vst [vmem:[%s58 + $0x440] sm:$0xff] %v331
      %v333 = vld [vmem:[%s57 + $0x448] sm:$0xff]
      %334 = vst [vmem:[%s58 + $0x448] sm:$0xff] %v333
      %v335 = vld [vmem:[%s57 + $0x450] sm:$0xff]
      %336 = vst [vmem:[%s58 + $0x450] sm:$0xff] %v335
      %v337 = vld [vmem:[%s57 + $0x458] sm:$0xff]
      %338 = vst [vmem:[%s58 + $0x458] sm:$0xff] %v337
      %v339 = vld [vmem:[%s57 + $0x460] sm:$0xff]
      %340 = vst [vmem:[%s58 + $0x460] sm:$0xff] %v339
      %v341 = vld [vmem:[%s57 + $0x468] sm:$0xff]
      %342 = vst [vmem:[%s58 + $0x468] sm:$0xff] %v341
      %v343 = vld [vmem:[%s57 + $0x470] sm:$0xff]
      %344 = vst [vmem:[%s58 + $0x470] sm:$0xff] %v343
      %v345 = vld [vmem:[%s57 + $0x478] sm:$0xff]
      %346 = vst [vmem:[%s58 + $0x478] sm:$0xff] %v345
      %v347 = vld [vmem:[%s57 + $0x480] sm:$0xff]
      %348 = vst [vmem:[%s58 + $0x480] sm:$0xff] %v347
      %v349 = vld [vmem:[%s57 + $0x488] sm:$0xff]
      %350 = vst [vmem:[%s58 + $0x488] sm:$0xff] %v349
      %v351 = vld [vmem:[%s57 + $0x490] sm:$0xff]
      %352 = vst [vmem:[%s58 + $0x490] sm:$0xff] %v351
      %v353 = vld [vmem:[%s57 + $0x498] sm:$0xff]
      %354 = vst [vmem:[%s58 + $0x498] sm:$0xff] %v353
      %v355 = vld [vmem:[%s57 + $0x4a0] sm:$0xff]
      %356 = vst [vmem:[%s58 + $0x4a0] sm:$0xff] %v355
      %v357 = vld [vmem:[%s57 + $0x4a8] sm:$0xff]
      %358 = vst [vmem:[%s58 + $0x4a8] sm:$0xff] %v357
      %v359 = vld [vmem:[%s57 + $0x4b0] sm:$0xff]
      %360 = vst [vmem:[%s58 + $0x4b0] sm:$0xff] %v359
      %v361 = vld [vmem:[%s57 + $0x4b8] sm:$0xff]
      %362 = vst [vmem:[%s58 + $0x4b8] sm:$0xff] %v361
      %v363 = vld [vmem:[%s57 + $0x4c0] sm:$0xff]
      %364 = vst [vmem:[%s58 + $0x4c0] sm:$0xff] %v363
      %v365 = vld [vmem:[%s57 + $0x4c8] sm:$0xff]
      %366 = vst [vmem:[%s58 + $0x4c8] sm:$0xff] %v365
      %v367 = vld [vmem:[%s57 + $0x4d0] sm:$0xff]
      %368 = vst [vmem:[%s58 + $0x4d0] sm:$0xff] %v367
      %v369 = vld [vmem:[%s57 + $0x4d8] sm:$0xff]
      %370 = vst [vmem:[%s58 + $0x4d8] sm:$0xff] %v369
      %v371 = vld [vmem:[%s57 + $0x4e0] sm:$0xff]
      %372 = vst [vmem:[%s58 + $0x4e0] sm:$0xff] %v371
      %v373 = vld [vmem:[%s57 + $0x4e8] sm:$0xff]
      %374 = vst [vmem:[%s58 + $0x4e8] sm:$0xff] %v373
      %v375 = vld [vmem:[%s57 + $0x4f0] sm:$0xff]
      %376 = vst [vmem:[%s58 + $0x4f0] sm:$0xff] %v375
      %v377 = vld [vmem:[%s57 + $0x4f8] sm:$0xff]
      %378 = vst [vmem:[%s58 + $0x4f8] sm:$0xff] %v377
      %v379 = vld [vmem:[%s57 + $0x500] sm:$0xff]
      %380 = vst [vmem:[%s58 + $0x500] sm:$0xff] %v379
      %v381 = vld [vmem:[%s57 + $0x508] sm:$0xff]
      %382 = vst [vmem:[%s58 + $0x508] sm:$0xff] %v381
      %v383 = vld [vmem:[%s57 + $0x510] sm:$0xff]
      %384 = vst [vmem:[%s58 + $0x510] sm:$0xff] %v383
      %v385 = vld [vmem:[%s57 + $0x518] sm:$0xff]
      %386 = vst [vmem:[%s58 + $0x518] sm:$0xff] %v385
      %v387 = vld [vmem:[%s57 + $0x520] sm:$0xff]
      %388 = vst [vmem:[%s58 + $0x520] sm:$0xff] %v387
      %v389 = vld [vmem:[%s57 + $0x528] sm:$0xff]
      %390 = vst [vmem:[%s58 + $0x528] sm:$0xff] %v389
      %v391 = vld [vmem:[%s57 + $0x530] sm:$0xff]
      %392 = vst [vmem:[%s58 + $0x530] sm:$0xff] %v391
      %v393 = vld [vmem:[%s57 + $0x538] sm:$0xff]
      %394 = vst [vmem:[%s58 + $0x538] sm:$0xff] %v393
      %v395 = vld [vmem:[%s57 + $0x540] sm:$0xff]
      %396 = vst [vmem:[%s58 + $0x540] sm:$0xff] %v395
      %v397 = vld [vmem:[%s57 + $0x548] sm:$0xff]
      %398 = vst [vmem:[%s58 + $0x548] sm:$0xff] %v397
      %v399 = vld [vmem:[%s57 + $0x550] sm:$0xff]
      %400 = vst [vmem:[%s58 + $0x550] sm:$0xff] %v399
      %v401 = vld [vmem:[%s57 + $0x558] sm:$0xff]
      %402 = vst [vmem:[%s58 + $0x558] sm:$0xff] %v401
      %v403 = vld [vmem:[%s57 + $0x560] sm:$0xff]
      %404 = vst [vmem:[%s58 + $0x560] sm:$0xff] %v403
      %v405 = vld [vmem:[%s57 + $0x568] sm:$0xff]
      %406 = vst [vmem:[%s58 + $0x568] sm:$0xff] %v405
      %v407 = vld [vmem:[%s57 + $0x570] sm:$0xff]
      %408 = vst [vmem:[%s58 + $0x570] sm:$0xff] %v407
      %v409 = vld [vmem:[%s57 + $0x578] sm:$0xff]
      %410 = vst [vmem:[%s58 + $0x578] sm:$0xff] %v409
      %v411 = vld [vmem:[%s57 + $0x580] sm:$0xff]
      %412 = vst [vmem:[%s58 + $0x580] sm:$0xff] %v411
      %v413 = vld [vmem:[%s57 + $0x588] sm:$0xff]
      %414 = vst [vmem:[%s58 + $0x588] sm:$0xff] %v413
      %v415 = vld [vmem:[%s57 + $0x590] sm:$0xff]
      %416 = vst [vmem:[%s58 + $0x590] sm:$0xff] %v415
      %v417 = vld [vmem:[%s57 + $0x598] sm:$0xff]
      %418 = vst [vmem:[%s58 + $0x598] sm:$0xff] %v417
      %v419 = vld [vmem:[%s57 + $0x5a0] sm:$0xff]
      %420 = vst [vmem:[%s58 + $0x5a0] sm:$0xff] %v419
      %v421 = vld [vmem:[%s57 + $0x5a8] sm:$0xff]
      %422 = vst [vmem:[%s58 + $0x5a8] sm:$0xff] %v421
      %v423 = vld [vmem:[%s57 + $0x5b0] sm:$0xff]
      %424 = vst [vmem:[%s58 + $0x5b0] sm:$0xff] %v423
      %v425 = vld [vmem:[%s57 + $0x5b8] sm:$0xff]
      %426 = vst [vmem:[%s58 + $0x5b8] sm:$0xff] %v425
      %v427 = vld [vmem:[%s57 + $0x5c0] sm:$0xff]
      %428 = vst [vmem:[%s58 + $0x5c0] sm:$0xff] %v427
      %v429 = vld [vmem:[%s57 + $0x5c8] sm:$0xff]
      %430 = vst [vmem:[%s58 + $0x5c8] sm:$0xff] %v429
      %v431 = vld [vmem:[%s57 + $0x5d0] sm:$0xff]
      %432 = vst [vmem:[%s58 + $0x5d0] sm:$0xff] %v431
      %v433 = vld [vmem:[%s57 + $0x5d8] sm:$0xff]
      %434 = vst [vmem:[%s58 + $0x5d8] sm:$0xff] %v433
      %v435 = vld [vmem:[%s57 + $0x5e0] sm:$0xff]
      %436 = vst [vmem:[%s58 + $0x5e0] sm:$0xff] %v435
      %v437 = vld [vmem:[%s57 + $0x5e8] sm:$0xff]
      %438 = vst [vmem:[%s58 + $0x5e8] sm:$0xff] %v437
      %v439 = vld [vmem:[%s57 + $0x5f0] sm:$0xff]
      %440 = vst [vmem:[%s58 + $0x5f0] sm:$0xff] %v439
      %v441 = vld [vmem:[%s57 + $0x5f8] sm:$0xff]
      %442 = vst [vmem:[%s58 + $0x5f8] sm:$0xff] %v441
      %v443 = vld [vmem:[%s57 + $0x600] sm:$0xff]
      %444 = vst [vmem:[%s58 + $0x600] sm:$0xff] %v443
      %v445 = vld [vmem:[%s57 + $0x608] sm:$0xff]
      %446 = vst [vmem:[%s58 + $0x608] sm:$0xff] %v445
      %v447 = vld [vmem:[%s57 + $0x610] sm:$0xff]
      %448 = vst [vmem:[%s58 + $0x610] sm:$0xff] %v447
      %v449 = vld [vmem:[%s57 + $0x618] sm:$0xff]
      %450 = vst [vmem:[%s58 + $0x618] sm:$0xff] %v449
      %v451 = vld [vmem:[%s57 + $0x620] sm:$0xff]
      %452 = vst [vmem:[%s58 + $0x620] sm:$0xff] %v451
      %v453 = vld [vmem:[%s57 + $0x628] sm:$0xff]
      %454 = vst [vmem:[%s58 + $0x628] sm:$0xff] %v453
      %v455 = vld [vmem:[%s57 + $0x630] sm:$0xff]
      %456 = vst [vmem:[%s58 + $0x630] sm:$0xff] %v455
      %v457 = vld [vmem:[%s57 + $0x638] sm:$0xff]
      %458 = vst [vmem:[%s58 + $0x638] sm:$0xff] %v457
      %v459 = vld [vmem:[%s57 + $0x640] sm:$0xff]
      %460 = vst [vmem:[%s58 + $0x640] sm:$0xff] %v459
      %v461 = vld [vmem:[%s57 + $0x648] sm:$0xff]
      %462 = vst [vmem:[%s58 + $0x648] sm:$0xff] %v461
      %v463 = vld [vmem:[%s57 + $0x650] sm:$0xff]
      %464 = vst [vmem:[%s58 + $0x650] sm:$0xff] %v463
      %v465 = vld [vmem:[%s57 + $0x658] sm:$0xff]
      %466 = vst [vmem:[%s58 + $0x658] sm:$0xff] %v465
      %v467 = vld [vmem:[%s57 + $0x660] sm:$0xff]
      %468 = vst [vmem:[%s58 + $0x660] sm:$0xff] %v467
      %v469 = vld [vmem:[%s57 + $0x668] sm:$0xff]
      %470 = vst [vmem:[%s58 + $0x668] sm:$0xff] %v469
      %v471 = vld [vmem:[%s57 + $0x670] sm:$0xff]
      %472 = vst [vmem:[%s58 + $0x670] sm:$0xff] %v471
      %v473 = vld [vmem:[%s57 + $0x678] sm:$0xff]
      %474 = vst [vmem:[%s58 + $0x678] sm:$0xff] %v473
      %v475 = vld [vmem:[%s57 + $0x680] sm:$0xff]
      %476 = vst [vmem:[%s58 + $0x680] sm:$0xff] %v475
      %v477 = vld [vmem:[%s57 + $0x688] sm:$0xff]
      %478 = vst [vmem:[%s58 + $0x688] sm:$0xff] %v477
      %v479 = vld [vmem:[%s57 + $0x690] sm:$0xff]
      %480 = vst [vmem:[%s58 + $0x690] sm:$0xff] %v479
      %v481 = vld [vmem:[%s57 + $0x698] sm:$0xff]
      %482 = vst [vmem:[%s58 + $0x698] sm:$0xff] %v481
      %v483 = vld [vmem:[%s57 + $0x6a0] sm:$0xff]
      %484 = vst [vmem:[%s58 + $0x6a0] sm:$0xff] %v483
      %v485 = vld [vmem:[%s57 + $0x6a8] sm:$0xff]
      %486 = vst [vmem:[%s58 + $0x6a8] sm:$0xff] %v485
      %v487 = vld [vmem:[%s57 + $0x6b0] sm:$0xff]
      %488 = vst [vmem:[%s58 + $0x6b0] sm:$0xff] %v487
      %v489 = vld [vmem:[%s57 + $0x6b8] sm:$0xff]
      %490 = vst [vmem:[%s58 + $0x6b8] sm:$0xff] %v489
      %v491 = vld [vmem:[%s57 + $0x6c0] sm:$0xff]
      %492 = vst [vmem:[%s58 + $0x6c0] sm:$0xff] %v491
      %v493 = vld [vmem:[%s57 + $0x6c8] sm:$0xff]
      %494 = vst [vmem:[%s58 + $0x6c8] sm:$0xff] %v493
      %v495 = vld [vmem:[%s57 + $0x6d0] sm:$0xff]
      %496 = vst [vmem:[%s58 + $0x6d0] sm:$0xff] %v495
      %v497 = vld [vmem:[%s57 + $0x6d8] sm:$0xff]
      %498 = vst [vmem:[%s58 + $0x6d8] sm:$0xff] %v497
      %v499 = vld [vmem:[%s57 + $0x6e0] sm:$0xff]
      %500 = vst [vmem:[%s58 + $0x6e0] sm:$0xff] %v499
      %v501 = vld [vmem:[%s57 + $0x6e8] sm:$0xff]
      %502 = vst [vmem:[%s58 + $0x6e8] sm:$0xff] %v501
      %v503 = vld [vmem:[%s57 + $0x6f0] sm:$0xff]
      %504 = vst [vmem:[%s58 + $0x6f0] sm:$0xff] %v503
      %v505 = vld [vmem:[%s57 + $0x6f8] sm:$0xff]
      %506 = vst [vmem:[%s58 + $0x6f8] sm:$0xff] %v505
      %v507 = vld [vmem:[%s57 + $0x700] sm:$0xff]
      %508 = vst [vmem:[%s58 + $0x700] sm:$0xff] %v507
      %v509 = vld [vmem:[%s57 + $0x708] sm:$0xff]
      %510 = vst [vmem:[%s58 + $0x708] sm:$0xff] %v509
      %v511 = vld [vmem:[%s57 + $0x710] sm:$0xff]
      %512 = vst [vmem:[%s58 + $0x710] sm:$0xff] %v511
      %v513 = vld [vmem:[%s57 + $0x718] sm:$0xff]
      %514 = vst [vmem:[%s58 + $0x718] sm:$0xff] %v513
      %v515 = vld [vmem:[%s57 + $0x720] sm:$0xff]
      %516 = vst [vmem:[%s58 + $0x720] sm:$0xff] %v515
      %v517 = vld [vmem:[%s57 + $0x728] sm:$0xff]
      %518 = vst [vmem:[%s58 + $0x728] sm:$0xff] %v517
      %v519 = vld [vmem:[%s57 + $0x730] sm:$0xff]
      %520 = vst [vmem:[%s58 + $0x730] sm:$0xff] %v519
      %v521 = vld [vmem:[%s57 + $0x738] sm:$0xff]
      %522 = vst [vmem:[%s58 + $0x738] sm:$0xff] %v521
      %v523 = vld [vmem:[%s57 + $0x740] sm:$0xff]
      %524 = vst [vmem:[%s58 + $0x740] sm:$0xff] %v523
      %v525 = vld [vmem:[%s57 + $0x748] sm:$0xff]
      %526 = vst [vmem:[%s58 + $0x748] sm:$0xff] %v525
      %v527 = vld [vmem:[%s57 + $0x750] sm:$0xff]
      %528 = vst [vmem:[%s58 + $0x750] sm:$0xff] %v527
      %v529 = vld [vmem:[%s57 + $0x758] sm:$0xff]
      %530 = vst [vmem:[%s58 + $0x758] sm:$0xff] %v529
      %v531 = vld [vmem:[%s57 + $0x760] sm:$0xff]
      %532 = vst [vmem:[%s58 + $0x760] sm:$0xff] %v531
      %v533 = vld [vmem:[%s57 + $0x768] sm:$0xff]
      %534 = vst [vmem:[%s58 + $0x768] sm:$0xff] %v533
      %v535 = vld [vmem:[%s57 + $0x770] sm:$0xff]
      %536 = vst [vmem:[%s58 + $0x770] sm:$0xff] %v535
      %v537 = vld [vmem:[%s57 + $0x778] sm:$0xff]
      %538 = vst [vmem:[%s58 + $0x778] sm:$0xff] %v537
      %v539 = vld [vmem:[%s57 + $0x780] sm:$0xff]
      %540 = vst [vmem:[%s58 + $0x780] sm:$0xff] %v539
      %v541 = vld [vmem:[%s57 + $0x788] sm:$0xff]
      %542 = vst [vmem:[%s58 + $0x788] sm:$0xff] %v541
      %v543 = vld [vmem:[%s57 + $0x790] sm:$0xff]
      %544 = vst [vmem:[%s58 + $0x790] sm:$0xff] %v543
      %v545 = vld [vmem:[%s57 + $0x798] sm:$0xff]
      %546 = vst [vmem:[%s58 + $0x798] sm:$0xff] %v545
      %v547 = vld [vmem:[%s57 + $0x7a0] sm:$0xff]
      %548 = vst [vmem:[%s58 + $0x7a0] sm:$0xff] %v547
      %v549 = vld [vmem:[%s57 + $0x7a8] sm:$0xff]
      %550 = vst [vmem:[%s58 + $0x7a8] sm:$0xff] %v549
      %v551 = vld [vmem:[%s57 + $0x7b0] sm:$0xff]
      %552 = vst [vmem:[%s58 + $0x7b0] sm:$0xff] %v551
      %v553 = vld [vmem:[%s57 + $0x7b8] sm:$0xff]
      %554 = vst [vmem:[%s58 + $0x7b8] sm:$0xff] %v553
      %v555 = vld [vmem:[%s57 + $0x7c0] sm:$0xff]
      %556 = vst [vmem:[%s58 + $0x7c0] sm:$0xff] %v555
      %v557 = vld [vmem:[%s57 + $0x7c8] sm:$0xff]
      %558 = vst [vmem:[%s58 + $0x7c8] sm:$0xff] %v557
      %v559 = vld [vmem:[%s57 + $0x7d0] sm:$0xff]
      %560 = vst [vmem:[%s58 + $0x7d0] sm:$0xff] %v559
      %v561 = vld [vmem:[%s57 + $0x7d8] sm:$0xff]
      %562 = vst [vmem:[%s58 + $0x7d8] sm:$0xff] %v561
      %v563 = vld [vmem:[%s57 + $0x7e0] sm:$0xff]
      %564 = vst [vmem:[%s58 + $0x7e0] sm:$0xff] %v563
      %v565 = vld [vmem:[%s57 + $0x7e8] sm:$0xff]
      %566 = vst [vmem:[%s58 + $0x7e8] sm:$0xff] %v565
      %v567 = vld [vmem:[%s57 + $0x7f0] sm:$0xff]
      %568 = vst [vmem:[%s58 + $0x7f0] sm:$0xff] %v567
      %v569 = vld [vmem:[%s57 + $0x7f8] sm:$0xff]
      %570 = vst [vmem:[%s58 + $0x7f8] sm:$0xff] %v569
      %v571 = vld [vmem:[%s57 + $0x800] sm:$0xff]
      %572 = vst [vmem:[%s58 + $0x800] sm:$0xff] %v571
      %v573 = vld [vmem:[%s57 + $0x808] sm:$0xff]
      %574 = vst [vmem:[%s58 + $0x808] sm:$0xff] %v573
      %v575 = vld [vmem:[%s57 + $0x810] sm:$0xff]
      %576 = vst [vmem:[%s58 + $0x810] sm:$0xff] %v575
      %v577 = vld [vmem:[%s57 + $0x818] sm:$0xff]
      %578 = vst [vmem:[%s58 + $0x818] sm:$0xff] %v577
      %v579 = vld [vmem:[%s57 + $0x820] sm:$0xff]
      %580 = vst [vmem:[%s58 + $0x820] sm:$0xff] %v579
      %v581 = vld [vmem:[%s57 + $0x828] sm:$0xff]
      %582 = vst [vmem:[%s58 + $0x828] sm:$0xff] %v581
      %v583 = vld [vmem:[%s57 + $0x830] sm:$0xff]
      %584 = vst [vmem:[%s58 + $0x830] sm:$0xff] %v583
      %v585 = vld [vmem:[%s57 + $0x838] sm:$0xff]
      %586 = vst [vmem:[%s58 + $0x838] sm:$0xff] %v585
      %v587 = vld [vmem:[%s57 + $0x840] sm:$0xff]
      %588 = vst [vmem:[%s58 + $0x840] sm:$0xff] %v587
      %v589 = vld [vmem:[%s57 + $0x848] sm:$0xff]
      %590 = vst [vmem:[%s58 + $0x848] sm:$0xff] %v589
      %v591 = vld [vmem:[%s57 + $0x850] sm:$0xff]
      %592 = vst [vmem:[%s58 + $0x850] sm:$0xff] %v591
      %v593 = vld [vmem:[%s57 + $0x858] sm:$0xff]
      %594 = vst [vmem:[%s58 + $0x858] sm:$0xff] %v593
      %v595 = vld [vmem:[%s57 + $0x860] sm:$0xff]
      %596 = vst [vmem:[%s58 + $0x860] sm:$0xff] %v595
      %v597 = vld [vmem:[%s57 + $0x868] sm:$0xff]
      %598 = vst [vmem:[%s58 + $0x868] sm:$0xff] %v597
      %v599 = vld [vmem:[%s57 + $0x870] sm:$0xff]
      %600 = vst [vmem:[%s58 + $0x870] sm:$0xff] %v599
      %v601 = vld [vmem:[%s57 + $0x878] sm:$0xff]
      %602 = vst [vmem:[%s58 + $0x878] sm:$0xff] %v601
      %v603 = vld [vmem:[%s57 + $0x880] sm:$0xff]
      %604 = vst [vmem:[%s58 + $0x880] sm:$0xff] %v603
      %v605 = vld [vmem:[%s57 + $0x888] sm:$0xff]
      %606 = vst [vmem:[%s58 + $0x888] sm:$0xff] %v605
      %v607 = vld [vmem:[%s57 + $0x890] sm:$0xff]
      %608 = vst [vmem:[%s58 + $0x890] sm:$0xff] %v607
      %v609 = vld [vmem:[%s57 + $0x898] sm:$0xff]
      %610 = vst [vmem:[%s58 + $0x898] sm:$0xff] %v609
      %v611 = vld [vmem:[%s57 + $0x8a0] sm:$0xff]
      %612 = vst [vmem:[%s58 + $0x8a0] sm:$0xff] %v611
      %v613 = vld [vmem:[%s57 + $0x8a8] sm:$0xff]
      %614 = vst [vmem:[%s58 + $0x8a8] sm:$0xff] %v613
      %v615 = vld [vmem:[%s57 + $0x8b0] sm:$0xff]
      %616 = vst [vmem:[%s58 + $0x8b0] sm:$0xff] %v615
      %v617 = vld [vmem:[%s57 + $0x8b8] sm:$0xff]
      %618 = vst [vmem:[%s58 + $0x8b8] sm:$0xff] %v617
      %v619 = vld [vmem:[%s57 + $0x8c0] sm:$0xff]
      %620 = vst [vmem:[%s58 + $0x8c0] sm:$0xff] %v619
      %v621 = vld [vmem:[%s57 + $0x8c8] sm:$0xff]
      %622 = vst [vmem:[%s58 + $0x8c8] sm:$0xff] %v621
      %v623 = vld [vmem:[%s57 + $0x8d0] sm:$0xff]
      %624 = vst [vmem:[%s58 + $0x8d0] sm:$0xff] %v623
      %v625 = vld [vmem:[%s57 + $0x8d8] sm:$0xff]
      %626 = vst [vmem:[%s58 + $0x8d8] sm:$0xff] %v625
      %v627 = vld [vmem:[%s57 + $0x8e0] sm:$0xff]
      %628 = vst [vmem:[%s58 + $0x8e0] sm:$0xff] %v627
      %v629 = vld [vmem:[%s57 + $0x8e8] sm:$0xff]
      %630 = vst [vmem:[%s58 + $0x8e8] sm:$0xff] %v629
      %v631 = vld [vmem:[%s57 + $0x8f0] sm:$0xff]
      %632 = vst [vmem:[%s58 + $0x8f0] sm:$0xff] %v631
      %v633 = vld [vmem:[%s57 + $0x8f8] sm:$0xff]
      %634 = vst [vmem:[%s58 + $0x8f8] sm:$0xff] %v633
      %v635 = vld [vmem:[%s57 + $0x900] sm:$0xff]
      %636 = vst [vmem:[%s58 + $0x900] sm:$0xff] %v635
      %v637 = vld [vmem:[%s57 + $0x908] sm:$0xff]
      %638 = vst [vmem:[%s58 + $0x908] sm:$0xff] %v637
      %v639 = vld [vmem:[%s57 + $0x910] sm:$0xff]
      %640 = vst [vmem:[%s58 + $0x910] sm:$0xff] %v639
      %v641 = vld [vmem:[%s57 + $0x918] sm:$0xff]
      %642 = vst [vmem:[%s58 + $0x918] sm:$0xff] %v641
      %v643 = vld [vmem:[%s57 + $0x920] sm:$0xff]
      %644 = vst [vmem:[%s58 + $0x920] sm:$0xff] %v643
      %v645 = vld [vmem:[%s57 + $0x928] sm:$0xff]
      %646 = vst [vmem:[%s58 + $0x928] sm:$0xff] %v645
      %v647 = vld [vmem:[%s57 + $0x930] sm:$0xff]
      %648 = vst [vmem:[%s58 + $0x930] sm:$0xff] %v647
      %v649 = vld [vmem:[%s57 + $0x938] sm:$0xff]
      %650 = vst [vmem:[%s58 + $0x938] sm:$0xff] %v649
      %v651 = vld [vmem:[%s57 + $0x940] sm:$0xff]
      %652 = vst [vmem:[%s58 + $0x940] sm:$0xff] %v651
      %v653 = vld [vmem:[%s57 + $0x948] sm:$0xff]
      %654 = vst [vmem:[%s58 + $0x948] sm:$0xff] %v653
      %v655 = vld [vmem:[%s57 + $0x950] sm:$0xff]
      %656 = vst [vmem:[%s58 + $0x950] sm:$0xff] %v655
      %v657 = vld [vmem:[%s57 + $0x958] sm:$0xff]
      %658 = vst [vmem:[%s58 + $0x958] sm:$0xff] %v657
      %v659 = vld [vmem:[%s57 + $0x960] sm:$0xff]
      %660 = vst [vmem:[%s58 + $0x960] sm:$0xff] %v659
      %v661 = vld [vmem:[%s57 + $0x968] sm:$0xff]
      %662 = vst [vmem:[%s58 + $0x968] sm:$0xff] %v661
      %v663 = vld [vmem:[%s57 + $0x970] sm:$0xff]
      %664 = vst [vmem:[%s58 + $0x970] sm:$0xff] %v663
      %v665 = vld [vmem:[%s57 + $0x978] sm:$0xff]
      %666 = vst [vmem:[%s58 + $0x978] sm:$0xff] %v665
      %v667 = vld [vmem:[%s57 + $0x980] sm:$0xff]
      %668 = vst [vmem:[%s58 + $0x980] sm:$0xff] %v667
      %v669 = vld [vmem:[%s57 + $0x988] sm:$0xff]
      %670 = vst [vmem:[%s58 + $0x988] sm:$0xff] %v669
      %v671 = vld [vmem:[%s57 + $0x990] sm:$0xff]
      %672 = vst [vmem:[%s58 + $0x990] sm:$0xff] %v671
      %v673 = vld [vmem:[%s57 + $0x998] sm:$0xff]
      %674 = vst [vmem:[%s58 + $0x998] sm:$0xff] %v673
      %v675 = vld [vmem:[%s57 + $0x9a0] sm:$0xff]
      %676 = vst [vmem:[%s58 + $0x9a0] sm:$0xff] %v675
      %v677 = vld [vmem:[%s57 + $0x9a8] sm:$0xff]
      %678 = vst [vmem:[%s58 + $0x9a8] sm:$0xff] %v677
      %v679 = vld [vmem:[%s57 + $0x9b0] sm:$0xff]
      %680 = vst [vmem:[%s58 + $0x9b0] sm:$0xff] %v679
      %v681 = vld [vmem:[%s57 + $0x9b8] sm:$0xff]
      %682 = vst [vmem:[%s58 + $0x9b8] sm:$0xff] %v681
      %v683 = vld [vmem:[%s57 + $0x9c0] sm:$0xff]
      %684 = vst [vmem:[%s58 + $0x9c0] sm:$0xff] %v683
      %v685 = vld [vmem:[%s57 + $0x9c8] sm:$0xff]
      %686 = vst [vmem:[%s58 + $0x9c8] sm:$0xff] %v685
      %v687 = vld [vmem:[%s57 + $0x9d0] sm:$0xff]
      %688 = vst [vmem:[%s58 + $0x9d0] sm:$0xff] %v687
      %v689 = vld [vmem:[%s57 + $0x9d8] sm:$0xff]
      %690 = vst [vmem:[%s58 + $0x9d8] sm:$0xff] %v689
      %v691 = vld [vmem:[%s57 + $0x9e0] sm:$0xff]
      %692 = vst [vmem:[%s58 + $0x9e0] sm:$0xff] %v691
      %v693 = vld [vmem:[%s57 + $0x9e8] sm:$0xff]
      %694 = vst [vmem:[%s58 + $0x9e8] sm:$0xff] %v693
      %v695 = vld [vmem:[%s57 + $0x9f0] sm:$0xff]
      %696 = vst [vmem:[%s58 + $0x9f0] sm:$0xff] %v695
      %v697 = vld [vmem:[%s57 + $0x9f8] sm:$0xff]
      %698 = vst [vmem:[%s58 + $0x9f8] sm:$0xff] %v697
      %v699 = vld [vmem:[%s57 + $0xa00] sm:$0xff]
      %700 = vst [vmem:[%s58 + $0xa00] sm:$0xff] %v699
      %v701 = vld [vmem:[%s57 + $0xa08] sm:$0xff]
      %702 = vst [vmem:[%s58 + $0xa08] sm:$0xff] %v701
      %v703 = vld [vmem:[%s57 + $0xa10] sm:$0xff]
      %704 = vst [vmem:[%s58 + $0xa10] sm:$0xff] %v703
      %v705 = vld [vmem:[%s57 + $0xa18] sm:$0xff]
      %706 = vst [vmem:[%s58 + $0xa18] sm:$0xff] %v705
      %v707 = vld [vmem:[%s57 + $0xa20] sm:$0xff]
      %708 = vst [vmem:[%s58 + $0xa20] sm:$0xff] %v707
      %v709 = vld [vmem:[%s57 + $0xa28] sm:$0xff]
      %710 = vst [vmem:[%s58 + $0xa28] sm:$0xff] %v709
      %v711 = vld [vmem:[%s57 + $0xa30] sm:$0xff]
      %712 = vst [vmem:[%s58 + $0xa30] sm:$0xff] %v711
      %v713 = vld [vmem:[%s57 + $0xa38] sm:$0xff]
      %714 = vst [vmem:[%s58 + $0xa38] sm:$0xff] %v713
      %v715 = vld [vmem:[%s57 + $0xa40] sm:$0xff]
      %716 = vst [vmem:[%s58 + $0xa40] sm:$0xff] %v715
      %v717 = vld [vmem:[%s57 + $0xa48] sm:$0xff]
      %718 = vst [vmem:[%s58 + $0xa48] sm:$0xff] %v717
      %v719 = vld [vmem:[%s57 + $0xa50] sm:$0xff]
      %720 = vst [vmem:[%s58 + $0xa50] sm:$0xff] %v719
      %v721 = vld [vmem:[%s57 + $0xa58] sm:$0xff]
      %722 = vst [vmem:[%s58 + $0xa58] sm:$0xff] %v721
      %v723 = vld [vmem:[%s57 + $0xa60] sm:$0xff]
      %724 = vst [vmem:[%s58 + $0xa60] sm:$0xff] %v723
      %v725 = vld [vmem:[%s57 + $0xa68] sm:$0xff]
      %726 = vst [vmem:[%s58 + $0xa68] sm:$0xff] %v725
      %v727 = vld [vmem:[%s57 + $0xa70] sm:$0xff]
      %728 = vst [vmem:[%s58 + $0xa70] sm:$0xff] %v727
      %v729 = vld [vmem:[%s57 + $0xa78] sm:$0xff]
      %730 = vst [vmem:[%s58 + $0xa78] sm:$0xff] %v729
      %v731 = vld [vmem:[%s57 + $0xa80] sm:$0xff]
      %732 = vst [vmem:[%s58 + $0xa80] sm:$0xff] %v731
      %v733 = vld [vmem:[%s57 + $0xa88] sm:$0xff]
      %734 = vst [vmem:[%s58 + $0xa88] sm:$0xff] %v733
      %v735 = vld [vmem:[%s57 + $0xa90] sm:$0xff]
      %736 = vst [vmem:[%s58 + $0xa90] sm:$0xff] %v735
      %v737 = vld [vmem:[%s57 + $0xa98] sm:$0xff]
      %738 = vst [vmem:[%s58 + $0xa98] sm:$0xff] %v737
      %v739 = vld [vmem:[%s57 + $0xaa0] sm:$0xff]
      %740 = vst [vmem:[%s58 + $0xaa0] sm:$0xff] %v739
      %v741 = vld [vmem:[%s57 + $0xaa8] sm:$0xff]
      %742 = vst [vmem:[%s58 + $0xaa8] sm:$0xff] %v741
      %v743 = vld [vmem:[%s57 + $0xab0] sm:$0xff]
      %744 = vst [vmem:[%s58 + $0xab0] sm:$0xff] %v743
      %v745 = vld [vmem:[%s57 + $0xab8] sm:$0xff]
      %746 = vst [vmem:[%s58 + $0xab8] sm:$0xff] %v745
      %v747 = vld [vmem:[%s57 + $0xac0] sm:$0xff]
      %748 = vst [vmem:[%s58 + $0xac0] sm:$0xff] %v747
      %v749 = vld [vmem:[%s57 + $0xac8] sm:$0xff]
      %750 = vst [vmem:[%s58 + $0xac8] sm:$0xff] %v749
      %v751 = vld [vmem:[%s57 + $0xad0] sm:$0xff]
      %752 = vst [vmem:[%s58 + $0xad0] sm:$0xff] %v751
      %v753 = vld [vmem:[%s57 + $0xad8] sm:$0xff]
      %754 = vst [vmem:[%s58 + $0xad8] sm:$0xff] %v753
      %v755 = vld [vmem:[%s57 + $0xae0] sm:$0xff]
      %756 = vst [vmem:[%s58 + $0xae0] sm:$0xff] %v755
      %v757 = vld [vmem:[%s57 + $0xae8] sm:$0xff]
      %758 = vst [vmem:[%s58 + $0xae8] sm:$0xff] %v757
      %v759 = vld [vmem:[%s57 + $0xaf0] sm:$0xff]
      %760 = vst [vmem:[%s58 + $0xaf0] sm:$0xff] %v759
      %v761 = vld [vmem:[%s57 + $0xaf8] sm:$0xff]
      %762 = vst [vmem:[%s58 + $0xaf8] sm:$0xff] %v761
      %v763 = vld [vmem:[%s57 + $0xb00] sm:$0xff]
      %764 = vst [vmem:[%s58 + $0xb00] sm:$0xff] %v763
      %v765 = vld [vmem:[%s57 + $0xb08] sm:$0xff]
      %766 = vst [vmem:[%s58 + $0xb08] sm:$0xff] %v765
      %v767 = vld [vmem:[%s57 + $0xb10] sm:$0xff]
      %768 = vst [vmem:[%s58 + $0xb10] sm:$0xff] %v767
      %v769 = vld [vmem:[%s57 + $0xb18] sm:$0xff]
      %770 = vst [vmem:[%s58 + $0xb18] sm:$0xff] %v769
      %v771 = vld [vmem:[%s57 + $0xb20] sm:$0xff]
      %772 = vst [vmem:[%s58 + $0xb20] sm:$0xff] %v771
      %v773 = vld [vmem:[%s57 + $0xb28] sm:$0xff]
      %774 = vst [vmem:[%s58 + $0xb28] sm:$0xff] %v773
      %v775 = vld [vmem:[%s57 + $0xb30] sm:$0xff]
      %776 = vst [vmem:[%s58 + $0xb30] sm:$0xff] %v775
      %v777 = vld [vmem:[%s57 + $0xb38] sm:$0xff]
      %778 = vst [vmem:[%s58 + $0xb38] sm:$0xff] %v777
      %v779 = vld [vmem:[%s57 + $0xb40] sm:$0xff]
      %780 = vst [vmem:[%s58 + $0xb40] sm:$0xff] %v779
      %v781 = vld [vmem:[%s57 + $0xb48] sm:$0xff]
      %782 = vst [vmem:[%s58 + $0xb48] sm:$0xff] %v781
      %v783 = vld [vmem:[%s57 + $0xb50] sm:$0xff]
      %784 = vst [vmem:[%s58 + $0xb50] sm:$0xff] %v783
      %v785 = vld [vmem:[%s57 + $0xb58] sm:$0xff]
      %786 = vst [vmem:[%s58 + $0xb58] sm:$0xff] %v785
      %v787 = vld [vmem:[%s57 + $0xb60] sm:$0xff]
      %788 = vst [vmem:[%s58 + $0xb60] sm:$0xff] %v787
      %v789 = vld [vmem:[%s57 + $0xb68] sm:$0xff]
      %790 = vst [vmem:[%s58 + $0xb68] sm:$0xff] %v789
      %v791 = vld [vmem:[%s57 + $0xb70] sm:$0xff]
      %792 = vst [vmem:[%s58 + $0xb70] sm:$0xff] %v791
      %v793 = vld [vmem:[%s57 + $0xb78] sm:$0xff]
      %794 = vst [vmem:[%s58 + $0xb78] sm:$0xff] %v793
      %v795 = vld [vmem:[%s57 + $0xb80] sm:$0xff]
      %796 = vst [vmem:[%s58 + $0xb80] sm:$0xff] %v795
      %v797 = vld [vmem:[%s57 + $0xb88] sm:$0xff]
      %798 = vst [vmem:[%s58 + $0xb88] sm:$0xff] %v797
      %v799 = vld [vmem:[%s57 + $0xb90] sm:$0xff]
      %800 = vst [vmem:[%s58 + $0xb90] sm:$0xff] %v799
      %v801 = vld [vmem:[%s57 + $0xb98] sm:$0xff]
      %802 = vst [vmem:[%s58 + $0xb98] sm:$0xff] %v801
      %v803 = vld [vmem:[%s57 + $0xba0] sm:$0xff]
      %804 = vst [vmem:[%s58 + $0xba0] sm:$0xff] %v803
      %v805 = vld [vmem:[%s57 + $0xba8] sm:$0xff]
      %806 = vst [vmem:[%s58 + $0xba8] sm:$0xff] %v805
      %v807 = vld [vmem:[%s57 + $0xbb0] sm:$0xff]
      %808 = vst [vmem:[%s58 + $0xbb0] sm:$0xff] %v807
      %v809 = vld [vmem:[%s57 + $0xbb8] sm:$0xff]
      %810 = vst [vmem:[%s58 + $0xbb8] sm:$0xff] %v809
      %v811 = vld [vmem:[%s57 + $0xbc0] sm:$0xff]
      %812 = vst [vmem:[%s58 + $0xbc0] sm:$0xff] %v811
      %v813 = vld [vmem:[%s57 + $0xbc8] sm:$0xff]
      %814 = vst [vmem:[%s58 + $0xbc8] sm:$0xff] %v813
      %v815 = vld [vmem:[%s57 + $0xbd0] sm:$0xff]
      %816 = vst [vmem:[%s58 + $0xbd0] sm:$0xff] %v815
      %v817 = vld [vmem:[%s57 + $0xbd8] sm:$0xff]
      %818 = vst [vmem:[%s58 + $0xbd8] sm:$0xff] %v817
      %v819 = vld [vmem:[%s57 + $0xbe0] sm:$0xff]
      %820 = vst [vmem:[%s58 + $0xbe0] sm:$0xff] %v819
      %v821 = vld [vmem:[%s57 + $0xbe8] sm:$0xff]
      %822 = vst [vmem:[%s58 + $0xbe8] sm:$0xff] %v821
      %v823 = vld [vmem:[%s57 + $0xbf0] sm:$0xff]
      %824 = vst [vmem:[%s58 + $0xbf0] sm:$0xff] %v823
      %v825 = vld [vmem:[%s57 + $0xbf8] sm:$0xff]
      %826 = vst [vmem:[%s58 + $0xbf8] sm:$0xff] %v825
      %v827 = vld [vmem:[%s57 + $0xc00] sm:$0xff]
      %828 = vst [vmem:[%s58 + $0xc00] sm:$0xff] %v827
      %v829 = vld [vmem:[%s57 + $0xc08] sm:$0xff]
      %830 = vst [vmem:[%s58 + $0xc08] sm:$0xff] %v829
      %v831 = vld [vmem:[%s57 + $0xc10] sm:$0xff]
      %832 = vst [vmem:[%s58 + $0xc10] sm:$0xff] %v831
      %v833 = vld [vmem:[%s57 + $0xc18] sm:$0xff]
      %834 = vst [vmem:[%s58 + $0xc18] sm:$0xff] %v833
      %v835 = vld [vmem:[%s57 + $0xc20] sm:$0xff]
      %836 = vst [vmem:[%s58 + $0xc20] sm:$0xff] %v835
      %v837 = vld [vmem:[%s57 + $0xc28] sm:$0xff]
      %838 = vst [vmem:[%s58 + $0xc28] sm:$0xff] %v837
      %v839 = vld [vmem:[%s57 + $0xc30] sm:$0xff]
      %840 = vst [vmem:[%s58 + $0xc30] sm:$0xff] %v839
      %v841 = vld [vmem:[%s57 + $0xc38] sm:$0xff]
      %842 = vst [vmem:[%s58 + $0xc38] sm:$0xff] %v841
      %v843 = vld [vmem:[%s57 + $0xc40] sm:$0xff]
      %844 = vst [vmem:[%s58 + $0xc40] sm:$0xff] %v843
      %v845 = vld [vmem:[%s57 + $0xc48] sm:$0xff]
      %846 = vst [vmem:[%s58 + $0xc48] sm:$0xff] %v845
      %v847 = vld [vmem:[%s57 + $0xc50] sm:$0xff]
      %848 = vst [vmem:[%s58 + $0xc50] sm:$0xff] %v847
      %v849 = vld [vmem:[%s57 + $0xc58] sm:$0xff]
      %850 = vst [vmem:[%s58 + $0xc58] sm:$0xff] %v849
      %v851 = vld [vmem:[%s57 + $0xc60] sm:$0xff]
      %852 = vst [vmem:[%s58 + $0xc60] sm:$0xff] %v851
      %v853 = vld [vmem:[%s57 + $0xc68] sm:$0xff]
      %854 = vst [vmem:[%s58 + $0xc68] sm:$0xff] %v853
      %v855 = vld [vmem:[%s57 + $0xc70] sm:$0xff]
      %856 = vst [vmem:[%s58 + $0xc70] sm:$0xff] %v855
      %v857 = vld [vmem:[%s57 + $0xc78] sm:$0xff]
      %858 = vst [vmem:[%s58 + $0xc78] sm:$0xff] %v857
      %v859 = vld [vmem:[%s57 + $0xc80] sm:$0xff]
      %860 = vst [vmem:[%s58 + $0xc80] sm:$0xff] %v859
      %v861 = vld [vmem:[%s57 + $0xc88] sm:$0xff]
      %862 = vst [vmem:[%s58 + $0xc88] sm:$0xff] %v861
      %v863 = vld [vmem:[%s57 + $0xc90] sm:$0xff]
      %864 = vst [vmem:[%s58 + $0xc90] sm:$0xff] %v863
      %v865 = vld [vmem:[%s57 + $0xc98] sm:$0xff]
      %866 = vst [vmem:[%s58 + $0xc98] sm:$0xff] %v865
      %v867 = vld [vmem:[%s57 + $0xca0] sm:$0xff]
      %868 = vst [vmem:[%s58 + $0xca0] sm:$0xff] %v867
      %v869 = vld [vmem:[%s57 + $0xca8] sm:$0xff]
      %870 = vst [vmem:[%s58 + $0xca8] sm:$0xff] %v869
      %v871 = vld [vmem:[%s57 + $0xcb0] sm:$0xff]
      %872 = vst [vmem:[%s58 + $0xcb0] sm:$0xff] %v871
      %v873 = vld [vmem:[%s57 + $0xcb8] sm:$0xff]
      %874 = vst [vmem:[%s58 + $0xcb8] sm:$0xff] %v873
      %v875 = vld [vmem:[%s57 + $0xcc0] sm:$0xff]
      %876 = vst [vmem:[%s58 + $0xcc0] sm:$0xff] %v875
      %v877 = vld [vmem:[%s57 + $0xcc8] sm:$0xff]
      %878 = vst [vmem:[%s58 + $0xcc8] sm:$0xff] %v877
      %v879 = vld [vmem:[%s57 + $0xcd0] sm:$0xff]
      %880 = vst [vmem:[%s58 + $0xcd0] sm:$0xff] %v879
      %v881 = vld [vmem:[%s57 + $0xcd8] sm:$0xff]
      %882 = vst [vmem:[%s58 + $0xcd8] sm:$0xff] %v881
      %v883 = vld [vmem:[%s57 + $0xce0] sm:$0xff]
      %884 = vst [vmem:[%s58 + $0xce0] sm:$0xff] %v883
      %v885 = vld [vmem:[%s57 + $0xce8] sm:$0xff]
      %886 = vst [vmem:[%s58 + $0xce8] sm:$0xff] %v885
      %v887 = vld [vmem:[%s57 + $0xcf0] sm:$0xff]
      %888 = vst [vmem:[%s58 + $0xcf0] sm:$0xff] %v887
      %v889 = vld [vmem:[%s57 + $0xcf8] sm:$0xff]
      %890 = vst [vmem:[%s58 + $0xcf8] sm:$0xff] %v889
    $region66: #{forward.1} parent=60 // loop_footer
      %s56 = sadd.s32 1, %s52
    $region67: #{forward.1} parent=60 // loop_footer_branch
      %51 = sbr.rel target = $region63
    $region68: #{forward.1} parent=60 // loop_exit
      _
  $region61: #{forward.1} parent=0 // pred_fallthru
    _
  // Predicated region
  $region69: #{forward.1} parent=0 // pred_check
    _
  $region70: #{forward.1} parent=0 // pred_check_branch
    %892 = sbr.rel target = $region72
  $region71: #{forward.1} parent=0 // pred_region
    _
  $region72: #{forward.1} parent=0 // pred_fallthru
    _
  // Predicated region
  $region73: #{forward.1} parent=0 // pred_check
    _
  $region74: #{forward.1} parent=0 // pred_check_branch
    %895 = sbr.rel (0) target = $region76
  $region75: #{forward.1} parent=0 // pred_region
    %896 = vsyncadd [#allocation4], 53248
  $region76: #{forward.1} parent=0 // pred_fallthru
    _
  %v897 = vld [vmem:[%s0] sm:$0xff]
  %v898 = vld [vmem:[%s0 + $0x8] sm:$0xff]
  %v899 = vld [vmem:[%s0 + $0x10] sm:$0xff]
  %v900 = vld [vmem:[%s1] sm:$0xf]
  %v901 = vld [vmem:[%s1 + $0x4] sm:$0xf]
  %s902 = scalar_lea.vmem %s1, 8
  %v903 = vld [vmem:[%s902] sm:$0xf]
  %v904 = vld [vmem:[%s902 + $0x4] sm:$0xf]
  %v907 = vunpack.c.l.b16 %v903
  %v908 = vunpack.c.l.b16 %v904
  %v909 = vpack.c.b16 %v908, %v907
  %911 = vst [vmem:[#allocation1] ss:$4 sm:$0xff] %v897
  %s913 = scalar_lea.vmem [#allocation1], 32
  %914 = vst [vmem:[%s913] ss:$4 sm:$0xff] %v898
  %v915 = vld.sshfl [vmem:[#allocation1] sm:$0xff pattern:$0x73625140]
  %v917 = vld.sshfl [vmem:[#allocation1 + $0x8] sm:$0xff pattern:$0x73625140]
  %v919 = vld.sshfl [vmem:[#allocation1 + $0x10] sm:$0xff pattern:$0x73625140]
  %v921 = vld.sshfl [vmem:[#allocation1 + $0x18] sm:$0xff pattern:$0x73625140]
  %v923 = vld.sshfl [vmem:[#allocation1 + $0x20] sm:$0xff pattern:$0x73625140]
  %v925 = vld.sshfl [vmem:[#allocation1 + $0x28] sm:$0xff pattern:$0x73625140]
  %v927 = vld.sshfl [vmem:[#allocation1 + $0x30] sm:$0xff pattern:$0x73625140]
  %v929 = vld.sshfl [vmem:[#allocation1 + $0x38] sm:$0xff pattern:$0x73625140]
  %932 = vst [vmem:[#allocation1] ss:$4 sm:$0xff] %v899
  %v933 = vld.sshfl [vmem:[#allocation1] sm:$0xff pattern:$0x73625140]
  %v935 = vld.sshfl [vmem:[#allocation1 + $0x8] sm:$0xff pattern:$0x73625140]
  %v937 = vld.sshfl [vmem:[#allocation1 + $0x10] sm:$0xff pattern:$0x73625140]
  %v939 = vld.sshfl [vmem:[#allocation1 + $0x18] sm:$0xff pattern:$0x73625140]
  %941 = vrot.lane.b32.xlu0 %v915, 126
  %v942 = vpop.permute.xlu0 %941
  %943 = vrot.lane.b32.xlu0 %v917, 126
  %v944 = vpop.permute.xlu0 %943
  %945 = vrot.lane.b32.xlu0 %v919, 126
  %v946 = vpop.permute.xlu0 %945
  %947 = vrot.lane.b32.xlu0 %v921, 126
  %v948 = vpop.permute.xlu0 %947
  %949 = vrot.lane.b32.xlu0 %v923, 126
  %v950 = vpop.permute.xlu0 %949
  %951 = vrot.lane.b32.xlu0 %v925, 126
  %v952 = vpop.permute.xlu0 %951
  %953 = vrot.lane.b32.xlu0 %v927, 126
  %v954 = vpop.permute.xlu0 %953
  %955 = vrot.lane.b32.xlu0 %v929, 126
  %v956 = vpop.permute.xlu0 %955
  %957 = vrot.lane.b32.xlu0 %v933, 126
  %v958 = vpop.permute.xlu0 %957
  %959 = vrot.lane.b32.xlu0 %v935, 126
  %v960 = vpop.permute.xlu0 %959
  %961 = vrot.lane.b32.xlu0 %v937, 126
  %v962 = vpop.permute.xlu0 %961
  %963 = vrot.lane.b32.xlu0 %v939, 126
  %v964 = vpop.permute.xlu0 %963
  %vm965 = vcmask 1031168
  %v966 = vsel %vm965, %v942, %v944
  %v967 = vsel %vm965, %v944, %v946
  %v968 = vsel %vm965, %v946, %v948
  %v969 = vsel %vm965, %v948, %v950
  %v970 = vsel %vm965, %v950, %v952
  %v971 = vsel %vm965, %v952, %v954
  %v972 = vsel %vm965, %v954, %v956
  %v973 = vsel %vm965, %v956, %v958
  %v974 = vsel %vm965, %v958, %v960
  %v975 = vsel %vm965, %v960, %v962
  %v976 = vsel %vm965, %v962, %v964
  %vm977 = vcmask 23552
  %v979 = vsel %vm977, %v909, 0
  %vm981 = vcmask 1040384
  %vm982 = vcmask 1041408
  %v983 = vsel %vm981, 4294967295, 65535
  %v984 = vsel %vm982, %v983, 0
  %v986 = vand.u32 %v966, %v984
  %v989 = vand.u32 %v967, %v984
  %v992 = vand.u32 %v968, %v984
  %v995 = vand.u32 %v969, %v984
  %v998 = vand.u32 %v970, %v984
  %v1001 = vand.u32 %v971, %v984
  %v1004 = vand.u32 %v972, %v984
  %v1007 = vand.u32 %v973, %v984
  %v1010 = vand.u32 %v974, %v984
  %v1013 = vand.u32 %v975, %v984
  %v1016 = vand.u32 %v976, %v984
  %v1019 = vand.u32 %v964, %v984
  %1021 = vmatpush.bf16.msra.mxu0 0
  %1022 = vmatpush.bf16.msra.mxu0 0
  %1023 = vmatpush.bf16.msra.mxu0 0
  %1024 = vmatpush.bf16.msra.mxu0 0
  %1025 = vmatpush.bf16.msra.mxu0 0
  %1026 = vmatpush.bf16.msra.mxu0 0
  %1027 = vmatpush.bf16.msra.mxu0 0
  %1028 = vmatpush.bf16.msra.mxu0 %v986
  %1029 = vmatmul.bf16.gmra.mxu0 %v979
  %v1030 = vpop.f32.mrf.mxu0
  %v1031 = vadd.f32 0.0, %v1030
  %v1032 = vpop.f32.mrf.mxu0
  %v1033 = vadd.f32 0.0, %v1032
  %1034 = vdwg.mxu0
  %1035 = vmatpush.bf16.msra.mxu0 0
  %1036 = vmatpush.bf16.msra.mxu0 0
  %1037 = vmatpush.bf16.msra.mxu0 0
  %1038 = vmatpush.bf16.msra.mxu0 0
  %1039 = vmatpush.bf16.msra.mxu0 0
  %1040 = vmatpush.bf16.msra.mxu0 0
  %1041 = vmatpush.bf16.msra.mxu0 0
  %1042 = vmatpush.bf16.msra.mxu0 %v989
  %1043 = vmatmul.bf16.gmra.mxu0 %v979
  %v1044 = vpop.f32.mrf.mxu0
  %v1045 = vadd.f32 0.0, %v1044
  %v1046 = vpop.f32.mrf.mxu0
  %v1047 = vadd.f32 0.0, %v1046
  %1048 = vdwg.mxu0
  %1049 = vmatpush.bf16.msra.mxu0 0
  %1050 = vmatpush.bf16.msra.mxu0 0
  %1051 = vmatpush.bf16.msra.mxu0 0
  %1052 = vmatpush.bf16.msra.mxu0 0
  %1053 = vmatpush.bf16.msra.mxu0 0
  %1054 = vmatpush.bf16.msra.mxu0 0
  %1055 = vmatpush.bf16.msra.mxu0 0
  %1056 = vmatpush.bf16.msra.mxu0 %v992
  %1057 = vmatmul.bf16.gmra.mxu0 %v979
  %v1058 = vpop.f32.mrf.mxu0
  %v1059 = vadd.f32 0.0, %v1058
  %v1060 = vpop.f32.mrf.mxu0
  %v1061 = vadd.f32 0.0, %v1060
  %1062 = vdwg.mxu0
  %1063 = vmatpush.bf16.msra.mxu0 0
  %1064 = vmatpush.bf16.msra.mxu0 0
  %1065 = vmatpush.bf16.msra.mxu0 0
  %1066 = vmatpush.bf16.msra.mxu0 0
  %1067 = vmatpush.bf16.msra.mxu0 0
  %1068 = vmatpush.bf16.msra.mxu0 0
  %1069 = vmatpush.bf16.msra.mxu0 0
  %1070 = vmatpush.bf16.msra.mxu0 %v995
  %1071 = vmatmul.bf16.gmra.mxu0 %v979
  %v1072 = vpop.f32.mrf.mxu0
  %v1073 = vadd.f32 0.0, %v1072
  %v1074 = vpop.f32.mrf.mxu0
  %v1075 = vadd.f32 0.0, %v1074
  %1076 = vdwg.mxu0
  %1077 = vmatpush.bf16.msra.mxu0 0
  %1078 = vmatpush.bf16.msra.mxu0 0
  %1079 = vmatpush.bf16.msra.mxu0 0
  %1080 = vmatpush.bf16.msra.mxu0 0
  %1081 = vmatpush.bf16.msra.mxu0 0
  %1082 = vmatpush.bf16.msra.mxu0 0
  %1083 = vmatpush.bf16.msra.mxu0 0
  %1084 = vmatpush.bf16.msra.mxu0 %v998
  %1085 = vmatmul.bf16.gmra.mxu0 %v979
  %v1086 = vpop.f32.mrf.mxu0
  %v1087 = vadd.f32 0.0, %v1086
  %v1088 = vpop.f32.mrf.mxu0
  %v1089 = vadd.f32 0.0, %v1088
  %1090 = vdwg.mxu0
  %1091 = vmatpush.bf16.msra.mxu0 0
  %1092 = vmatpush.bf16.msra.mxu0 0
  %1093 = vmatpush.bf16.msra.mxu0 0
  %1094 = vmatpush.bf16.msra.mxu0 0
  %1095 = vmatpush.bf16.msra.mxu0 0
  %1096 = vmatpush.bf16.msra.mxu0 0
  %1097 = vmatpush.bf16.msra.mxu0 0
  %1098 = vmatpush.bf16.msra.mxu0 %v1001
  %1099 = vmatmul.bf16.gmra.mxu0 %v979
  %v1100 = vpop.f32.mrf.mxu0
  %v1101 = vadd.f32 0.0, %v1100
  %v1102 = vpop.f32.mrf.mxu0
  %v1103 = vadd.f32 0.0, %v1102
  %1104 = vdwg.mxu0
  %1105 = vmatpush.bf16.msra.mxu0 0
  %1106 = vmatpush.bf16.msra.mxu0 0
  %1107 = vmatpush.bf16.msra.mxu0 0
  %1108 = vmatpush.bf16.msra.mxu0 0
  %1109 = vmatpush.bf16.msra.mxu0 0
  %1110 = vmatpush.bf16.msra.mxu0 0
  %1111 = vmatpush.bf16.msra.mxu0 0
  %1112 = vmatpush.bf16.msra.mxu0 %v1004
  %1113 = vmatmul.bf16.gmra.mxu0 %v979
  %v1114 = vpop.f32.mrf.mxu0
  %v1115 = vadd.f32 0.0, %v1114
  %v1116 = vpop.f32.mrf.mxu0
  %v1117 = vadd.f32 0.0, %v1116
  %1118 = vdwg.mxu0
  %1119 = vmatpush.bf16.msra.mxu0 0
  %1120 = vmatpush.bf16.msra.mxu0 0
  %1121 = vmatpush.bf16.msra.mxu0 0
  %1122 = vmatpush.bf16.msra.mxu0 0
  %1123 = vmatpush.bf16.msra.mxu0 0
  %1124 = vmatpush.bf16.msra.mxu0 0
  %1125 = vmatpush.bf16.msra.mxu0 0
  %1126 = vmatpush.bf16.msra.mxu0 %v1007
  %1127 = vmatmul.bf16.gmra.mxu0 %v979
  %v1128 = vpop.f32.mrf.mxu0
  %v1129 = vadd.f32 0.0, %v1128
  %v1130 = vpop.f32.mrf.mxu0
  %v1131 = vadd.f32 0.0, %v1130
  %1132 = vdwg.mxu0
  %1133 = vmatpush.bf16.msra.mxu0 0
  %1134 = vmatpush.bf16.msra.mxu0 0
  %1135 = vmatpush.bf16.msra.mxu0 0
  %1136 = vmatpush.bf16.msra.mxu0 0
  %1137 = vmatpush.bf16.msra.mxu0 0
  %1138 = vmatpush.bf16.msra.mxu0 0
  %1139 = vmatpush.bf16.msra.mxu0 0
  %1140 = vmatpush.bf16.msra.mxu0 %v1010
  %1141 = vmatmul.bf16.gmra.mxu0 %v979
  %v1142 = vpop.f32.mrf.mxu0
  %v1143 = vadd.f32 0.0, %v1142
  %v1144 = vpop.f32.mrf.mxu0
  %v1145 = vadd.f32 0.0, %v1144
  %1146 = vdwg.mxu0
  %1147 = vmatpush.bf16.msra.mxu0 0
  %1148 = vmatpush.bf16.msra.mxu0 0
  %1149 = vmatpush.bf16.msra.mxu0 0
  %1150 = vmatpush.bf16.msra.mxu0 0
  %1151 = vmatpush.bf16.msra.mxu0 0
  %1152 = vmatpush.bf16.msra.mxu0 0
  %1153 = vmatpush.bf16.msra.mxu0 0
  %1154 = vmatpush.bf16.msra.mxu0 %v1013
  %1155 = vmatmul.bf16.gmra.mxu0 %v979
  %v1156 = vpop.f32.mrf.mxu0
  %v1157 = vadd.f32 0.0, %v1156
  %v1158 = vpop.f32.mrf.mxu0
  %v1159 = vadd.f32 0.0, %v1158
  %1160 = vdwg.mxu0
  %1161 = vmatpush.bf16.msra.mxu0 0
  %1162 = vmatpush.bf16.msra.mxu0 0
  %1163 = vmatpush.bf16.msra.mxu0 0
  %1164 = vmatpush.bf16.msra.mxu0 0
  %1165 = vmatpush.bf16.msra.mxu0 0
  %1166 = vmatpush.bf16.msra.mxu0 0
  %1167 = vmatpush.bf16.msra.mxu0 0
  %1168 = vmatpush.bf16.msra.mxu0 %v1016
  %1169 = vmatmul.bf16.gmra.mxu0 %v979
  %v1170 = vpop.f32.mrf.mxu0
  %v1171 = vadd.f32 0.0, %v1170
  %v1172 = vpop.f32.mrf.mxu0
  %v1173 = vadd.f32 0.0, %v1172
  %1174 = vdwg.mxu0
  %1175 = vmatpush.bf16.msra.mxu0 0
  %1176 = vmatpush.bf16.msra.mxu0 0
  %1177 = vmatpush.bf16.msra.mxu0 0
  %1178 = vmatpush.bf16.msra.mxu0 0
  %1179 = vmatpush.bf16.msra.mxu0 0
  %1180 = vmatpush.bf16.msra.mxu0 0
  %1181 = vmatpush.bf16.msra.mxu0 0
  %1182 = vmatpush.bf16.msra.mxu0 %v1019
  %1183 = vmatmul.bf16.gmra.mxu0 %v979
  %v1184 = vpop.f32.mrf.mxu0
  %v1185 = vadd.f32 0.0, %v1184
  %v1186 = vpop.f32.mrf.mxu0
  %v1187 = vadd.f32 0.0, %v1186
  %1188 = vdwg.mxu0
  %v1191 = vunpack.c.l.b16 %v900
  %v1192 = vunpack.c.l.b16 %v901
  %v1193 = vpack.c.b16 %v1192, %v1191
  %1194 = vst [vmem:[#allocation1] ss:$4 sm:$0xff] %v897
  %s1195 = scalar_lea.vmem [#allocation1], 32
  %1196 = vst [vmem:[%s1195] ss:$4 sm:$0xff] %v898
  %v1197 = vld.sshfl [vmem:[#allocation1] sm:$0xff pattern:$0x73625140]
  %v1198 = vld.sshfl [vmem:[#allocation1 + $0x8] sm:$0xff pattern:$0x73625140]
  %v1199 = vld.sshfl [vmem:[#allocation1 + $0x10] sm:$0xff pattern:$0x73625140]
  %v1200 = vld.sshfl [vmem:[#allocation1 + $0x18] sm:$0xff pattern:$0x73625140]
  %v1201 = vld.sshfl [vmem:[#allocation1 + $0x20] sm:$0xff pattern:$0x73625140]
  %v1202 = vld.sshfl [vmem:[#allocation1 + $0x28] sm:$0xff pattern:$0x73625140]
  %v1203 = vld.sshfl [vmem:[#allocation1 + $0x30] sm:$0xff pattern:$0x73625140]
  %v1204 = vld.sshfl [vmem:[#allocation1 + $0x38] sm:$0xff pattern:$0x73625140]
  %1205 = vst [vmem:[#allocation1] ss:$4 sm:$0xff] %v899
  %v1206 = vld.sshfl [vmem:[#allocation1] sm:$0xff pattern:$0x73625140]
  %v1207 = vld.sshfl [vmem:[#allocation1 + $0x8] sm:$0xff pattern:$0x73625140]
  %v1208 = vld.sshfl [vmem:[#allocation1 + $0x10] sm:$0xff pattern:$0x73625140]
  %v1209 = vld.sshfl [vmem:[#allocation1 + $0x18] sm:$0xff pattern:$0x73625140]
  %v1211 = vsel %vm977, %v1193, 0
  %v1213 = vand.u32 %v1197, %v984
  %v1215 = vand.u32 %v1198, %v984
  %v1217 = vand.u32 %v1199, %v984
  %v1219 = vand.u32 %v1200, %v984
  %v1221 = vand.u32 %v1201, %v984
  %v1223 = vand.u32 %v1202, %v984
  %v1225 = vand.u32 %v1203, %v984
  %v1227 = vand.u32 %v1204, %v984
  %v1229 = vand.u32 %v1206, %v984
  %v1231 = vand.u32 %v1207, %v984
  %v1233 = vand.u32 %v1208, %v984
  %v1235 = vand.u32 %v1209, %v984
  %1237 = vmatpush.bf16.msra.mxu0 0
  %1238 = vmatpush.bf16.msra.mxu0 0
  %1239 = vmatpush.bf16.msra.mxu0 0
  %1240 = vmatpush.bf16.msra.mxu0 0
  %1241 = vmatpush.bf16.msra.mxu0 0
  %1242 = vmatpush.bf16.msra.mxu0 0
  %1243 = vmatpush.bf16.msra.mxu0 0
  %1244 = vmatpush.bf16.msra.mxu0 %v1213
  %1245 = vmatmul.bf16.gmra.mxu0 %v1211
  %v1246 = vpop.f32.mrf.mxu0
  %v1247 = vadd.f32 %v1031, %v1246
  %v1248 = vpop.f32.mrf.mxu0
  %v1249 = vadd.f32 %v1033, %v1248
  %1250 = vdwg.mxu0
  %1251 = vmatpush.bf16.msra.mxu0 0
  %1252 = vmatpush.bf16.msra.mxu0 0
  %1253 = vmatpush.bf16.msra.mxu0 0
  %1254 = vmatpush.bf16.msra.mxu0 0
  %1255 = vmatpush.bf16.msra.mxu0 0
  %1256 = vmatpush.bf16.msra.mxu0 0
  %1257 = vmatpush.bf16.msra.mxu0 0
  %1258 = vmatpush.bf16.msra.mxu0 %v1215
  %1259 = vmatmul.bf16.gmra.mxu0 %v1211
  %v1260 = vpop.f32.mrf.mxu0
  %v1261 = vadd.f32 %v1045, %v1260
  %v1262 = vpop.f32.mrf.mxu0
  %v1263 = vadd.f32 %v1047, %v1262
  %1264 = vdwg.mxu0
  %1265 = vmatpush.bf16.msra.mxu0 0
  %1266 = vmatpush.bf16.msra.mxu0 0
  %1267 = vmatpush.bf16.msra.mxu0 0
  %1268 = vmatpush.bf16.msra.mxu0 0
  %1269 = vmatpush.bf16.msra.mxu0 0
  %1270 = vmatpush.bf16.msra.mxu0 0
  %1271 = vmatpush.bf16.msra.mxu0 0
  %1272 = vmatpush.bf16.msra.mxu0 %v1217
  %1273 = vmatmul.bf16.gmra.mxu0 %v1211
  %v1274 = vpop.f32.mrf.mxu0
  %v1275 = vadd.f32 %v1059, %v1274
  %v1276 = vpop.f32.mrf.mxu0
  %v1277 = vadd.f32 %v1061, %v1276
  %1278 = vdwg.mxu0
  %1279 = vmatpush.bf16.msra.mxu0 0
  %1280 = vmatpush.bf16.msra.mxu0 0
  %1281 = vmatpush.bf16.msra.mxu0 0
  %1282 = vmatpush.bf16.msra.mxu0 0
  %1283 = vmatpush.bf16.msra.mxu0 0
  %1284 = vmatpush.bf16.msra.mxu0 0
  %1285 = vmatpush.bf16.msra.mxu0 0
  %1286 = vmatpush.bf16.msra.mxu0 %v1219
  %1287 = vmatmul.bf16.gmra.mxu0 %v1211
  %v1288 = vpop.f32.mrf.mxu0
  %v1289 = vadd.f32 %v1073, %v1288
  %v1290 = vpop.f32.mrf.mxu0
  %v1291 = vadd.f32 %v1075, %v1290
  %1292 = vdwg.mxu0
  %1293 = vmatpush.bf16.msra.mxu0 0
  %1294 = vmatpush.bf16.msra.mxu0 0
  %1295 = vmatpush.bf16.msra.mxu0 0
  %1296 = vmatpush.bf16.msra.mxu0 0
  %1297 = vmatpush.bf16.msra.mxu0 0
  %1298 = vmatpush.bf16.msra.mxu0 0
  %1299 = vmatpush.bf16.msra.mxu0 0
  %1300 = vmatpush.bf16.msra.mxu0 %v1221
  %1301 = vmatmul.bf16.gmra.mxu0 %v1211
  %v1302 = vpop.f32.mrf.mxu0
  %v1303 = vadd.f32 %v1087, %v1302
  %v1304 = vpop.f32.mrf.mxu0
  %v1305 = vadd.f32 %v1089, %v1304
  %1306 = vdwg.mxu0
  %1307 = vmatpush.bf16.msra.mxu0 0
  %1308 = vmatpush.bf16.msra.mxu0 0
  %1309 = vmatpush.bf16.msra.mxu0 0
  %1310 = vmatpush.bf16.msra.mxu0 0
  %1311 = vmatpush.bf16.msra.mxu0 0
  %1312 = vmatpush.bf16.msra.mxu0 0
  %1313 = vmatpush.bf16.msra.mxu0 0
  %1314 = vmatpush.bf16.msra.mxu0 %v1223
  %1315 = vmatmul.bf16.gmra.mxu0 %v1211
  %v1316 = vpop.f32.mrf.mxu0
  %v1317 = vadd.f32 %v1101, %v1316
  %v1318 = vpop.f32.mrf.mxu0
  %v1319 = vadd.f32 %v1103, %v1318
  %1320 = vdwg.mxu0
  %1321 = vmatpush.bf16.msra.mxu0 0
  %1322 = vmatpush.bf16.msra.mxu0 0
  %1323 = vmatpush.bf16.msra.mxu0 0
  %1324 = vmatpush.bf16.msra.mxu0 0
  %1325 = vmatpush.bf16.msra.mxu0 0
  %1326 = vmatpush.bf16.msra.mxu0 0
  %1327 = vmatpush.bf16.msra.mxu0 0
  %1328 = vmatpush.bf16.msra.mxu0 %v1225
  %1329 = vmatmul.bf16.gmra.mxu0 %v1211
  %v1330 = vpop.f32.mrf.mxu0
  %v1331 = vadd.f32 %v1115, %v1330
  %v1332 = vpop.f32.mrf.mxu0
  %v1333 = vadd.f32 %v1117, %v1332
  %1334 = vdwg.mxu0
  %1335 = vmatpush.bf16.msra.mxu0 0
  %1336 = vmatpush.bf16.msra.mxu0 0
  %1337 = vmatpush.bf16.msra.mxu0 0
  %1338 = vmatpush.bf16.msra.mxu0 0
  %1339 = vmatpush.bf16.msra.mxu0 0
  %1340 = vmatpush.bf16.msra.mxu0 0
  %1341 = vmatpush.bf16.msra.mxu0 0
  %1342 = vmatpush.bf16.msra.mxu0 %v1227
  %1343 = vmatmul.bf16.gmra.mxu0 %v1211
  %v1344 = vpop.f32.mrf.mxu0
  %v1345 = vadd.f32 %v1129, %v1344
  %v1346 = vpop.f32.mrf.mxu0
  %v1347 = vadd.f32 %v1131, %v1346
  %1348 = vdwg.mxu0
  %1349 = vmatpush.bf16.msra.mxu0 0
  %1350 = vmatpush.bf16.msra.mxu0 0
  %1351 = vmatpush.bf16.msra.mxu0 0
  %1352 = vmatpush.bf16.msra.mxu0 0
  %1353 = vmatpush.bf16.msra.mxu0 0
  %1354 = vmatpush.bf16.msra.mxu0 0
  %1355 = vmatpush.bf16.msra.mxu0 0
  %1356 = vmatpush.bf16.msra.mxu0 %v1229
  %1357 = vmatmul.bf16.gmra.mxu0 %v1211
  %v1358 = vpop.f32.mrf.mxu0
  %v1359 = vadd.f32 %v1143, %v1358
  %v1360 = vpop.f32.mrf.mxu0
  %v1361 = vadd.f32 %v1145, %v1360
  %1362 = vdwg.mxu0
  %1363 = vmatpush.bf16.msra.mxu0 0
  %1364 = vmatpush.bf16.msra.mxu0 0
  %1365 = vmatpush.bf16.msra.mxu0 0
  %1366 = vmatpush.bf16.msra.mxu0 0
  %1367 = vmatpush.bf16.msra.mxu0 0
  %1368 = vmatpush.bf16.msra.mxu0 0
  %1369 = vmatpush.bf16.msra.mxu0 0
  %1370 = vmatpush.bf16.msra.mxu0 %v1231
  %1371 = vmatmul.bf16.gmra.mxu0 %v1211
  %v1372 = vpop.f32.mrf.mxu0
  %v1373 = vadd.f32 %v1157, %v1372
  %v1374 = vpop.f32.mrf.mxu0
  %v1375 = vadd.f32 %v1159, %v1374
  %1376 = vdwg.mxu0
  %1377 = vmatpush.bf16.msra.mxu0 0
  %1378 = vmatpush.bf16.msra.mxu0 0
  %1379 = vmatpush.bf16.msra.mxu0 0
  %1380 = vmatpush.bf16.msra.mxu0 0
  %1381 = vmatpush.bf16.msra.mxu0 0
  %1382 = vmatpush.bf16.msra.mxu0 0
  %1383 = vmatpush.bf16.msra.mxu0 0
  %1384 = vmatpush.bf16.msra.mxu0 %v1233
  %1385 = vmatmul.bf16.gmra.mxu0 %v1211
  %v1386 = vpop.f32.mrf.mxu0
  %v1387 = vadd.f32 %v1171, %v1386
  %v1388 = vpop.f32.mrf.mxu0
  %v1389 = vadd.f32 %v1173, %v1388
  %1390 = vdwg.mxu0
  %1391 = vmatpush.bf16.msra.mxu0 0
  %1392 = vmatpush.bf16.msra.mxu0 0
  %1393 = vmatpush.bf16.msra.mxu0 0
  %1394 = vmatpush.bf16.msra.mxu0 0
  %1395 = vmatpush.bf16.msra.mxu0 0
  %1396 = vmatpush.bf16.msra.mxu0 0
  %1397 = vmatpush.bf16.msra.mxu0 0
  %1398 = vmatpush.bf16.msra.mxu0 %v1235
  %1399 = vmatmul.bf16.gmra.mxu0 %v1211
  %v1400 = vpop.f32.mrf.mxu0
  %v1401 = vadd.f32 %v1185, %v1400
  %v1402 = vpop.f32.mrf.mxu0
  %v1403 = vadd.f32 %v1187, %v1402
  %1404 = vdwg.mxu0
  %s1405 = scalar_lea.vmem %s1, 16
  %v1406 = vld [vmem:[%s1405] sm:$0xf]
  %v1407 = vld [vmem:[%s1405 + $0x4] sm:$0xf]
  %v1410 = vunpack.c.l.b16 %v1406
  %v1411 = vunpack.c.l.b16 %v1407
  %v1412 = vpack.c.b16 %v1411, %v1410
  %1413 = vst [vmem:[#allocation1] ss:$4 sm:$0xff] %v897
  %s1414 = scalar_lea.vmem [#allocation1], 32
  %1415 = vst [vmem:[%s1414] ss:$4 sm:$0xff] %v898
  %v1416 = vld.sshfl [vmem:[#allocation1] sm:$0xff pattern:$0x73625140]
  %v1418 = vld.sshfl [vmem:[#allocation1 + $0x8] sm:$0xff pattern:$0x73625140]
  %v1420 = vld.sshfl [vmem:[#allocation1 + $0x10] sm:$0xff pattern:$0x73625140]
  %v1422 = vld.sshfl [vmem:[#allocation1 + $0x18] sm:$0xff pattern:$0x73625140]
  %v1424 = vld.sshfl [vmem:[#allocation1 + $0x20] sm:$0xff pattern:$0x73625140]
  %v1426 = vld.sshfl [vmem:[#allocation1 + $0x28] sm:$0xff pattern:$0x73625140]
  %v1428 = vld.sshfl [vmem:[#allocation1 + $0x30] sm:$0xff pattern:$0x73625140]
  %v1430 = vld.sshfl [vmem:[#allocation1 + $0x38] sm:$0xff pattern:$0x73625140]
  %1432 = vst [vmem:[#allocation1] ss:$4 sm:$0xff] %v899
  %v1433 = vld.sshfl [vmem:[#allocation1] sm:$0xff pattern:$0x73625140]
  %v1435 = vld.sshfl [vmem:[#allocation1 + $0x8] sm:$0xff pattern:$0x73625140]
  %v1437 = vld.sshfl [vmem:[#allocation1 + $0x10] sm:$0xff pattern:$0x73625140]
  %v1439 = vld.sshfl [vmem:[#allocation1 + $0x18] sm:$0xff pattern:$0x73625140]
  %1441 = vrot.lane.b32.xlu0 %v1416, 72
  %v1442 = vpop.permute.xlu0 %1441
  %1443 = vrot.lane.b32.xlu0 %v1418, 72
  %v1444 = vpop.permute.xlu0 %1443
  %1445 = vrot.lane.b32.xlu0 %v1420, 72
  %v1446 = vpop.permute.xlu0 %1445
  %1447 = vrot.lane.b32.xlu0 %v1422, 72
  %v1448 = vpop.permute.xlu0 %1447
  %1449 = vrot.lane.b32.xlu0 %v1424, 72
  %v1450 = vpop.permute.xlu0 %1449
  %1451 = vrot.lane.b32.xlu0 %v1426, 72
  %v1452 = vpop.permute.xlu0 %1451
  %1453 = vrot.lane.b32.xlu0 %v1428, 72
  %v1454 = vpop.permute.xlu0 %1453
  %1455 = vrot.lane.b32.xlu0 %v1430, 72
  %v1456 = vpop.permute.xlu0 %1455
  %1457 = vrot.lane.b32.xlu0 %v1433, 72
  %v1458 = vpop.permute.xlu0 %1457
  %1459 = vrot.lane.b32.xlu0 %v1435, 72
  %v1460 = vpop.permute.xlu0 %1459
  %1461 = vrot.lane.b32.xlu0 %v1437, 72
  %v1462 = vpop.permute.xlu0 %1461
  %1463 = vrot.lane.b32.xlu0 %v1439, 72
  %v1464 = vpop.permute.xlu0 %1463
  %vm1465 = vcmask 588800
  %v1466 = vsel %vm1465, %v1442, %v1444
  %v1467 = vsel %vm1465, %v1444, %v1446
  %v1468 = vsel %vm1465, %v1446, %v1448
  %v1469 = vsel %vm1465, %v1448, %v1450
  %v1470 = vsel %vm1465, %v1450, %v1452
  %v1471 = vsel %vm1465, %v1452, %v1454
  %v1472 = vsel %vm1465, %v1454, %v1456
  %v1473 = vsel %vm1465, %v1456, %v1458
  %v1474 = vsel %vm1465, %v1458, %v1460
  %v1475 = vsel %vm1465, %v1460, %v1462
  %v1476 = vsel %vm1465, %v1462, %v1464
  %v1478 = vsel %vm977, %v1412, 0
  %v1481 = vand.u32 %v1466, %v984
  %v1484 = vand.u32 %v1467, %v984
  %v1487 = vand.u32 %v1468, %v984
  %v1490 = vand.u32 %v1469, %v984
  %v1493 = vand.u32 %v1470, %v984
  %v1496 = vand.u32 %v1471, %v984
  %v1499 = vand.u32 %v1472, %v984
  %v1502 = vand.u32 %v1473, %v984
  %v1505 = vand.u32 %v1474, %v984
  %v1508 = vand.u32 %v1475, %v984
  %v1511 = vand.u32 %v1476, %v984
  %v1514 = vand.u32 %v1464, %v984
  %1516 = vmatpush.bf16.msra.mxu0 0
  %1517 = vmatpush.bf16.msra.mxu0 0
  %1518 = vmatpush.bf16.msra.mxu0 0
  %1519 = vmatpush.bf16.msra.mxu0 0
  %1520 = vmatpush.bf16.msra.mxu0 0
  %1521 = vmatpush.bf16.msra.mxu0 0
  %1522 = vmatpush.bf16.msra.mxu0 0
  %1523 = vmatpush.bf16.msra.mxu0 %v1481
  %1524 = vmatmul.bf16.gmra.mxu0 %v1478
  %v1525 = vpop.f32.mrf.mxu0
  %v1526 = vadd.f32 0.0, %v1525
  %v1527 = vpop.f32.mrf.mxu0
  %v1528 = vadd.f32 0.0, %v1527
  %1529 = vdwg.mxu0
  %1530 = vmatpush.bf16.msra.mxu0 0
  %1531 = vmatpush.bf16.msra.mxu0 0
  %1532 = vmatpush.bf16.msra.mxu0 0
  %1533 = vmatpush.bf16.msra.mxu0 0
  %1534 = vmatpush.bf16.msra.mxu0 0
  %1535 = vmatpush.bf16.msra.mxu0 0
  %1536 = vmatpush.bf16.msra.mxu0 0
  %1537 = vmatpush.bf16.msra.mxu0 %v1484
  %1538 = vmatmul.bf16.gmra.mxu0 %v1478
  %v1539 = vpop.f32.mrf.mxu0
  %v1540 = vadd.f32 0.0, %v1539
  %v1541 = vpop.f32.mrf.mxu0
  %v1542 = vadd.f32 0.0, %v1541
  %1543 = vdwg.mxu0
  %1544 = vmatpush.bf16.msra.mxu0 0
  %1545 = vmatpush.bf16.msra.mxu0 0
  %1546 = vmatpush.bf16.msra.mxu0 0
  %1547 = vmatpush.bf16.msra.mxu0 0
  %1548 = vmatpush.bf16.msra.mxu0 0
  %1549 = vmatpush.bf16.msra.mxu0 0
  %1550 = vmatpush.bf16.msra.mxu0 0
  %1551 = vmatpush.bf16.msra.mxu0 %v1487
  %1552 = vmatmul.bf16.gmra.mxu0 %v1478
  %v1553 = vpop.f32.mrf.mxu0
  %v1554 = vadd.f32 0.0, %v1553
  %v1555 = vpop.f32.mrf.mxu0
  %v1556 = vadd.f32 0.0, %v1555
  %1557 = vdwg.mxu0
  %1558 = vmatpush.bf16.msra.mxu0 0
  %1559 = vmatpush.bf16.msra.mxu0 0
  %1560 = vmatpush.bf16.msra.mxu0 0
  %1561 = vmatpush.bf16.msra.mxu0 0
  %1562 = vmatpush.bf16.msra.mxu0 0
  %1563 = vmatpush.bf16.msra.mxu0 0
  %1564 = vmatpush.bf16.msra.mxu0 0
  %1565 = vmatpush.bf16.msra.mxu0 %v1490
  %1566 = vmatmul.bf16.gmra.mxu0 %v1478
  %v1567 = vpop.f32.mrf.mxu0
  %v1568 = vadd.f32 0.0, %v1567
  %v1569 = vpop.f32.mrf.mxu0
  %v1570 = vadd.f32 0.0, %v1569
  %1571 = vdwg.mxu0
  %1572 = vmatpush.bf16.msra.mxu0 0
  %1573 = vmatpush.bf16.msra.mxu0 0
  %1574 = vmatpush.bf16.msra.mxu0 0
  %1575 = vmatpush.bf16.msra.mxu0 0
  %1576 = vmatpush.bf16.msra.mxu0 0
  %1577 = vmatpush.bf16.msra.mxu0 0
  %1578 = vmatpush.bf16.msra.mxu0 0
  %1579 = vmatpush.bf16.msra.mxu0 %v1493
  %1580 = vmatmul.bf16.gmra.mxu0 %v1478
  %v1581 = vpop.f32.mrf.mxu0
  %v1582 = vadd.f32 0.0, %v1581
  %v1583 = vpop.f32.mrf.mxu0
  %v1584 = vadd.f32 0.0, %v1583
  %1585 = vdwg.mxu0
  %1586 = vmatpush.bf16.msra.mxu0 0
  %1587 = vmatpush.bf16.msra.mxu0 0
  %1588 = vmatpush.bf16.msra.mxu0 0
  %1589 = vmatpush.bf16.msra.mxu0 0
  %1590 = vmatpush.bf16.msra.mxu0 0
  %1591 = vmatpush.bf16.msra.mxu0 0
  %1592 = vmatpush.bf16.msra.mxu0 0
  %1593 = vmatpush.bf16.msra.mxu0 %v1496
  %1594 = vmatmul.bf16.gmra.mxu0 %v1478
  %v1595 = vpop.f32.mrf.mxu0
  %v1596 = vadd.f32 0.0, %v1595
  %v1597 = vpop.f32.mrf.mxu0
  %v1598 = vadd.f32 0.0, %v1597
  %1599 = vdwg.mxu0
  %1600 = vmatpush.bf16.msra.mxu0 0
  %1601 = vmatpush.bf16.msra.mxu0 0
  %1602 = vmatpush.bf16.msra.mxu0 0
  %1603 = vmatpush.bf16.msra.mxu0 0
  %1604 = vmatpush.bf16.msra.mxu0 0
  %1605 = vmatpush.bf16.msra.mxu0 0
  %1606 = vmatpush.bf16.msra.mxu0 0
  %1607 = vmatpush.bf16.msra.mxu0 %v1499
  %1608 = vmatmul.bf16.gmra.mxu0 %v1478
  %v1609 = vpop.f32.mrf.mxu0
  %v1610 = vadd.f32 0.0, %v1609
  %v1611 = vpop.f32.mrf.mxu0
  %v1612 = vadd.f32 0.0, %v1611
  %1613 = vdwg.mxu0
  %1614 = vmatpush.bf16.msra.mxu0 0
  %1615 = vmatpush.bf16.msra.mxu0 0
  %1616 = vmatpush.bf16.msra.mxu0 0
  %1617 = vmatpush.bf16.msra.mxu0 0
  %1618 = vmatpush.bf16.msra.mxu0 0
  %1619 = vmatpush.bf16.msra.mxu0 0
  %1620 = vmatpush.bf16.msra.mxu0 0
  %1621 = vmatpush.bf16.msra.mxu0 %v1502
  %1622 = vmatmul.bf16.gmra.mxu0 %v1478
  %v1623 = vpop.f32.mrf.mxu0
  %v1624 = vadd.f32 0.0, %v1623
  %v1625 = vpop.f32.mrf.mxu0
  %v1626 = vadd.f32 0.0, %v1625
  %1627 = vdwg.mxu0
  %1628 = vmatpush.bf16.msra.mxu0 0
  %1629 = vmatpush.bf16.msra.mxu0 0
  %1630 = vmatpush.bf16.msra.mxu0 0
  %1631 = vmatpush.bf16.msra.mxu0 0
  %1632 = vmatpush.bf16.msra.mxu0 0
  %1633 = vmatpush.bf16.msra.mxu0 0
  %1634 = vmatpush.bf16.msra.mxu0 0
  %1635 = vmatpush.bf16.msra.mxu0 %v1505
  %1636 = vmatmul.bf16.gmra.mxu0 %v1478
  %v1637 = vpop.f32.mrf.mxu0
  %v1638 = vadd.f32 0.0, %v1637
  %v1639 = vpop.f32.mrf.mxu0
  %v1640 = vadd.f32 0.0, %v1639
  %1641 = vdwg.mxu0
  %1642 = vmatpush.bf16.msra.mxu0 0
  %1643 = vmatpush.bf16.msra.mxu0 0
  %1644 = vmatpush.bf16.msra.mxu0 0
  %1645 = vmatpush.bf16.msra.mxu0 0
  %1646 = vmatpush.bf16.msra.mxu0 0
  %1647 = vmatpush.bf16.msra.mxu0 0
  %1648 = vmatpush.bf16.msra.mxu0 0
  %1649 = vmatpush.bf16.msra.mxu0 %v1508
  %1650 = vmatmul.bf16.gmra.mxu0 %v1478
  %v1651 = vpop.f32.mrf.mxu0
  %v1652 = vadd.f32 0.0, %v1651
  %v1653 = vpop.f32.mrf.mxu0
  %v1654 = vadd.f32 0.0, %v1653
  %1655 = vdwg.mxu0
  %1656 = vmatpush.bf16.msra.mxu0 0
  %1657 = vmatpush.bf16.msra.mxu0 0
  %1658 = vmatpush.bf16.msra.mxu0 0
  %1659 = vmatpush.bf16.msra.mxu0 0
  %1660 = vmatpush.bf16.msra.mxu0 0
  %1661 = vmatpush.bf16.msra.mxu0 0
  %1662 = vmatpush.bf16.msra.mxu0 0
  %1663 = vmatpush.bf16.msra.mxu0 %v1511
  %1664 = vmatmul.bf16.gmra.mxu0 %v1478
  %v1665 = vpop.f32.mrf.mxu0
  %v1666 = vadd.f32 0.0, %v1665
  %v1667 = vpop.f32.mrf.mxu0
  %v1668 = vadd.f32 0.0, %v1667
  %1669 = vdwg.mxu0
  %1670 = vmatpush.bf16.msra.mxu0 0
  %1671 = vmatpush.bf16.msra.mxu0 0
  %1672 = vmatpush.bf16.msra.mxu0 0
  %1673 = vmatpush.bf16.msra.mxu0 0
  %1674 = vmatpush.bf16.msra.mxu0 0
  %1675 = vmatpush.bf16.msra.mxu0 0
  %1676 = vmatpush.bf16.msra.mxu0 0
  %1677 = vmatpush.bf16.msra.mxu0 %v1514
  %1678 = vmatmul.bf16.gmra.mxu0 %v1478
  %v1679 = vpop.f32.mrf.mxu0
  %v1680 = vadd.f32 0.0, %v1679
  %v1681 = vpop.f32.mrf.mxu0
  %v1682 = vadd.f32 0.0, %v1681
  %1683 = vdwg.mxu0
  %v1684 = vadd.f32 %v1247, %v1526
  %v1685 = vadd.f32 %v1261, %v1540
  %v1686 = vadd.f32 %v1275, %v1554
  %v1687 = vadd.f32 %v1289, %v1568
  %v1688 = vadd.f32 %v1303, %v1582
  %v1689 = vadd.f32 %v1317, %v1596
  %v1690 = vadd.f32 %v1331, %v1610
  %v1691 = vadd.f32 %v1345, %v1624
  %v1692 = vadd.f32 %v1359, %v1638
  %v1693 = vadd.f32 %v1373, %v1652
  %v1694 = vadd.f32 %v1387, %v1666
  %v1695 = vadd.f32 %v1401, %v1680
  %v1696 = vadd.f32 %v1249, %v1528
  %v1697 = vadd.f32 %v1263, %v1542
  %v1698 = vadd.f32 %v1277, %v1556
  %v1699 = vadd.f32 %v1291, %v1570
  %v1700 = vadd.f32 %v1305, %v1584
  %v1701 = vadd.f32 %v1319, %v1598
  %v1702 = vadd.f32 %v1333, %v1612
  %v1703 = vadd.f32 %v1347, %v1626
  %v1704 = vadd.f32 %v1361, %v1640
  %v1705 = vadd.f32 %v1375, %v1654
  %v1706 = vadd.f32 %v1389, %v1668
  %v1707 = vadd.f32 %v1403, %v1682
  %s1708 = scalar_lea.vmem %s1, 24
  %v1709 = vld [vmem:[%s1708] sm:$0xf]
  %v1710 = vld [vmem:[%s1708 + $0x4] sm:$0xf]
  %v1713 = vunpack.c.l.b16 %v1709
  %v1714 = vunpack.c.l.b16 %v1710
  %v1715 = vpack.c.b16 %v1714, %v1713
  %1716 = vst [vmem:[#allocation1] ss:$4 sm:$0xff] %v897
  %s1717 = scalar_lea.vmem [#allocation1], 32
  %1718 = vst [vmem:[%s1717] ss:$4 sm:$0xff] %v898
  %v1719 = vld.sshfl [vmem:[#allocation1] sm:$0xff pattern:$0x73625140]
  %v1721 = vld.sshfl [vmem:[#allocation1 + $0x8] sm:$0xff pattern:$0x73625140]
  %v1723 = vld.sshfl [vmem:[#allocation1 + $0x10] sm:$0xff pattern:$0x73625140]
  %v1725 = vld.sshfl [vmem:[#allocation1 + $0x18] sm:$0xff pattern:$0x73625140]
  %v1727 = vld.sshfl [vmem:[#allocation1 + $0x20] sm:$0xff pattern:$0x73625140]
  %v1729 = vld.sshfl [vmem:[#allocation1 + $0x28] sm:$0xff pattern:$0x73625140]
  %v1731 = vld.sshfl [vmem:[#allocation1 + $0x30] sm:$0xff pattern:$0x73625140]
  %v1733 = vld.sshfl [vmem:[#allocation1 + $0x38] sm:$0xff pattern:$0x73625140]
  %1735 = vst [vmem:[#allocation1] ss:$4 sm:$0xff] %v899
  %v1736 = vld.sshfl [vmem:[#allocation1] sm:$0xff pattern:$0x73625140]
  %v1738 = vld.sshfl [vmem:[#allocation1 + $0x8] sm:$0xff pattern:$0x73625140]
  %v1740 = vld.sshfl [vmem:[#allocation1 + $0x10] sm:$0xff pattern:$0x73625140]
  %v1742 = vld.sshfl [vmem:[#allocation1 + $0x18] sm:$0xff pattern:$0x73625140]
  %1744 = vrot.lane.b32.xlu0 %v1719, 70
  %v1745 = vpop.permute.xlu0 %1744
  %1746 = vrot.lane.b32.xlu0 %v1721, 70
  %v1747 = vpop.permute.xlu0 %1746
  %1748 = vrot.lane.b32.xlu0 %v1723, 70
  %v1749 = vpop.permute.xlu0 %1748
  %1750 = vrot.lane.b32.xlu0 %v1725, 70
  %v1751 = vpop.permute.xlu0 %1750
  %1752 = vrot.lane.b32.xlu0 %v1727, 70
  %v1753 = vpop.permute.xlu0 %1752
  %1754 = vrot.lane.b32.xlu0 %v1729, 70
  %v1755 = vpop.permute.xlu0 %1754
  %1756 = vrot.lane.b32.xlu0 %v1731, 70
  %v1757 = vpop.permute.xlu0 %1756
  %1758 = vrot.lane.b32.xlu0 %v1733, 70
  %v1759 = vpop.permute.xlu0 %1758
  %1760 = vrot.lane.b32.xlu0 %v1736, 70
  %v1761 = vpop.permute.xlu0 %1760
  %1762 = vrot.lane.b32.xlu0 %v1738, 70
  %v1763 = vpop.permute.xlu0 %1762
  %1764 = vrot.lane.b32.xlu0 %v1740, 70
  %v1765 = vpop.permute.xlu0 %1764
  %1766 = vrot.lane.b32.xlu0 %v1742, 70
  %v1767 = vpop.permute.xlu0 %1766
  %vm1768 = vcmask 572416
  %v1769 = vsel %vm1768, %v1745, %v1747
  %v1770 = vsel %vm1768, %v1747, %v1749
  %v1771 = vsel %vm1768, %v1749, %v1751
  %v1772 = vsel %vm1768, %v1751, %v1753
  %v1773 = vsel %vm1768, %v1753, %v1755
  %v1774 = vsel %vm1768, %v1755, %v1757
  %v1775 = vsel %vm1768, %v1757, %v1759
  %v1776 = vsel %vm1768, %v1759, %v1761
  %v1777 = vsel %vm1768, %v1761, %v1763
  %v1778 = vsel %vm1768, %v1763, %v1765
  %v1779 = vsel %vm1768, %v1765, %v1767
  %v1781 = vsel %vm977, %v1715, 0
  %v1784 = vand.u32 %v1769, %v984
  %v1787 = vand.u32 %v1770, %v984
  %v1790 = vand.u32 %v1771, %v984
  %v1793 = vand.u32 %v1772, %v984
  %v1796 = vand.u32 %v1773, %v984
  %v1799 = vand.u32 %v1774, %v984
  %v1802 = vand.u32 %v1775, %v984
  %v1805 = vand.u32 %v1776, %v984
  %v1808 = vand.u32 %v1777, %v984
  %v1811 = vand.u32 %v1778, %v984
  %v1814 = vand.u32 %v1779, %v984
  %v1817 = vand.u32 %v1767, %v984
  %1819 = vmatpush.bf16.msra.mxu0 0
  %1820 = vmatpush.bf16.msra.mxu0 0
  %1821 = vmatpush.bf16.msra.mxu0 0
  %1822 = vmatpush.bf16.msra.mxu0 0
  %1823 = vmatpush.bf16.msra.mxu0 0
  %1824 = vmatpush.bf16.msra.mxu0 0
  %1825 = vmatpush.bf16.msra.mxu0 0
  %1826 = vmatpush.bf16.msra.mxu0 %v1784
  %1827 = vmatmul.bf16.gmra.mxu0 %v1781
  %v1828 = vpop.f32.mrf.mxu0
  %v1829 = vadd.f32 0.0, %v1828
  %v1830 = vpop.f32.mrf.mxu0
  %v1831 = vadd.f32 0.0, %v1830
  %1832 = vdwg.mxu0
  %1833 = vmatpush.bf16.msra.mxu0 0
  %1834 = vmatpush.bf16.msra.mxu0 0
  %1835 = vmatpush.bf16.msra.mxu0 0
  %1836 = vmatpush.bf16.msra.mxu0 0
  %1837 = vmatpush.bf16.msra.mxu0 0
  %1838 = vmatpush.bf16.msra.mxu0 0
  %1839 = vmatpush.bf16.msra.mxu0 0
  %1840 = vmatpush.bf16.msra.mxu0 %v1787
  %1841 = vmatmul.bf16.gmra.mxu0 %v1781
  %v1842 = vpop.f32.mrf.mxu0
  %v1843 = vadd.f32 0.0, %v1842
  %v1844 = vpop.f32.mrf.mxu0
  %v1845 = vadd.f32 0.0, %v1844
  %1846 = vdwg.mxu0
  %1847 = vmatpush.bf16.msra.mxu0 0
  %1848 = vmatpush.bf16.msra.mxu0 0
  %1849 = vmatpush.bf16.msra.mxu0 0
  %1850 = vmatpush.bf16.msra.mxu0 0
  %1851 = vmatpush.bf16.msra.mxu0 0
  %1852 = vmatpush.bf16.msra.mxu0 0
  %1853 = vmatpush.bf16.msra.mxu0 0
  %1854 = vmatpush.bf16.msra.mxu0 %v1790
  %1855 = vmatmul.bf16.gmra.mxu0 %v1781
  %v1856 = vpop.f32.mrf.mxu0
  %v1857 = vadd.f32 0.0, %v1856
  %v1858 = vpop.f32.mrf.mxu0
  %v1859 = vadd.f32 0.0, %v1858
  %1860 = vdwg.mxu0
  %1861 = vmatpush.bf16.msra.mxu0 0
  %1862 = vmatpush.bf16.msra.mxu0 0
  %1863 = vmatpush.bf16.msra.mxu0 0
  %1864 = vmatpush.bf16.msra.mxu0 0
  %1865 = vmatpush.bf16.msra.mxu0 0
  %1866 = vmatpush.bf16.msra.mxu0 0
  %1867 = vmatpush.bf16.msra.mxu0 0
  %1868 = vmatpush.bf16.msra.mxu0 %v1793
  %1869 = vmatmul.bf16.gmra.mxu0 %v1781
  %v1870 = vpop.f32.mrf.mxu0
  %v1871 = vadd.f32 0.0, %v1870
  %v1872 = vpop.f32.mrf.mxu0
  %v1873 = vadd.f32 0.0, %v1872
  %1874 = vdwg.mxu0
  %1875 = vmatpush.bf16.msra.mxu0 0
  %1876 = vmatpush.bf16.msra.mxu0 0
  %1877 = vmatpush.bf16.msra.mxu0 0
  %1878 = vmatpush.bf16.msra.mxu0 0
  %1879 = vmatpush.bf16.msra.mxu0 0
  %1880 = vmatpush.bf16.msra.mxu0 0
  %1881 = vmatpush.bf16.msra.mxu0 0
  %1882 = vmatpush.bf16.msra.mxu0 %v1796
  %1883 = vmatmul.bf16.gmra.mxu0 %v1781
  %v1884 = vpop.f32.mrf.mxu0
  %v1885 = vadd.f32 0.0, %v1884
  %v1886 = vpop.f32.mrf.mxu0
  %v1887 = vadd.f32 0.0, %v1886
  %1888 = vdwg.mxu0
  %1889 = vmatpush.bf16.msra.mxu0 0
  %1890 = vmatpush.bf16.msra.mxu0 0
  %1891 = vmatpush.bf16.msra.mxu0 0
  %1892 = vmatpush.bf16.msra.mxu0 0
  %1893 = vmatpush.bf16.msra.mxu0 0
  %1894 = vmatpush.bf16.msra.mxu0 0
  %1895 = vmatpush.bf16.msra.mxu0 0
  %1896 = vmatpush.bf16.msra.mxu0 %v1799
  %1897 = vmatmul.bf16.gmra.mxu0 %v1781
  %v1898 = vpop.f32.mrf.mxu0
  %v1899 = vadd.f32 0.0, %v1898
  %v1900 = vpop.f32.mrf.mxu0
  %v1901 = vadd.f32 0.0, %v1900
  %1902 = vdwg.mxu0
  %1903 = vmatpush.bf16.msra.mxu0 0
  %1904 = vmatpush.bf16.msra.mxu0 0
  %1905 = vmatpush.bf16.msra.mxu0 0
  %1906 = vmatpush.bf16.msra.mxu0 0
  %1907 = vmatpush.bf16.msra.mxu0 0
  %1908 = vmatpush.bf16.msra.mxu0 0
  %1909 = vmatpush.bf16.msra.mxu0 0
  %1910 = vmatpush.bf16.msra.mxu0 %v1802
  %1911 = vmatmul.bf16.gmra.mxu0 %v1781
  %v1912 = vpop.f32.mrf.mxu0
  %v1913 = vadd.f32 0.0, %v1912
  %v1914 = vpop.f32.mrf.mxu0
  %v1915 = vadd.f32 0.0, %v1914
  %1916 = vdwg.mxu0
  %1917 = vmatpush.bf16.msra.mxu0 0
  %1918 = vmatpush.bf16.msra.mxu0 0
  %1919 = vmatpush.bf16.msra.mxu0 0
  %1920 = vmatpush.bf16.msra.mxu0 0
  %1921 = vmatpush.bf16.msra.mxu0 0
  %1922 = vmatpush.bf16.msra.mxu0 0
  %1923 = vmatpush.bf16.msra.mxu0 0
  %1924 = vmatpush.bf16.msra.mxu0 %v1805
  %1925 = vmatmul.bf16.gmra.mxu0 %v1781
  %v1926 = vpop.f32.mrf.mxu0
  %v1927 = vadd.f32 0.0, %v1926
  %v1928 = vpop.f32.mrf.mxu0
  %v1929 = vadd.f32 0.0, %v1928
  %1930 = vdwg.mxu0
  %1931 = vmatpush.bf16.msra.mxu0 0
  %1932 = vmatpush.bf16.msra.mxu0 0
  %1933 = vmatpush.bf16.msra.mxu0 0
  %1934 = vmatpush.bf16.msra.mxu0 0
  %1935 = vmatpush.bf16.msra.mxu0 0
  %1936 = vmatpush.bf16.msra.mxu0 0
  %1937 = vmatpush.bf16.msra.mxu0 0
  %1938 = vmatpush.bf16.msra.mxu0 %v1808
  %1939 = vmatmul.bf16.gmra.mxu0 %v1781
  %v1940 = vpop.f32.mrf.mxu0
  %v1941 = vadd.f32 0.0, %v1940
  %v1942 = vpop.f32.mrf.mxu0
  %v1943 = vadd.f32 0.0, %v1942
  %1944 = vdwg.mxu0
  %1945 = vmatpush.bf16.msra.mxu0 0
  %1946 = vmatpush.bf16.msra.mxu0 0
  %1947 = vmatpush.bf16.msra.mxu0 0
  %1948 = vmatpush.bf16.msra.mxu0 0
  %1949 = vmatpush.bf16.msra.mxu0 0
  %1950 = vmatpush.bf16.msra.mxu0 0
  %1951 = vmatpush.bf16.msra.mxu0 0
  %1952 = vmatpush.bf16.msra.mxu0 %v1811
  %1953 = vmatmul.bf16.gmra.mxu0 %v1781
  %v1954 = vpop.f32.mrf.mxu0
  %v1955 = vadd.f32 0.0, %v1954
  %v1956 = vpop.f32.mrf.mxu0
  %v1957 = vadd.f32 0.0, %v1956
  %1958 = vdwg.mxu0
  %1959 = vmatpush.bf16.msra.mxu0 0
  %1960 = vmatpush.bf16.msra.mxu0 0
  %1961 = vmatpush.bf16.msra.mxu0 0
  %1962 = vmatpush.bf16.msra.mxu0 0
  %1963 = vmatpush.bf16.msra.mxu0 0
  %1964 = vmatpush.bf16.msra.mxu0 0
  %1965 = vmatpush.bf16.msra.mxu0 0
  %1966 = vmatpush.bf16.msra.mxu0 %v1814
  %1967 = vmatmul.bf16.gmra.mxu0 %v1781
  %v1968 = vpop.f32.mrf.mxu0
  %v1969 = vadd.f32 0.0, %v1968
  %v1970 = vpop.f32.mrf.mxu0
  %v1971 = vadd.f32 0.0, %v1970
  %1972 = vdwg.mxu0
  %1973 = vmatpush.bf16.msra.mxu0 0
  %1974 = vmatpush.bf16.msra.mxu0 0
  %1975 = vmatpush.bf16.msra.mxu0 0
  %1976 = vmatpush.bf16.msra.mxu0 0
  %1977 = vmatpush.bf16.msra.mxu0 0
  %1978 = vmatpush.bf16.msra.mxu0 0
  %1979 = vmatpush.bf16.msra.mxu0 0
  %1980 = vmatpush.bf16.msra.mxu0 %v1817
  %1981 = vmatmul.bf16.gmra.mxu0 %v1781
  %v1982 = vpop.f32.mrf.mxu0
  %v1983 = vadd.f32 0.0, %v1982
  %v1984 = vpop.f32.mrf.mxu0
  %v1985 = vadd.f32 0.0, %v1984
  %1986 = vdwg.mxu0
  %v1987 = vadd.f32 %v1684, %v1829
  %v1988 = vadd.f32 %v1685, %v1843
  %v1989 = vadd.f32 %v1686, %v1857
  %v1990 = vadd.f32 %v1687, %v1871
  %v1991 = vadd.f32 %v1688, %v1885
  %v1992 = vadd.f32 %v1689, %v1899
  %v1993 = vadd.f32 %v1690, %v1913
  %v1994 = vadd.f32 %v1691, %v1927
  %v1995 = vadd.f32 %v1692, %v1941
  %v1996 = vadd.f32 %v1693, %v1955
  %v1997 = vadd.f32 %v1694, %v1969
  %v1998 = vadd.f32 %v1695, %v1983
  %v1999 = vadd.f32 %v1696, %v1831
  %v2000 = vadd.f32 %v1697, %v1845
  %v2001 = vadd.f32 %v1698, %v1859
  %v2002 = vadd.f32 %v1699, %v1873
  %v2003 = vadd.f32 %v1700, %v1887
  %v2004 = vadd.f32 %v1701, %v1901
  %v2005 = vadd.f32 %v1702, %v1915
  %v2006 = vadd.f32 %v1703, %v1929
  %v2007 = vadd.f32 %v1704, %v1943
  %v2008 = vadd.f32 %v1705, %v1957
  %v2009 = vadd.f32 %v1706, %v1971
  %v2010 = vadd.f32 %v1707, %v1985
  %v2011 = vld [vmem:[%s2] sm:$0xff]
  %v2012 = vld [vmem:[%s2 + $0x8] sm:$0xff]
  %2014 = vset.pattern.permute.xlu0 0
  %2015 = vperm.xlu0 %2014, %v2011
  %v2016 = vpop.permute.xlu0 %2015
  %2019 = vset.pattern.permute.xlu0 0
  %2020 = vperm.xlu0 %2019, %v2012
  %v2021 = vpop.permute.xlu0 %2020
  %v2023 = vadd.f32 %v1987, %v2016
  %v2024 = vadd.f32 %v1988, %v2016
  %v2025 = vadd.f32 %v1989, %v2016
  %v2026 = vadd.f32 %v1990, %v2016
  %v2027 = vadd.f32 %v1991, %v2016
  %v2028 = vadd.f32 %v1992, %v2016
  %v2029 = vadd.f32 %v1993, %v2016
  %v2030 = vadd.f32 %v1994, %v2016
  %v2031 = vadd.f32 %v1995, %v2016
  %v2032 = vadd.f32 %v1996, %v2016
  %v2033 = vadd.f32 %v1997, %v2016
  %v2034 = vadd.f32 %v1998, %v2016
  %v2035 = vadd.f32 %v1999, %v2021
  %v2036 = vadd.f32 %v2000, %v2021
  %v2037 = vadd.f32 %v2001, %v2021
  %v2038 = vadd.f32 %v2002, %v2021
  %v2039 = vadd.f32 %v2003, %v2021
  %v2040 = vadd.f32 %v2004, %v2021
  %v2041 = vadd.f32 %v2005, %v2021
  %v2042 = vadd.f32 %v2006, %v2021
  %v2043 = vadd.f32 %v2007, %v2021
  %v2044 = vadd.f32 %v2008, %v2021
  %v2045 = vadd.f32 %v2009, %v2021
  %v2046 = vadd.f32 %v2010, %v2021
  %v2047 = vmax.f32 %v2023, 0.0
  %v2048 = vmax.f32 %v2024, 0.0
  %v2049 = vmax.f32 %v2025, 0.0
  %v2050 = vmax.f32 %v2026, 0.0
  %v2051 = vmax.f32 %v2027, 0.0
  %v2052 = vmax.f32 %v2028, 0.0
  %v2053 = vmax.f32 %v2029, 0.0
  %v2054 = vmax.f32 %v2030, 0.0
  %v2055 = vmax.f32 %v2031, 0.0
  %v2056 = vmax.f32 %v2032, 0.0
  %v2057 = vmax.f32 %v2033, 0.0
  %v2058 = vmax.f32 %v2034, 0.0
  %v2059 = vmax.f32 %v2035, 0.0
  %v2060 = vmax.f32 %v2036, 0.0
  %v2061 = vmax.f32 %v2037, 0.0
  %v2062 = vmax.f32 %v2038, 0.0
  %v2063 = vmax.f32 %v2039, 0.0
  %v2064 = vmax.f32 %v2040, 0.0
  %v2065 = vmax.f32 %v2041, 0.0
  %v2066 = vmax.f32 %v2042, 0.0
  %v2067 = vmax.f32 %v2043, 0.0
  %v2068 = vmax.f32 %v2044, 0.0
  %v2069 = vmax.f32 %v2045, 0.0
  %v2070 = vmax.f32 %v2046, 0.0
  %2093 = vrot.lane.b32.xlu0 %v2047, 126
  %v2094 = vpop.permute.xlu0 %2093
  %2095 = vrot.lane.b32.xlu0 %v2048, 126
  %v2096 = vpop.permute.xlu0 %2095
  %2097 = vrot.lane.b32.xlu0 %v2049, 126
  %v2098 = vpop.permute.xlu0 %2097
  %2099 = vrot.lane.b32.xlu0 %v2050, 126
  %v2100 = vpop.permute.xlu0 %2099
  %2101 = vrot.lane.b32.xlu0 %v2051, 126
  %v2102 = vpop.permute.xlu0 %2101
  %2103 = vrot.lane.b32.xlu0 %v2052, 126
  %v2104 = vpop.permute.xlu0 %2103
  %2105 = vrot.lane.b32.xlu0 %v2053, 126
  %v2106 = vpop.permute.xlu0 %2105
  %2107 = vrot.lane.b32.xlu0 %v2054, 126
  %v2108 = vpop.permute.xlu0 %2107
  %2109 = vrot.lane.b32.xlu0 %v2055, 126
  %v2110 = vpop.permute.xlu0 %2109
  %2111 = vrot.lane.b32.xlu0 %v2056, 126
  %v2112 = vpop.permute.xlu0 %2111
  %2113 = vrot.lane.b32.xlu0 %v2057, 126
  %v2114 = vpop.permute.xlu0 %2113
  %2115 = vrot.lane.b32.xlu0 %v2059, 126
  %v2116 = vpop.permute.xlu0 %2115
  %2117 = vrot.lane.b32.xlu0 %v2060, 126
  %v2118 = vpop.permute.xlu0 %2117
  %2119 = vrot.lane.b32.xlu0 %v2061, 126
  %v2120 = vpop.permute.xlu0 %2119
  %2121 = vrot.lane.b32.xlu0 %v2062, 126
  %v2122 = vpop.permute.xlu0 %2121
  %2123 = vrot.lane.b32.xlu0 %v2063, 126
  %v2124 = vpop.permute.xlu0 %2123
  %2125 = vrot.lane.b32.xlu0 %v2064, 126
  %v2126 = vpop.permute.xlu0 %2125
  %2127 = vrot.lane.b32.xlu0 %v2065, 126
  %v2128 = vpop.permute.xlu0 %2127
  %2129 = vrot.lane.b32.xlu0 %v2066, 126
  %v2130 = vpop.permute.xlu0 %2129
  %2131 = vrot.lane.b32.xlu0 %v2067, 126
  %v2132 = vpop.permute.xlu0 %2131
  %2133 = vrot.lane.b32.xlu0 %v2068, 126
  %v2134 = vpop.permute.xlu0 %2133
  %2135 = vrot.lane.b32.xlu0 %v2069, 126
  %v2136 = vpop.permute.xlu0 %2135
  %vm2137 = vcmask 1031168
  %v2138 = vsel %vm2137, %v2094, %v2096
  %v2139 = vsel %vm2137, %v2096, %v2098
  %v2140 = vsel %vm2137, %v2098, %v2100
  %v2141 = vsel %vm2137, %v2100, %v2102
  %v2142 = vsel %vm2137, %v2102, %v2104
  %v2143 = vsel %vm2137, %v2104, %v2106
  %v2144 = vsel %vm2137, %v2106, %v2108
  %v2145 = vsel %vm2137, %v2108, %v2110
  %v2146 = vsel %vm2137, %v2110, %v2112
  %v2147 = vsel %vm2137, %v2112, %v2114
  %v2148 = vsel %vm2137, %v2116, %v2118
  %v2149 = vsel %vm2137, %v2118, %v2120
  %v2150 = vsel %vm2137, %v2120, %v2122
  %v2151 = vsel %vm2137, %v2122, %v2124
  %v2152 = vsel %vm2137, %v2124, %v2126
  %v2153 = vsel %vm2137, %v2126, %v2128
  %v2154 = vsel %vm2137, %v2128, %v2130
  %v2155 = vsel %vm2137, %v2130, %v2132
  %v2156 = vsel %vm2137, %v2132, %v2134
  %v2157 = vsel %vm2137, %v2134, %v2136
  %v2180 = vmax.f32 %v2047, %v2138
  %v2181 = vmax.f32 %v2048, %v2139
  %v2182 = vmax.f32 %v2049, %v2140
  %v2183 = vmax.f32 %v2050, %v2141
  %v2184 = vmax.f32 %v2051, %v2142
  %v2185 = vmax.f32 %v2052, %v2143
  %v2186 = vmax.f32 %v2053, %v2144
  %v2187 = vmax.f32 %v2054, %v2145
  %v2188 = vmax.f32 %v2055, %v2146
  %v2189 = vmax.f32 %v2056, %v2147
  %v2190 = vmax.f32 %v2057, %v2114
  %v2191 = vmax.f32 %v2059, %v2148
  %v2192 = vmax.f32 %v2060, %v2149
  %v2193 = vmax.f32 %v2061, %v2150
  %v2194 = vmax.f32 %v2062, %v2151
  %v2195 = vmax.f32 %v2063, %v2152
  %v2196 = vmax.f32 %v2064, %v2153
  %v2197 = vmax.f32 %v2065, %v2154
  %v2198 = vmax.f32 %v2066, %v2155
  %v2199 = vmax.f32 %v2067, %v2156
  %v2200 = vmax.f32 %v2068, %v2157
  %v2201 = vmax.f32 %v2069, %v2136
  %2204 = vrot.lane.b32.xlu0 %v2047, 72
  %v2205 = vpop.permute.xlu0 %2204
  %2206 = vrot.lane.b32.xlu0 %v2048, 72
  %v2207 = vpop.permute.xlu0 %2206
  %2208 = vrot.lane.b32.xlu0 %v2049, 72
  %v2209 = vpop.permute.xlu0 %2208
  %2210 = vrot.lane.b32.xlu0 %v2050, 72
  %v2211 = vpop.permute.xlu0 %2210
  %2212 = vrot.lane.b32.xlu0 %v2051, 72
  %v2213 = vpop.permute.xlu0 %2212
  %2214 = vrot.lane.b32.xlu0 %v2052, 72
  %v2215 = vpop.permute.xlu0 %2214
  %2216 = vrot.lane.b32.xlu0 %v2053, 72
  %v2217 = vpop.permute.xlu0 %2216
  %2218 = vrot.lane.b32.xlu0 %v2054, 72
  %v2219 = vpop.permute.xlu0 %2218
  %2220 = vrot.lane.b32.xlu0 %v2055, 72
  %v2221 = vpop.permute.xlu0 %2220
  %2222 = vrot.lane.b32.xlu0 %v2056, 72
  %v2223 = vpop.permute.xlu0 %2222
  %2224 = vrot.lane.b32.xlu0 %v2057, 72
  %v2225 = vpop.permute.xlu0 %2224
  %2226 = vrot.lane.b32.xlu0 %v2058, 72
  %v2227 = vpop.permute.xlu0 %2226
  %2228 = vrot.lane.b32.xlu0 %v2059, 72
  %v2229 = vpop.permute.xlu0 %2228
  %2230 = vrot.lane.b32.xlu0 %v2060, 72
  %v2231 = vpop.permute.xlu0 %2230
  %2232 = vrot.lane.b32.xlu0 %v2061, 72
  %v2233 = vpop.permute.xlu0 %2232
  %2234 = vrot.lane.b32.xlu0 %v2062, 72
  %v2235 = vpop.permute.xlu0 %2234
  %2236 = vrot.lane.b32.xlu0 %v2063, 72
  %v2237 = vpop.permute.xlu0 %2236
  %2238 = vrot.lane.b32.xlu0 %v2064, 72
  %v2239 = vpop.permute.xlu0 %2238
  %2240 = vrot.lane.b32.xlu0 %v2065, 72
  %v2241 = vpop.permute.xlu0 %2240
  %2242 = vrot.lane.b32.xlu0 %v2066, 72
  %v2243 = vpop.permute.xlu0 %2242
  %2244 = vrot.lane.b32.xlu0 %v2067, 72
  %v2245 = vpop.permute.xlu0 %2244
  %2246 = vrot.lane.b32.xlu0 %v2068, 72
  %v2247 = vpop.permute.xlu0 %2246
  %2248 = vrot.lane.b32.xlu0 %v2069, 72
  %v2249 = vpop.permute.xlu0 %2248
  %2250 = vrot.lane.b32.xlu0 %v2070, 72
  %v2251 = vpop.permute.xlu0 %2250
  %vm2252 = vcmask 588800
  %v2253 = vsel %vm2252, %v2205, %v2207
  %v2254 = vsel %vm2252, %v2207, %v2209
  %v2255 = vsel %vm2252, %v2209, %v2211
  %v2256 = vsel %vm2252, %v2211, %v2213
  %v2257 = vsel %vm2252, %v2213, %v2215
  %v2258 = vsel %vm2252, %v2215, %v2217
  %v2259 = vsel %vm2252, %v2217, %v2219
  %v2260 = vsel %vm2252, %v2219, %v2221
  %v2261 = vsel %vm2252, %v2221, %v2223
  %v2262 = vsel %vm2252, %v2223, %v2225
  %v2263 = vsel %vm2252, %v2225, %v2227
  %v2264 = vsel %vm2252, %v2229, %v2231
  %v2265 = vsel %vm2252, %v2231, %v2233
  %v2266 = vsel %vm2252, %v2233, %v2235
  %v2267 = vsel %vm2252, %v2235, %v2237
  %v2268 = vsel %vm2252, %v2237, %v2239
  %v2269 = vsel %vm2252, %v2239, %v2241
  %v2270 = vsel %vm2252, %v2241, %v2243
  %v2271 = vsel %vm2252, %v2243, %v2245
  %v2272 = vsel %vm2252, %v2245, %v2247
  %v2273 = vsel %vm2252, %v2247, %v2249
  %v2274 = vsel %vm2252, %v2249, %v2251
  %v2297 = vmax.f32 %v2180, %v2253
  %v2298 = vmax.f32 %v2181, %v2254
  %v2299 = vmax.f32 %v2182, %v2255
  %v2300 = vmax.f32 %v2183, %v2256
  %v2301 = vmax.f32 %v2184, %v2257
  %v2302 = vmax.f32 %v2185, %v2258
  %v2303 = vmax.f32 %v2186, %v2259
  %v2304 = vmax.f32 %v2187, %v2260
  %v2305 = vmax.f32 %v2188, %v2261
  %v2306 = vmax.f32 %v2189, %v2262
  %v2307 = vmax.f32 %v2190, %v2263
  %v2308 = vmax.f32 %v2191, %v2264
  %v2309 = vmax.f32 %v2192, %v2265
  %v2310 = vmax.f32 %v2193, %v2266
  %v2311 = vmax.f32 %v2194, %v2267
  %v2312 = vmax.f32 %v2195, %v2268
  %v2313 = vmax.f32 %v2196, %v2269
  %v2314 = vmax.f32 %v2197, %v2270
  %v2315 = vmax.f32 %v2198, %v2271
  %v2316 = vmax.f32 %v2199, %v2272
  %v2317 = vmax.f32 %v2200, %v2273
  %v2318 = vmax.f32 %v2201, %v2274
  %2319 = vrot.lane.b32.xlu0 %v2047, 70
  %v2320 = vpop.permute.xlu0 %2319
  %2321 = vrot.lane.b32.xlu0 %v2048, 70
  %v2322 = vpop.permute.xlu0 %2321
  %2323 = vrot.lane.b32.xlu0 %v2049, 70
  %v2324 = vpop.permute.xlu0 %2323
  %2325 = vrot.lane.b32.xlu0 %v2050, 70
  %v2326 = vpop.permute.xlu0 %2325
  %2327 = vrot.lane.b32.xlu0 %v2051, 70
  %v2328 = vpop.permute.xlu0 %2327
  %2329 = vrot.lane.b32.xlu0 %v2052, 70
  %v2330 = vpop.permute.xlu0 %2329
  %2331 = vrot.lane.b32.xlu0 %v2053, 70
  %v2332 = vpop.permute.xlu0 %2331
  %2333 = vrot.lane.b32.xlu0 %v2054, 70
  %v2334 = vpop.permute.xlu0 %2333
  %2335 = vrot.lane.b32.xlu0 %v2055, 70
  %v2336 = vpop.permute.xlu0 %2335
  %2337 = vrot.lane.b32.xlu0 %v2056, 70
  %v2338 = vpop.permute.xlu0 %2337
  %2339 = vrot.lane.b32.xlu0 %v2057, 70
  %v2340 = vpop.permute.xlu0 %2339
  %2341 = vrot.lane.b32.xlu0 %v2058, 70
  %v2342 = vpop.permute.xlu0 %2341
  %2343 = vrot.lane.b32.xlu0 %v2059, 70
  %v2344 = vpop.permute.xlu0 %2343
  %2345 = vrot.lane.b32.xlu0 %v2060, 70
  %v2346 = vpop.permute.xlu0 %2345
  %2347 = vrot.lane.b32.xlu0 %v2061, 70
  %v2348 = vpop.permute.xlu0 %2347
  %2349 = vrot.lane.b32.xlu0 %v2062, 70
  %v2350 = vpop.permute.xlu0 %2349
  %2351 = vrot.lane.b32.xlu0 %v2063, 70
  %v2352 = vpop.permute.xlu0 %2351
  %2353 = vrot.lane.b32.xlu0 %v2064, 70
  %v2354 = vpop.permute.xlu0 %2353
  %2355 = vrot.lane.b32.xlu0 %v2065, 70
  %v2356 = vpop.permute.xlu0 %2355
  %2357 = vrot.lane.b32.xlu0 %v2066, 70
  %v2358 = vpop.permute.xlu0 %2357
  %2359 = vrot.lane.b32.xlu0 %v2067, 70
  %v2360 = vpop.permute.xlu0 %2359
  %2361 = vrot.lane.b32.xlu0 %v2068, 70
  %v2362 = vpop.permute.xlu0 %2361
  %2363 = vrot.lane.b32.xlu0 %v2069, 70
  %v2364 = vpop.permute.xlu0 %2363
  %2365 = vrot.lane.b32.xlu0 %v2070, 70
  %v2366 = vpop.permute.xlu0 %2365
  %vm2367 = vcmask 572416
  %v2368 = vsel %vm2367, %v2320, %v2322
  %v2369 = vsel %vm2367, %v2322, %v2324
  %v2370 = vsel %vm2367, %v2324, %v2326
  %v2371 = vsel %vm2367, %v2326, %v2328
  %v2372 = vsel %vm2367, %v2328, %v2330
  %v2373 = vsel %vm2367, %v2330, %v2332
  %v2374 = vsel %vm2367, %v2332, %v2334
  %v2375 = vsel %vm2367, %v2334, %v2336
  %v2376 = vsel %vm2367, %v2336, %v2338
  %v2377 = vsel %vm2367, %v2338, %v2340
  %v2378 = vsel %vm2367, %v2340, %v2342
  %v2379 = vsel %vm2367, %v2344, %v2346
  %v2380 = vsel %vm2367, %v2346, %v2348
  %v2381 = vsel %vm2367, %v2348, %v2350
  %v2382 = vsel %vm2367, %v2350, %v2352
  %v2383 = vsel %vm2367, %v2352, %v2354
  %v2384 = vsel %vm2367, %v2354, %v2356
  %v2385 = vsel %vm2367, %v2356, %v2358
  %v2386 = vsel %vm2367, %v2358, %v2360
  %v2387 = vsel %vm2367, %v2360, %v2362
  %v2388 = vsel %vm2367, %v2362, %v2364
  %v2389 = vsel %vm2367, %v2364, %v2366
  %v2412 = vmax.f32 %v2297, %v2368
  %v2413 = vmax.f32 %v2298, %v2369
  %v2414 = vmax.f32 %v2299, %v2370
  %v2415 = vmax.f32 %v2300, %v2371
  %v2416 = vmax.f32 %v2301, %v2372
  %v2417 = vmax.f32 %v2302, %v2373
  %v2418 = vmax.f32 %v2303, %v2374
  %v2419 = vmax.f32 %v2304, %v2375
  %v2420 = vmax.f32 %v2305, %v2376
  %v2421 = vmax.f32 %v2306, %v2377
  %v2422 = vmax.f32 %v2307, %v2378
  %v2423 = vmax.f32 %v2308, %v2379
  %v2424 = vmax.f32 %v2309, %v2380
  %v2425 = vmax.f32 %v2310, %v2381
  %v2426 = vmax.f32 %v2311, %v2382
  %v2427 = vmax.f32 %v2312, %v2383
  %v2428 = vmax.f32 %v2313, %v2384
  %v2429 = vmax.f32 %v2314, %v2385
  %v2430 = vmax.f32 %v2315, %v2386
  %v2431 = vmax.f32 %v2316, %v2387
  %v2432 = vmax.f32 %v2317, %v2388
  %v2433 = vmax.f32 %v2318, %v2389
  %v2434 = vpack.c.bf16 %v2413, %v2412
  %v2435 = vpack.c.bf16 %v2415, %v2414
  %v2436 = vpack.c.bf16 %v2417, %v2416
  %v2437 = vpack.c.bf16 %v2419, %v2418
  %v2438 = vpack.c.bf16 %v2421, %v2420
  %v2439 = vpack.c.bf16 %v2422, %v2422
  %v2440 = vpack.c.bf16 %v2424, %v2423
  %v2441 = vpack.c.bf16 %v2426, %v2425
  %v2442 = vpack.c.bf16 %v2428, %v2427
  %v2443 = vpack.c.bf16 %v2430, %v2429
  %v2444 = vpack.c.bf16 %v2432, %v2431
  %v2445 = vpack.c.bf16 %v2433, %v2433
  %v2446 = vld [vmem:[%s3] sm:$0xf]
  %v2447 = vld [vmem:[%s3 + $0x4] sm:$0xf]
  %v2448 = vld [vmem:[%s3 + $0x8] sm:$0xf]
  %v2449 = vld [vmem:[%s3 + $0xc] sm:$0xf]
  %s2450 = scalar_lea.vmem %s3, 16
  %v2451 = vld [vmem:[%s2450] sm:$0xf]
  %v2452 = vld [vmem:[%s2450 + $0x4] sm:$0xf]
  %v2453 = vld [vmem:[%s2450 + $0x8] sm:$0xf]
  %v2454 = vld [vmem:[%s2450 + $0xc] sm:$0xf]
  %v2459 = vunpack.c.l.b16 %v2451
  %v2460 = vunpack.c.l.b16 %v2452
  %v2461 = vunpack.c.l.b16 %v2453
  %v2462 = vunpack.c.l.b16 %v2454
  %v2463 = vpack.c.b16 %v2460, %v2459
  %v2464 = vpack.c.b16 %v2462, %v2461
  %v2477 = vunpack.c.l.b16 %v2434
  %v2478 = vunpack.c.h.b16 %v2434
  %v2479 = vunpack.c.l.b16 %v2435
  %v2480 = vunpack.c.h.b16 %v2435
  %v2481 = vunpack.c.l.b16 %v2436
  %v2482 = vunpack.c.h.b16 %v2436
  %v2483 = vunpack.c.l.b16 %v2437
  %v2484 = vunpack.c.h.b16 %v2437
  %v2485 = vunpack.c.l.b16 %v2438
  %v2486 = vunpack.c.h.b16 %v2438
  %v2487 = vunpack.c.l.b16 %v2439
  %v2488 = vunpack.c.l.b16 %v2440
  %v2489 = vunpack.c.h.b16 %v2440
  %v2490 = vunpack.c.l.b16 %v2441
  %v2491 = vunpack.c.h.b16 %v2441
  %v2492 = vunpack.c.l.b16 %v2442
  %v2493 = vunpack.c.h.b16 %v2442
  %v2494 = vunpack.c.l.b16 %v2443
  %v2495 = vunpack.c.h.b16 %v2443
  %v2496 = vunpack.c.l.b16 %v2444
  %v2497 = vunpack.c.h.b16 %v2444
  %v2498 = vunpack.c.l.b16 %v2445
  %v2499 = vpack.c.b16 %v2488, %v2477
  %v2500 = vpack.c.b16 %v2489, %v2478
  %v2501 = vpack.c.b16 %v2490, %v2479
  %v2502 = vpack.c.b16 %v2491, %v2480
  %v2503 = vpack.c.b16 %v2492, %v2481
  %v2504 = vpack.c.b16 %v2493, %v2482
  %v2505 = vpack.c.b16 %v2494, %v2483
  %v2506 = vpack.c.b16 %v2495, %v2484
  %v2507 = vpack.c.b16 %v2496, %v2485
  %v2508 = vpack.c.b16 %v2497, %v2486
  %v2509 = vpack.c.b16 %v2498, %v2487
  %2510 = vrot.lane.b32.xlu0 %v2499, 124
  %v2511 = vpop.permute.xlu0 %2510
  %2512 = vrot.lane.b32.xlu0 %v2500, 124
  %v2513 = vpop.permute.xlu0 %2512
  %2514 = vrot.lane.b32.xlu0 %v2501, 124
  %v2515 = vpop.permute.xlu0 %2514
  %2516 = vrot.lane.b32.xlu0 %v2502, 124
  %v2517 = vpop.permute.xlu0 %2516
  %2518 = vrot.lane.b32.xlu0 %v2503, 124
  %v2519 = vpop.permute.xlu0 %2518
  %2520 = vrot.lane.b32.xlu0 %v2504, 124
  %v2521 = vpop.permute.xlu0 %2520
  %2522 = vrot.lane.b32.xlu0 %v2505, 124
  %v2523 = vpop.permute.xlu0 %2522
  %2524 = vrot.lane.b32.xlu0 %v2506, 124
  %v2525 = vpop.permute.xlu0 %2524
  %2526 = vrot.lane.b32.xlu0 %v2507, 124
  %v2527 = vpop.permute.xlu0 %2526
  %2528 = vrot.lane.b32.xlu0 %v2508, 124
  %v2529 = vpop.permute.xlu0 %2528
  %2530 = vrot.lane.b32.xlu0 %v2509, 124
  %v2531 = vpop.permute.xlu0 %2530
  %vm2532 = vcmask 1014784
  %v2533 = vsel %vm2532, %v2511, %v2513
  %v2534 = vsel %vm2532, %v2513, %v2515
  %v2535 = vsel %vm2532, %v2515, %v2517
  %v2536 = vsel %vm2532, %v2517, %v2519
  %v2537 = vsel %vm2532, %v2519, %v2521
  %v2538 = vsel %vm2532, %v2521, %v2523
  %v2539 = vsel %vm2532, %v2523, %v2525
  %v2540 = vsel %vm2532, %v2525, %v2527
  %v2541 = vsel %vm2532, %v2527, %v2529
  %v2542 = vsel %vm2532, %v2529, %v2531
  %vm2553 = vcmask 130048
  %v2555 = vsel %vm2553, %v2463, 0
  %v2558 = vsel %vm2553, %v2464, 0
  %2560 = vmatpush.bf16.msra.mxu0 0
  %2561 = vmatpush.bf16.msra.mxu0 0
  %2562 = vmatpush.bf16.msra.mxu0 0
  %2563 = vmatpush.bf16.msra.mxu0 0
  %2564 = vmatpush.bf16.msra.mxu0 0
  %2565 = vmatpush.bf16.msra.mxu0 0
  %2566 = vmatpush.bf16.msra.mxu0 0
  %2567 = vmatpush.bf16.msra.mxu0 %v2533
  %2568 = vmatmul.bf16.gmra.mxu0 %v2555
  %v2569 = vpop.f32.mrf.mxu0
  %v2570 = vadd.f32 0.0, %v2569
  %v2571 = vpop.f32.mrf.mxu0
  %v2572 = vadd.f32 0.0, %v2571
  %2573 = vmatmul.bf16.gmra.mxu0 %v2558
  %v2574 = vpop.f32.mrf.mxu0
  %v2575 = vadd.f32 0.0, %v2574
  %v2576 = vpop.f32.mrf.mxu0
  %v2577 = vadd.f32 0.0, %v2576
  %2578 = vdwg.mxu0
  %2579 = vmatpush.bf16.msra.mxu0 0
  %2580 = vmatpush.bf16.msra.mxu0 0
  %2581 = vmatpush.bf16.msra.mxu0 0
  %2582 = vmatpush.bf16.msra.mxu0 0
  %2583 = vmatpush.bf16.msra.mxu0 0
  %2584 = vmatpush.bf16.msra.mxu0 0
  %2585 = vmatpush.bf16.msra.mxu0 0
  %2586 = vmatpush.bf16.msra.mxu0 %v2534
  %2587 = vmatmul.bf16.gmra.mxu0 %v2555
  %v2588 = vpop.f32.mrf.mxu0
  %v2589 = vadd.f32 0.0, %v2588
  %v2590 = vpop.f32.mrf.mxu0
  %v2591 = vadd.f32 0.0, %v2590
  %2592 = vmatmul.bf16.gmra.mxu0 %v2558
  %v2593 = vpop.f32.mrf.mxu0
  %v2594 = vadd.f32 0.0, %v2593
  %v2595 = vpop.f32.mrf.mxu0
  %v2596 = vadd.f32 0.0, %v2595
  %2597 = vdwg.mxu0
  %2598 = vmatpush.bf16.msra.mxu0 0
  %2599 = vmatpush.bf16.msra.mxu0 0
  %2600 = vmatpush.bf16.msra.mxu0 0
  %2601 = vmatpush.bf16.msra.mxu0 0
  %2602 = vmatpush.bf16.msra.mxu0 0
  %2603 = vmatpush.bf16.msra.mxu0 0
  %2604 = vmatpush.bf16.msra.mxu0 0
  %2605 = vmatpush.bf16.msra.mxu0 %v2535
  %2606 = vmatmul.bf16.gmra.mxu0 %v2555
  %v2607 = vpop.f32.mrf.mxu0
  %v2608 = vadd.f32 0.0, %v2607
  %v2609 = vpop.f32.mrf.mxu0
  %v2610 = vadd.f32 0.0, %v2609
  %2611 = vmatmul.bf16.gmra.mxu0 %v2558
  %v2612 = vpop.f32.mrf.mxu0
  %v2613 = vadd.f32 0.0, %v2612
  %v2614 = vpop.f32.mrf.mxu0
  %v2615 = vadd.f32 0.0, %v2614
  %2616 = vdwg.mxu0
  %2617 = vmatpush.bf16.msra.mxu0 0
  %2618 = vmatpush.bf16.msra.mxu0 0
  %2619 = vmatpush.bf16.msra.mxu0 0
  %2620 = vmatpush.bf16.msra.mxu0 0
  %2621 = vmatpush.bf16.msra.mxu0 0
  %2622 = vmatpush.bf16.msra.mxu0 0
  %2623 = vmatpush.bf16.msra.mxu0 0
  %2624 = vmatpush.bf16.msra.mxu0 %v2536
  %2625 = vmatmul.bf16.gmra.mxu0 %v2555
  %v2626 = vpop.f32.mrf.mxu0
  %v2627 = vadd.f32 0.0, %v2626
  %v2628 = vpop.f32.mrf.mxu0
  %v2629 = vadd.f32 0.0, %v2628
  %2630 = vmatmul.bf16.gmra.mxu0 %v2558
  %v2631 = vpop.f32.mrf.mxu0
  %v2632 = vadd.f32 0.0, %v2631
  %v2633 = vpop.f32.mrf.mxu0
  %v2634 = vadd.f32 0.0, %v2633
  %2635 = vdwg.mxu0
  %2636 = vmatpush.bf16.msra.mxu0 0
  %2637 = vmatpush.bf16.msra.mxu0 0
  %2638 = vmatpush.bf16.msra.mxu0 0
  %2639 = vmatpush.bf16.msra.mxu0 0
  %2640 = vmatpush.bf16.msra.mxu0 0
  %2641 = vmatpush.bf16.msra.mxu0 0
  %2642 = vmatpush.bf16.msra.mxu0 0
  %2643 = vmatpush.bf16.msra.mxu0 %v2537
  %2644 = vmatmul.bf16.gmra.mxu0 %v2555
  %v2645 = vpop.f32.mrf.mxu0
  %v2646 = vadd.f32 0.0, %v2645
  %v2647 = vpop.f32.mrf.mxu0
  %v2648 = vadd.f32 0.0, %v2647
  %2649 = vmatmul.bf16.gmra.mxu0 %v2558
  %v2650 = vpop.f32.mrf.mxu0
  %v2651 = vadd.f32 0.0, %v2650
  %v2652 = vpop.f32.mrf.mxu0
  %v2653 = vadd.f32 0.0, %v2652
  %2654 = vdwg.mxu0
  %2655 = vmatpush.bf16.msra.mxu0 0
  %2656 = vmatpush.bf16.msra.mxu0 0
  %2657 = vmatpush.bf16.msra.mxu0 0
  %2658 = vmatpush.bf16.msra.mxu0 0
  %2659 = vmatpush.bf16.msra.mxu0 0
  %2660 = vmatpush.bf16.msra.mxu0 0
  %2661 = vmatpush.bf16.msra.mxu0 0
  %2662 = vmatpush.bf16.msra.mxu0 %v2538
  %2663 = vmatmul.bf16.gmra.mxu0 %v2555
  %v2664 = vpop.f32.mrf.mxu0
  %v2665 = vadd.f32 0.0, %v2664
  %v2666 = vpop.f32.mrf.mxu0
  %v2667 = vadd.f32 0.0, %v2666
  %2668 = vmatmul.bf16.gmra.mxu0 %v2558
  %v2669 = vpop.f32.mrf.mxu0
  %v2670 = vadd.f32 0.0, %v2669
  %v2671 = vpop.f32.mrf.mxu0
  %v2672 = vadd.f32 0.0, %v2671
  %2673 = vdwg.mxu0
  %2674 = vmatpush.bf16.msra.mxu0 0
  %2675 = vmatpush.bf16.msra.mxu0 0
  %2676 = vmatpush.bf16.msra.mxu0 0
  %2677 = vmatpush.bf16.msra.mxu0 0
  %2678 = vmatpush.bf16.msra.mxu0 0
  %2679 = vmatpush.bf16.msra.mxu0 0
  %2680 = vmatpush.bf16.msra.mxu0 0
  %2681 = vmatpush.bf16.msra.mxu0 %v2539
  %2682 = vmatmul.bf16.gmra.mxu0 %v2555
  %v2683 = vpop.f32.mrf.mxu0
  %v2684 = vadd.f32 0.0, %v2683
  %v2685 = vpop.f32.mrf.mxu0
  %v2686 = vadd.f32 0.0, %v2685
  %2687 = vmatmul.bf16.gmra.mxu0 %v2558
  %v2688 = vpop.f32.mrf.mxu0
  %v2689 = vadd.f32 0.0, %v2688
  %v2690 = vpop.f32.mrf.mxu0
  %v2691 = vadd.f32 0.0, %v2690
  %2692 = vdwg.mxu0
  %2693 = vmatpush.bf16.msra.mxu0 0
  %2694 = vmatpush.bf16.msra.mxu0 0
  %2695 = vmatpush.bf16.msra.mxu0 0
  %2696 = vmatpush.bf16.msra.mxu0 0
  %2697 = vmatpush.bf16.msra.mxu0 0
  %2698 = vmatpush.bf16.msra.mxu0 0
  %2699 = vmatpush.bf16.msra.mxu0 0
  %2700 = vmatpush.bf16.msra.mxu0 %v2540
  %2701 = vmatmul.bf16.gmra.mxu0 %v2555
  %v2702 = vpop.f32.mrf.mxu0
  %v2703 = vadd.f32 0.0, %v2702
  %v2704 = vpop.f32.mrf.mxu0
  %v2705 = vadd.f32 0.0, %v2704
  %2706 = vmatmul.bf16.gmra.mxu0 %v2558
  %v2707 = vpop.f32.mrf.mxu0
  %v2708 = vadd.f32 0.0, %v2707
  %v2709 = vpop.f32.mrf.mxu0
  %v2710 = vadd.f32 0.0, %v2709
  %2711 = vdwg.mxu0
  %2712 = vmatpush.bf16.msra.mxu0 0
  %2713 = vmatpush.bf16.msra.mxu0 0
  %2714 = vmatpush.bf16.msra.mxu0 0
  %2715 = vmatpush.bf16.msra.mxu0 0
  %2716 = vmatpush.bf16.msra.mxu0 0
  %2717 = vmatpush.bf16.msra.mxu0 0
  %2718 = vmatpush.bf16.msra.mxu0 0
  %2719 = vmatpush.bf16.msra.mxu0 %v2541
  %2720 = vmatmul.bf16.gmra.mxu0 %v2555
  %v2721 = vpop.f32.mrf.mxu0
  %v2722 = vadd.f32 0.0, %v2721
  %v2723 = vpop.f32.mrf.mxu0
  %v2724 = vadd.f32 0.0, %v2723
  %2725 = vmatmul.bf16.gmra.mxu0 %v2558
  %v2726 = vpop.f32.mrf.mxu0
  %v2727 = vadd.f32 0.0, %v2726
  %v2728 = vpop.f32.mrf.mxu0
  %v2729 = vadd.f32 0.0, %v2728
  %2730 = vdwg.mxu0
  %2731 = vmatpush.bf16.msra.mxu0 0
  %2732 = vmatpush.bf16.msra.mxu0 0
  %2733 = vmatpush.bf16.msra.mxu0 0
  %2734 = vmatpush.bf16.msra.mxu0 0
  %2735 = vmatpush.bf16.msra.mxu0 0
  %2736 = vmatpush.bf16.msra.mxu0 0
  %2737 = vmatpush.bf16.msra.mxu0 0
  %2738 = vmatpush.bf16.msra.mxu0 %v2542
  %2739 = vmatmul.bf16.gmra.mxu0 %v2555
  %v2740 = vpop.f32.mrf.mxu0
  %v2741 = vadd.f32 0.0, %v2740
  %v2742 = vpop.f32.mrf.mxu0
  %v2743 = vadd.f32 0.0, %v2742
  %2744 = vmatmul.bf16.gmra.mxu0 %v2558
  %v2745 = vpop.f32.mrf.mxu0
  %v2746 = vadd.f32 0.0, %v2745
  %v2747 = vpop.f32.mrf.mxu0
  %v2748 = vadd.f32 0.0, %v2747
  %2749 = vdwg.mxu0
  %v2754 = vunpack.c.l.b16 %v2446
  %v2755 = vunpack.c.l.b16 %v2447
  %v2756 = vunpack.c.l.b16 %v2448
  %v2757 = vunpack.c.l.b16 %v2449
  %v2758 = vpack.c.b16 %v2755, %v2754
  %v2759 = vpack.c.b16 %v2757, %v2756
  %v2771 = vsel %vm2553, %v2758, 0
  %v2774 = vsel %vm2553, %v2759, 0
  %2776 = vmatpush.bf16.msra.mxu0 0
  %2777 = vmatpush.bf16.msra.mxu0 0
  %2778 = vmatpush.bf16.msra.mxu0 0
  %2779 = vmatpush.bf16.msra.mxu0 0
  %2780 = vmatpush.bf16.msra.mxu0 0
  %2781 = vmatpush.bf16.msra.mxu0 0
  %2782 = vmatpush.bf16.msra.mxu0 0
  %2783 = vmatpush.bf16.msra.mxu0 %v2499
  %2784 = vmatmul.bf16.gmra.mxu0 %v2771
  %v2785 = vpop.f32.mrf.mxu0
  %v2786 = vadd.f32 %v2570, %v2785
  %v2787 = vpop.f32.mrf.mxu0
  %v2788 = vadd.f32 %v2572, %v2787
  %2789 = vmatmul.bf16.gmra.mxu0 %v2774
  %v2790 = vpop.f32.mrf.mxu0
  %v2791 = vadd.f32 %v2575, %v2790
  %v2792 = vpop.f32.mrf.mxu0
  %v2793 = vadd.f32 %v2577, %v2792
  %2794 = vdwg.mxu0
  %2795 = vmatpush.bf16.msra.mxu0 0
  %2796 = vmatpush.bf16.msra.mxu0 0
  %2797 = vmatpush.bf16.msra.mxu0 0
  %2798 = vmatpush.bf16.msra.mxu0 0
  %2799 = vmatpush.bf16.msra.mxu0 0
  %2800 = vmatpush.bf16.msra.mxu0 0
  %2801 = vmatpush.bf16.msra.mxu0 0
  %2802 = vmatpush.bf16.msra.mxu0 %v2500
  %2803 = vmatmul.bf16.gmra.mxu0 %v2771
  %v2804 = vpop.f32.mrf.mxu0
  %v2805 = vadd.f32 %v2589, %v2804
  %v2806 = vpop.f32.mrf.mxu0
  %v2807 = vadd.f32 %v2591, %v2806
  %2808 = vmatmul.bf16.gmra.mxu0 %v2774
  %v2809 = vpop.f32.mrf.mxu0
  %v2810 = vadd.f32 %v2594, %v2809
  %v2811 = vpop.f32.mrf.mxu0
  %v2812 = vadd.f32 %v2596, %v2811
  %2813 = vdwg.mxu0
  %2814 = vmatpush.bf16.msra.mxu0 0
  %2815 = vmatpush.bf16.msra.mxu0 0
  %2816 = vmatpush.bf16.msra.mxu0 0
  %2817 = vmatpush.bf16.msra.mxu0 0
  %2818 = vmatpush.bf16.msra.mxu0 0
  %2819 = vmatpush.bf16.msra.mxu0 0
  %2820 = vmatpush.bf16.msra.mxu0 0
  %2821 = vmatpush.bf16.msra.mxu0 %v2501
  %2822 = vmatmul.bf16.gmra.mxu0 %v2771
  %v2823 = vpop.f32.mrf.mxu0
  %v2824 = vadd.f32 %v2608, %v2823
  %v2825 = vpop.f32.mrf.mxu0
  %v2826 = vadd.f32 %v2610, %v2825
  %2827 = vmatmul.bf16.gmra.mxu0 %v2774
  %v2828 = vpop.f32.mrf.mxu0
  %v2829 = vadd.f32 %v2613, %v2828
  %v2830 = vpop.f32.mrf.mxu0
  %v2831 = vadd.f32 %v2615, %v2830
  %2832 = vdwg.mxu0
  %2833 = vmatpush.bf16.msra.mxu0 0
  %2834 = vmatpush.bf16.msra.mxu0 0
  %2835 = vmatpush.bf16.msra.mxu0 0
  %2836 = vmatpush.bf16.msra.mxu0 0
  %2837 = vmatpush.bf16.msra.mxu0 0
  %2838 = vmatpush.bf16.msra.mxu0 0
  %2839 = vmatpush.bf16.msra.mxu0 0
  %2840 = vmatpush.bf16.msra.mxu0 %v2502
  %2841 = vmatmul.bf16.gmra.mxu0 %v2771
  %v2842 = vpop.f32.mrf.mxu0
  %v2843 = vadd.f32 %v2627, %v2842
  %v2844 = vpop.f32.mrf.mxu0
  %v2845 = vadd.f32 %v2629, %v2844
  %2846 = vmatmul.bf16.gmra.mxu0 %v2774
  %v2847 = vpop.f32.mrf.mxu0
  %v2848 = vadd.f32 %v2632, %v2847
  %v2849 = vpop.f32.mrf.mxu0
  %v2850 = vadd.f32 %v2634, %v2849
  %2851 = vdwg.mxu0
  %2852 = vmatpush.bf16.msra.mxu0 0
  %2853 = vmatpush.bf16.msra.mxu0 0
  %2854 = vmatpush.bf16.msra.mxu0 0
  %2855 = vmatpush.bf16.msra.mxu0 0
  %2856 = vmatpush.bf16.msra.mxu0 0
  %2857 = vmatpush.bf16.msra.mxu0 0
  %2858 = vmatpush.bf16.msra.mxu0 0
  %2859 = vmatpush.bf16.msra.mxu0 %v2503
  %2860 = vmatmul.bf16.gmra.mxu0 %v2771
  %v2861 = vpop.f32.mrf.mxu0
  %v2862 = vadd.f32 %v2646, %v2861
  %v2863 = vpop.f32.mrf.mxu0
  %v2864 = vadd.f32 %v2648, %v2863
  %2865 = vmatmul.bf16.gmra.mxu0 %v2774
  %v2866 = vpop.f32.mrf.mxu0
  %v2867 = vadd.f32 %v2651, %v2866
  %v2868 = vpop.f32.mrf.mxu0
  %v2869 = vadd.f32 %v2653, %v2868
  %2870 = vdwg.mxu0
  %2871 = vmatpush.bf16.msra.mxu0 0
  %2872 = vmatpush.bf16.msra.mxu0 0
  %2873 = vmatpush.bf16.msra.mxu0 0
  %2874 = vmatpush.bf16.msra.mxu0 0
  %2875 = vmatpush.bf16.msra.mxu0 0
  %2876 = vmatpush.bf16.msra.mxu0 0
  %2877 = vmatpush.bf16.msra.mxu0 0
  %2878 = vmatpush.bf16.msra.mxu0 %v2504
  %2879 = vmatmul.bf16.gmra.mxu0 %v2771
  %v2880 = vpop.f32.mrf.mxu0
  %v2881 = vadd.f32 %v2665, %v2880
  %v2882 = vpop.f32.mrf.mxu0
  %v2883 = vadd.f32 %v2667, %v2882
  %2884 = vmatmul.bf16.gmra.mxu0 %v2774
  %v2885 = vpop.f32.mrf.mxu0
  %v2886 = vadd.f32 %v2670, %v2885
  %v2887 = vpop.f32.mrf.mxu0
  %v2888 = vadd.f32 %v2672, %v2887
  %2889 = vdwg.mxu0
  %2890 = vmatpush.bf16.msra.mxu0 0
  %2891 = vmatpush.bf16.msra.mxu0 0
  %2892 = vmatpush.bf16.msra.mxu0 0
  %2893 = vmatpush.bf16.msra.mxu0 0
  %2894 = vmatpush.bf16.msra.mxu0 0
  %2895 = vmatpush.bf16.msra.mxu0 0
  %2896 = vmatpush.bf16.msra.mxu0 0
  %2897 = vmatpush.bf16.msra.mxu0 %v2505
  %2898 = vmatmul.bf16.gmra.mxu0 %v2771
  %v2899 = vpop.f32.mrf.mxu0
  %v2900 = vadd.f32 %v2684, %v2899
  %v2901 = vpop.f32.mrf.mxu0
  %v2902 = vadd.f32 %v2686, %v2901
  %2903 = vmatmul.bf16.gmra.mxu0 %v2774
  %v2904 = vpop.f32.mrf.mxu0
  %v2905 = vadd.f32 %v2689, %v2904
  %v2906 = vpop.f32.mrf.mxu0
  %v2907 = vadd.f32 %v2691, %v2906
  %2908 = vdwg.mxu0
  %2909 = vmatpush.bf16.msra.mxu0 0
  %2910 = vmatpush.bf16.msra.mxu0 0
  %2911 = vmatpush.bf16.msra.mxu0 0
  %2912 = vmatpush.bf16.msra.mxu0 0
  %2913 = vmatpush.bf16.msra.mxu0 0
  %2914 = vmatpush.bf16.msra.mxu0 0
  %2915 = vmatpush.bf16.msra.mxu0 0
  %2916 = vmatpush.bf16.msra.mxu0 %v2506
  %2917 = vmatmul.bf16.gmra.mxu0 %v2771
  %v2918 = vpop.f32.mrf.mxu0
  %v2919 = vadd.f32 %v2703, %v2918
  %v2920 = vpop.f32.mrf.mxu0
  %v2921 = vadd.f32 %v2705, %v2920
  %2922 = vmatmul.bf16.gmra.mxu0 %v2774
  %v2923 = vpop.f32.mrf.mxu0
  %v2924 = vadd.f32 %v2708, %v2923
  %v2925 = vpop.f32.mrf.mxu0
  %v2926 = vadd.f32 %v2710, %v2925
  %2927 = vdwg.mxu0
  %2928 = vmatpush.bf16.msra.mxu0 0
  %2929 = vmatpush.bf16.msra.mxu0 0
  %2930 = vmatpush.bf16.msra.mxu0 0
  %2931 = vmatpush.bf16.msra.mxu0 0
  %2932 = vmatpush.bf16.msra.mxu0 0
  %2933 = vmatpush.bf16.msra.mxu0 0
  %2934 = vmatpush.bf16.msra.mxu0 0
  %2935 = vmatpush.bf16.msra.mxu0 %v2507
  %2936 = vmatmul.bf16.gmra.mxu0 %v2771
  %v2937 = vpop.f32.mrf.mxu0
  %v2938 = vadd.f32 %v2722, %v2937
  %v2939 = vpop.f32.mrf.mxu0
  %v2940 = vadd.f32 %v2724, %v2939
  %2941 = vmatmul.bf16.gmra.mxu0 %v2774
  %v2942 = vpop.f32.mrf.mxu0
  %v2943 = vadd.f32 %v2727, %v2942
  %v2944 = vpop.f32.mrf.mxu0
  %v2945 = vadd.f32 %v2729, %v2944
  %2946 = vdwg.mxu0
  %2947 = vmatpush.bf16.msra.mxu0 0
  %2948 = vmatpush.bf16.msra.mxu0 0
  %2949 = vmatpush.bf16.msra.mxu0 0
  %2950 = vmatpush.bf16.msra.mxu0 0
  %2951 = vmatpush.bf16.msra.mxu0 0
  %2952 = vmatpush.bf16.msra.mxu0 0
  %2953 = vmatpush.bf16.msra.mxu0 0
  %2954 = vmatpush.bf16.msra.mxu0 %v2508
  %2955 = vmatmul.bf16.gmra.mxu0 %v2771
  %v2956 = vpop.f32.mrf.mxu0
  %v2957 = vadd.f32 %v2741, %v2956
  %v2958 = vpop.f32.mrf.mxu0
  %v2959 = vadd.f32 %v2743, %v2958
  %2960 = vmatmul.bf16.gmra.mxu0 %v2774
  %v2961 = vpop.f32.mrf.mxu0
  %v2962 = vadd.f32 %v2746, %v2961
  %v2963 = vpop.f32.mrf.mxu0
  %v2964 = vadd.f32 %v2748, %v2963
  %2965 = vdwg.mxu0
  %s2966 = scalar_lea.vmem %s3, 32
  %v2967 = vld [vmem:[%s2966] sm:$0xf]
  %v2968 = vld [vmem:[%s2966 + $0x4] sm:$0xf]
  %v2969 = vld [vmem:[%s2966 + $0x8] sm:$0xf]
  %v2970 = vld [vmem:[%s2966 + $0xc] sm:$0xf]
  %v2975 = vunpack.c.l.b16 %v2967
  %v2976 = vunpack.c.l.b16 %v2968
  %v2977 = vunpack.c.l.b16 %v2969
  %v2978 = vunpack.c.l.b16 %v2970
  %v2979 = vpack.c.b16 %v2976, %v2975
  %v2980 = vpack.c.b16 %v2978, %v2977
  %2981 = vrot.lane.b32.xlu0 %v2499, 16
  %v2982 = vpop.permute.xlu0 %2981
  %2983 = vrot.lane.b32.xlu0 %v2500, 16
  %v2984 = vpop.permute.xlu0 %2983
  %2985 = vrot.lane.b32.xlu0 %v2501, 16
  %v2986 = vpop.permute.xlu0 %2985
  %2987 = vrot.lane.b32.xlu0 %v2502, 16
  %v2988 = vpop.permute.xlu0 %2987
  %2989 = vrot.lane.b32.xlu0 %v2503, 16
  %v2990 = vpop.permute.xlu0 %2989
  %2991 = vrot.lane.b32.xlu0 %v2504, 16
  %v2992 = vpop.permute.xlu0 %2991
  %2993 = vrot.lane.b32.xlu0 %v2505, 16
  %v2994 = vpop.permute.xlu0 %2993
  %2995 = vrot.lane.b32.xlu0 %v2506, 16
  %v2996 = vpop.permute.xlu0 %2995
  %2997 = vrot.lane.b32.xlu0 %v2507, 16
  %v2998 = vpop.permute.xlu0 %2997
  %2999 = vrot.lane.b32.xlu0 %v2508, 16
  %v3000 = vpop.permute.xlu0 %2999
  %3001 = vrot.lane.b32.xlu0 %v2509, 16
  %v3002 = vpop.permute.xlu0 %3001
  %vm3003 = vcmask 130048
  %v3004 = vsel %vm3003, %v2982, %v2984
  %v3005 = vsel %vm3003, %v2984, %v2986
  %v3006 = vsel %vm3003, %v2986, %v2988
  %v3007 = vsel %vm3003, %v2988, %v2990
  %v3008 = vsel %vm3003, %v2990, %v2992
  %v3009 = vsel %vm3003, %v2992, %v2994
  %v3010 = vsel %vm3003, %v2994, %v2996
  %v3011 = vsel %vm3003, %v2996, %v2998
  %v3012 = vsel %vm3003, %v2998, %v3000
  %v3013 = vsel %vm3003, %v3000, %v3002
  %v3025 = vsel %vm2553, %v2979, 0
  %v3028 = vsel %vm2553, %v2980, 0
  %3030 = vmatpush.bf16.msra.mxu0 0
  %3031 = vmatpush.bf16.msra.mxu0 0
  %3032 = vmatpush.bf16.msra.mxu0 0
  %3033 = vmatpush.bf16.msra.mxu0 0
  %3034 = vmatpush.bf16.msra.mxu0 0
  %3035 = vmatpush.bf16.msra.mxu0 0
  %3036 = vmatpush.bf16.msra.mxu0 0
  %3037 = vmatpush.bf16.msra.mxu0 %v3004
  %3038 = vmatmul.bf16.gmra.mxu0 %v3025
  %v3039 = vpop.f32.mrf.mxu0
  %v3040 = vadd.f32 0.0, %v3039
  %v3041 = vpop.f32.mrf.mxu0
  %v3042 = vadd.f32 0.0, %v3041
  %3043 = vmatmul.bf16.gmra.mxu0 %v3028
  %v3044 = vpop.f32.mrf.mxu0
  %v3045 = vadd.f32 0.0, %v3044
  %v3046 = vpop.f32.mrf.mxu0
  %v3047 = vadd.f32 0.0, %v3046
  %3048 = vdwg.mxu0
  %3049 = vmatpush.bf16.msra.mxu0 0
  %3050 = vmatpush.bf16.msra.mxu0 0
  %3051 = vmatpush.bf16.msra.mxu0 0
  %3052 = vmatpush.bf16.msra.mxu0 0
  %3053 = vmatpush.bf16.msra.mxu0 0
  %3054 = vmatpush.bf16.msra.mxu0 0
  %3055 = vmatpush.bf16.msra.mxu0 0
  %3056 = vmatpush.bf16.msra.mxu0 %v3005
  %3057 = vmatmul.bf16.gmra.mxu0 %v3025
  %v3058 = vpop.f32.mrf.mxu0
  %v3059 = vadd.f32 0.0, %v3058
  %v3060 = vpop.f32.mrf.mxu0
  %v3061 = vadd.f32 0.0, %v3060
  %3062 = vmatmul.bf16.gmra.mxu0 %v3028
  %v3063 = vpop.f32.mrf.mxu0
  %v3064 = vadd.f32 0.0, %v3063
  %v3065 = vpop.f32.mrf.mxu0
  %v3066 = vadd.f32 0.0, %v3065
  %3067 = vdwg.mxu0
  %3068 = vmatpush.bf16.msra.mxu0 0
  %3069 = vmatpush.bf16.msra.mxu0 0
  %3070 = vmatpush.bf16.msra.mxu0 0
  %3071 = vmatpush.bf16.msra.mxu0 0
  %3072 = vmatpush.bf16.msra.mxu0 0
  %3073 = vmatpush.bf16.msra.mxu0 0
  %3074 = vmatpush.bf16.msra.mxu0 0
  %3075 = vmatpush.bf16.msra.mxu0 %v3006
  %3076 = vmatmul.bf16.gmra.mxu0 %v3025
  %v3077 = vpop.f32.mrf.mxu0
  %v3078 = vadd.f32 0.0, %v3077
  %v3079 = vpop.f32.mrf.mxu0
  %v3080 = vadd.f32 0.0, %v3079
  %3081 = vmatmul.bf16.gmra.mxu0 %v3028
  %v3082 = vpop.f32.mrf.mxu0
  %v3083 = vadd.f32 0.0, %v3082
  %v3084 = vpop.f32.mrf.mxu0
  %v3085 = vadd.f32 0.0, %v3084
  %3086 = vdwg.mxu0
  %3087 = vmatpush.bf16.msra.mxu0 0
  %3088 = vmatpush.bf16.msra.mxu0 0
  %3089 = vmatpush.bf16.msra.mxu0 0
  %3090 = vmatpush.bf16.msra.mxu0 0
  %3091 = vmatpush.bf16.msra.mxu0 0
  %3092 = vmatpush.bf16.msra.mxu0 0
  %3093 = vmatpush.bf16.msra.mxu0 0
  %3094 = vmatpush.bf16.msra.mxu0 %v3007
  %3095 = vmatmul.bf16.gmra.mxu0 %v3025
  %v3096 = vpop.f32.mrf.mxu0
  %v3097 = vadd.f32 0.0, %v3096
  %v3098 = vpop.f32.mrf.mxu0
  %v3099 = vadd.f32 0.0, %v3098
  %3100 = vmatmul.bf16.gmra.mxu0 %v3028
  %v3101 = vpop.f32.mrf.mxu0
  %v3102 = vadd.f32 0.0, %v3101
  %v3103 = vpop.f32.mrf.mxu0
  %v3104 = vadd.f32 0.0, %v3103
  %3105 = vdwg.mxu0
  %3106 = vmatpush.bf16.msra.mxu0 0
  %3107 = vmatpush.bf16.msra.mxu0 0
  %3108 = vmatpush.bf16.msra.mxu0 0
  %3109 = vmatpush.bf16.msra.mxu0 0
  %3110 = vmatpush.bf16.msra.mxu0 0
  %3111 = vmatpush.bf16.msra.mxu0 0
  %3112 = vmatpush.bf16.msra.mxu0 0
  %3113 = vmatpush.bf16.msra.mxu0 %v3008
  %3114 = vmatmul.bf16.gmra.mxu0 %v3025
  %v3115 = vpop.f32.mrf.mxu0
  %v3116 = vadd.f32 0.0, %v3115
  %v3117 = vpop.f32.mrf.mxu0
  %v3118 = vadd.f32 0.0, %v3117
  %3119 = vmatmul.bf16.gmra.mxu0 %v3028
  %v3120 = vpop.f32.mrf.mxu0
  %v3121 = vadd.f32 0.0, %v3120
  %v3122 = vpop.f32.mrf.mxu0
  %v3123 = vadd.f32 0.0, %v3122
  %3124 = vdwg.mxu0
  %3125 = vmatpush.bf16.msra.mxu0 0
  %3126 = vmatpush.bf16.msra.mxu0 0
  %3127 = vmatpush.bf16.msra.mxu0 0
  %3128 = vmatpush.bf16.msra.mxu0 0
  %3129 = vmatpush.bf16.msra.mxu0 0
  %3130 = vmatpush.bf16.msra.mxu0 0
  %3131 = vmatpush.bf16.msra.mxu0 0
  %3132 = vmatpush.bf16.msra.mxu0 %v3009
  %3133 = vmatmul.bf16.gmra.mxu0 %v3025
  %v3134 = vpop.f32.mrf.mxu0
  %v3135 = vadd.f32 0.0, %v3134
  %v3136 = vpop.f32.mrf.mxu0
  %v3137 = vadd.f32 0.0, %v3136
  %3138 = vmatmul.bf16.gmra.mxu0 %v3028
  %v3139 = vpop.f32.mrf.mxu0
  %v3140 = vadd.f32 0.0, %v3139
  %v3141 = vpop.f32.mrf.mxu0
  %v3142 = vadd.f32 0.0, %v3141
  %3143 = vdwg.mxu0
  %3144 = vmatpush.bf16.msra.mxu0 0
  %3145 = vmatpush.bf16.msra.mxu0 0
  %3146 = vmatpush.bf16.msra.mxu0 0
  %3147 = vmatpush.bf16.msra.mxu0 0
  %3148 = vmatpush.bf16.msra.mxu0 0
  %3149 = vmatpush.bf16.msra.mxu0 0
  %3150 = vmatpush.bf16.msra.mxu0 0
  %3151 = vmatpush.bf16.msra.mxu0 %v3010
  %3152 = vmatmul.bf16.gmra.mxu0 %v3025
  %v3153 = vpop.f32.mrf.mxu0
  %v3154 = vadd.f32 0.0, %v3153
  %v3155 = vpop.f32.mrf.mxu0
  %v3156 = vadd.f32 0.0, %v3155
  %3157 = vmatmul.bf16.gmra.mxu0 %v3028
  %v3158 = vpop.f32.mrf.mxu0
  %v3159 = vadd.f32 0.0, %v3158
  %v3160 = vpop.f32.mrf.mxu0
  %v3161 = vadd.f32 0.0, %v3160
  %3162 = vdwg.mxu0
  %3163 = vmatpush.bf16.msra.mxu0 0
  %3164 = vmatpush.bf16.msra.mxu0 0
  %3165 = vmatpush.bf16.msra.mxu0 0
  %3166 = vmatpush.bf16.msra.mxu0 0
  %3167 = vmatpush.bf16.msra.mxu0 0
  %3168 = vmatpush.bf16.msra.mxu0 0
  %3169 = vmatpush.bf16.msra.mxu0 0
  %3170 = vmatpush.bf16.msra.mxu0 %v3011
  %3171 = vmatmul.bf16.gmra.mxu0 %v3025
  %v3172 = vpop.f32.mrf.mxu0
  %v3173 = vadd.f32 0.0, %v3172
  %v3174 = vpop.f32.mrf.mxu0
  %v3175 = vadd.f32 0.0, %v3174
  %3176 = vmatmul.bf16.gmra.mxu0 %v3028
  %v3177 = vpop.f32.mrf.mxu0
  %v3178 = vadd.f32 0.0, %v3177
  %v3179 = vpop.f32.mrf.mxu0
  %v3180 = vadd.f32 0.0, %v3179
  %3181 = vdwg.mxu0
  %3182 = vmatpush.bf16.msra.mxu0 0
  %3183 = vmatpush.bf16.msra.mxu0 0
  %3184 = vmatpush.bf16.msra.mxu0 0
  %3185 = vmatpush.bf16.msra.mxu0 0
  %3186 = vmatpush.bf16.msra.mxu0 0
  %3187 = vmatpush.bf16.msra.mxu0 0
  %3188 = vmatpush.bf16.msra.mxu0 0
  %3189 = vmatpush.bf16.msra.mxu0 %v3012
  %3190 = vmatmul.bf16.gmra.mxu0 %v3025
  %v3191 = vpop.f32.mrf.mxu0
  %v3192 = vadd.f32 0.0, %v3191
  %v3193 = vpop.f32.mrf.mxu0
  %v3194 = vadd.f32 0.0, %v3193
  %3195 = vmatmul.bf16.gmra.mxu0 %v3028
  %v3196 = vpop.f32.mrf.mxu0
  %v3197 = vadd.f32 0.0, %v3196
  %v3198 = vpop.f32.mrf.mxu0
  %v3199 = vadd.f32 0.0, %v3198
  %3200 = vdwg.mxu0
  %3201 = vmatpush.bf16.msra.mxu0 0
  %3202 = vmatpush.bf16.msra.mxu0 0
  %3203 = vmatpush.bf16.msra.mxu0 0
  %3204 = vmatpush.bf16.msra.mxu0 0
  %3205 = vmatpush.bf16.msra.mxu0 0
  %3206 = vmatpush.bf16.msra.mxu0 0
  %3207 = vmatpush.bf16.msra.mxu0 0
  %3208 = vmatpush.bf16.msra.mxu0 %v3013
  %3209 = vmatmul.bf16.gmra.mxu0 %v3025
  %v3210 = vpop.f32.mrf.mxu0
  %v3211 = vadd.f32 0.0, %v3210
  %v3212 = vpop.f32.mrf.mxu0
  %v3213 = vadd.f32 0.0, %v3212
  %3214 = vmatmul.bf16.gmra.mxu0 %v3028
  %v3215 = vpop.f32.mrf.mxu0
  %v3216 = vadd.f32 0.0, %v3215
  %v3217 = vpop.f32.mrf.mxu0
  %v3218 = vadd.f32 0.0, %v3217
  %3219 = vdwg.mxu0
  %v3220 = vadd.f32 %v2786, %v3040
  %v3221 = vadd.f32 %v2805, %v3059
  %v3222 = vadd.f32 %v2824, %v3078
  %v3223 = vadd.f32 %v2843, %v3097
  %v3224 = vadd.f32 %v2862, %v3116
  %v3225 = vadd.f32 %v2881, %v3135
  %v3226 = vadd.f32 %v2900, %v3154
  %v3227 = vadd.f32 %v2919, %v3173
  %v3228 = vadd.f32 %v2938, %v3192
  %v3229 = vadd.f32 %v2957, %v3211
  %v3230 = vadd.f32 %v2788, %v3042
  %v3231 = vadd.f32 %v2807, %v3061
  %v3232 = vadd.f32 %v2826, %v3080
  %v3233 = vadd.f32 %v2845, %v3099
  %v3234 = vadd.f32 %v2864, %v3118
  %v3235 = vadd.f32 %v2883, %v3137
  %v3236 = vadd.f32 %v2902, %v3156
  %v3237 = vadd.f32 %v2921, %v3175
  %v3238 = vadd.f32 %v2940, %v3194
  %v3239 = vadd.f32 %v2959, %v3213
  %v3240 = vadd.f32 %v2791, %v3045
  %v3241 = vadd.f32 %v2810, %v3064
  %v3242 = vadd.f32 %v2829, %v3083
  %v3243 = vadd.f32 %v2848, %v3102
  %v3244 = vadd.f32 %v2867, %v3121
  %v3245 = vadd.f32 %v2886, %v3140
  %v3246 = vadd.f32 %v2905, %v3159
  %v3247 = vadd.f32 %v2924, %v3178
  %v3248 = vadd.f32 %v2943, %v3197
  %v3249 = vadd.f32 %v2962, %v3216
  %v3250 = vadd.f32 %v2793, %v3047
  %v3251 = vadd.f32 %v2812, %v3066
  %v3252 = vadd.f32 %v2831, %v3085
  %v3253 = vadd.f32 %v2850, %v3104
  %v3254 = vadd.f32 %v2869, %v3123
  %v3255 = vadd.f32 %v2888, %v3142
  %v3256 = vadd.f32 %v2907, %v3161
  %v3257 = vadd.f32 %v2926, %v3180
  %v3258 = vadd.f32 %v2945, %v3199
  %v3259 = vadd.f32 %v2964, %v3218
  %s3260 = scalar_lea.vmem %s3, 48
  %v3261 = vld [vmem:[%s3260] sm:$0xf]
  %v3262 = vld [vmem:[%s3260 + $0x4] sm:$0xf]
  %v3263 = vld [vmem:[%s3260 + $0x8] sm:$0xf]
  %v3264 = vld [vmem:[%s3260 + $0xc] sm:$0xf]
  %v3269 = vunpack.c.l.b16 %v3261
  %v3270 = vunpack.c.l.b16 %v3262
  %v3271 = vunpack.c.l.b16 %v3263
  %v3272 = vunpack.c.l.b16 %v3264
  %v3273 = vpack.c.b16 %v3270, %v3269
  %v3274 = vpack.c.b16 %v3272, %v3271
  %3275 = vrot.lane.b32.xlu0 %v2499, 12
  %v3276 = vpop.permute.xlu0 %3275
  %3277 = vrot.lane.b32.xlu0 %v2500, 12
  %v3278 = vpop.permute.xlu0 %3277
  %3279 = vrot.lane.b32.xlu0 %v2501, 12
  %v3280 = vpop.permute.xlu0 %3279
  %3281 = vrot.lane.b32.xlu0 %v2502, 12
  %v3282 = vpop.permute.xlu0 %3281
  %3283 = vrot.lane.b32.xlu0 %v2503, 12
  %v3284 = vpop.permute.xlu0 %3283
  %3285 = vrot.lane.b32.xlu0 %v2504, 12
  %v3286 = vpop.permute.xlu0 %3285
  %3287 = vrot.lane.b32.xlu0 %v2505, 12
  %v3288 = vpop.permute.xlu0 %3287
  %3289 = vrot.lane.b32.xlu0 %v2506, 12
  %v3290 = vpop.permute.xlu0 %3289
  %3291 = vrot.lane.b32.xlu0 %v2507, 12
  %v3292 = vpop.permute.xlu0 %3291
  %3293 = vrot.lane.b32.xlu0 %v2508, 12
  %v3294 = vpop.permute.xlu0 %3293
  %3295 = vrot.lane.b32.xlu0 %v2509, 12
  %v3296 = vpop.permute.xlu0 %3295
  %vm3297 = vcmask 97280
  %v3298 = vsel %vm3297, %v3276, %v3278
  %v3299 = vsel %vm3297, %v3278, %v3280
  %v3300 = vsel %vm3297, %v3280, %v3282
  %v3301 = vsel %vm3297, %v3282, %v3284
  %v3302 = vsel %vm3297, %v3284, %v3286
  %v3303 = vsel %vm3297, %v3286, %v3288
  %v3304 = vsel %vm3297, %v3288, %v3290
  %v3305 = vsel %vm3297, %v3290, %v3292
  %v3306 = vsel %vm3297, %v3292, %v3294
  %v3307 = vsel %vm3297, %v3294, %v3296
  %v3319 = vsel %vm2553, %v3273, 0
  %v3322 = vsel %vm2553, %v3274, 0
  %3324 = vmatpush.bf16.msra.mxu0 0
  %3325 = vmatpush.bf16.msra.mxu0 0
  %3326 = vmatpush.bf16.msra.mxu0 0
  %3327 = vmatpush.bf16.msra.mxu0 0
  %3328 = vmatpush.bf16.msra.mxu0 0
  %3329 = vmatpush.bf16.msra.mxu0 0
  %3330 = vmatpush.bf16.msra.mxu0 0
  %3331 = vmatpush.bf16.msra.mxu0 %v3298
  %3332 = vmatmul.bf16.gmra.mxu0 %v3319
  %v3333 = vpop.f32.mrf.mxu0
  %v3334 = vadd.f32 0.0, %v3333
  %v3335 = vpop.f32.mrf.mxu0
  %v3336 = vadd.f32 0.0, %v3335
  %3337 = vmatmul.bf16.gmra.mxu0 %v3322
  %v3338 = vpop.f32.mrf.mxu0
  %v3339 = vadd.f32 0.0, %v3338
  %v3340 = vpop.f32.mrf.mxu0
  %v3341 = vadd.f32 0.0, %v3340
  %3342 = vdwg.mxu0
  %3343 = vmatpush.bf16.msra.mxu0 0
  %3344 = vmatpush.bf16.msra.mxu0 0
  %3345 = vmatpush.bf16.msra.mxu0 0
  %3346 = vmatpush.bf16.msra.mxu0 0
  %3347 = vmatpush.bf16.msra.mxu0 0
  %3348 = vmatpush.bf16.msra.mxu0 0
  %3349 = vmatpush.bf16.msra.mxu0 0
  %3350 = vmatpush.bf16.msra.mxu0 %v3299
  %3351 = vmatmul.bf16.gmra.mxu0 %v3319
  %v3352 = vpop.f32.mrf.mxu0
  %v3353 = vadd.f32 0.0, %v3352
  %v3354 = vpop.f32.mrf.mxu0
  %v3355 = vadd.f32 0.0, %v3354
  %3356 = vmatmul.bf16.gmra.mxu0 %v3322
  %v3357 = vpop.f32.mrf.mxu0
  %v3358 = vadd.f32 0.0, %v3357
  %v3359 = vpop.f32.mrf.mxu0
  %v3360 = vadd.f32 0.0, %v3359
  %3361 = vdwg.mxu0
  %3362 = vmatpush.bf16.msra.mxu0 0
  %3363 = vmatpush.bf16.msra.mxu0 0
  %3364 = vmatpush.bf16.msra.mxu0 0
  %3365 = vmatpush.bf16.msra.mxu0 0
  %3366 = vmatpush.bf16.msra.mxu0 0
  %3367 = vmatpush.bf16.msra.mxu0 0
  %3368 = vmatpush.bf16.msra.mxu0 0
  %3369 = vmatpush.bf16.msra.mxu0 %v3300
  %3370 = vmatmul.bf16.gmra.mxu0 %v3319
  %v3371 = vpop.f32.mrf.mxu0
  %v3372 = vadd.f32 0.0, %v3371
  %v3373 = vpop.f32.mrf.mxu0
  %v3374 = vadd.f32 0.0, %v3373
  %3375 = vmatmul.bf16.gmra.mxu0 %v3322
  %v3376 = vpop.f32.mrf.mxu0
  %v3377 = vadd.f32 0.0, %v3376
  %v3378 = vpop.f32.mrf.mxu0
  %v3379 = vadd.f32 0.0, %v3378
  %3380 = vdwg.mxu0
  %3381 = vmatpush.bf16.msra.mxu0 0
  %3382 = vmatpush.bf16.msra.mxu0 0
  %3383 = vmatpush.bf16.msra.mxu0 0
  %3384 = vmatpush.bf16.msra.mxu0 0
  %3385 = vmatpush.bf16.msra.mxu0 0
  %3386 = vmatpush.bf16.msra.mxu0 0
  %3387 = vmatpush.bf16.msra.mxu0 0
  %3388 = vmatpush.bf16.msra.mxu0 %v3301
  %3389 = vmatmul.bf16.gmra.mxu0 %v3319
  %v3390 = vpop.f32.mrf.mxu0
  %v3391 = vadd.f32 0.0, %v3390
  %v3392 = vpop.f32.mrf.mxu0
  %v3393 = vadd.f32 0.0, %v3392
  %3394 = vmatmul.bf16.gmra.mxu0 %v3322
  %v3395 = vpop.f32.mrf.mxu0
  %v3396 = vadd.f32 0.0, %v3395
  %v3397 = vpop.f32.mrf.mxu0
  %v3398 = vadd.f32 0.0, %v3397
  %3399 = vdwg.mxu0
  %3400 = vmatpush.bf16.msra.mxu0 0
  %3401 = vmatpush.bf16.msra.mxu0 0
  %3402 = vmatpush.bf16.msra.mxu0 0
  %3403 = vmatpush.bf16.msra.mxu0 0
  %3404 = vmatpush.bf16.msra.mxu0 0
  %3405 = vmatpush.bf16.msra.mxu0 0
  %3406 = vmatpush.bf16.msra.mxu0 0
  %3407 = vmatpush.bf16.msra.mxu0 %v3302
  %3408 = vmatmul.bf16.gmra.mxu0 %v3319
  %v3409 = vpop.f32.mrf.mxu0
  %v3410 = vadd.f32 0.0, %v3409
  %v3411 = vpop.f32.mrf.mxu0
  %v3412 = vadd.f32 0.0, %v3411
  %3413 = vmatmul.bf16.gmra.mxu0 %v3322
  %v3414 = vpop.f32.mrf.mxu0
  %v3415 = vadd.f32 0.0, %v3414
  %v3416 = vpop.f32.mrf.mxu0
  %v3417 = vadd.f32 0.0, %v3416
  %3418 = vdwg.mxu0
  %3419 = vmatpush.bf16.msra.mxu0 0
  %3420 = vmatpush.bf16.msra.mxu0 0
  %3421 = vmatpush.bf16.msra.mxu0 0
  %3422 = vmatpush.bf16.msra.mxu0 0
  %3423 = vmatpush.bf16.msra.mxu0 0
  %3424 = vmatpush.bf16.msra.mxu0 0
  %3425 = vmatpush.bf16.msra.mxu0 0
  %3426 = vmatpush.bf16.msra.mxu0 %v3303
  %3427 = vmatmul.bf16.gmra.mxu0 %v3319
  %v3428 = vpop.f32.mrf.mxu0
  %v3429 = vadd.f32 0.0, %v3428
  %v3430 = vpop.f32.mrf.mxu0
  %v3431 = vadd.f32 0.0, %v3430
  %3432 = vmatmul.bf16.gmra.mxu0 %v3322
  %v3433 = vpop.f32.mrf.mxu0
  %v3434 = vadd.f32 0.0, %v3433
  %v3435 = vpop.f32.mrf.mxu0
  %v3436 = vadd.f32 0.0, %v3435
  %3437 = vdwg.mxu0
  %3438 = vmatpush.bf16.msra.mxu0 0
  %3439 = vmatpush.bf16.msra.mxu0 0
  %3440 = vmatpush.bf16.msra.mxu0 0
  %3441 = vmatpush.bf16.msra.mxu0 0
  %3442 = vmatpush.bf16.msra.mxu0 0
  %3443 = vmatpush.bf16.msra.mxu0 0
  %3444 = vmatpush.bf16.msra.mxu0 0
  %3445 = vmatpush.bf16.msra.mxu0 %v3304
  %3446 = vmatmul.bf16.gmra.mxu0 %v3319
  %v3447 = vpop.f32.mrf.mxu0
  %v3448 = vadd.f32 0.0, %v3447
  %v3449 = vpop.f32.mrf.mxu0
  %v3450 = vadd.f32 0.0, %v3449
  %3451 = vmatmul.bf16.gmra.mxu0 %v3322
  %v3452 = vpop.f32.mrf.mxu0
  %v3453 = vadd.f32 0.0, %v3452
  %v3454 = vpop.f32.mrf.mxu0
  %v3455 = vadd.f32 0.0, %v3454
  %3456 = vdwg.mxu0
  %3457 = vmatpush.bf16.msra.mxu0 0
  %3458 = vmatpush.bf16.msra.mxu0 0
  %3459 = vmatpush.bf16.msra.mxu0 0
  %3460 = vmatpush.bf16.msra.mxu0 0
  %3461 = vmatpush.bf16.msra.mxu0 0
  %3462 = vmatpush.bf16.msra.mxu0 0
  %3463 = vmatpush.bf16.msra.mxu0 0
  %3464 = vmatpush.bf16.msra.mxu0 %v3305
  %3465 = vmatmul.bf16.gmra.mxu0 %v3319
  %v3466 = vpop.f32.mrf.mxu0
  %v3467 = vadd.f32 0.0, %v3466
  %v3468 = vpop.f32.mrf.mxu0
  %v3469 = vadd.f32 0.0, %v3468
  %3470 = vmatmul.bf16.gmra.mxu0 %v3322
  %v3471 = vpop.f32.mrf.mxu0
  %v3472 = vadd.f32 0.0, %v3471
  %v3473 = vpop.f32.mrf.mxu0
  %v3474 = vadd.f32 0.0, %v3473
  %3475 = vdwg.mxu0
  %3476 = vmatpush.bf16.msra.mxu0 0
  %3477 = vmatpush.bf16.msra.mxu0 0
  %3478 = vmatpush.bf16.msra.mxu0 0
  %3479 = vmatpush.bf16.msra.mxu0 0
  %3480 = vmatpush.bf16.msra.mxu0 0
  %3481 = vmatpush.bf16.msra.mxu0 0
  %3482 = vmatpush.bf16.msra.mxu0 0
  %3483 = vmatpush.bf16.msra.mxu0 %v3306
  %3484 = vmatmul.bf16.gmra.mxu0 %v3319
  %v3485 = vpop.f32.mrf.mxu0
  %v3486 = vadd.f32 0.0, %v3485
  %v3487 = vpop.f32.mrf.mxu0
  %v3488 = vadd.f32 0.0, %v3487
  %3489 = vmatmul.bf16.gmra.mxu0 %v3322
  %v3490 = vpop.f32.mrf.mxu0
  %v3491 = vadd.f32 0.0, %v3490
  %v3492 = vpop.f32.mrf.mxu0
  %v3493 = vadd.f32 0.0, %v3492
  %3494 = vdwg.mxu0
  %3495 = vmatpush.bf16.msra.mxu0 0
  %3496 = vmatpush.bf16.msra.mxu0 0
  %3497 = vmatpush.bf16.msra.mxu0 0
  %3498 = vmatpush.bf16.msra.mxu0 0
  %3499 = vmatpush.bf16.msra.mxu0 0
  %3500 = vmatpush.bf16.msra.mxu0 0
  %3501 = vmatpush.bf16.msra.mxu0 0
  %3502 = vmatpush.bf16.msra.mxu0 %v3307
  %3503 = vmatmul.bf16.gmra.mxu0 %v3319
  %v3504 = vpop.f32.mrf.mxu0
  %v3505 = vadd.f32 0.0, %v3504
  %v3506 = vpop.f32.mrf.mxu0
  %v3507 = vadd.f32 0.0, %v3506
  %3508 = vmatmul.bf16.gmra.mxu0 %v3322
  %v3509 = vpop.f32.mrf.mxu0
  %v3510 = vadd.f32 0.0, %v3509
  %v3511 = vpop.f32.mrf.mxu0
  %v3512 = vadd.f32 0.0, %v3511
  %3513 = vdwg.mxu0
  %v3514 = vadd.f32 %v3220, %v3334
  %v3515 = vadd.f32 %v3221, %v3353
  %v3516 = vadd.f32 %v3222, %v3372
  %v3517 = vadd.f32 %v3223, %v3391
  %v3518 = vadd.f32 %v3224, %v3410
  %v3519 = vadd.f32 %v3225, %v3429
  %v3520 = vadd.f32 %v3226, %v3448
  %v3521 = vadd.f32 %v3227, %v3467
  %v3522 = vadd.f32 %v3228, %v3486
  %v3523 = vadd.f32 %v3229, %v3505
  %v3524 = vadd.f32 %v3230, %v3336
  %v3525 = vadd.f32 %v3231, %v3355
  %v3526 = vadd.f32 %v3232, %v3374
  %v3527 = vadd.f32 %v3233, %v3393
  %v3528 = vadd.f32 %v3234, %v3412
  %v3529 = vadd.f32 %v3235, %v3431
  %v3530 = vadd.f32 %v3236, %v3450
  %v3531 = vadd.f32 %v3237, %v3469
  %v3532 = vadd.f32 %v3238, %v3488
  %v3533 = vadd.f32 %v3239, %v3507
  %v3534 = vadd.f32 %v3240, %v3339
  %v3535 = vadd.f32 %v3241, %v3358
  %v3536 = vadd.f32 %v3242, %v3377
  %v3537 = vadd.f32 %v3243, %v3396
  %v3538 = vadd.f32 %v3244, %v3415
  %v3539 = vadd.f32 %v3245, %v3434
  %v3540 = vadd.f32 %v3246, %v3453
  %v3541 = vadd.f32 %v3247, %v3472
  %v3542 = vadd.f32 %v3248, %v3491
  %v3543 = vadd.f32 %v3249, %v3510
  %v3544 = vadd.f32 %v3250, %v3341
  %v3545 = vadd.f32 %v3251, %v3360
  %v3546 = vadd.f32 %v3252, %v3379
  %v3547 = vadd.f32 %v3253, %v3398
  %v3548 = vadd.f32 %v3254, %v3417
  %v3549 = vadd.f32 %v3255, %v3436
  %v3550 = vadd.f32 %v3256, %v3455
  %v3551 = vadd.f32 %v3257, %v3474
  %v3552 = vadd.f32 %v3258, %v3493
  %v3553 = vadd.f32 %v3259, %v3512
  %v3554 = vld [vmem:[%s4] sm:$0xff]
  %v3555 = vld [vmem:[%s4 + $0x8] sm:$0xff]
  %v3556 = vld [vmem:[%s4 + $0x10] sm:$0xff]
  %v3557 = vld [vmem:[%s4 + $0x18] sm:$0xff]
  %3559 = vset.pattern.permute.xlu0 0
  %3560 = vperm.xlu0 %3559, %v3554
  %v3561 = vpop.permute.xlu0 %3560
  %3564 = vset.pattern.permute.xlu0 0
  %3565 = vperm.xlu0 %3564, %v3555
  %v3566 = vpop.permute.xlu0 %3565
  %3569 = vset.pattern.permute.xlu0 0
  %3570 = vperm.xlu0 %3569, %v3556
  %v3571 = vpop.permute.xlu0 %3570
  %3574 = vset.pattern.permute.xlu0 0
  %3575 = vperm.xlu0 %3574, %v3557
  %v3576 = vpop.permute.xlu0 %3575
  %v3578 = vadd.f32 %v3514, %v3561
  %v3579 = vadd.f32 %v3515, %v3561
  %v3580 = vadd.f32 %v3516, %v3561
  %v3581 = vadd.f32 %v3517, %v3561
  %v3582 = vadd.f32 %v3518, %v3561
  %v3583 = vadd.f32 %v3519, %v3561
  %v3584 = vadd.f32 %v3520, %v3561
  %v3585 = vadd.f32 %v3521, %v3561
  %v3586 = vadd.f32 %v3522, %v3561
  %v3587 = vadd.f32 %v3523, %v3561
  %v3588 = vadd.f32 %v3524, %v3566
  %v3589 = vadd.f32 %v3525, %v3566
  %v3590 = vadd.f32 %v3526, %v3566
  %v3591 = vadd.f32 %v3527, %v3566
  %v3592 = vadd.f32 %v3528, %v3566
  %v3593 = vadd.f32 %v3529, %v3566
  %v3594 = vadd.f32 %v3530, %v3566
  %v3595 = vadd.f32 %v3531, %v3566
  %v3596 = vadd.f32 %v3532, %v3566
  %v3597 = vadd.f32 %v3533, %v3566
  %v3598 = vadd.f32 %v3534, %v3571
  %v3599 = vadd.f32 %v3535, %v3571
  %v3600 = vadd.f32 %v3536, %v3571
  %v3601 = vadd.f32 %v3537, %v3571
  %v3602 = vadd.f32 %v3538, %v3571
  %v3603 = vadd.f32 %v3539, %v3571
  %v3604 = vadd.f32 %v3540, %v3571
  %v3605 = vadd.f32 %v3541, %v3571
  %v3606 = vadd.f32 %v3542, %v3571
  %v3607 = vadd.f32 %v3543, %v3571
  %v3608 = vadd.f32 %v3544, %v3576
  %v3609 = vadd.f32 %v3545, %v3576
  %v3610 = vadd.f32 %v3546, %v3576
  %v3611 = vadd.f32 %v3547, %v3576
  %v3612 = vadd.f32 %v3548, %v3576
  %v3613 = vadd.f32 %v3549, %v3576
  %v3614 = vadd.f32 %v3550, %v3576
  %v3615 = vadd.f32 %v3551, %v3576
  %v3616 = vadd.f32 %v3552, %v3576
  %v3617 = vadd.f32 %v3553, %v3576
  %v3618 = vmax.f32 %v3578, 0.0
  %v3619 = vmax.f32 %v3579, 0.0
  %v3620 = vmax.f32 %v3580, 0.0
  %v3621 = vmax.f32 %v3581, 0.0
  %v3622 = vmax.f32 %v3582, 0.0
  %v3623 = vmax.f32 %v3583, 0.0
  %v3624 = vmax.f32 %v3584, 0.0
  %v3625 = vmax.f32 %v3585, 0.0
  %v3626 = vmax.f32 %v3586, 0.0
  %v3627 = vmax.f32 %v3587, 0.0
  %v3628 = vmax.f32 %v3588, 0.0
  %v3629 = vmax.f32 %v3589, 0.0
  %v3630 = vmax.f32 %v3590, 0.0
  %v3631 = vmax.f32 %v3591, 0.0
  %v3632 = vmax.f32 %v3592, 0.0
  %v3633 = vmax.f32 %v3593, 0.0
  %v3634 = vmax.f32 %v3594, 0.0
  %v3635 = vmax.f32 %v3595, 0.0
  %v3636 = vmax.f32 %v3596, 0.0
  %v3637 = vmax.f32 %v3597, 0.0
  %v3638 = vmax.f32 %v3598, 0.0
  %v3639 = vmax.f32 %v3599, 0.0
  %v3640 = vmax.f32 %v3600, 0.0
  %v3641 = vmax.f32 %v3601, 0.0
  %v3642 = vmax.f32 %v3602, 0.0
  %v3643 = vmax.f32 %v3603, 0.0
  %v3644 = vmax.f32 %v3604, 0.0
  %v3645 = vmax.f32 %v3605, 0.0
  %v3646 = vmax.f32 %v3606, 0.0
  %v3647 = vmax.f32 %v3607, 0.0
  %v3648 = vmax.f32 %v3608, 0.0
  %v3649 = vmax.f32 %v3609, 0.0
  %v3650 = vmax.f32 %v3610, 0.0
  %v3651 = vmax.f32 %v3611, 0.0
  %v3652 = vmax.f32 %v3612, 0.0
  %v3653 = vmax.f32 %v3613, 0.0
  %v3654 = vmax.f32 %v3614, 0.0
  %v3655 = vmax.f32 %v3615, 0.0
  %v3656 = vmax.f32 %v3616, 0.0
  %v3657 = vmax.f32 %v3617, 0.0
  %3698 = vrot.lane.b32.xlu0 %v3618, 124
  %v3699 = vpop.permute.xlu0 %3698
  %3700 = vrot.lane.b32.xlu0 %v3619, 124
  %v3701 = vpop.permute.xlu0 %3700
  %3702 = vrot.lane.b32.xlu0 %v3620, 124
  %v3703 = vpop.permute.xlu0 %3702
  %3704 = vrot.lane.b32.xlu0 %v3621, 124
  %v3705 = vpop.permute.xlu0 %3704
  %3706 = vrot.lane.b32.xlu0 %v3622, 124
  %v3707 = vpop.permute.xlu0 %3706
  %3708 = vrot.lane.b32.xlu0 %v3623, 124
  %v3709 = vpop.permute.xlu0 %3708
  %3710 = vrot.lane.b32.xlu0 %v3624, 124
  %v3711 = vpop.permute.xlu0 %3710
  %3712 = vrot.lane.b32.xlu0 %v3625, 124
  %v3713 = vpop.permute.xlu0 %3712
  %3714 = vrot.lane.b32.xlu0 %v3626, 124
  %v3715 = vpop.permute.xlu0 %3714
  %3716 = vrot.lane.b32.xlu0 %v3627, 124
  %v3717 = vpop.permute.xlu0 %3716
  %3718 = vrot.lane.b32.xlu0 %v3628, 124
  %v3719 = vpop.permute.xlu0 %3718
  %3720 = vrot.lane.b32.xlu0 %v3629, 124
  %v3721 = vpop.permute.xlu0 %3720
  %3722 = vrot.lane.b32.xlu0 %v3630, 124
  %v3723 = vpop.permute.xlu0 %3722
  %3724 = vrot.lane.b32.xlu0 %v3631, 124
  %v3725 = vpop.permute.xlu0 %3724
  %3726 = vrot.lane.b32.xlu0 %v3632, 124
  %v3727 = vpop.permute.xlu0 %3726
  %3728 = vrot.lane.b32.xlu0 %v3633, 124
  %v3729 = vpop.permute.xlu0 %3728
  %3730 = vrot.lane.b32.xlu0 %v3634, 124
  %v3731 = vpop.permute.xlu0 %3730
  %3732 = vrot.lane.b32.xlu0 %v3635, 124
  %v3733 = vpop.permute.xlu0 %3732
  %3734 = vrot.lane.b32.xlu0 %v3636, 124
  %v3735 = vpop.permute.xlu0 %3734
  %3736 = vrot.lane.b32.xlu0 %v3637, 124
  %v3737 = vpop.permute.xlu0 %3736
  %3738 = vrot.lane.b32.xlu0 %v3638, 124
  %v3739 = vpop.permute.xlu0 %3738
  %3740 = vrot.lane.b32.xlu0 %v3639, 124
  %v3741 = vpop.permute.xlu0 %3740
  %3742 = vrot.lane.b32.xlu0 %v3640, 124
  %v3743 = vpop.permute.xlu0 %3742
  %3744 = vrot.lane.b32.xlu0 %v3641, 124
  %v3745 = vpop.permute.xlu0 %3744
  %3746 = vrot.lane.b32.xlu0 %v3642, 124
  %v3747 = vpop.permute.xlu0 %3746
  %3748 = vrot.lane.b32.xlu0 %v3643, 124
  %v3749 = vpop.permute.xlu0 %3748
  %3750 = vrot.lane.b32.xlu0 %v3644, 124
  %v3751 = vpop.permute.xlu0 %3750
  %3752 = vrot.lane.b32.xlu0 %v3645, 124
  %v3753 = vpop.permute.xlu0 %3752
  %3754 = vrot.lane.b32.xlu0 %v3646, 124
  %v3755 = vpop.permute.xlu0 %3754
  %3756 = vrot.lane.b32.xlu0 %v3647, 124
  %v3757 = vpop.permute.xlu0 %3756
  %3758 = vrot.lane.b32.xlu0 %v3648, 124
  %v3759 = vpop.permute.xlu0 %3758
  %3760 = vrot.lane.b32.xlu0 %v3649, 124
  %v3761 = vpop.permute.xlu0 %3760
  %3762 = vrot.lane.b32.xlu0 %v3650, 124
  %v3763 = vpop.permute.xlu0 %3762
  %3764 = vrot.lane.b32.xlu0 %v3651, 124
  %v3765 = vpop.permute.xlu0 %3764
  %3766 = vrot.lane.b32.xlu0 %v3652, 124
  %v3767 = vpop.permute.xlu0 %3766
  %3768 = vrot.lane.b32.xlu0 %v3653, 124
  %v3769 = vpop.permute.xlu0 %3768
  %3770 = vrot.lane.b32.xlu0 %v3654, 124
  %v3771 = vpop.permute.xlu0 %3770
  %3772 = vrot.lane.b32.xlu0 %v3655, 124
  %v3773 = vpop.permute.xlu0 %3772
  %3774 = vrot.lane.b32.xlu0 %v3656, 124
  %v3775 = vpop.permute.xlu0 %3774
  %3776 = vrot.lane.b32.xlu0 %v3657, 124
  %v3777 = vpop.permute.xlu0 %3776
  %vm3778 = vcmask 1014784
  %v3779 = vsel %vm3778, %v3699, %v3701
  %v3780 = vsel %vm3778, %v3701, %v3703
  %v3781 = vsel %vm3778, %v3703, %v3705
  %v3782 = vsel %vm3778, %v3705, %v3707
  %v3783 = vsel %vm3778, %v3707, %v3709
  %v3784 = vsel %vm3778, %v3709, %v3711
  %v3785 = vsel %vm3778, %v3711, %v3713
  %v3786 = vsel %vm3778, %v3713, %v3715
  %v3787 = vsel %vm3778, %v3715, %v3717
  %v3788 = vsel %vm3778, %v3719, %v3721
  %v3789 = vsel %vm3778, %v3721, %v3723
  %v3790 = vsel %vm3778, %v3723, %v3725
  %v3791 = vsel %vm3778, %v3725, %v3727
  %v3792 = vsel %vm3778, %v3727, %v3729
  %v3793 = vsel %vm3778, %v3729, %v3731
  %v3794 = vsel %vm3778, %v3731, %v3733
  %v3795 = vsel %vm3778, %v3733, %v3735
  %v3796 = vsel %vm3778, %v3735, %v3737
  %v3797 = vsel %vm3778, %v3739, %v3741
  %v3798 = vsel %vm3778, %v3741, %v3743
  %v3799 = vsel %vm3778, %v3743, %v3745
  %v3800 = vsel %vm3778, %v3745, %v3747
  %v3801 = vsel %vm3778, %v3747, %v3749
  %v3802 = vsel %vm3778, %v3749, %v3751
  %v3803 = vsel %vm3778, %v3751, %v3753
  %v3804 = vsel %vm3778, %v3753, %v3755
  %v3805 = vsel %vm3778, %v3755, %v3757
  %v3806 = vsel %vm3778, %v3759, %v3761
  %v3807 = vsel %vm3778, %v3761, %v3763
  %v3808 = vsel %vm3778, %v3763, %v3765
  %v3809 = vsel %vm3778, %v3765, %v3767
  %v3810 = vsel %vm3778, %v3767, %v3769
  %v3811 = vsel %vm3778, %v3769, %v3771
  %v3812 = vsel %vm3778, %v3771, %v3773
  %v3813 = vsel %vm3778, %v3773, %v3775
  %v3814 = vsel %vm3778, %v3775, %v3777
  %v3855 = vmax.f32 %v3618, %v3779
  %v3856 = vmax.f32 %v3619, %v3780
  %v3857 = vmax.f32 %v3620, %v3781
  %v3858 = vmax.f32 %v3621, %v3782
  %v3859 = vmax.f32 %v3622, %v3783
  %v3860 = vmax.f32 %v3623, %v3784
  %v3861 = vmax.f32 %v3624, %v3785
  %v3862 = vmax.f32 %v3625, %v3786
  %v3863 = vmax.f32 %v3626, %v3787
  %v3864 = vmax.f32 %v3627, %v3717
  %v3865 = vmax.f32 %v3628, %v3788
  %v3866 = vmax.f32 %v3629, %v3789
  %v3867 = vmax.f32 %v3630, %v3790
  %v3868 = vmax.f32 %v3631, %v3791
  %v3869 = vmax.f32 %v3632, %v3792
  %v3870 = vmax.f32 %v3633, %v3793
  %v3871 = vmax.f32 %v3634, %v3794
  %v3872 = vmax.f32 %v3635, %v3795
  %v3873 = vmax.f32 %v3636, %v3796
  %v3874 = vmax.f32 %v3637, %v3737
  %v3875 = vmax.f32 %v3638, %v3797
  %v3876 = vmax.f32 %v3639, %v3798
  %v3877 = vmax.f32 %v3640, %v3799
  %v3878 = vmax.f32 %v3641, %v3800
  %v3879 = vmax.f32 %v3642, %v3801
  %v3880 = vmax.f32 %v3643, %v3802
  %v3881 = vmax.f32 %v3644, %v3803
  %v3882 = vmax.f32 %v3645, %v3804
  %v3883 = vmax.f32 %v3646, %v3805
  %v3884 = vmax.f32 %v3647, %v3757
  %v3885 = vmax.f32 %v3648, %v3806
  %v3886 = vmax.f32 %v3649, %v3807
  %v3887 = vmax.f32 %v3650, %v3808
  %v3888 = vmax.f32 %v3651, %v3809
  %v3889 = vmax.f32 %v3652, %v3810
  %v3890 = vmax.f32 %v3653, %v3811
  %v3891 = vmax.f32 %v3654, %v3812
  %v3892 = vmax.f32 %v3655, %v3813
  %v3893 = vmax.f32 %v3656, %v3814
  %v3894 = vmax.f32 %v3657, %v3777
  %3895 = vrot.lane.b32.xlu0 %v3618, 16
  %v3896 = vpop.permute.xlu0 %3895
  %3897 = vrot.lane.b32.xlu0 %v3619, 16
  %v3898 = vpop.permute.xlu0 %3897
  %3899 = vrot.lane.b32.xlu0 %v3620, 16
  %v3900 = vpop.permute.xlu0 %3899
  %3901 = vrot.lane.b32.xlu0 %v3621, 16
  %v3902 = vpop.permute.xlu0 %3901
  %3903 = vrot.lane.b32.xlu0 %v3622, 16
  %v3904 = vpop.permute.xlu0 %3903
  %3905 = vrot.lane.b32.xlu0 %v3623, 16
  %v3906 = vpop.permute.xlu0 %3905
  %3907 = vrot.lane.b32.xlu0 %v3624, 16
  %v3908 = vpop.permute.xlu0 %3907
  %3909 = vrot.lane.b32.xlu0 %v3625, 16
  %v3910 = vpop.permute.xlu0 %3909
  %3911 = vrot.lane.b32.xlu0 %v3626, 16
  %v3912 = vpop.permute.xlu0 %3911
  %3913 = vrot.lane.b32.xlu0 %v3627, 16
  %v3914 = vpop.permute.xlu0 %3913
  %3915 = vrot.lane.b32.xlu0 %v3628, 16
  %v3916 = vpop.permute.xlu0 %3915
  %3917 = vrot.lane.b32.xlu0 %v3629, 16
  %v3918 = vpop.permute.xlu0 %3917
  %3919 = vrot.lane.b32.xlu0 %v3630, 16
  %v3920 = vpop.permute.xlu0 %3919
  %3921 = vrot.lane.b32.xlu0 %v3631, 16
  %v3922 = vpop.permute.xlu0 %3921
  %3923 = vrot.lane.b32.xlu0 %v3632, 16
  %v3924 = vpop.permute.xlu0 %3923
  %3925 = vrot.lane.b32.xlu0 %v3633, 16
  %v3926 = vpop.permute.xlu0 %3925
  %3927 = vrot.lane.b32.xlu0 %v3634, 16
  %v3928 = vpop.permute.xlu0 %3927
  %3929 = vrot.lane.b32.xlu0 %v3635, 16
  %v3930 = vpop.permute.xlu0 %3929
  %3931 = vrot.lane.b32.xlu0 %v3636, 16
  %v3932 = vpop.permute.xlu0 %3931
  %3933 = vrot.lane.b32.xlu0 %v3637, 16
  %v3934 = vpop.permute.xlu0 %3933
  %3935 = vrot.lane.b32.xlu0 %v3638, 16
  %v3936 = vpop.permute.xlu0 %3935
  %3937 = vrot.lane.b32.xlu0 %v3639, 16
  %v3938 = vpop.permute.xlu0 %3937
  %3939 = vrot.lane.b32.xlu0 %v3640, 16
  %v3940 = vpop.permute.xlu0 %3939
  %3941 = vrot.lane.b32.xlu0 %v3641, 16
  %v3942 = vpop.permute.xlu0 %3941
  %3943 = vrot.lane.b32.xlu0 %v3642, 16
  %v3944 = vpop.permute.xlu0 %3943
  %3945 = vrot.lane.b32.xlu0 %v3643, 16
  %v3946 = vpop.permute.xlu0 %3945
  %3947 = vrot.lane.b32.xlu0 %v3644, 16
  %v3948 = vpop.permute.xlu0 %3947
  %3949 = vrot.lane.b32.xlu0 %v3645, 16
  %v3950 = vpop.permute.xlu0 %3949
  %3951 = vrot.lane.b32.xlu0 %v3646, 16
  %v3952 = vpop.permute.xlu0 %3951
  %3953 = vrot.lane.b32.xlu0 %v3647, 16
  %v3954 = vpop.permute.xlu0 %3953
  %3955 = vrot.lane.b32.xlu0 %v3648, 16
  %v3956 = vpop.permute.xlu0 %3955
  %3957 = vrot.lane.b32.xlu0 %v3649, 16
  %v3958 = vpop.permute.xlu0 %3957
  %3959 = vrot.lane.b32.xlu0 %v3650, 16
  %v3960 = vpop.permute.xlu0 %3959
  %3961 = vrot.lane.b32.xlu0 %v3651, 16
  %v3962 = vpop.permute.xlu0 %3961
  %3963 = vrot.lane.b32.xlu0 %v3652, 16
  %v3964 = vpop.permute.xlu0 %3963
  %3965 = vrot.lane.b32.xlu0 %v3653, 16
  %v3966 = vpop.permute.xlu0 %3965
  %3967 = vrot.lane.b32.xlu0 %v3654, 16
  %v3968 = vpop.permute.xlu0 %3967
  %3969 = vrot.lane.b32.xlu0 %v3655, 16
  %v3970 = vpop.permute.xlu0 %3969
  %3971 = vrot.lane.b32.xlu0 %v3656, 16
  %v3972 = vpop.permute.xlu0 %3971
  %3973 = vrot.lane.b32.xlu0 %v3657, 16
  %v3974 = vpop.permute.xlu0 %3973
  %v3975 = vsel %vm2553, %v3896, %v3898
  %v3976 = vsel %vm2553, %v3898, %v3900
  %v3977 = vsel %vm2553, %v3900, %v3902
  %v3978 = vsel %vm2553, %v3902, %v3904
  %v3979 = vsel %vm2553, %v3904, %v3906
  %v3980 = vsel %vm2553, %v3906, %v3908
  %v3981 = vsel %vm2553, %v3908, %v3910
  %v3982 = vsel %vm2553, %v3910, %v3912
  %v3983 = vsel %vm2553, %v3912, %v3914
  %v3984 = vsel %vm2553, %v3916, %v3918
  %v3985 = vsel %vm2553, %v3918, %v3920
  %v3986 = vsel %vm2553, %v3920, %v3922
  %v3987 = vsel %vm2553, %v3922, %v3924
  %v3988 = vsel %vm2553, %v3924, %v3926
  %v3989 = vsel %vm2553, %v3926, %v3928
  %v3990 = vsel %vm2553, %v3928, %v3930
  %v3991 = vsel %vm2553, %v3930, %v3932
  %v3992 = vsel %vm2553, %v3932, %v3934
  %v3993 = vsel %vm2553, %v3936, %v3938
  %v3994 = vsel %vm2553, %v3938, %v3940
  %v3995 = vsel %vm2553, %v3940, %v3942
  %v3996 = vsel %vm2553, %v3942, %v3944
  %v3997 = vsel %vm2553, %v3944, %v3946
  %v3998 = vsel %vm2553, %v3946, %v3948
  %v3999 = vsel %vm2553, %v3948, %v3950
  %v4000 = vsel %vm2553, %v3950, %v3952
  %v4001 = vsel %vm2553, %v3952, %v3954
  %v4002 = vsel %vm2553, %v3956, %v3958
  %v4003 = vsel %vm2553, %v3958, %v3960
  %v4004 = vsel %vm2553, %v3960, %v3962
  %v4005 = vsel %vm2553, %v3962, %v3964
  %v4006 = vsel %vm2553, %v3964, %v3966
  %v4007 = vsel %vm2553, %v3966, %v3968
  %v4008 = vsel %vm2553, %v3968, %v3970
  %v4009 = vsel %vm2553, %v3970, %v3972
  %v4010 = vsel %vm2553, %v3972, %v3974
  %v4051 = vmax.f32 %v3855, %v3975
  %v4052 = vmax.f32 %v3856, %v3976
  %v4053 = vmax.f32 %v3857, %v3977
  %v4054 = vmax.f32 %v3858, %v3978
  %v4055 = vmax.f32 %v3859, %v3979
  %v4056 = vmax.f32 %v3860, %v3980
  %v4057 = vmax.f32 %v3861, %v3981
  %v4058 = vmax.f32 %v3862, %v3982
  %v4059 = vmax.f32 %v3863, %v3983
  %v4060 = vmax.f32 %v3864, %v3914
  %v4061 = vmax.f32 %v3865, %v3984
  %v4062 = vmax.f32 %v3866, %v3985
  %v4063 = vmax.f32 %v3867, %v3986
  %v4064 = vmax.f32 %v3868, %v3987
  %v4065 = vmax.f32 %v3869, %v3988
  %v4066 = vmax.f32 %v3870, %v3989
  %v4067 = vmax.f32 %v3871, %v3990
  %v4068 = vmax.f32 %v3872, %v3991
  %v4069 = vmax.f32 %v3873, %v3992
  %v4070 = vmax.f32 %v3874, %v3934
  %v4071 = vmax.f32 %v3875, %v3993
  %v4072 = vmax.f32 %v3876, %v3994
  %v4073 = vmax.f32 %v3877, %v3995
  %v4074 = vmax.f32 %v3878, %v3996
  %v4075 = vmax.f32 %v3879, %v3997
  %v4076 = vmax.f32 %v3880, %v3998
  %v4077 = vmax.f32 %v3881, %v3999
  %v4078 = vmax.f32 %v3882, %v4000
  %v4079 = vmax.f32 %v3883, %v4001
  %v4080 = vmax.f32 %v3884, %v3954
  %v4081 = vmax.f32 %v3885, %v4002
  %v4082 = vmax.f32 %v3886, %v4003
  %v4083 = vmax.f32 %v3887, %v4004
  %v4084 = vmax.f32 %v3888, %v4005
  %v4085 = vmax.f32 %v3889, %v4006
  %v4086 = vmax.f32 %v3890, %v4007
  %v4087 = vmax.f32 %v3891, %v4008
  %v4088 = vmax.f32 %v3892, %v4009
  %v4089 = vmax.f32 %v3893, %v4010
  %v4090 = vmax.f32 %v3894, %v3974
  %4091 = vrot.lane.b32.xlu0 %v3618, 12
  %v4092 = vpop.permute.xlu0 %4091
  %4093 = vrot.lane.b32.xlu0 %v3619, 12
  %v4094 = vpop.permute.xlu0 %4093
  %4095 = vrot.lane.b32.xlu0 %v3620, 12
  %v4096 = vpop.permute.xlu0 %4095
  %4097 = vrot.lane.b32.xlu0 %v3621, 12
  %v4098 = vpop.permute.xlu0 %4097
  %4099 = vrot.lane.b32.xlu0 %v3622, 12
  %v4100 = vpop.permute.xlu0 %4099
  %4101 = vrot.lane.b32.xlu0 %v3623, 12
  %v4102 = vpop.permute.xlu0 %4101
  %4103 = vrot.lane.b32.xlu0 %v3624, 12
  %v4104 = vpop.permute.xlu0 %4103
  %4105 = vrot.lane.b32.xlu0 %v3625, 12
  %v4106 = vpop.permute.xlu0 %4105
  %4107 = vrot.lane.b32.xlu0 %v3626, 12
  %v4108 = vpop.permute.xlu0 %4107
  %4109 = vrot.lane.b32.xlu0 %v3627, 12
  %v4110 = vpop.permute.xlu0 %4109
  %4111 = vrot.lane.b32.xlu0 %v3628, 12
  %v4112 = vpop.permute.xlu0 %4111
  %4113 = vrot.lane.b32.xlu0 %v3629, 12
  %v4114 = vpop.permute.xlu0 %4113
  %4115 = vrot.lane.b32.xlu0 %v3630, 12
  %v4116 = vpop.permute.xlu0 %4115
  %4117 = vrot.lane.b32.xlu0 %v3631, 12
  %v4118 = vpop.permute.xlu0 %4117
  %4119 = vrot.lane.b32.xlu0 %v3632, 12
  %v4120 = vpop.permute.xlu0 %4119
  %4121 = vrot.lane.b32.xlu0 %v3633, 12
  %v4122 = vpop.permute.xlu0 %4121
  %4123 = vrot.lane.b32.xlu0 %v3634, 12
  %v4124 = vpop.permute.xlu0 %4123
  %4125 = vrot.lane.b32.xlu0 %v3635, 12
  %v4126 = vpop.permute.xlu0 %4125
  %4127 = vrot.lane.b32.xlu0 %v3636, 12
  %v4128 = vpop.permute.xlu0 %4127
  %4129 = vrot.lane.b32.xlu0 %v3637, 12
  %v4130 = vpop.permute.xlu0 %4129
  %4131 = vrot.lane.b32.xlu0 %v3638, 12
  %v4132 = vpop.permute.xlu0 %4131
  %4133 = vrot.lane.b32.xlu0 %v3639, 12
  %v4134 = vpop.permute.xlu0 %4133
  %4135 = vrot.lane.b32.xlu0 %v3640, 12
  %v4136 = vpop.permute.xlu0 %4135
  %4137 = vrot.lane.b32.xlu0 %v3641, 12
  %v4138 = vpop.permute.xlu0 %4137
  %4139 = vrot.lane.b32.xlu0 %v3642, 12
  %v4140 = vpop.permute.xlu0 %4139
  %4141 = vrot.lane.b32.xlu0 %v3643, 12
  %v4142 = vpop.permute.xlu0 %4141
  %4143 = vrot.lane.b32.xlu0 %v3644, 12
  %v4144 = vpop.permute.xlu0 %4143
  %4145 = vrot.lane.b32.xlu0 %v3645, 12
  %v4146 = vpop.permute.xlu0 %4145
  %4147 = vrot.lane.b32.xlu0 %v3646, 12
  %v4148 = vpop.permute.xlu0 %4147
  %4149 = vrot.lane.b32.xlu0 %v3647, 12
  %v4150 = vpop.permute.xlu0 %4149
  %4151 = vrot.lane.b32.xlu0 %v3648, 12
  %v4152 = vpop.permute.xlu0 %4151
  %4153 = vrot.lane.b32.xlu0 %v3649, 12
  %v4154 = vpop.permute.xlu0 %4153
  %4155 = vrot.lane.b32.xlu0 %v3650, 12
  %v4156 = vpop.permute.xlu0 %4155
  %4157 = vrot.lane.b32.xlu0 %v3651, 12
  %v4158 = vpop.permute.xlu0 %4157
  %4159 = vrot.lane.b32.xlu0 %v3652, 12
  %v4160 = vpop.permute.xlu0 %4159
  %4161 = vrot.lane.b32.xlu0 %v3653, 12
  %v4162 = vpop.permute.xlu0 %4161
  %4163 = vrot.lane.b32.xlu0 %v3654, 12
  %v4164 = vpop.permute.xlu0 %4163
  %4165 = vrot.lane.b32.xlu0 %v3655, 12
  %v4166 = vpop.permute.xlu0 %4165
  %4167 = vrot.lane.b32.xlu0 %v3656, 12
  %v4168 = vpop.permute.xlu0 %4167
  %4169 = vrot.lane.b32.xlu0 %v3657, 12
  %v4170 = vpop.permute.xlu0 %4169
  %vm4171 = vcmask 97280
  %v4172 = vsel %vm4171, %v4092, %v4094
  %v4173 = vsel %vm4171, %v4094, %v4096
  %v4174 = vsel %vm4171, %v4096, %v4098
  %v4175 = vsel %vm4171, %v4098, %v4100
  %v4176 = vsel %vm4171, %v4100, %v4102
  %v4177 = vsel %vm4171, %v4102, %v4104
  %v4178 = vsel %vm4171, %v4104, %v4106
  %v4179 = vsel %vm4171, %v4106, %v4108
  %v4180 = vsel %vm4171, %v4108, %v4110
  %v4181 = vsel %vm4171, %v4112, %v4114
  %v4182 = vsel %vm4171, %v4114, %v4116
  %v4183 = vsel %vm4171, %v4116, %v4118
  %v4184 = vsel %vm4171, %v4118, %v4120
  %v4185 = vsel %vm4171, %v4120, %v4122
  %v4186 = vsel %vm4171, %v4122, %v4124
  %v4187 = vsel %vm4171, %v4124, %v4126
  %v4188 = vsel %vm4171, %v4126, %v4128
  %v4189 = vsel %vm4171, %v4128, %v4130
  %v4190 = vsel %vm4171, %v4132, %v4134
  %v4191 = vsel %vm4171, %v4134, %v4136
  %v4192 = vsel %vm4171, %v4136, %v4138
  %v4193 = vsel %vm4171, %v4138, %v4140
  %v4194 = vsel %vm4171, %v4140, %v4142
  %v4195 = vsel %vm4171, %v4142, %v4144
  %v4196 = vsel %vm4171, %v4144, %v4146
  %v4197 = vsel %vm4171, %v4146, %v4148
  %v4198 = vsel %vm4171, %v4148, %v4150
  %v4199 = vsel %vm4171, %v4152, %v4154
  %v4200 = vsel %vm4171, %v4154, %v4156
  %v4201 = vsel %vm4171, %v4156, %v4158
  %v4202 = vsel %vm4171, %v4158, %v4160
  %v4203 = vsel %vm4171, %v4160, %v4162
  %v4204 = vsel %vm4171, %v4162, %v4164
  %v4205 = vsel %vm4171, %v4164, %v4166
  %v4206 = vsel %vm4171, %v4166, %v4168
  %v4207 = vsel %vm4171, %v4168, %v4170
  %v4248 = vmax.f32 %v4051, %v4172
  %v4249 = vmax.f32 %v4052, %v4173
  %v4250 = vmax.f32 %v4053, %v4174
  %v4251 = vmax.f32 %v4054, %v4175
  %v4252 = vmax.f32 %v4055, %v4176
  %v4253 = vmax.f32 %v4056, %v4177
  %v4254 = vmax.f32 %v4057, %v4178
  %v4255 = vmax.f32 %v4058, %v4179
  %v4256 = vmax.f32 %v4059, %v4180
  %v4257 = vmax.f32 %v4060, %v4110
  %v4258 = vmax.f32 %v4061, %v4181
  %v4259 = vmax.f32 %v4062, %v4182
  %v4260 = vmax.f32 %v4063, %v4183
  %v4261 = vmax.f32 %v4064, %v4184
  %v4262 = vmax.f32 %v4065, %v4185
  %v4263 = vmax.f32 %v4066, %v4186
  %v4264 = vmax.f32 %v4067, %v4187
  %v4265 = vmax.f32 %v4068, %v4188
  %v4266 = vmax.f32 %v4069, %v4189
  %v4267 = vmax.f32 %v4070, %v4130
  %v4268 = vmax.f32 %v4071, %v4190
  %v4269 = vmax.f32 %v4072, %v4191
  %v4270 = vmax.f32 %v4073, %v4192
  %v4271 = vmax.f32 %v4074, %v4193
  %v4272 = vmax.f32 %v4075, %v4194
  %v4273 = vmax.f32 %v4076, %v4195
  %v4274 = vmax.f32 %v4077, %v4196
  %v4275 = vmax.f32 %v4078, %v4197
  %v4276 = vmax.f32 %v4079, %v4198
  %v4277 = vmax.f32 %v4080, %v4150
  %v4278 = vmax.f32 %v4081, %v4199
  %v4279 = vmax.f32 %v4082, %v4200
  %v4280 = vmax.f32 %v4083, %v4201
  %v4281 = vmax.f32 %v4084, %v4202
  %v4282 = vmax.f32 %v4085, %v4203
  %v4283 = vmax.f32 %v4086, %v4204
  %v4284 = vmax.f32 %v4087, %v4205
  %v4285 = vmax.f32 %v4088, %v4206
  %v4286 = vmax.f32 %v4089, %v4207
  %v4287 = vmax.f32 %v4090, %v4170
  %v4288 = vpack.c.bf16 %v4249, %v4248
  %v4289 = vpack.c.bf16 %v4251, %v4250
  %v4290 = vpack.c.bf16 %v4253, %v4252
  %v4291 = vpack.c.bf16 %v4255, %v4254
  %v4292 = vpack.c.bf16 %v4257, %v4256
  %v4293 = vpack.c.bf16 %v4259, %v4258
  %v4294 = vpack.c.bf16 %v4261, %v4260
  %v4295 = vpack.c.bf16 %v4263, %v4262
  %v4296 = vpack.c.bf16 %v4265, %v4264
  %v4297 = vpack.c.bf16 %v4267, %v4266
  %v4298 = vpack.c.bf16 %v4269, %v4268
  %v4299 = vpack.c.bf16 %v4271, %v4270
  %v4300 = vpack.c.bf16 %v4273, %v4272
  %v4301 = vpack.c.bf16 %v4275, %v4274
  %v4302 = vpack.c.bf16 %v4277, %v4276
  %v4303 = vpack.c.bf16 %v4279, %v4278
  %v4304 = vpack.c.bf16 %v4281, %v4280
  %v4305 = vpack.c.bf16 %v4283, %v4282
  %v4306 = vpack.c.bf16 %v4285, %v4284
  %v4307 = vpack.c.bf16 %v4287, %v4286
  %v4308 = vld [vmem:[%s5] sm:$0xf]
  %v4309 = vld [vmem:[%s5 + $0x4] sm:$0xf]
  %v4310 = vld [vmem:[%s5 + $0x8] sm:$0xf]
  %v4311 = vld [vmem:[%s5 + $0xc] sm:$0xf]
  %v4312 = vld [vmem:[%s5 + $0x10] sm:$0xf]
  %v4313 = vld [vmem:[%s5 + $0x14] sm:$0xf]
  %v4314 = vld [vmem:[%s5 + $0x18] sm:$0xf]
  %v4315 = vld [vmem:[%s5 + $0x1c] sm:$0xf]
  %s4316 = scalar_lea.vmem %s5, 32
  %v4317 = vld [vmem:[%s4316] sm:$0xf]
  %v4318 = vld [vmem:[%s4316 + $0x4] sm:$0xf]
  %v4319 = vld [vmem:[%s4316 + $0x8] sm:$0xf]
  %v4320 = vld [vmem:[%s4316 + $0xc] sm:$0xf]
  %v4321 = vld [vmem:[%s4316 + $0x10] sm:$0xf]
  %v4322 = vld [vmem:[%s4316 + $0x14] sm:$0xf]
  %v4323 = vld [vmem:[%s4316 + $0x18] sm:$0xf]
  %v4324 = vld [vmem:[%s4316 + $0x1c] sm:$0xf]
  %v4333 = vunpack.c.l.b16 %v4317
  %v4334 = vunpack.c.l.b16 %v4318
  %v4335 = vunpack.c.l.b16 %v4319
  %v4336 = vunpack.c.l.b16 %v4320
  %v4337 = vunpack.c.l.b16 %v4321
  %v4338 = vunpack.c.l.b16 %v4322
  %v4339 = vunpack.c.l.b16 %v4323
  %v4340 = vunpack.c.l.b16 %v4324
  %v4341 = vpack.c.b16 %v4334, %v4333
  %v4342 = vpack.c.b16 %v4336, %v4335
  %v4343 = vpack.c.b16 %v4338, %v4337
  %v4344 = vpack.c.b16 %v4340, %v4339
  %v4361 = vunpack.c.l.b16 %v4288
  %v4362 = vunpack.c.h.b16 %v4288
  %v4363 = vunpack.c.l.b16 %v4289
  %v4364 = vunpack.c.h.b16 %v4289
  %v4365 = vunpack.c.l.b16 %v4290
  %v4366 = vunpack.c.h.b16 %v4290
  %v4367 = vunpack.c.l.b16 %v4291
  %v4368 = vunpack.c.h.b16 %v4291
  %v4369 = vunpack.c.l.b16 %v4293
  %v4370 = vunpack.c.h.b16 %v4293
  %v4371 = vunpack.c.l.b16 %v4294
  %v4372 = vunpack.c.h.b16 %v4294
  %v4373 = vunpack.c.l.b16 %v4295
  %v4374 = vunpack.c.h.b16 %v4295
  %v4375 = vunpack.c.l.b16 %v4296
  %v4376 = vunpack.c.h.b16 %v4296
  %v4377 = vunpack.c.l.b16 %v4298
  %v4378 = vunpack.c.h.b16 %v4298
  %v4379 = vunpack.c.l.b16 %v4299
  %v4380 = vunpack.c.h.b16 %v4299
  %v4381 = vunpack.c.l.b16 %v4300
  %v4382 = vunpack.c.h.b16 %v4300
  %v4383 = vunpack.c.l.b16 %v4301
  %v4384 = vunpack.c.h.b16 %v4301
  %v4385 = vunpack.c.l.b16 %v4303
  %v4386 = vunpack.c.h.b16 %v4303
  %v4387 = vunpack.c.l.b16 %v4304
  %v4388 = vunpack.c.h.b16 %v4304
  %v4389 = vunpack.c.l.b16 %v4305
  %v4390 = vunpack.c.h.b16 %v4305
  %v4391 = vunpack.c.l.b16 %v4306
  %v4392 = vunpack.c.h.b16 %v4306
  %v4393 = vpack.c.b16 %v4369, %v4361
  %v4394 = vpack.c.b16 %v4370, %v4362
  %v4395 = vpack.c.b16 %v4371, %v4363
  %v4396 = vpack.c.b16 %v4372, %v4364
  %v4397 = vpack.c.b16 %v4373, %v4365
  %v4398 = vpack.c.b16 %v4374, %v4366
  %v4399 = vpack.c.b16 %v4375, %v4367
  %v4400 = vpack.c.b16 %v4376, %v4368
  %v4401 = vpack.c.b16 %v4385, %v4377
  %v4402 = vpack.c.b16 %v4386, %v4378
  %v4403 = vpack.c.b16 %v4387, %v4379
  %v4404 = vpack.c.b16 %v4388, %v4380
  %v4405 = vpack.c.b16 %v4389, %v4381
  %v4406 = vpack.c.b16 %v4390, %v4382
  %v4407 = vpack.c.b16 %v4391, %v4383
  %v4408 = vpack.c.b16 %v4392, %v4384
  %4409 = vrot.lane.b32.xlu0 %v4393, 120
  %v4410 = vpop.permute.xlu0 %4409
  %4411 = vrot.lane.b32.xlu0 %v4394, 120
  %v4412 = vpop.permute.xlu0 %4411
  %4413 = vrot.lane.b32.xlu0 %v4395, 120
  %v4414 = vpop.permute.xlu0 %4413
  %4415 = vrot.lane.b32.xlu0 %v4396, 120
  %v4416 = vpop.permute.xlu0 %4415
  %4417 = vrot.lane.b32.xlu0 %v4397, 120
  %v4418 = vpop.permute.xlu0 %4417
  %4419 = vrot.lane.b32.xlu0 %v4398, 120
  %v4420 = vpop.permute.xlu0 %4419
  %4421 = vrot.lane.b32.xlu0 %v4399, 120
  %v4422 = vpop.permute.xlu0 %4421
  %4423 = vrot.lane.b32.xlu0 %v4400, 120
  %v4424 = vpop.permute.xlu0 %4423
  %4425 = vrot.lane.b32.xlu0 %v4401, 120
  %v4426 = vpop.permute.xlu0 %4425
  %4427 = vrot.lane.b32.xlu0 %v4402, 120
  %v4428 = vpop.permute.xlu0 %4427
  %4429 = vrot.lane.b32.xlu0 %v4403, 120
  %v4430 = vpop.permute.xlu0 %4429
  %4431 = vrot.lane.b32.xlu0 %v4404, 120
  %v4432 = vpop.permute.xlu0 %4431
  %4433 = vrot.lane.b32.xlu0 %v4405, 120
  %v4434 = vpop.permute.xlu0 %4433
  %4435 = vrot.lane.b32.xlu0 %v4406, 120
  %v4436 = vpop.permute.xlu0 %4435
  %4437 = vrot.lane.b32.xlu0 %v4407, 120
  %v4438 = vpop.permute.xlu0 %4437
  %4439 = vrot.lane.b32.xlu0 %v4408, 120
  %v4440 = vpop.permute.xlu0 %4439
  %vm4441 = vcmask 982016
  %v4442 = vsel %vm4441, %v4410, %v4412
  %v4443 = vsel %vm4441, %v4412, %v4414
  %v4444 = vsel %vm4441, %v4414, %v4416
  %v4445 = vsel %vm4441, %v4416, %v4418
  %v4446 = vsel %vm4441, %v4420, %v4422
  %v4447 = vsel %vm4441, %v4426, %v4428
  %v4448 = vsel %vm4441, %v4428, %v4430
  %v4449 = vsel %vm4441, %v4430, %v4432
  %v4450 = vsel %vm4441, %v4432, %v4434
  %v4451 = vsel %vm4441, %v4436, %v4438
  %vm4464 = vcmask 261120
  %v4466 = vsel %vm4464, %v4341, 0
  %v4469 = vsel %vm4464, %v4342, 0
  %v4472 = vsel %vm4464, %v4343, 0
  %v4475 = vsel %vm4464, %v4344, 0
  %4477 = vmatpush.bf16.msra.mxu0 0
  %4478 = vmatpush.bf16.msra.mxu0 0
  %4479 = vmatpush.bf16.msra.mxu0 0
  %4480 = vmatpush.bf16.msra.mxu0 0
  %4481 = vmatpush.bf16.msra.mxu0 0
  %4482 = vmatpush.bf16.msra.mxu0 0
  %4483 = vmatpush.bf16.msra.mxu0 %v4447
  %4484 = vmatpush.bf16.msra.mxu0 %v4442
  %4485 = vmatmul.bf16.gmra.mxu0 %v4466
  %v4486 = vpop.f32.mrf.mxu0
  %v4487 = vadd.f32 0.0, %v4486
  %v4488 = vpop.f32.mrf.mxu0
  %v4489 = vadd.f32 0.0, %v4488
  %4490 = vmatmul.bf16.gmra.mxu0 %v4469
  %v4491 = vpop.f32.mrf.mxu0
  %v4492 = vadd.f32 0.0, %v4491
  %v4493 = vpop.f32.mrf.mxu0
  %v4494 = vadd.f32 0.0, %v4493
  %4495 = vmatmul.bf16.gmra.mxu0 %v4472
  %v4496 = vpop.f32.mrf.mxu0
  %v4497 = vadd.f32 0.0, %v4496
  %v4498 = vpop.f32.mrf.mxu0
  %v4499 = vadd.f32 0.0, %v4498
  %4500 = vmatmul.bf16.gmra.mxu0 %v4475
  %v4501 = vpop.f32.mrf.mxu0
  %v4502 = vadd.f32 0.0, %v4501
  %v4503 = vpop.f32.mrf.mxu0
  %v4504 = vadd.f32 0.0, %v4503
  %4505 = vdwg.mxu0
  %4506 = vmatpush.bf16.msra.mxu0 0
  %4507 = vmatpush.bf16.msra.mxu0 0
  %4508 = vmatpush.bf16.msra.mxu0 0
  %4509 = vmatpush.bf16.msra.mxu0 0
  %4510 = vmatpush.bf16.msra.mxu0 0
  %4511 = vmatpush.bf16.msra.mxu0 0
  %4512 = vmatpush.bf16.msra.mxu0 %v4448
  %4513 = vmatpush.bf16.msra.mxu0 %v4443
  %4514 = vmatmul.bf16.gmra.mxu0 %v4466
  %v4515 = vpop.f32.mrf.mxu0
  %v4516 = vadd.f32 0.0, %v4515
  %v4517 = vpop.f32.mrf.mxu0
  %v4518 = vadd.f32 0.0, %v4517
  %4519 = vmatmul.bf16.gmra.mxu0 %v4469
  %v4520 = vpop.f32.mrf.mxu0
  %v4521 = vadd.f32 0.0, %v4520
  %v4522 = vpop.f32.mrf.mxu0
  %v4523 = vadd.f32 0.0, %v4522
  %4524 = vmatmul.bf16.gmra.mxu0 %v4472
  %v4525 = vpop.f32.mrf.mxu0
  %v4526 = vadd.f32 0.0, %v4525
  %v4527 = vpop.f32.mrf.mxu0
  %v4528 = vadd.f32 0.0, %v4527
  %4529 = vmatmul.bf16.gmra.mxu0 %v4475
  %v4530 = vpop.f32.mrf.mxu0
  %v4531 = vadd.f32 0.0, %v4530
  %v4532 = vpop.f32.mrf.mxu0
  %v4533 = vadd.f32 0.0, %v4532
  %4534 = vdwg.mxu0
  %4535 = vmatpush.bf16.msra.mxu0 0
  %4536 = vmatpush.bf16.msra.mxu0 0
  %4537 = vmatpush.bf16.msra.mxu0 0
  %4538 = vmatpush.bf16.msra.mxu0 0
  %4539 = vmatpush.bf16.msra.mxu0 0
  %4540 = vmatpush.bf16.msra.mxu0 0
  %4541 = vmatpush.bf16.msra.mxu0 %v4449
  %4542 = vmatpush.bf16.msra.mxu0 %v4444
  %4543 = vmatmul.bf16.gmra.mxu0 %v4466
  %v4544 = vpop.f32.mrf.mxu0
  %v4545 = vadd.f32 0.0, %v4544
  %v4546 = vpop.f32.mrf.mxu0
  %v4547 = vadd.f32 0.0, %v4546
  %4548 = vmatmul.bf16.gmra.mxu0 %v4469
  %v4549 = vpop.f32.mrf.mxu0
  %v4550 = vadd.f32 0.0, %v4549
  %v4551 = vpop.f32.mrf.mxu0
  %v4552 = vadd.f32 0.0, %v4551
  %4553 = vmatmul.bf16.gmra.mxu0 %v4472
  %v4554 = vpop.f32.mrf.mxu0
  %v4555 = vadd.f32 0.0, %v4554
  %v4556 = vpop.f32.mrf.mxu0
  %v4557 = vadd.f32 0.0, %v4556
  %4558 = vmatmul.bf16.gmra.mxu0 %v4475
  %v4559 = vpop.f32.mrf.mxu0
  %v4560 = vadd.f32 0.0, %v4559
  %v4561 = vpop.f32.mrf.mxu0
  %v4562 = vadd.f32 0.0, %v4561
  %4563 = vdwg.mxu0
  %4564 = vmatpush.bf16.msra.mxu0 0
  %4565 = vmatpush.bf16.msra.mxu0 0
  %4566 = vmatpush.bf16.msra.mxu0 0
  %4567 = vmatpush.bf16.msra.mxu0 0
  %4568 = vmatpush.bf16.msra.mxu0 0
  %4569 = vmatpush.bf16.msra.mxu0 0
  %4570 = vmatpush.bf16.msra.mxu0 %v4450
  %4571 = vmatpush.bf16.msra.mxu0 %v4445
  %4572 = vmatmul.bf16.gmra.mxu0 %v4466
  %v4573 = vpop.f32.mrf.mxu0
  %v4574 = vadd.f32 0.0, %v4573
  %v4575 = vpop.f32.mrf.mxu0
  %v4576 = vadd.f32 0.0, %v4575
  %4577 = vmatmul.bf16.gmra.mxu0 %v4469
  %v4578 = vpop.f32.mrf.mxu0
  %v4579 = vadd.f32 0.0, %v4578
  %v4580 = vpop.f32.mrf.mxu0
  %v4581 = vadd.f32 0.0, %v4580
  %4582 = vmatmul.bf16.gmra.mxu0 %v4472
  %v4583 = vpop.f32.mrf.mxu0
  %v4584 = vadd.f32 0.0, %v4583
  %v4585 = vpop.f32.mrf.mxu0
  %v4586 = vadd.f32 0.0, %v4585
  %4587 = vmatmul.bf16.gmra.mxu0 %v4475
  %v4588 = vpop.f32.mrf.mxu0
  %v4589 = vadd.f32 0.0, %v4588
  %v4590 = vpop.f32.mrf.mxu0
  %v4591 = vadd.f32 0.0, %v4590
  %4592 = vdwg.mxu0
  %4593 = vmatpush.bf16.msra.mxu0 0
  %4594 = vmatpush.bf16.msra.mxu0 0
  %4595 = vmatpush.bf16.msra.mxu0 0
  %4596 = vmatpush.bf16.msra.mxu0 0
  %4597 = vmatpush.bf16.msra.mxu0 0
  %4598 = vmatpush.bf16.msra.mxu0 0
  %4599 = vmatpush.bf16.msra.mxu0 %v4451
  %4600 = vmatpush.bf16.msra.mxu0 %v4446
  %4601 = vmatmul.bf16.gmra.mxu0 %v4466
  %v4602 = vpop.f32.mrf.mxu0
  %v4603 = vadd.f32 0.0, %v4602
  %v4604 = vpop.f32.mrf.mxu0
  %v4605 = vadd.f32 0.0, %v4604
  %4606 = vmatmul.bf16.gmra.mxu0 %v4469
  %v4607 = vpop.f32.mrf.mxu0
  %v4608 = vadd.f32 0.0, %v4607
  %v4609 = vpop.f32.mrf.mxu0
  %v4610 = vadd.f32 0.0, %v4609
  %4611 = vmatmul.bf16.gmra.mxu0 %v4472
  %v4612 = vpop.f32.mrf.mxu0
  %v4613 = vadd.f32 0.0, %v4612
  %v4614 = vpop.f32.mrf.mxu0
  %v4615 = vadd.f32 0.0, %v4614
  %4616 = vmatmul.bf16.gmra.mxu0 %v4475
  %v4617 = vpop.f32.mrf.mxu0
  %v4618 = vadd.f32 0.0, %v4617
  %v4619 = vpop.f32.mrf.mxu0
  %v4620 = vadd.f32 0.0, %v4619
  %4621 = vdwg.mxu0
  %4622 = vmatpush.bf16.msra.mxu0 0
  %4623 = vmatpush.bf16.msra.mxu0 0
  %4624 = vmatpush.bf16.msra.mxu0 0
  %4625 = vmatpush.bf16.msra.mxu0 0
  %4626 = vmatpush.bf16.msra.mxu0 0
  %4627 = vmatpush.bf16.msra.mxu0 0
  %4628 = vmatpush.bf16.msra.mxu0 %v4440
  %4629 = vmatpush.bf16.msra.mxu0 %v4424
  %4630 = vmatmul.bf16.gmra.mxu0 %v4466
  %v4631 = vpop.f32.mrf.mxu0
  %v4632 = vadd.f32 0.0, %v4631
  %v4633 = vpop.f32.mrf.mxu0
  %v4634 = vadd.f32 0.0, %v4633
  %4635 = vmatmul.bf16.gmra.mxu0 %v4469
  %v4636 = vpop.f32.mrf.mxu0
  %v4637 = vadd.f32 0.0, %v4636
  %v4638 = vpop.f32.mrf.mxu0
  %v4639 = vadd.f32 0.0, %v4638
  %4640 = vmatmul.bf16.gmra.mxu0 %v4472
  %v4641 = vpop.f32.mrf.mxu0
  %v4642 = vadd.f32 0.0, %v4641
  %v4643 = vpop.f32.mrf.mxu0
  %v4644 = vadd.f32 0.0, %v4643
  %4645 = vmatmul.bf16.gmra.mxu0 %v4475
  %v4646 = vpop.f32.mrf.mxu0
  %v4647 = vadd.f32 0.0, %v4646
  %v4648 = vpop.f32.mrf.mxu0
  %v4649 = vadd.f32 0.0, %v4648
  %4650 = vdwg.mxu0
  %v4659 = vunpack.c.l.b16 %v4308
  %v4660 = vunpack.c.l.b16 %v4309
  %v4661 = vunpack.c.l.b16 %v4310
  %v4662 = vunpack.c.l.b16 %v4311
  %v4663 = vunpack.c.l.b16 %v4312
  %v4664 = vunpack.c.l.b16 %v4313
  %v4665 = vunpack.c.l.b16 %v4314
  %v4666 = vunpack.c.l.b16 %v4315
  %v4667 = vpack.c.b16 %v4660, %v4659
  %v4668 = vpack.c.b16 %v4662, %v4661
  %v4669 = vpack.c.b16 %v4664, %v4663
  %v4670 = vpack.c.b16 %v4666, %v4665
  %v4684 = vsel %vm4464, %v4667, 0
  %v4687 = vsel %vm4464, %v4668, 0
  %v4690 = vsel %vm4464, %v4669, 0
  %v4693 = vsel %vm4464, %v4670, 0
  %4695 = vmatpush.bf16.msra.mxu0 0
  %4696 = vmatpush.bf16.msra.mxu0 0
  %4697 = vmatpush.bf16.msra.mxu0 0
  %4698 = vmatpush.bf16.msra.mxu0 0
  %4699 = vmatpush.bf16.msra.mxu0 0
  %4700 = vmatpush.bf16.msra.mxu0 0
  %4701 = vmatpush.bf16.msra.mxu0 %v4401
  %4702 = vmatpush.bf16.msra.mxu0 %v4393
  %4703 = vmatmul.bf16.gmra.mxu0 %v4684
  %v4704 = vpop.f32.mrf.mxu0
  %v4705 = vadd.f32 %v4487, %v4704
  %v4706 = vpop.f32.mrf.mxu0
  %v4707 = vadd.f32 %v4489, %v4706
  %4708 = vmatmul.bf16.gmra.mxu0 %v4687
  %v4709 = vpop.f32.mrf.mxu0
  %v4710 = vadd.f32 %v4492, %v4709
  %v4711 = vpop.f32.mrf.mxu0
  %v4712 = vadd.f32 %v4494, %v4711
  %4713 = vmatmul.bf16.gmra.mxu0 %v4690
  %v4714 = vpop.f32.mrf.mxu0
  %v4715 = vadd.f32 %v4497, %v4714
  %v4716 = vpop.f32.mrf.mxu0
  %v4717 = vadd.f32 %v4499, %v4716
  %4718 = vmatmul.bf16.gmra.mxu0 %v4693
  %v4719 = vpop.f32.mrf.mxu0
  %v4720 = vadd.f32 %v4502, %v4719
  %v4721 = vpop.f32.mrf.mxu0
  %v4722 = vadd.f32 %v4504, %v4721
  %4723 = vdwg.mxu0
  %4724 = vmatpush.bf16.msra.mxu0 0
  %4725 = vmatpush.bf16.msra.mxu0 0
  %4726 = vmatpush.bf16.msra.mxu0 0
  %4727 = vmatpush.bf16.msra.mxu0 0
  %4728 = vmatpush.bf16.msra.mxu0 0
  %4729 = vmatpush.bf16.msra.mxu0 0
  %4730 = vmatpush.bf16.msra.mxu0 %v4402
  %4731 = vmatpush.bf16.msra.mxu0 %v4394
  %4732 = vmatmul.bf16.gmra.mxu0 %v4684
  %v4733 = vpop.f32.mrf.mxu0
  %v4734 = vadd.f32 %v4516, %v4733
  %v4735 = vpop.f32.mrf.mxu0
  %v4736 = vadd.f32 %v4518, %v4735
  %4737 = vmatmul.bf16.gmra.mxu0 %v4687
  %v4738 = vpop.f32.mrf.mxu0
  %v4739 = vadd.f32 %v4521, %v4738
  %v4740 = vpop.f32.mrf.mxu0
  %v4741 = vadd.f32 %v4523, %v4740
  %4742 = vmatmul.bf16.gmra.mxu0 %v4690
  %v4743 = vpop.f32.mrf.mxu0
  %v4744 = vadd.f32 %v4526, %v4743
  %v4745 = vpop.f32.mrf.mxu0
  %v4746 = vadd.f32 %v4528, %v4745
  %4747 = vmatmul.bf16.gmra.mxu0 %v4693
  %v4748 = vpop.f32.mrf.mxu0
  %v4749 = vadd.f32 %v4531, %v4748
  %v4750 = vpop.f32.mrf.mxu0
  %v4751 = vadd.f32 %v4533, %v4750
  %4752 = vdwg.mxu0
  %4753 = vmatpush.bf16.msra.mxu0 0
  %4754 = vmatpush.bf16.msra.mxu0 0
  %4755 = vmatpush.bf16.msra.mxu0 0
  %4756 = vmatpush.bf16.msra.mxu0 0
  %4757 = vmatpush.bf16.msra.mxu0 0
  %4758 = vmatpush.bf16.msra.mxu0 0
  %4759 = vmatpush.bf16.msra.mxu0 %v4403
  %4760 = vmatpush.bf16.msra.mxu0 %v4395
  %4761 = vmatmul.bf16.gmra.mxu0 %v4684
  %v4762 = vpop.f32.mrf.mxu0
  %v4763 = vadd.f32 %v4545, %v4762
  %v4764 = vpop.f32.mrf.mxu0
  %v4765 = vadd.f32 %v4547, %v4764
  %4766 = vmatmul.bf16.gmra.mxu0 %v4687
  %v4767 = vpop.f32.mrf.mxu0
  %v4768 = vadd.f32 %v4550, %v4767
  %v4769 = vpop.f32.mrf.mxu0
  %v4770 = vadd.f32 %v4552, %v4769
  %4771 = vmatmul.bf16.gmra.mxu0 %v4690
  %v4772 = vpop.f32.mrf.mxu0
  %v4773 = vadd.f32 %v4555, %v4772
  %v4774 = vpop.f32.mrf.mxu0
  %v4775 = vadd.f32 %v4557, %v4774
  %4776 = vmatmul.bf16.gmra.mxu0 %v4693
  %v4777 = vpop.f32.mrf.mxu0
  %v4778 = vadd.f32 %v4560, %v4777
  %v4779 = vpop.f32.mrf.mxu0
  %v4780 = vadd.f32 %v4562, %v4779
  %4781 = vdwg.mxu0
  %4782 = vmatpush.bf16.msra.mxu0 0
  %4783 = vmatpush.bf16.msra.mxu0 0
  %4784 = vmatpush.bf16.msra.mxu0 0
  %4785 = vmatpush.bf16.msra.mxu0 0
  %4786 = vmatpush.bf16.msra.mxu0 0
  %4787 = vmatpush.bf16.msra.mxu0 0
  %4788 = vmatpush.bf16.msra.mxu0 %v4404
  %4789 = vmatpush.bf16.msra.mxu0 %v4396
  %4790 = vmatmul.bf16.gmra.mxu0 %v4684
  %v4791 = vpop.f32.mrf.mxu0
  %v4792 = vadd.f32 %v4574, %v4791
  %v4793 = vpop.f32.mrf.mxu0
  %v4794 = vadd.f32 %v4576, %v4793
  %4795 = vmatmul.bf16.gmra.mxu0 %v4687
  %v4796 = vpop.f32.mrf.mxu0
  %v4797 = vadd.f32 %v4579, %v4796
  %v4798 = vpop.f32.mrf.mxu0
  %v4799 = vadd.f32 %v4581, %v4798
  %4800 = vmatmul.bf16.gmra.mxu0 %v4690
  %v4801 = vpop.f32.mrf.mxu0
  %v4802 = vadd.f32 %v4584, %v4801
  %v4803 = vpop.f32.mrf.mxu0
  %v4804 = vadd.f32 %v4586, %v4803
  %4805 = vmatmul.bf16.gmra.mxu0 %v4693
  %v4806 = vpop.f32.mrf.mxu0
  %v4807 = vadd.f32 %v4589, %v4806
  %v4808 = vpop.f32.mrf.mxu0
  %v4809 = vadd.f32 %v4591, %v4808
  %4810 = vdwg.mxu0
  %4811 = vmatpush.bf16.msra.mxu0 0
  %4812 = vmatpush.bf16.msra.mxu0 0
  %4813 = vmatpush.bf16.msra.mxu0 0
  %4814 = vmatpush.bf16.msra.mxu0 0
  %4815 = vmatpush.bf16.msra.mxu0 0
  %4816 = vmatpush.bf16.msra.mxu0 0
  %4817 = vmatpush.bf16.msra.mxu0 %v4406
  %4818 = vmatpush.bf16.msra.mxu0 %v4398
  %4819 = vmatmul.bf16.gmra.mxu0 %v4684
  %v4820 = vpop.f32.mrf.mxu0
  %v4821 = vadd.f32 %v4603, %v4820
  %v4822 = vpop.f32.mrf.mxu0
  %v4823 = vadd.f32 %v4605, %v4822
  %4824 = vmatmul.bf16.gmra.mxu0 %v4687
  %v4825 = vpop.f32.mrf.mxu0
  %v4826 = vadd.f32 %v4608, %v4825
  %v4827 = vpop.f32.mrf.mxu0
  %v4828 = vadd.f32 %v4610, %v4827
  %4829 = vmatmul.bf16.gmra.mxu0 %v4690
  %v4830 = vpop.f32.mrf.mxu0
  %v4831 = vadd.f32 %v4613, %v4830
  %v4832 = vpop.f32.mrf.mxu0
  %v4833 = vadd.f32 %v4615, %v4832
  %4834 = vmatmul.bf16.gmra.mxu0 %v4693
  %v4835 = vpop.f32.mrf.mxu0
  %v4836 = vadd.f32 %v4618, %v4835
  %v4837 = vpop.f32.mrf.mxu0
  %v4838 = vadd.f32 %v4620, %v4837
  %4839 = vdwg.mxu0
  %4840 = vmatpush.bf16.msra.mxu0 0
  %4841 = vmatpush.bf16.msra.mxu0 0
  %4842 = vmatpush.bf16.msra.mxu0 0
  %4843 = vmatpush.bf16.msra.mxu0 0
  %4844 = vmatpush.bf16.msra.mxu0 0
  %4845 = vmatpush.bf16.msra.mxu0 0
  %4846 = vmatpush.bf16.msra.mxu0 %v4408
  %4847 = vmatpush.bf16.msra.mxu0 %v4400
  %4848 = vmatmul.bf16.gmra.mxu0 %v4684
  %v4849 = vpop.f32.mrf.mxu0
  %v4850 = vadd.f32 %v4632, %v4849
  %v4851 = vpop.f32.mrf.mxu0
  %v4852 = vadd.f32 %v4634, %v4851
  %4853 = vmatmul.bf16.gmra.mxu0 %v4687
  %v4854 = vpop.f32.mrf.mxu0
  %v4855 = vadd.f32 %v4637, %v4854
  %v4856 = vpop.f32.mrf.mxu0
  %v4857 = vadd.f32 %v4639, %v4856
  %4858 = vmatmul.bf16.gmra.mxu0 %v4690
  %v4859 = vpop.f32.mrf.mxu0
  %v4860 = vadd.f32 %v4642, %v4859
  %v4861 = vpop.f32.mrf.mxu0
  %v4862 = vadd.f32 %v4644, %v4861
  %4863 = vmatmul.bf16.gmra.mxu0 %v4693
  %v4864 = vpop.f32.mrf.mxu0
  %v4865 = vadd.f32 %v4647, %v4864
  %v4866 = vpop.f32.mrf.mxu0
  %v4867 = vadd.f32 %v4649, %v4866
  %4868 = vdwg.mxu0
  %s4869 = scalar_lea.vmem %s5, 64
  %v4870 = vld [vmem:[%s4869] sm:$0xf]
  %v4871 = vld [vmem:[%s4869 + $0x4] sm:$0xf]
  %v4872 = vld [vmem:[%s4869 + $0x8] sm:$0xf]
  %v4873 = vld [vmem:[%s4869 + $0xc] sm:$0xf]
  %v4874 = vld [vmem:[%s4869 + $0x10] sm:$0xf]
  %v4875 = vld [vmem:[%s4869 + $0x14] sm:$0xf]
  %v4876 = vld [vmem:[%s4869 + $0x18] sm:$0xf]
  %v4877 = vld [vmem:[%s4869 + $0x1c] sm:$0xf]
  %v4886 = vunpack.c.l.b16 %v4870
  %v4887 = vunpack.c.l.b16 %v4871
  %v4888 = vunpack.c.l.b16 %v4872
  %v4889 = vunpack.c.l.b16 %v4873
  %v4890 = vunpack.c.l.b16 %v4874
  %v4891 = vunpack.c.l.b16 %v4875
  %v4892 = vunpack.c.l.b16 %v4876
  %v4893 = vunpack.c.l.b16 %v4877
  %v4894 = vpack.c.b16 %v4887, %v4886
  %v4895 = vpack.c.b16 %v4889, %v4888
  %v4896 = vpack.c.b16 %v4891, %v4890
  %v4897 = vpack.c.b16 %v4893, %v4892
  %v4902 = vunpack.c.l.b16 %v4292
  %v4903 = vunpack.c.h.b16 %v4292
  %v4904 = vunpack.c.l.b16 %v4297
  %v4905 = vunpack.c.h.b16 %v4297
  %v4906 = vunpack.c.l.b16 %v4302
  %v4907 = vunpack.c.h.b16 %v4302
  %v4908 = vunpack.c.l.b16 %v4307
  %v4909 = vunpack.c.h.b16 %v4307
  %v4910 = vpack.c.b16 %v4904, %v4902
  %v4911 = vpack.c.b16 %v4905, %v4903
  %v4912 = vpack.c.b16 %v4908, %v4906
  %v4913 = vpack.c.b16 %v4909, %v4907
  %4914 = vrot.lane.b32.xlu0 %v4394, 32
  %v4915 = vpop.permute.xlu0 %4914
  %4916 = vrot.lane.b32.xlu0 %v4395, 32
  %v4917 = vpop.permute.xlu0 %4916
  %4918 = vrot.lane.b32.xlu0 %v4396, 32
  %v4919 = vpop.permute.xlu0 %4918
  %4920 = vrot.lane.b32.xlu0 %v4397, 32
  %v4921 = vpop.permute.xlu0 %4920
  %4922 = vrot.lane.b32.xlu0 %v4398, 32
  %v4923 = vpop.permute.xlu0 %4922
  %4924 = vrot.lane.b32.xlu0 %v4399, 32
  %v4925 = vpop.permute.xlu0 %4924
  %4926 = vrot.lane.b32.xlu0 %v4400, 32
  %v4927 = vpop.permute.xlu0 %4926
  %4928 = vrot.lane.b32.xlu0 %v4910, 32
  %v4929 = vpop.permute.xlu0 %4928
  %4930 = vrot.lane.b32.xlu0 %v4911, 32
  %v4931 = vpop.permute.xlu0 %4930
  %4932 = vrot.lane.b32.xlu0 %v4402, 32
  %v4933 = vpop.permute.xlu0 %4932
  %4934 = vrot.lane.b32.xlu0 %v4403, 32
  %v4935 = vpop.permute.xlu0 %4934
  %4936 = vrot.lane.b32.xlu0 %v4404, 32
  %v4937 = vpop.permute.xlu0 %4936
  %4938 = vrot.lane.b32.xlu0 %v4405, 32
  %v4939 = vpop.permute.xlu0 %4938
  %4940 = vrot.lane.b32.xlu0 %v4406, 32
  %v4941 = vpop.permute.xlu0 %4940
  %4942 = vrot.lane.b32.xlu0 %v4407, 32
  %v4943 = vpop.permute.xlu0 %4942
  %4944 = vrot.lane.b32.xlu0 %v4408, 32
  %v4945 = vpop.permute.xlu0 %4944
  %4946 = vrot.lane.b32.xlu0 %v4912, 32
  %v4947 = vpop.permute.xlu0 %4946
  %4948 = vrot.lane.b32.xlu0 %v4913, 32
  %v4949 = vpop.permute.xlu0 %4948
  %vm4950 = vcmask 261120
  %v4951 = vsel %vm4950, %v4915, %v4917
  %v4952 = vsel %vm4950, %v4917, %v4919
  %v4953 = vsel %vm4950, %v4919, %v4921
  %v4954 = vsel %vm4950, %v4921, %v4923
  %v4955 = vsel %vm4950, %v4925, %v4927
  %v4956 = vsel %vm4950, %v4929, %v4931
  %v4957 = vsel %vm4950, %v4933, %v4935
  %v4958 = vsel %vm4950, %v4935, %v4937
  %v4959 = vsel %vm4950, %v4937, %v4939
  %v4960 = vsel %vm4950, %v4939, %v4941
  %v4961 = vsel %vm4950, %v4943, %v4945
  %v4962 = vsel %vm4950, %v4947, %v4949
  %v4976 = vsel %vm4464, %v4894, 0
  %v4979 = vsel %vm4464, %v4895, 0
  %v4982 = vsel %vm4464, %v4896, 0
  %v4985 = vsel %vm4464, %v4897, 0
  %4987 = vmatpush.bf16.msra.mxu0 0
  %4988 = vmatpush.bf16.msra.mxu0 0
  %4989 = vmatpush.bf16.msra.mxu0 0
  %4990 = vmatpush.bf16.msra.mxu0 0
  %4991 = vmatpush.bf16.msra.mxu0 0
  %4992 = vmatpush.bf16.msra.mxu0 0
  %4993 = vmatpush.bf16.msra.mxu0 %v4957
  %4994 = vmatpush.bf16.msra.mxu0 %v4951
  %4995 = vmatmul.bf16.gmra.mxu0 %v4976
  %v4996 = vpop.f32.mrf.mxu0
  %v4997 = vadd.f32 0.0, %v4996
  %v4998 = vpop.f32.mrf.mxu0
  %v4999 = vadd.f32 0.0, %v4998
  %5000 = vmatmul.bf16.gmra.mxu0 %v4979
  %v5001 = vpop.f32.mrf.mxu0
  %v5002 = vadd.f32 0.0, %v5001
  %v5003 = vpop.f32.mrf.mxu0
  %v5004 = vadd.f32 0.0, %v5003
  %5005 = vmatmul.bf16.gmra.mxu0 %v4982
  %v5006 = vpop.f32.mrf.mxu0
  %v5007 = vadd.f32 0.0, %v5006
  %v5008 = vpop.f32.mrf.mxu0
  %v5009 = vadd.f32 0.0, %v5008
  %5010 = vmatmul.bf16.gmra.mxu0 %v4985
  %v5011 = vpop.f32.mrf.mxu0
  %v5012 = vadd.f32 0.0, %v5011
  %v5013 = vpop.f32.mrf.mxu0
  %v5014 = vadd.f32 0.0, %v5013
  %5015 = vdwg.mxu0
  %5016 = vmatpush.bf16.msra.mxu0 0
  %5017 = vmatpush.bf16.msra.mxu0 0
  %5018 = vmatpush.bf16.msra.mxu0 0
  %5019 = vmatpush.bf16.msra.mxu0 0
  %5020 = vmatpush.bf16.msra.mxu0 0
  %5021 = vmatpush.bf16.msra.mxu0 0
  %5022 = vmatpush.bf16.msra.mxu0 %v4958
  %5023 = vmatpush.bf16.msra.mxu0 %v4952
  %5024 = vmatmul.bf16.gmra.mxu0 %v4976
  %v5025 = vpop.f32.mrf.mxu0
  %v5026 = vadd.f32 0.0, %v5025
  %v5027 = vpop.f32.mrf.mxu0
  %v5028 = vadd.f32 0.0, %v5027
  %5029 = vmatmul.bf16.gmra.mxu0 %v4979
  %v5030 = vpop.f32.mrf.mxu0
  %v5031 = vadd.f32 0.0, %v5030
  %v5032 = vpop.f32.mrf.mxu0
  %v5033 = vadd.f32 0.0, %v5032
  %5034 = vmatmul.bf16.gmra.mxu0 %v4982
  %v5035 = vpop.f32.mrf.mxu0
  %v5036 = vadd.f32 0.0, %v5035
  %v5037 = vpop.f32.mrf.mxu0
  %v5038 = vadd.f32 0.0, %v5037
  %5039 = vmatmul.bf16.gmra.mxu0 %v4985
  %v5040 = vpop.f32.mrf.mxu0
  %v5041 = vadd.f32 0.0, %v5040
  %v5042 = vpop.f32.mrf.mxu0
  %v5043 = vadd.f32 0.0, %v5042
  %5044 = vdwg.mxu0
  %5045 = vmatpush.bf16.msra.mxu0 0
  %5046 = vmatpush.bf16.msra.mxu0 0
  %5047 = vmatpush.bf16.msra.mxu0 0
  %5048 = vmatpush.bf16.msra.mxu0 0
  %5049 = vmatpush.bf16.msra.mxu0 0
  %5050 = vmatpush.bf16.msra.mxu0 0
  %5051 = vmatpush.bf16.msra.mxu0 %v4959
  %5052 = vmatpush.bf16.msra.mxu0 %v4953
  %5053 = vmatmul.bf16.gmra.mxu0 %v4976
  %v5054 = vpop.f32.mrf.mxu0
  %v5055 = vadd.f32 0.0, %v5054
  %v5056 = vpop.f32.mrf.mxu0
  %v5057 = vadd.f32 0.0, %v5056
  %5058 = vmatmul.bf16.gmra.mxu0 %v4979
  %v5059 = vpop.f32.mrf.mxu0
  %v5060 = vadd.f32 0.0, %v5059
  %v5061 = vpop.f32.mrf.mxu0
  %v5062 = vadd.f32 0.0, %v5061
  %5063 = vmatmul.bf16.gmra.mxu0 %v4982
  %v5064 = vpop.f32.mrf.mxu0
  %v5065 = vadd.f32 0.0, %v5064
  %v5066 = vpop.f32.mrf.mxu0
  %v5067 = vadd.f32 0.0, %v5066
  %5068 = vmatmul.bf16.gmra.mxu0 %v4985
  %v5069 = vpop.f32.mrf.mxu0
  %v5070 = vadd.f32 0.0, %v5069
  %v5071 = vpop.f32.mrf.mxu0
  %v5072 = vadd.f32 0.0, %v5071
  %5073 = vdwg.mxu0
  %5074 = vmatpush.bf16.msra.mxu0 0
  %5075 = vmatpush.bf16.msra.mxu0 0
  %5076 = vmatpush.bf16.msra.mxu0 0
  %5077 = vmatpush.bf16.msra.mxu0 0
  %5078 = vmatpush.bf16.msra.mxu0 0
  %5079 = vmatpush.bf16.msra.mxu0 0
  %5080 = vmatpush.bf16.msra.mxu0 %v4960
  %5081 = vmatpush.bf16.msra.mxu0 %v4954
  %5082 = vmatmul.bf16.gmra.mxu0 %v4976
  %v5083 = vpop.f32.mrf.mxu0
  %v5084 = vadd.f32 0.0, %v5083
  %v5085 = vpop.f32.mrf.mxu0
  %v5086 = vadd.f32 0.0, %v5085
  %5087 = vmatmul.bf16.gmra.mxu0 %v4979
  %v5088 = vpop.f32.mrf.mxu0
  %v5089 = vadd.f32 0.0, %v5088
  %v5090 = vpop.f32.mrf.mxu0
  %v5091 = vadd.f32 0.0, %v5090
  %5092 = vmatmul.bf16.gmra.mxu0 %v4982
  %v5093 = vpop.f32.mrf.mxu0
  %v5094 = vadd.f32 0.0, %v5093
  %v5095 = vpop.f32.mrf.mxu0
  %v5096 = vadd.f32 0.0, %v5095
  %5097 = vmatmul.bf16.gmra.mxu0 %v4985
  %v5098 = vpop.f32.mrf.mxu0
  %v5099 = vadd.f32 0.0, %v5098
  %v5100 = vpop.f32.mrf.mxu0
  %v5101 = vadd.f32 0.0, %v5100
  %5102 = vdwg.mxu0
  %5103 = vmatpush.bf16.msra.mxu0 0
  %5104 = vmatpush.bf16.msra.mxu0 0
  %5105 = vmatpush.bf16.msra.mxu0 0
  %5106 = vmatpush.bf16.msra.mxu0 0
  %5107 = vmatpush.bf16.msra.mxu0 0
  %5108 = vmatpush.bf16.msra.mxu0 0
  %5109 = vmatpush.bf16.msra.mxu0 %v4961
  %5110 = vmatpush.bf16.msra.mxu0 %v4955
  %5111 = vmatmul.bf16.gmra.mxu0 %v4976
  %v5112 = vpop.f32.mrf.mxu0
  %v5113 = vadd.f32 0.0, %v5112
  %v5114 = vpop.f32.mrf.mxu0
  %v5115 = vadd.f32 0.0, %v5114
  %5116 = vmatmul.bf16.gmra.mxu0 %v4979
  %v5117 = vpop.f32.mrf.mxu0
  %v5118 = vadd.f32 0.0, %v5117
  %v5119 = vpop.f32.mrf.mxu0
  %v5120 = vadd.f32 0.0, %v5119
  %5121 = vmatmul.bf16.gmra.mxu0 %v4982
  %v5122 = vpop.f32.mrf.mxu0
  %v5123 = vadd.f32 0.0, %v5122
  %v5124 = vpop.f32.mrf.mxu0
  %v5125 = vadd.f32 0.0, %v5124
  %5126 = vmatmul.bf16.gmra.mxu0 %v4985
  %v5127 = vpop.f32.mrf.mxu0
  %v5128 = vadd.f32 0.0, %v5127
  %v5129 = vpop.f32.mrf.mxu0
  %v5130 = vadd.f32 0.0, %v5129
  %5131 = vdwg.mxu0
  %5132 = vmatpush.bf16.msra.mxu0 0
  %5133 = vmatpush.bf16.msra.mxu0 0
  %5134 = vmatpush.bf16.msra.mxu0 0
  %5135 = vmatpush.bf16.msra.mxu0 0
  %5136 = vmatpush.bf16.msra.mxu0 0
  %5137 = vmatpush.bf16.msra.mxu0 0
  %5138 = vmatpush.bf16.msra.mxu0 %v4962
  %5139 = vmatpush.bf16.msra.mxu0 %v4956
  %5140 = vmatmul.bf16.gmra.mxu0 %v4976
  %v5141 = vpop.f32.mrf.mxu0
  %v5142 = vadd.f32 0.0, %v5141
  %v5143 = vpop.f32.mrf.mxu0
  %v5144 = vadd.f32 0.0, %v5143
  %5145 = vmatmul.bf16.gmra.mxu0 %v4979
  %v5146 = vpop.f32.mrf.mxu0
  %v5147 = vadd.f32 0.0, %v5146
  %v5148 = vpop.f32.mrf.mxu0
  %v5149 = vadd.f32 0.0, %v5148
  %5150 = vmatmul.bf16.gmra.mxu0 %v4982
  %v5151 = vpop.f32.mrf.mxu0
  %v5152 = vadd.f32 0.0, %v5151
  %v5153 = vpop.f32.mrf.mxu0
  %v5154 = vadd.f32 0.0, %v5153
  %5155 = vmatmul.bf16.gmra.mxu0 %v4985
  %v5156 = vpop.f32.mrf.mxu0
  %v5157 = vadd.f32 0.0, %v5156
  %v5158 = vpop.f32.mrf.mxu0
  %v5159 = vadd.f32 0.0, %v5158
  %5160 = vdwg.mxu0
  %v5161 = vadd.f32 %v4705, %v4997
  %v5162 = vadd.f32 %v4734, %v5026
  %v5163 = vadd.f32 %v4763, %v5055
  %v5164 = vadd.f32 %v4792, %v5084
  %v5165 = vadd.f32 %v4821, %v5113
  %v5166 = vadd.f32 %v4850, %v5142
  %v5167 = vadd.f32 %v4707, %v4999
  %v5168 = vadd.f32 %v4736, %v5028
  %v5169 = vadd.f32 %v4765, %v5057
  %v5170 = vadd.f32 %v4794, %v5086
  %v5171 = vadd.f32 %v4823, %v5115
  %v5172 = vadd.f32 %v4852, %v5144
  %v5173 = vadd.f32 %v4710, %v5002
  %v5174 = vadd.f32 %v4739, %v5031
  %v5175 = vadd.f32 %v4768, %v5060
  %v5176 = vadd.f32 %v4797, %v5089
  %v5177 = vadd.f32 %v4826, %v5118
  %v5178 = vadd.f32 %v4855, %v5147
  %v5179 = vadd.f32 %v4712, %v5004
  %v5180 = vadd.f32 %v4741, %v5033
  %v5181 = vadd.f32 %v4770, %v5062
  %v5182 = vadd.f32 %v4799, %v5091
  %v5183 = vadd.f32 %v4828, %v5120
  %v5184 = vadd.f32 %v4857, %v5149
  %v5185 = vadd.f32 %v4715, %v5007
  %v5186 = vadd.f32 %v4744, %v5036
  %v5187 = vadd.f32 %v4773, %v5065
  %v5188 = vadd.f32 %v4802, %v5094
  %v5189 = vadd.f32 %v4831, %v5123
  %v5190 = vadd.f32 %v4860, %v5152
  %v5191 = vadd.f32 %v4717, %v5009
  %v5192 = vadd.f32 %v4746, %v5038
  %v5193 = vadd.f32 %v4775, %v5067
  %v5194 = vadd.f32 %v4804, %v5096
  %v5195 = vadd.f32 %v4833, %v5125
  %v5196 = vadd.f32 %v4862, %v5154
  %v5197 = vadd.f32 %v4720, %v5012
  %v5198 = vadd.f32 %v4749, %v5041
  %v5199 = vadd.f32 %v4778, %v5070
  %v5200 = vadd.f32 %v4807, %v5099
  %v5201 = vadd.f32 %v4836, %v5128
  %v5202 = vadd.f32 %v4865, %v5157
  %v5203 = vadd.f32 %v4722, %v5014
  %v5204 = vadd.f32 %v4751, %v5043
  %v5205 = vadd.f32 %v4780, %v5072
  %v5206 = vadd.f32 %v4809, %v5101
  %v5207 = vadd.f32 %v4838, %v5130
  %v5208 = vadd.f32 %v4867, %v5159
  %s5209 = scalar_lea.vmem %s5, 96
  %v5210 = vld [vmem:[%s5209] sm:$0xf]
  %v5211 = vld [vmem:[%s5209 + $0x4] sm:$0xf]
  %v5212 = vld [vmem:[%s5209 + $0x8] sm:$0xf]
  %v5213 = vld [vmem:[%s5209 + $0xc] sm:$0xf]
  %v5214 = vld [vmem:[%s5209 + $0x10] sm:$0xf]
  %v5215 = vld [vmem:[%s5209 + $0x14] sm:$0xf]
  %v5216 = vld [vmem:[%s5209 + $0x18] sm:$0xf]
  %v5217 = vld [vmem:[%s5209 + $0x1c] sm:$0xf]
  %v5226 = vunpack.c.l.b16 %v5210
  %v5227 = vunpack.c.l.b16 %v5211
  %v5228 = vunpack.c.l.b16 %v5212
  %v5229 = vunpack.c.l.b16 %v5213
  %v5230 = vunpack.c.l.b16 %v5214
  %v5231 = vunpack.c.l.b16 %v5215
  %v5232 = vunpack.c.l.b16 %v5216
  %v5233 = vunpack.c.l.b16 %v5217
  %v5234 = vpack.c.b16 %v5227, %v5226
  %v5235 = vpack.c.b16 %v5229, %v5228
  %v5236 = vpack.c.b16 %v5231, %v5230
  %v5237 = vpack.c.b16 %v5233, %v5232
  %5238 = vrot.lane.b32.xlu0 %v4394, 24
  %v5239 = vpop.permute.xlu0 %5238
  %5240 = vrot.lane.b32.xlu0 %v4395, 24
  %v5241 = vpop.permute.xlu0 %5240
  %5242 = vrot.lane.b32.xlu0 %v4396, 24
  %v5243 = vpop.permute.xlu0 %5242
  %5244 = vrot.lane.b32.xlu0 %v4397, 24
  %v5245 = vpop.permute.xlu0 %5244
  %5246 = vrot.lane.b32.xlu0 %v4398, 24
  %v5247 = vpop.permute.xlu0 %5246
  %5248 = vrot.lane.b32.xlu0 %v4399, 24
  %v5249 = vpop.permute.xlu0 %5248
  %5250 = vrot.lane.b32.xlu0 %v4400, 24
  %v5251 = vpop.permute.xlu0 %5250
  %5252 = vrot.lane.b32.xlu0 %v4910, 24
  %v5253 = vpop.permute.xlu0 %5252
  %5254 = vrot.lane.b32.xlu0 %v4911, 24
  %v5255 = vpop.permute.xlu0 %5254
  %5256 = vrot.lane.b32.xlu0 %v4402, 24
  %v5257 = vpop.permute.xlu0 %5256
  %5258 = vrot.lane.b32.xlu0 %v4403, 24
  %v5259 = vpop.permute.xlu0 %5258
  %5260 = vrot.lane.b32.xlu0 %v4404, 24
  %v5261 = vpop.permute.xlu0 %5260
  %5262 = vrot.lane.b32.xlu0 %v4405, 24
  %v5263 = vpop.permute.xlu0 %5262
  %5264 = vrot.lane.b32.xlu0 %v4406, 24
  %v5265 = vpop.permute.xlu0 %5264
  %5266 = vrot.lane.b32.xlu0 %v4407, 24
  %v5267 = vpop.permute.xlu0 %5266
  %5268 = vrot.lane.b32.xlu0 %v4408, 24
  %v5269 = vpop.permute.xlu0 %5268
  %5270 = vrot.lane.b32.xlu0 %v4912, 24
  %v5271 = vpop.permute.xlu0 %5270
  %5272 = vrot.lane.b32.xlu0 %v4913, 24
  %v5273 = vpop.permute.xlu0 %5272
  %vm5274 = vcmask 195584
  %v5275 = vsel %vm5274, %v5239, %v5241
  %v5276 = vsel %vm5274, %v5241, %v5243
  %v5277 = vsel %vm5274, %v5243, %v5245
  %v5278 = vsel %vm5274, %v5245, %v5247
  %v5279 = vsel %vm5274, %v5249, %v5251
  %v5280 = vsel %vm5274, %v5253, %v5255
  %v5281 = vsel %vm5274, %v5257, %v5259
  %v5282 = vsel %vm5274, %v5259, %v5261
  %v5283 = vsel %vm5274, %v5261, %v5263
  %v5284 = vsel %vm5274, %v5263, %v5265
  %v5285 = vsel %vm5274, %v5267, %v5269
  %v5286 = vsel %vm5274, %v5271, %v5273
  %v5300 = vsel %vm4464, %v5234, 0
  %v5303 = vsel %vm4464, %v5235, 0
  %v5306 = vsel %vm4464, %v5236, 0
  %v5309 = vsel %vm4464, %v5237, 0
  %5311 = vmatpush.bf16.msra.mxu0 0
  %5312 = vmatpush.bf16.msra.mxu0 0
  %5313 = vmatpush.bf16.msra.mxu0 0
  %5314 = vmatpush.bf16.msra.mxu0 0
  %5315 = vmatpush.bf16.msra.mxu0 0
  %5316 = vmatpush.bf16.msra.mxu0 0
  %5317 = vmatpush.bf16.msra.mxu0 %v5281
  %5318 = vmatpush.bf16.msra.mxu0 %v5275
  %5319 = vmatmul.bf16.gmra.mxu0 %v5300
  %v5320 = vpop.f32.mrf.mxu0
  %v5321 = vadd.f32 0.0, %v5320
  %v5322 = vpop.f32.mrf.mxu0
  %v5323 = vadd.f32 0.0, %v5322
  %5324 = vmatmul.bf16.gmra.mxu0 %v5303
  %v5325 = vpop.f32.mrf.mxu0
  %v5326 = vadd.f32 0.0, %v5325
  %v5327 = vpop.f32.mrf.mxu0
  %v5328 = vadd.f32 0.0, %v5327
  %5329 = vmatmul.bf16.gmra.mxu0 %v5306
  %v5330 = vpop.f32.mrf.mxu0
  %v5331 = vadd.f32 0.0, %v5330
  %v5332 = vpop.f32.mrf.mxu0
  %v5333 = vadd.f32 0.0, %v5332
  %5334 = vmatmul.bf16.gmra.mxu0 %v5309
  %v5335 = vpop.f32.mrf.mxu0
  %v5336 = vadd.f32 0.0, %v5335
  %v5337 = vpop.f32.mrf.mxu0
  %v5338 = vadd.f32 0.0, %v5337
  %5339 = vdwg.mxu0
  %5340 = vmatpush.bf16.msra.mxu0 0
  %5341 = vmatpush.bf16.msra.mxu0 0
  %5342 = vmatpush.bf16.msra.mxu0 0
  %5343 = vmatpush.bf16.msra.mxu0 0
  %5344 = vmatpush.bf16.msra.mxu0 0
  %5345 = vmatpush.bf16.msra.mxu0 0
  %5346 = vmatpush.bf16.msra.mxu0 %v5282
  %5347 = vmatpush.bf16.msra.mxu0 %v5276
  %5348 = vmatmul.bf16.gmra.mxu0 %v5300
  %v5349 = vpop.f32.mrf.mxu0
  %v5350 = vadd.f32 0.0, %v5349
  %v5351 = vpop.f32.mrf.mxu0
  %v5352 = vadd.f32 0.0, %v5351
  %5353 = vmatmul.bf16.gmra.mxu0 %v5303
  %v5354 = vpop.f32.mrf.mxu0
  %v5355 = vadd.f32 0.0, %v5354
  %v5356 = vpop.f32.mrf.mxu0
  %v5357 = vadd.f32 0.0, %v5356
  %5358 = vmatmul.bf16.gmra.mxu0 %v5306
  %v5359 = vpop.f32.mrf.mxu0
  %v5360 = vadd.f32 0.0, %v5359
  %v5361 = vpop.f32.mrf.mxu0
  %v5362 = vadd.f32 0.0, %v5361
  %5363 = vmatmul.bf16.gmra.mxu0 %v5309
  %v5364 = vpop.f32.mrf.mxu0
  %v5365 = vadd.f32 0.0, %v5364
  %v5366 = vpop.f32.mrf.mxu0
  %v5367 = vadd.f32 0.0, %v5366
  %5368 = vdwg.mxu0
  %5369 = vmatpush.bf16.msra.mxu0 0
  %5370 = vmatpush.bf16.msra.mxu0 0
  %5371 = vmatpush.bf16.msra.mxu0 0
  %5372 = vmatpush.bf16.msra.mxu0 0
  %5373 = vmatpush.bf16.msra.mxu0 0
  %5374 = vmatpush.bf16.msra.mxu0 0
  %5375 = vmatpush.bf16.msra.mxu0 %v5283
  %5376 = vmatpush.bf16.msra.mxu0 %v5277
  %5377 = vmatmul.bf16.gmra.mxu0 %v5300
  %v5378 = vpop.f32.mrf.mxu0
  %v5379 = vadd.f32 0.0, %v5378
  %v5380 = vpop.f32.mrf.mxu0
  %v5381 = vadd.f32 0.0, %v5380
  %5382 = vmatmul.bf16.gmra.mxu0 %v5303
  %v5383 = vpop.f32.mrf.mxu0
  %v5384 = vadd.f32 0.0, %v5383
  %v5385 = vpop.f32.mrf.mxu0
  %v5386 = vadd.f32 0.0, %v5385
  %5387 = vmatmul.bf16.gmra.mxu0 %v5306
  %v5388 = vpop.f32.mrf.mxu0
  %v5389 = vadd.f32 0.0, %v5388
  %v5390 = vpop.f32.mrf.mxu0
  %v5391 = vadd.f32 0.0, %v5390
  %5392 = vmatmul.bf16.gmra.mxu0 %v5309
  %v5393 = vpop.f32.mrf.mxu0
  %v5394 = vadd.f32 0.0, %v5393
  %v5395 = vpop.f32.mrf.mxu0
  %v5396 = vadd.f32 0.0, %v5395
  %5397 = vdwg.mxu0
  %5398 = vmatpush.bf16.msra.mxu0 0
  %5399 = vmatpush.bf16.msra.mxu0 0
  %5400 = vmatpush.bf16.msra.mxu0 0
  %5401 = vmatpush.bf16.msra.mxu0 0
  %5402 = vmatpush.bf16.msra.mxu0 0
  %5403 = vmatpush.bf16.msra.mxu0 0
  %5404 = vmatpush.bf16.msra.mxu0 %v5284
  %5405 = vmatpush.bf16.msra.mxu0 %v5278
  %5406 = vmatmul.bf16.gmra.mxu0 %v5300
  %v5407 = vpop.f32.mrf.mxu0
  %v5408 = vadd.f32 0.0, %v5407
  %v5409 = vpop.f32.mrf.mxu0
  %v5410 = vadd.f32 0.0, %v5409
  %5411 = vmatmul.bf16.gmra.mxu0 %v5303
  %v5412 = vpop.f32.mrf.mxu0
  %v5413 = vadd.f32 0.0, %v5412
  %v5414 = vpop.f32.mrf.mxu0
  %v5415 = vadd.f32 0.0, %v5414
  %5416 = vmatmul.bf16.gmra.mxu0 %v5306
  %v5417 = vpop.f32.mrf.mxu0
  %v5418 = vadd.f32 0.0, %v5417
  %v5419 = vpop.f32.mrf.mxu0
  %v5420 = vadd.f32 0.0, %v5419
  %5421 = vmatmul.bf16.gmra.mxu0 %v5309
  %v5422 = vpop.f32.mrf.mxu0
  %v5423 = vadd.f32 0.0, %v5422
  %v5424 = vpop.f32.mrf.mxu0
  %v5425 = vadd.f32 0.0, %v5424
  %5426 = vdwg.mxu0
  %5427 = vmatpush.bf16.msra.mxu0 0
  %5428 = vmatpush.bf16.msra.mxu0 0
  %5429 = vmatpush.bf16.msra.mxu0 0
  %5430 = vmatpush.bf16.msra.mxu0 0
  %5431 = vmatpush.bf16.msra.mxu0 0
  %5432 = vmatpush.bf16.msra.mxu0 0
  %5433 = vmatpush.bf16.msra.mxu0 %v5285
  %5434 = vmatpush.bf16.msra.mxu0 %v5279
  %5435 = vmatmul.bf16.gmra.mxu0 %v5300
  %v5436 = vpop.f32.mrf.mxu0
  %v5437 = vadd.f32 0.0, %v5436
  %v5438 = vpop.f32.mrf.mxu0
  %v5439 = vadd.f32 0.0, %v5438
  %5440 = vmatmul.bf16.gmra.mxu0 %v5303
  %v5441 = vpop.f32.mrf.mxu0
  %v5442 = vadd.f32 0.0, %v5441
  %v5443 = vpop.f32.mrf.mxu0
  %v5444 = vadd.f32 0.0, %v5443
  %5445 = vmatmul.bf16.gmra.mxu0 %v5306
  %v5446 = vpop.f32.mrf.mxu0
  %v5447 = vadd.f32 0.0, %v5446
  %v5448 = vpop.f32.mrf.mxu0
  %v5449 = vadd.f32 0.0, %v5448
  %5450 = vmatmul.bf16.gmra.mxu0 %v5309
  %v5451 = vpop.f32.mrf.mxu0
  %v5452 = vadd.f32 0.0, %v5451
  %v5453 = vpop.f32.mrf.mxu0
  %v5454 = vadd.f32 0.0, %v5453
  %5455 = vdwg.mxu0
  %5456 = vmatpush.bf16.msra.mxu0 0
  %5457 = vmatpush.bf16.msra.mxu0 0
  %5458 = vmatpush.bf16.msra.mxu0 0
  %5459 = vmatpush.bf16.msra.mxu0 0
  %5460 = vmatpush.bf16.msra.mxu0 0
  %5461 = vmatpush.bf16.msra.mxu0 0
  %5462 = vmatpush.bf16.msra.mxu0 %v5286
  %5463 = vmatpush.bf16.msra.mxu0 %v5280
  %5464 = vmatmul.bf16.gmra.mxu0 %v5300
  %v5465 = vpop.f32.mrf.mxu0
  %v5466 = vadd.f32 0.0, %v5465
  %v5467 = vpop.f32.mrf.mxu0
  %v5468 = vadd.f32 0.0, %v5467
  %5469 = vmatmul.bf16.gmra.mxu0 %v5303
  %v5470 = vpop.f32.mrf.mxu0
  %v5471 = vadd.f32 0.0, %v5470
  %v5472 = vpop.f32.mrf.mxu0
  %v5473 = vadd.f32 0.0, %v5472
  %5474 = vmatmul.bf16.gmra.mxu0 %v5306
  %v5475 = vpop.f32.mrf.mxu0
  %v5476 = vadd.f32 0.0, %v5475
  %v5477 = vpop.f32.mrf.mxu0
  %v5478 = vadd.f32 0.0, %v5477
  %5479 = vmatmul.bf16.gmra.mxu0 %v5309
  %v5480 = vpop.f32.mrf.mxu0
  %v5481 = vadd.f32 0.0, %v5480
  %v5482 = vpop.f32.mrf.mxu0
  %v5483 = vadd.f32 0.0, %v5482
  %5484 = vdwg.mxu0
  %v5485 = vadd.f32 %v5161, %v5321
  %v5486 = vadd.f32 %v5162, %v5350
  %v5487 = vadd.f32 %v5163, %v5379
  %v5488 = vadd.f32 %v5164, %v5408
  %v5489 = vadd.f32 %v5165, %v5437
  %v5490 = vadd.f32 %v5166, %v5466
  %v5491 = vadd.f32 %v5167, %v5323
  %v5492 = vadd.f32 %v5168, %v5352
  %v5493 = vadd.f32 %v5169, %v5381
  %v5494 = vadd.f32 %v5170, %v5410
  %v5495 = vadd.f32 %v5171, %v5439
  %v5496 = vadd.f32 %v5172, %v5468
  %v5497 = vadd.f32 %v5173, %v5326
  %v5498 = vadd.f32 %v5174, %v5355
  %v5499 = vadd.f32 %v5175, %v5384
  %v5500 = vadd.f32 %v5176, %v5413
  %v5501 = vadd.f32 %v5177, %v5442
  %v5502 = vadd.f32 %v5178, %v5471
  %v5503 = vadd.f32 %v5179, %v5328
  %v5504 = vadd.f32 %v5180, %v5357
  %v5505 = vadd.f32 %v5181, %v5386
  %v5506 = vadd.f32 %v5182, %v5415
  %v5507 = vadd.f32 %v5183, %v5444
  %v5508 = vadd.f32 %v5184, %v5473
  %v5509 = vadd.f32 %v5185, %v5331
  %v5510 = vadd.f32 %v5186, %v5360
  %v5511 = vadd.f32 %v5187, %v5389
  %v5512 = vadd.f32 %v5188, %v5418
  %v5513 = vadd.f32 %v5189, %v5447
  %v5514 = vadd.f32 %v5190, %v5476
  %v5515 = vadd.f32 %v5191, %v5333
  %v5516 = vadd.f32 %v5192, %v5362
  %v5517 = vadd.f32 %v5193, %v5391
  %v5518 = vadd.f32 %v5194, %v5420
  %v5519 = vadd.f32 %v5195, %v5449
  %v5520 = vadd.f32 %v5196, %v5478
  %v5521 = vadd.f32 %v5197, %v5336
  %v5522 = vadd.f32 %v5198, %v5365
  %v5523 = vadd.f32 %v5199, %v5394
  %v5524 = vadd.f32 %v5200, %v5423
  %v5525 = vadd.f32 %v5201, %v5452
  %v5526 = vadd.f32 %v5202, %v5481
  %v5527 = vadd.f32 %v5203, %v5338
  %v5528 = vadd.f32 %v5204, %v5367
  %v5529 = vadd.f32 %v5205, %v5396
  %v5530 = vadd.f32 %v5206, %v5425
  %v5531 = vadd.f32 %v5207, %v5454
  %v5532 = vadd.f32 %v5208, %v5483
  %v5533 = vld [vmem:[%s6] sm:$0xff]
  %v5534 = vld [vmem:[%s6 + $0x8] sm:$0xff]
  %v5535 = vld [vmem:[%s6 + $0x10] sm:$0xff]
  %v5536 = vld [vmem:[%s6 + $0x18] sm:$0xff]
  %v5537 = vld [vmem:[%s6 + $0x20] sm:$0xff]
  %v5538 = vld [vmem:[%s6 + $0x28] sm:$0xff]
  %v5539 = vld [vmem:[%s6 + $0x30] sm:$0xff]
  %v5540 = vld [vmem:[%s6 + $0x38] sm:$0xff]
  %5542 = vset.pattern.permute.xlu0 0
  %5543 = vperm.xlu0 %5542, %v5533
  %v5544 = vpop.permute.xlu0 %5543
  %5547 = vset.pattern.permute.xlu0 0
  %5548 = vperm.xlu0 %5547, %v5534
  %v5549 = vpop.permute.xlu0 %5548
  %5552 = vset.pattern.permute.xlu0 0
  %5553 = vperm.xlu0 %5552, %v5535
  %v5554 = vpop.permute.xlu0 %5553
  %5557 = vset.pattern.permute.xlu0 0
  %5558 = vperm.xlu0 %5557, %v5536
  %v5559 = vpop.permute.xlu0 %5558
  %5562 = vset.pattern.permute.xlu0 0
  %5563 = vperm.xlu0 %5562, %v5537
  %v5564 = vpop.permute.xlu0 %5563
  %5567 = vset.pattern.permute.xlu0 0
  %5568 = vperm.xlu0 %5567, %v5538
  %v5569 = vpop.permute.xlu0 %5568
  %5572 = vset.pattern.permute.xlu0 0
  %5573 = vperm.xlu0 %5572, %v5539
  %v5574 = vpop.permute.xlu0 %5573
  %5577 = vset.pattern.permute.xlu0 0
  %5578 = vperm.xlu0 %5577, %v5540
  %v5579 = vpop.permute.xlu0 %5578
  %v5581 = vadd.f32 %v5485, %v5544
  %v5582 = vadd.f32 %v5486, %v5544
  %v5583 = vadd.f32 %v5487, %v5544
  %v5584 = vadd.f32 %v5488, %v5544
  %v5585 = vadd.f32 %v5489, %v5544
  %v5586 = vadd.f32 %v5490, %v5544
  %v5587 = vadd.f32 %v5491, %v5549
  %v5588 = vadd.f32 %v5492, %v5549
  %v5589 = vadd.f32 %v5493, %v5549
  %v5590 = vadd.f32 %v5494, %v5549
  %v5591 = vadd.f32 %v5495, %v5549
  %v5592 = vadd.f32 %v5496, %v5549
  %v5593 = vadd.f32 %v5497, %v5554
  %v5594 = vadd.f32 %v5498, %v5554
  %v5595 = vadd.f32 %v5499, %v5554
  %v5596 = vadd.f32 %v5500, %v5554
  %v5597 = vadd.f32 %v5501, %v5554
  %v5598 = vadd.f32 %v5502, %v5554
  %v5599 = vadd.f32 %v5503, %v5559
  %v5600 = vadd.f32 %v5504, %v5559
  %v5601 = vadd.f32 %v5505, %v5559
  %v5602 = vadd.f32 %v5506, %v5559
  %v5603 = vadd.f32 %v5507, %v5559
  %v5604 = vadd.f32 %v5508, %v5559
  %v5605 = vadd.f32 %v5509, %v5564
  %v5606 = vadd.f32 %v5510, %v5564
  %v5607 = vadd.f32 %v5511, %v5564
  %v5608 = vadd.f32 %v5512, %v5564
  %v5609 = vadd.f32 %v5513, %v5564
  %v5610 = vadd.f32 %v5514, %v5564
  %v5611 = vadd.f32 %v5515, %v5569
  %v5612 = vadd.f32 %v5516, %v5569
  %v5613 = vadd.f32 %v5517, %v5569
  %v5614 = vadd.f32 %v5518, %v5569
  %v5615 = vadd.f32 %v5519, %v5569
  %v5616 = vadd.f32 %v5520, %v5569
  %v5617 = vadd.f32 %v5521, %v5574
  %v5618 = vadd.f32 %v5522, %v5574
  %v5619 = vadd.f32 %v5523, %v5574
  %v5620 = vadd.f32 %v5524, %v5574
  %v5621 = vadd.f32 %v5525, %v5574
  %v5622 = vadd.f32 %v5526, %v5574
  %v5623 = vadd.f32 %v5527, %v5579
  %v5624 = vadd.f32 %v5528, %v5579
  %v5625 = vadd.f32 %v5529, %v5579
  %v5626 = vadd.f32 %v5530, %v5579
  %v5627 = vadd.f32 %v5531, %v5579
  %v5628 = vadd.f32 %v5532, %v5579
  %v5629 = vmax.f32 %v5581, 0.0
  %v5630 = vmax.f32 %v5582, 0.0
  %v5631 = vmax.f32 %v5583, 0.0
  %v5632 = vmax.f32 %v5584, 0.0
  %v5633 = vmax.f32 %v5585, 0.0
  %v5634 = vmax.f32 %v5586, 0.0
  %v5635 = vmax.f32 %v5587, 0.0
  %v5636 = vmax.f32 %v5588, 0.0
  %v5637 = vmax.f32 %v5589, 0.0
  %v5638 = vmax.f32 %v5590, 0.0
  %v5639 = vmax.f32 %v5591, 0.0
  %v5640 = vmax.f32 %v5592, 0.0
  %v5641 = vmax.f32 %v5593, 0.0
  %v5642 = vmax.f32 %v5594, 0.0
  %v5643 = vmax.f32 %v5595, 0.0
  %v5644 = vmax.f32 %v5596, 0.0
  %v5645 = vmax.f32 %v5597, 0.0
  %v5646 = vmax.f32 %v5598, 0.0
  %v5647 = vmax.f32 %v5599, 0.0
  %v5648 = vmax.f32 %v5600, 0.0
  %v5649 = vmax.f32 %v5601, 0.0
  %v5650 = vmax.f32 %v5602, 0.0
  %v5651 = vmax.f32 %v5603, 0.0
  %v5652 = vmax.f32 %v5604, 0.0
  %v5653 = vmax.f32 %v5605, 0.0
  %v5654 = vmax.f32 %v5606, 0.0
  %v5655 = vmax.f32 %v5607, 0.0
  %v5656 = vmax.f32 %v5608, 0.0
  %v5657 = vmax.f32 %v5609, 0.0
  %v5658 = vmax.f32 %v5610, 0.0
  %v5659 = vmax.f32 %v5611, 0.0
  %v5660 = vmax.f32 %v5612, 0.0
  %v5661 = vmax.f32 %v5613, 0.0
  %v5662 = vmax.f32 %v5614, 0.0
  %v5663 = vmax.f32 %v5615, 0.0
  %v5664 = vmax.f32 %v5616, 0.0
  %v5665 = vmax.f32 %v5617, 0.0
  %v5666 = vmax.f32 %v5618, 0.0
  %v5667 = vmax.f32 %v5619, 0.0
  %v5668 = vmax.f32 %v5620, 0.0
  %v5669 = vmax.f32 %v5621, 0.0
  %v5670 = vmax.f32 %v5622, 0.0
  %v5671 = vmax.f32 %v5623, 0.0
  %v5672 = vmax.f32 %v5624, 0.0
  %v5673 = vmax.f32 %v5625, 0.0
  %v5674 = vmax.f32 %v5626, 0.0
  %v5675 = vmax.f32 %v5627, 0.0
  %v5676 = vmax.f32 %v5628, 0.0
  %vm5677 = vcmask 15360
  %5678 = vst.msk [vmem:[#allocation3] sm:$0xff] %vm5677, %v5629
  %5679 = vst.msk [vmem:[#allocation3 + $0x8] sm:$0xff] %vm5677, %v5635
  %5680 = vst.msk [vmem:[#allocation3 + $0x10] sm:$0xff] %vm5677, %v5641
  %5681 = vst.msk [vmem:[#allocation3 + $0x18] sm:$0xff] %vm5677, %v5647
  %5682 = vst.msk [vmem:[#allocation3 + $0x20] sm:$0xff] %vm5677, %v5653
  %5683 = vst.msk [vmem:[#allocation3 + $0x28] sm:$0xff] %vm5677, %v5659
  %5684 = vst.msk [vmem:[#allocation3 + $0x30] sm:$0xff] %vm5677, %v5665
  %5685 = vst.msk [vmem:[#allocation3 + $0x38] sm:$0xff] %vm5677, %v5671
  %5694 = vrot.lane.b32.xlu0 %v5629, 120
  %v5695 = vpop.permute.xlu0 %5694
  %5696 = vrot.lane.b32.xlu0 %v5635, 120
  %v5697 = vpop.permute.xlu0 %5696
  %5698 = vrot.lane.b32.xlu0 %v5641, 120
  %v5699 = vpop.permute.xlu0 %5698
  %5700 = vrot.lane.b32.xlu0 %v5647, 120
  %v5701 = vpop.permute.xlu0 %5700
  %5702 = vrot.lane.b32.xlu0 %v5653, 120
  %v5703 = vpop.permute.xlu0 %5702
  %5704 = vrot.lane.b32.xlu0 %v5659, 120
  %v5705 = vpop.permute.xlu0 %5704
  %5706 = vrot.lane.b32.xlu0 %v5665, 120
  %v5707 = vpop.permute.xlu0 %5706
  %5708 = vrot.lane.b32.xlu0 %v5671, 120
  %v5709 = vpop.permute.xlu0 %5708
  %5718 = vst.msk [vmem:[#allocation3 + $0x40] sm:$0xff] %vm5677, %v5695
  %5719 = vst.msk [vmem:[#allocation3 + $0x48] sm:$0xff] %vm5677, %v5697
  %5720 = vst.msk [vmem:[#allocation3 + $0x50] sm:$0xff] %vm5677, %v5699
  %5721 = vst.msk [vmem:[#allocation3 + $0x58] sm:$0xff] %vm5677, %v5701
  %5722 = vst.msk [vmem:[#allocation3 + $0x60] sm:$0xff] %vm5677, %v5703
  %5723 = vst.msk [vmem:[#allocation3 + $0x68] sm:$0xff] %vm5677, %v5705
  %5724 = vst.msk [vmem:[#allocation3 + $0x70] sm:$0xff] %vm5677, %v5707
  %5725 = vst.msk [vmem:[#allocation3 + $0x78] sm:$0xff] %vm5677, %v5709
  %5726 = vrot.lane.b32.xlu0 %v5629, 112
  %v5727 = vpop.permute.xlu0 %5726
  %5728 = vrot.lane.b32.xlu0 %v5635, 112
  %v5729 = vpop.permute.xlu0 %5728
  %5730 = vrot.lane.b32.xlu0 %v5641, 112
  %v5731 = vpop.permute.xlu0 %5730
  %5732 = vrot.lane.b32.xlu0 %v5647, 112
  %v5733 = vpop.permute.xlu0 %5732
  %5734 = vrot.lane.b32.xlu0 %v5653, 112
  %v5735 = vpop.permute.xlu0 %5734
  %5736 = vrot.lane.b32.xlu0 %v5659, 112
  %v5737 = vpop.permute.xlu0 %5736
  %5738 = vrot.lane.b32.xlu0 %v5665, 112
  %v5739 = vpop.permute.xlu0 %5738
  %5740 = vrot.lane.b32.xlu0 %v5671, 112
  %v5741 = vpop.permute.xlu0 %5740
  %5750 = vst.msk [vmem:[#allocation3 + $0x80] sm:$0xff] %vm5677, %v5727
  %5751 = vst.msk [vmem:[#allocation3 + $0x88] sm:$0xff] %vm5677, %v5729
  %5752 = vst.msk [vmem:[#allocation3 + $0x90] sm:$0xff] %vm5677, %v5731
  %5753 = vst.msk [vmem:[#allocation3 + $0x98] sm:$0xff] %vm5677, %v5733
  %5754 = vst.msk [vmem:[#allocation3 + $0xa0] sm:$0xff] %vm5677, %v5735
  %5755 = vst.msk [vmem:[#allocation3 + $0xa8] sm:$0xff] %vm5677, %v5737
  %5756 = vst.msk [vmem:[#allocation3 + $0xb0] sm:$0xff] %vm5677, %v5739
  %5757 = vst.msk [vmem:[#allocation3 + $0xb8] sm:$0xff] %vm5677, %v5741
  %5758 = vrot.lane.b32.xlu0 %v5629, 104
  %v5759 = vpop.permute.xlu0 %5758
  %5760 = vrot.lane.b32.xlu0 %v5635, 104
  %v5761 = vpop.permute.xlu0 %5760
  %5762 = vrot.lane.b32.xlu0 %v5641, 104
  %v5763 = vpop.permute.xlu0 %5762
  %5764 = vrot.lane.b32.xlu0 %v5647, 104
  %v5765 = vpop.permute.xlu0 %5764
  %5766 = vrot.lane.b32.xlu0 %v5653, 104
  %v5767 = vpop.permute.xlu0 %5766
  %5768 = vrot.lane.b32.xlu0 %v5659, 104
  %v5769 = vpop.permute.xlu0 %5768
  %5770 = vrot.lane.b32.xlu0 %v5665, 104
  %v5771 = vpop.permute.xlu0 %5770
  %5772 = vrot.lane.b32.xlu0 %v5671, 104
  %v5773 = vpop.permute.xlu0 %5772
  %5782 = vst.msk [vmem:[#allocation3 + $0xc0] sm:$0xff] %vm5677, %v5759
  %5783 = vst.msk [vmem:[#allocation3 + $0xc8] sm:$0xff] %vm5677, %v5761
  %5784 = vst.msk [vmem:[#allocation3 + $0xd0] sm:$0xff] %vm5677, %v5763
  %5785 = vst.msk [vmem:[#allocation3 + $0xd8] sm:$0xff] %vm5677, %v5765
  %5786 = vst.msk [vmem:[#allocation3 + $0xe0] sm:$0xff] %vm5677, %v5767
  %5787 = vst.msk [vmem:[#allocation3 + $0xe8] sm:$0xff] %vm5677, %v5769
  %5788 = vst.msk [vmem:[#allocation3 + $0xf0] sm:$0xff] %vm5677, %v5771
  %5789 = vst.msk [vmem:[#allocation3 + $0xf8] sm:$0xff] %vm5677, %v5773
  %5790 = vrot.lane.b32.xlu0 %v5629, 96
  %v5791 = vpop.permute.xlu0 %5790
  %5792 = vrot.lane.b32.xlu0 %v5635, 96
  %v5793 = vpop.permute.xlu0 %5792
  %5794 = vrot.lane.b32.xlu0 %v5641, 96
  %v5795 = vpop.permute.xlu0 %5794
  %5796 = vrot.lane.b32.xlu0 %v5647, 96
  %v5797 = vpop.permute.xlu0 %5796
  %5798 = vrot.lane.b32.xlu0 %v5653, 96
  %v5799 = vpop.permute.xlu0 %5798
  %5800 = vrot.lane.b32.xlu0 %v5659, 96
  %v5801 = vpop.permute.xlu0 %5800
  %5802 = vrot.lane.b32.xlu0 %v5665, 96
  %v5803 = vpop.permute.xlu0 %5802
  %5804 = vrot.lane.b32.xlu0 %v5671, 96
  %v5805 = vpop.permute.xlu0 %5804
  %5814 = vst.msk [vmem:[#allocation3 + $0x100] sm:$0xff] %vm5677, %v5791
  %5815 = vst.msk [vmem:[#allocation3 + $0x108] sm:$0xff] %vm5677, %v5793
  %5816 = vst.msk [vmem:[#allocation3 + $0x110] sm:$0xff] %vm5677, %v5795
  %5817 = vst.msk [vmem:[#allocation3 + $0x118] sm:$0xff] %vm5677, %v5797
  %5818 = vst.msk [vmem:[#allocation3 + $0x120] sm:$0xff] %vm5677, %v5799
  %5819 = vst.msk [vmem:[#allocation3 + $0x128] sm:$0xff] %vm5677, %v5801
  %5820 = vst.msk [vmem:[#allocation3 + $0x130] sm:$0xff] %vm5677, %v5803
  %5821 = vst.msk [vmem:[#allocation3 + $0x138] sm:$0xff] %vm5677, %v5805
  %5830 = vrot.lane.b32.xlu0 %v5630, 32
  %v5831 = vpop.permute.xlu0 %5830
  %5832 = vrot.lane.b32.xlu0 %v5636, 32
  %v5833 = vpop.permute.xlu0 %5832
  %5834 = vrot.lane.b32.xlu0 %v5642, 32
  %v5835 = vpop.permute.xlu0 %5834
  %5836 = vrot.lane.b32.xlu0 %v5648, 32
  %v5837 = vpop.permute.xlu0 %5836
  %5838 = vrot.lane.b32.xlu0 %v5654, 32
  %v5839 = vpop.permute.xlu0 %5838
  %5840 = vrot.lane.b32.xlu0 %v5660, 32
  %v5841 = vpop.permute.xlu0 %5840
  %5842 = vrot.lane.b32.xlu0 %v5666, 32
  %v5843 = vpop.permute.xlu0 %5842
  %5844 = vrot.lane.b32.xlu0 %v5672, 32
  %v5845 = vpop.permute.xlu0 %5844
  %5854 = vst.msk [vmem:[#allocation3 + $0x140] sm:$0xff] %vm5677, %v5831
  %5855 = vst.msk [vmem:[#allocation3 + $0x148] sm:$0xff] %vm5677, %v5833
  %5856 = vst.msk [vmem:[#allocation3 + $0x150] sm:$0xff] %vm5677, %v5835
  %5857 = vst.msk [vmem:[#allocation3 + $0x158] sm:$0xff] %vm5677, %v5837
  %5858 = vst.msk [vmem:[#allocation3 + $0x160] sm:$0xff] %vm5677, %v5839
  %5859 = vst.msk [vmem:[#allocation3 + $0x168] sm:$0xff] %vm5677, %v5841
  %5860 = vst.msk [vmem:[#allocation3 + $0x170] sm:$0xff] %vm5677, %v5843
  %5861 = vst.msk [vmem:[#allocation3 + $0x178] sm:$0xff] %vm5677, %v5845
  %5862 = vrot.lane.b32.xlu0 %v5630, 24
  %v5863 = vpop.permute.xlu0 %5862
  %5864 = vrot.lane.b32.xlu0 %v5636, 24
  %v5865 = vpop.permute.xlu0 %5864
  %5866 = vrot.lane.b32.xlu0 %v5642, 24
  %v5867 = vpop.permute.xlu0 %5866
  %5868 = vrot.lane.b32.xlu0 %v5648, 24
  %v5869 = vpop.permute.xlu0 %5868
  %5870 = vrot.lane.b32.xlu0 %v5654, 24
  %v5871 = vpop.permute.xlu0 %5870
  %5872 = vrot.lane.b32.xlu0 %v5660, 24
  %v5873 = vpop.permute.xlu0 %5872
  %5874 = vrot.lane.b32.xlu0 %v5666, 24
  %v5875 = vpop.permute.xlu0 %5874
  %5876 = vrot.lane.b32.xlu0 %v5672, 24
  %v5877 = vpop.permute.xlu0 %5876
  %5886 = vst.msk [vmem:[#allocation3 + $0x180] sm:$0xff] %vm5677, %v5863
  %5887 = vst.msk [vmem:[#allocation3 + $0x188] sm:$0xff] %vm5677, %v5865
  %5888 = vst.msk [vmem:[#allocation3 + $0x190] sm:$0xff] %vm5677, %v5867
  %5889 = vst.msk [vmem:[#allocation3 + $0x198] sm:$0xff] %vm5677, %v5869
  %5890 = vst.msk [vmem:[#allocation3 + $0x1a0] sm:$0xff] %vm5677, %v5871
  %5891 = vst.msk [vmem:[#allocation3 + $0x1a8] sm:$0xff] %vm5677, %v5873
  %5892 = vst.msk [vmem:[#allocation3 + $0x1b0] sm:$0xff] %vm5677, %v5875
  %5893 = vst.msk [vmem:[#allocation3 + $0x1b8] sm:$0xff] %vm5677, %v5877
  %5894 = vrot.lane.b32.xlu0 %v5630, 16
  %v5895 = vpop.permute.xlu0 %5894
  %5896 = vrot.lane.b32.xlu0 %v5636, 16
  %v5897 = vpop.permute.xlu0 %5896
  %5898 = vrot.lane.b32.xlu0 %v5642, 16
  %v5899 = vpop.permute.xlu0 %5898
  %5900 = vrot.lane.b32.xlu0 %v5648, 16
  %v5901 = vpop.permute.xlu0 %5900
  %5902 = vrot.lane.b32.xlu0 %v5654, 16
  %v5903 = vpop.permute.xlu0 %5902
  %5904 = vrot.lane.b32.xlu0 %v5660, 16
  %v5905 = vpop.permute.xlu0 %5904
  %5906 = vrot.lane.b32.xlu0 %v5666, 16
  %v5907 = vpop.permute.xlu0 %5906
  %5908 = vrot.lane.b32.xlu0 %v5672, 16
  %v5909 = vpop.permute.xlu0 %5908
  %5918 = vst.msk [vmem:[#allocation3 + $0x1c0] sm:$0xff] %vm5677, %v5895
  %5919 = vst.msk [vmem:[#allocation3 + $0x1c8] sm:$0xff] %vm5677, %v5897
  %5920 = vst.msk [vmem:[#allocation3 + $0x1d0] sm:$0xff] %vm5677, %v5899
  %5921 = vst.msk [vmem:[#allocation3 + $0x1d8] sm:$0xff] %vm5677, %v5901
  %5922 = vst.msk [vmem:[#allocation3 + $0x1e0] sm:$0xff] %vm5677, %v5903
  %5923 = vst.msk [vmem:[#allocation3 + $0x1e8] sm:$0xff] %vm5677, %v5905
  %5924 = vst.msk [vmem:[#allocation3 + $0x1f0] sm:$0xff] %vm5677, %v5907
  %5925 = vst.msk [vmem:[#allocation3 + $0x1f8] sm:$0xff] %vm5677, %v5909
  %5926 = vrot.lane.b32.xlu0 %v5630, 8
  %v5927 = vpop.permute.xlu0 %5926
  %5928 = vrot.lane.b32.xlu0 %v5636, 8
  %v5929 = vpop.permute.xlu0 %5928
  %5930 = vrot.lane.b32.xlu0 %v5642, 8
  %v5931 = vpop.permute.xlu0 %5930
  %5932 = vrot.lane.b32.xlu0 %v5648, 8
  %v5933 = vpop.permute.xlu0 %5932
  %5934 = vrot.lane.b32.xlu0 %v5654, 8
  %v5935 = vpop.permute.xlu0 %5934
  %5936 = vrot.lane.b32.xlu0 %v5660, 8
  %v5937 = vpop.permute.xlu0 %5936
  %5938 = vrot.lane.b32.xlu0 %v5666, 8
  %v5939 = vpop.permute.xlu0 %5938
  %5940 = vrot.lane.b32.xlu0 %v5672, 8
  %v5941 = vpop.permute.xlu0 %5940
  %5950 = vst.msk [vmem:[#allocation3 + $0x200] sm:$0xff] %vm5677, %v5927
  %5951 = vst.msk [vmem:[#allocation3 + $0x208] sm:$0xff] %vm5677, %v5929
  %5952 = vst.msk [vmem:[#allocation3 + $0x210] sm:$0xff] %vm5677, %v5931
  %5953 = vst.msk [vmem:[#allocation3 + $0x218] sm:$0xff] %vm5677, %v5933
  %5954 = vst.msk [vmem:[#allocation3 + $0x220] sm:$0xff] %vm5677, %v5935
  %5955 = vst.msk [vmem:[#allocation3 + $0x228] sm:$0xff] %vm5677, %v5937
  %5956 = vst.msk [vmem:[#allocation3 + $0x230] sm:$0xff] %vm5677, %v5939
  %5957 = vst.msk [vmem:[#allocation3 + $0x238] sm:$0xff] %vm5677, %v5941
  %5958 = vst.msk [vmem:[#allocation3 + $0x240] sm:$0xff] %vm5677, %v5631
  %5959 = vst.msk [vmem:[#allocation3 + $0x248] sm:$0xff] %vm5677, %v5637
  %5960 = vst.msk [vmem:[#allocation3 + $0x250] sm:$0xff] %vm5677, %v5643
  %5961 = vst.msk [vmem:[#allocation3 + $0x258] sm:$0xff] %vm5677, %v5649
  %5962 = vst.msk [vmem:[#allocation3 + $0x260] sm:$0xff] %vm5677, %v5655
  %5963 = vst.msk [vmem:[#allocation3 + $0x268] sm:$0xff] %vm5677, %v5661
  %5964 = vst.msk [vmem:[#allocation3 + $0x270] sm:$0xff] %vm5677, %v5667
  %5965 = vst.msk [vmem:[#allocation3 + $0x278] sm:$0xff] %vm5677, %v5673
  %5974 = vrot.lane.b32.xlu0 %v5632, 64
  %v5975 = vpop.permute.xlu0 %5974
  %5976 = vrot.lane.b32.xlu0 %v5638, 64
  %v5977 = vpop.permute.xlu0 %5976
  %5978 = vrot.lane.b32.xlu0 %v5644, 64
  %v5979 = vpop.permute.xlu0 %5978
  %5980 = vrot.lane.b32.xlu0 %v5650, 64
  %v5981 = vpop.permute.xlu0 %5980
  %5982 = vrot.lane.b32.xlu0 %v5656, 64
  %v5983 = vpop.permute.xlu0 %5982
  %5984 = vrot.lane.b32.xlu0 %v5662, 64
  %v5985 = vpop.permute.xlu0 %5984
  %5986 = vrot.lane.b32.xlu0 %v5668, 64
  %v5987 = vpop.permute.xlu0 %5986
  %5988 = vrot.lane.b32.xlu0 %v5674, 64
  %v5989 = vpop.permute.xlu0 %5988
  %5998 = vst.msk [vmem:[#allocation3 + $0x280] sm:$0xff] %vm5677, %v5975
  %5999 = vst.msk [vmem:[#allocation3 + $0x288] sm:$0xff] %vm5677, %v5977
  %6000 = vst.msk [vmem:[#allocation3 + $0x290] sm:$0xff] %vm5677, %v5979
  %6001 = vst.msk [vmem:[#allocation3 + $0x298] sm:$0xff] %vm5677, %v5981
  %6002 = vst.msk [vmem:[#allocation3 + $0x2a0] sm:$0xff] %vm5677, %v5983
  %6003 = vst.msk [vmem:[#allocation3 + $0x2a8] sm:$0xff] %vm5677, %v5985
  %6004 = vst.msk [vmem:[#allocation3 + $0x2b0] sm:$0xff] %vm5677, %v5987
  %6005 = vst.msk [vmem:[#allocation3 + $0x2b8] sm:$0xff] %vm5677, %v5989
  %6006 = vrot.lane.b32.xlu0 %v5632, 56
  %v6007 = vpop.permute.xlu0 %6006
  %6008 = vrot.lane.b32.xlu0 %v5638, 56
  %v6009 = vpop.permute.xlu0 %6008
  %6010 = vrot.lane.b32.xlu0 %v5644, 56
  %v6011 = vpop.permute.xlu0 %6010
  %6012 = vrot.lane.b32.xlu0 %v5650, 56
  %v6013 = vpop.permute.xlu0 %6012
  %6014 = vrot.lane.b32.xlu0 %v5656, 56
  %v6015 = vpop.permute.xlu0 %6014
  %6016 = vrot.lane.b32.xlu0 %v5662, 56
  %v6017 = vpop.permute.xlu0 %6016
  %6018 = vrot.lane.b32.xlu0 %v5668, 56
  %v6019 = vpop.permute.xlu0 %6018
  %6020 = vrot.lane.b32.xlu0 %v5674, 56
  %v6021 = vpop.permute.xlu0 %6020
  %6030 = vst.msk [vmem:[#allocation3 + $0x2c0] sm:$0xff] %vm5677, %v6007
  %6031 = vst.msk [vmem:[#allocation3 + $0x2c8] sm:$0xff] %vm5677, %v6009
  %6032 = vst.msk [vmem:[#allocation3 + $0x2d0] sm:$0xff] %vm5677, %v6011
  %6033 = vst.msk [vmem:[#allocation3 + $0x2d8] sm:$0xff] %vm5677, %v6013
  %6034 = vst.msk [vmem:[#allocation3 + $0x2e0] sm:$0xff] %vm5677, %v6015
  %6035 = vst.msk [vmem:[#allocation3 + $0x2e8] sm:$0xff] %vm5677, %v6017
  %6036 = vst.msk [vmem:[#allocation3 + $0x2f0] sm:$0xff] %vm5677, %v6019
  %6037 = vst.msk [vmem:[#allocation3 + $0x2f8] sm:$0xff] %vm5677, %v6021
  %6038 = vrot.lane.b32.xlu0 %v5632, 48
  %v6039 = vpop.permute.xlu0 %6038
  %6040 = vrot.lane.b32.xlu0 %v5638, 48
  %v6041 = vpop.permute.xlu0 %6040
  %6042 = vrot.lane.b32.xlu0 %v5644, 48
  %v6043 = vpop.permute.xlu0 %6042
  %6044 = vrot.lane.b32.xlu0 %v5650, 48
  %v6045 = vpop.permute.xlu0 %6044
  %6046 = vrot.lane.b32.xlu0 %v5656, 48
  %v6047 = vpop.permute.xlu0 %6046
  %6048 = vrot.lane.b32.xlu0 %v5662, 48
  %v6049 = vpop.permute.xlu0 %6048
  %6050 = vrot.lane.b32.xlu0 %v5668, 48
  %v6051 = vpop.permute.xlu0 %6050
  %6052 = vrot.lane.b32.xlu0 %v5674, 48
  %v6053 = vpop.permute.xlu0 %6052
  %6062 = vst.msk [vmem:[#allocation3 + $0x300] sm:$0xff] %vm5677, %v6039
  %6063 = vst.msk [vmem:[#allocation3 + $0x308] sm:$0xff] %vm5677, %v6041
  %6064 = vst.msk [vmem:[#allocation3 + $0x310] sm:$0xff] %vm5677, %v6043
  %6065 = vst.msk [vmem:[#allocation3 + $0x318] sm:$0xff] %vm5677, %v6045
  %6066 = vst.msk [vmem:[#allocation3 + $0x320] sm:$0xff] %vm5677, %v6047
  %6067 = vst.msk [vmem:[#allocation3 + $0x328] sm:$0xff] %vm5677, %v6049
  %6068 = vst.msk [vmem:[#allocation3 + $0x330] sm:$0xff] %vm5677, %v6051
  %6069 = vst.msk [vmem:[#allocation3 + $0x338] sm:$0xff] %vm5677, %v6053
  %6070 = vrot.lane.b32.xlu0 %v5632, 40
  %v6071 = vpop.permute.xlu0 %6070
  %6072 = vrot.lane.b32.xlu0 %v5638, 40
  %v6073 = vpop.permute.xlu0 %6072
  %6074 = vrot.lane.b32.xlu0 %v5644, 40
  %v6075 = vpop.permute.xlu0 %6074
  %6076 = vrot.lane.b32.xlu0 %v5650, 40
  %v6077 = vpop.permute.xlu0 %6076
  %6078 = vrot.lane.b32.xlu0 %v5656, 40
  %v6079 = vpop.permute.xlu0 %6078
  %6080 = vrot.lane.b32.xlu0 %v5662, 40
  %v6081 = vpop.permute.xlu0 %6080
  %6082 = vrot.lane.b32.xlu0 %v5668, 40
  %v6083 = vpop.permute.xlu0 %6082
  %6084 = vrot.lane.b32.xlu0 %v5674, 40
  %v6085 = vpop.permute.xlu0 %6084
  %6094 = vst.msk [vmem:[#allocation3 + $0x340] sm:$0xff] %vm5677, %v6071
  %6095 = vst.msk [vmem:[#allocation3 + $0x348] sm:$0xff] %vm5677, %v6073
  %6096 = vst.msk [vmem:[#allocation3 + $0x350] sm:$0xff] %vm5677, %v6075
  %6097 = vst.msk [vmem:[#allocation3 + $0x358] sm:$0xff] %vm5677, %v6077
  %6098 = vst.msk [vmem:[#allocation3 + $0x360] sm:$0xff] %vm5677, %v6079
  %6099 = vst.msk [vmem:[#allocation3 + $0x368] sm:$0xff] %vm5677, %v6081
  %6100 = vst.msk [vmem:[#allocation3 + $0x370] sm:$0xff] %vm5677, %v6083
  %6101 = vst.msk [vmem:[#allocation3 + $0x378] sm:$0xff] %vm5677, %v6085
  %6102 = vrot.lane.b32.xlu0 %v5632, 32
  %v6103 = vpop.permute.xlu0 %6102
  %6104 = vrot.lane.b32.xlu0 %v5638, 32
  %v6105 = vpop.permute.xlu0 %6104
  %6106 = vrot.lane.b32.xlu0 %v5644, 32
  %v6107 = vpop.permute.xlu0 %6106
  %6108 = vrot.lane.b32.xlu0 %v5650, 32
  %v6109 = vpop.permute.xlu0 %6108
  %6110 = vrot.lane.b32.xlu0 %v5656, 32
  %v6111 = vpop.permute.xlu0 %6110
  %6112 = vrot.lane.b32.xlu0 %v5662, 32
  %v6113 = vpop.permute.xlu0 %6112
  %6114 = vrot.lane.b32.xlu0 %v5668, 32
  %v6115 = vpop.permute.xlu0 %6114
  %6116 = vrot.lane.b32.xlu0 %v5674, 32
  %v6117 = vpop.permute.xlu0 %6116
  %6126 = vst.msk [vmem:[#allocation3 + $0x380] sm:$0xff] %vm5677, %v6103
  %6127 = vst.msk [vmem:[#allocation3 + $0x388] sm:$0xff] %vm5677, %v6105
  %6128 = vst.msk [vmem:[#allocation3 + $0x390] sm:$0xff] %vm5677, %v6107
  %6129 = vst.msk [vmem:[#allocation3 + $0x398] sm:$0xff] %vm5677, %v6109
  %6130 = vst.msk [vmem:[#allocation3 + $0x3a0] sm:$0xff] %vm5677, %v6111
  %6131 = vst.msk [vmem:[#allocation3 + $0x3a8] sm:$0xff] %vm5677, %v6113
  %6132 = vst.msk [vmem:[#allocation3 + $0x3b0] sm:$0xff] %vm5677, %v6115
  %6133 = vst.msk [vmem:[#allocation3 + $0x3b8] sm:$0xff] %vm5677, %v6117
  %6142 = vrot.lane.b32.xlu0 %v5633, 96
  %v6143 = vpop.permute.xlu0 %6142
  %6144 = vrot.lane.b32.xlu0 %v5639, 96
  %v6145 = vpop.permute.xlu0 %6144
  %6146 = vrot.lane.b32.xlu0 %v5645, 96
  %v6147 = vpop.permute.xlu0 %6146
  %6148 = vrot.lane.b32.xlu0 %v5651, 96
  %v6149 = vpop.permute.xlu0 %6148
  %6150 = vrot.lane.b32.xlu0 %v5657, 96
  %v6151 = vpop.permute.xlu0 %6150
  %6152 = vrot.lane.b32.xlu0 %v5663, 96
  %v6153 = vpop.permute.xlu0 %6152
  %6154 = vrot.lane.b32.xlu0 %v5669, 96
  %v6155 = vpop.permute.xlu0 %6154
  %6156 = vrot.lane.b32.xlu0 %v5675, 96
  %v6157 = vpop.permute.xlu0 %6156
  %6166 = vst.msk [vmem:[#allocation3 + $0x3c0] sm:$0xff] %vm5677, %v6143
  %6167 = vst.msk [vmem:[#allocation3 + $0x3c8] sm:$0xff] %vm5677, %v6145
  %6168 = vst.msk [vmem:[#allocation3 + $0x3d0] sm:$0xff] %vm5677, %v6147
  %6169 = vst.msk [vmem:[#allocation3 + $0x3d8] sm:$0xff] %vm5677, %v6149
  %6170 = vst.msk [vmem:[#allocation3 + $0x3e0] sm:$0xff] %vm5677, %v6151
  %6171 = vst.msk [vmem:[#allocation3 + $0x3e8] sm:$0xff] %vm5677, %v6153
  %6172 = vst.msk [vmem:[#allocation3 + $0x3f0] sm:$0xff] %vm5677, %v6155
  %6173 = vst.msk [vmem:[#allocation3 + $0x3f8] sm:$0xff] %vm5677, %v6157
  %6174 = vrot.lane.b32.xlu0 %v5633, 88
  %v6175 = vpop.permute.xlu0 %6174
  %6176 = vrot.lane.b32.xlu0 %v5639, 88
  %v6177 = vpop.permute.xlu0 %6176
  %6178 = vrot.lane.b32.xlu0 %v5645, 88
  %v6179 = vpop.permute.xlu0 %6178
  %6180 = vrot.lane.b32.xlu0 %v5651, 88
  %v6181 = vpop.permute.xlu0 %6180
  %6182 = vrot.lane.b32.xlu0 %v5657, 88
  %v6183 = vpop.permute.xlu0 %6182
  %6184 = vrot.lane.b32.xlu0 %v5663, 88
  %v6185 = vpop.permute.xlu0 %6184
  %6186 = vrot.lane.b32.xlu0 %v5669, 88
  %v6187 = vpop.permute.xlu0 %6186
  %6188 = vrot.lane.b32.xlu0 %v5675, 88
  %v6189 = vpop.permute.xlu0 %6188
  %6198 = vst.msk [vmem:[#allocation3 + $0x400] sm:$0xff] %vm5677, %v6175
  %6199 = vst.msk [vmem:[#allocation3 + $0x408] sm:$0xff] %vm5677, %v6177
  %6200 = vst.msk [vmem:[#allocation3 + $0x410] sm:$0xff] %vm5677, %v6179
  %6201 = vst.msk [vmem:[#allocation3 + $0x418] sm:$0xff] %vm5677, %v6181
  %6202 = vst.msk [vmem:[#allocation3 + $0x420] sm:$0xff] %vm5677, %v6183
  %6203 = vst.msk [vmem:[#allocation3 + $0x428] sm:$0xff] %vm5677, %v6185
  %6204 = vst.msk [vmem:[#allocation3 + $0x430] sm:$0xff] %vm5677, %v6187
  %6205 = vst.msk [vmem:[#allocation3 + $0x438] sm:$0xff] %vm5677, %v6189
  %6206 = vrot.lane.b32.xlu0 %v5633, 80
  %v6207 = vpop.permute.xlu0 %6206
  %6208 = vrot.lane.b32.xlu0 %v5639, 80
  %v6209 = vpop.permute.xlu0 %6208
  %6210 = vrot.lane.b32.xlu0 %v5645, 80
  %v6211 = vpop.permute.xlu0 %6210
  %6212 = vrot.lane.b32.xlu0 %v5651, 80
  %v6213 = vpop.permute.xlu0 %6212
  %6214 = vrot.lane.b32.xlu0 %v5657, 80
  %v6215 = vpop.permute.xlu0 %6214
  %6216 = vrot.lane.b32.xlu0 %v5663, 80
  %v6217 = vpop.permute.xlu0 %6216
  %6218 = vrot.lane.b32.xlu0 %v5669, 80
  %v6219 = vpop.permute.xlu0 %6218
  %6220 = vrot.lane.b32.xlu0 %v5675, 80
  %v6221 = vpop.permute.xlu0 %6220
  %6230 = vst.msk [vmem:[#allocation3 + $0x440] sm:$0xff] %vm5677, %v6207
  %6231 = vst.msk [vmem:[#allocation3 + $0x448] sm:$0xff] %vm5677, %v6209
  %6232 = vst.msk [vmem:[#allocation3 + $0x450] sm:$0xff] %vm5677, %v6211
  %6233 = vst.msk [vmem:[#allocation3 + $0x458] sm:$0xff] %vm5677, %v6213
  %6234 = vst.msk [vmem:[#allocation3 + $0x460] sm:$0xff] %vm5677, %v6215
  %6235 = vst.msk [vmem:[#allocation3 + $0x468] sm:$0xff] %vm5677, %v6217
  %6236 = vst.msk [vmem:[#allocation3 + $0x470] sm:$0xff] %vm5677, %v6219
  %6237 = vst.msk [vmem:[#allocation3 + $0x478] sm:$0xff] %vm5677, %v6221
  %6238 = vrot.lane.b32.xlu0 %v5633, 72
  %v6239 = vpop.permute.xlu0 %6238
  %6240 = vrot.lane.b32.xlu0 %v5639, 72
  %v6241 = vpop.permute.xlu0 %6240
  %6242 = vrot.lane.b32.xlu0 %v5645, 72
  %v6243 = vpop.permute.xlu0 %6242
  %6244 = vrot.lane.b32.xlu0 %v5651, 72
  %v6245 = vpop.permute.xlu0 %6244
  %6246 = vrot.lane.b32.xlu0 %v5657, 72
  %v6247 = vpop.permute.xlu0 %6246
  %6248 = vrot.lane.b32.xlu0 %v5663, 72
  %v6249 = vpop.permute.xlu0 %6248
  %6250 = vrot.lane.b32.xlu0 %v5669, 72
  %v6251 = vpop.permute.xlu0 %6250
  %6252 = vrot.lane.b32.xlu0 %v5675, 72
  %v6253 = vpop.permute.xlu0 %6252
  %6262 = vst.msk [vmem:[#allocation3 + $0x480] sm:$0xff] %vm5677, %v6239
  %6263 = vst.msk [vmem:[#allocation3 + $0x488] sm:$0xff] %vm5677, %v6241
  %6264 = vst.msk [vmem:[#allocation3 + $0x490] sm:$0xff] %vm5677, %v6243
  %6265 = vst.msk [vmem:[#allocation3 + $0x498] sm:$0xff] %vm5677, %v6245
  %6266 = vst.msk [vmem:[#allocation3 + $0x4a0] sm:$0xff] %vm5677, %v6247
  %6267 = vst.msk [vmem:[#allocation3 + $0x4a8] sm:$0xff] %vm5677, %v6249
  %6268 = vst.msk [vmem:[#allocation3 + $0x4b0] sm:$0xff] %vm5677, %v6251
  %6269 = vst.msk [vmem:[#allocation3 + $0x4b8] sm:$0xff] %vm5677, %v6253
  %6270 = vrot.lane.b32.xlu0 %v5633, 64
  %v6271 = vpop.permute.xlu0 %6270
  %6272 = vrot.lane.b32.xlu0 %v5639, 64
  %v6273 = vpop.permute.xlu0 %6272
  %6274 = vrot.lane.b32.xlu0 %v5645, 64
  %v6275 = vpop.permute.xlu0 %6274
  %6276 = vrot.lane.b32.xlu0 %v5651, 64
  %v6277 = vpop.permute.xlu0 %6276
  %6278 = vrot.lane.b32.xlu0 %v5657, 64
  %v6279 = vpop.permute.xlu0 %6278
  %6280 = vrot.lane.b32.xlu0 %v5663, 64
  %v6281 = vpop.permute.xlu0 %6280
  %6282 = vrot.lane.b32.xlu0 %v5669, 64
  %v6283 = vpop.permute.xlu0 %6282
  %6284 = vrot.lane.b32.xlu0 %v5675, 64
  %v6285 = vpop.permute.xlu0 %6284
  %6294 = vst.msk [vmem:[#allocation3 + $0x4c0] sm:$0xff] %vm5677, %v6271
  %6295 = vst.msk [vmem:[#allocation3 + $0x4c8] sm:$0xff] %vm5677, %v6273
  %6296 = vst.msk [vmem:[#allocation3 + $0x4d0] sm:$0xff] %vm5677, %v6275
  %6297 = vst.msk [vmem:[#allocation3 + $0x4d8] sm:$0xff] %vm5677, %v6277
  %6298 = vst.msk [vmem:[#allocation3 + $0x4e0] sm:$0xff] %vm5677, %v6279
  %6299 = vst.msk [vmem:[#allocation3 + $0x4e8] sm:$0xff] %vm5677, %v6281
  %6300 = vst.msk [vmem:[#allocation3 + $0x4f0] sm:$0xff] %vm5677, %v6283
  %6301 = vst.msk [vmem:[#allocation3 + $0x4f8] sm:$0xff] %vm5677, %v6285
  %6302 = vst.msk [vmem:[#allocation3 + $0x500] sm:$0xff] %vm5677, %v5634
  %6303 = vst.msk [vmem:[#allocation3 + $0x508] sm:$0xff] %vm5677, %v5640
  %6304 = vst.msk [vmem:[#allocation3 + $0x510] sm:$0xff] %vm5677, %v5646
  %6305 = vst.msk [vmem:[#allocation3 + $0x518] sm:$0xff] %vm5677, %v5652
  %6306 = vst.msk [vmem:[#allocation3 + $0x520] sm:$0xff] %vm5677, %v5658
  %6307 = vst.msk [vmem:[#allocation3 + $0x528] sm:$0xff] %vm5677, %v5664
  %6308 = vst.msk [vmem:[#allocation3 + $0x530] sm:$0xff] %vm5677, %v5670
  %6309 = vst.msk [vmem:[#allocation3 + $0x538] sm:$0xff] %vm5677, %v5676
  %6318 = vrot.lane.b32.xlu0 %v5634, 120
  %v6319 = vpop.permute.xlu0 %6318
  %6320 = vrot.lane.b32.xlu0 %v5640, 120
  %v6321 = vpop.permute.xlu0 %6320
  %6322 = vrot.lane.b32.xlu0 %v5646, 120
  %v6323 = vpop.permute.xlu0 %6322
  %6324 = vrot.lane.b32.xlu0 %v5652, 120
  %v6325 = vpop.permute.xlu0 %6324
  %6326 = vrot.lane.b32.xlu0 %v5658, 120
  %v6327 = vpop.permute.xlu0 %6326
  %6328 = vrot.lane.b32.xlu0 %v5664, 120
  %v6329 = vpop.permute.xlu0 %6328
  %6330 = vrot.lane.b32.xlu0 %v5670, 120
  %v6331 = vpop.permute.xlu0 %6330
  %6332 = vrot.lane.b32.xlu0 %v5676, 120
  %v6333 = vpop.permute.xlu0 %6332
  %6342 = vst.msk [vmem:[#allocation3 + $0x540] sm:$0xff] %vm5677, %v6319
  %6343 = vst.msk [vmem:[#allocation3 + $0x548] sm:$0xff] %vm5677, %v6321
  %6344 = vst.msk [vmem:[#allocation3 + $0x550] sm:$0xff] %vm5677, %v6323
  %6345 = vst.msk [vmem:[#allocation3 + $0x558] sm:$0xff] %vm5677, %v6325
  %6346 = vst.msk [vmem:[#allocation3 + $0x560] sm:$0xff] %vm5677, %v6327
  %6347 = vst.msk [vmem:[#allocation3 + $0x568] sm:$0xff] %vm5677, %v6329
  %6348 = vst.msk [vmem:[#allocation3 + $0x570] sm:$0xff] %vm5677, %v6331
  %6349 = vst.msk [vmem:[#allocation3 + $0x578] sm:$0xff] %vm5677, %v6333
  %6350 = vrot.lane.b32.xlu0 %v5634, 112
  %v6351 = vpop.permute.xlu0 %6350
  %6352 = vrot.lane.b32.xlu0 %v5640, 112
  %v6353 = vpop.permute.xlu0 %6352
  %6354 = vrot.lane.b32.xlu0 %v5646, 112
  %v6355 = vpop.permute.xlu0 %6354
  %6356 = vrot.lane.b32.xlu0 %v5652, 112
  %v6357 = vpop.permute.xlu0 %6356
  %6358 = vrot.lane.b32.xlu0 %v5658, 112
  %v6359 = vpop.permute.xlu0 %6358
  %6360 = vrot.lane.b32.xlu0 %v5664, 112
  %v6361 = vpop.permute.xlu0 %6360
  %6362 = vrot.lane.b32.xlu0 %v5670, 112
  %v6363 = vpop.permute.xlu0 %6362
  %6364 = vrot.lane.b32.xlu0 %v5676, 112
  %v6365 = vpop.permute.xlu0 %6364
  %6374 = vst.msk [vmem:[#allocation3 + $0x580] sm:$0xff] %vm5677, %v6351
  %6375 = vst.msk [vmem:[#allocation3 + $0x588] sm:$0xff] %vm5677, %v6353
  %6376 = vst.msk [vmem:[#allocation3 + $0x590] sm:$0xff] %vm5677, %v6355
  %6377 = vst.msk [vmem:[#allocation3 + $0x598] sm:$0xff] %vm5677, %v6357
  %6378 = vst.msk [vmem:[#allocation3 + $0x5a0] sm:$0xff] %vm5677, %v6359
  %6379 = vst.msk [vmem:[#allocation3 + $0x5a8] sm:$0xff] %vm5677, %v6361
  %6380 = vst.msk [vmem:[#allocation3 + $0x5b0] sm:$0xff] %vm5677, %v6363
  %6381 = vst.msk [vmem:[#allocation3 + $0x5b8] sm:$0xff] %vm5677, %v6365
  %6382 = vrot.lane.b32.xlu0 %v5634, 104
  %v6383 = vpop.permute.xlu0 %6382
  %6384 = vrot.lane.b32.xlu0 %v5640, 104
  %v6385 = vpop.permute.xlu0 %6384
  %6386 = vrot.lane.b32.xlu0 %v5646, 104
  %v6387 = vpop.permute.xlu0 %6386
  %6388 = vrot.lane.b32.xlu0 %v5652, 104
  %v6389 = vpop.permute.xlu0 %6388
  %6390 = vrot.lane.b32.xlu0 %v5658, 104
  %v6391 = vpop.permute.xlu0 %6390
  %6392 = vrot.lane.b32.xlu0 %v5664, 104
  %v6393 = vpop.permute.xlu0 %6392
  %6394 = vrot.lane.b32.xlu0 %v5670, 104
  %v6395 = vpop.permute.xlu0 %6394
  %6396 = vrot.lane.b32.xlu0 %v5676, 104
  %v6397 = vpop.permute.xlu0 %6396
  %6406 = vst.msk [vmem:[#allocation3 + $0x5c0] sm:$0xff] %vm5677, %v6383
  %6407 = vst.msk [vmem:[#allocation3 + $0x5c8] sm:$0xff] %vm5677, %v6385
  %6408 = vst.msk [vmem:[#allocation3 + $0x5d0] sm:$0xff] %vm5677, %v6387
  %6409 = vst.msk [vmem:[#allocation3 + $0x5d8] sm:$0xff] %vm5677, %v6389
  %6410 = vst.msk [vmem:[#allocation3 + $0x5e0] sm:$0xff] %vm5677, %v6391
  %6411 = vst.msk [vmem:[#allocation3 + $0x5e8] sm:$0xff] %vm5677, %v6393
  %6412 = vst.msk [vmem:[#allocation3 + $0x5f0] sm:$0xff] %vm5677, %v6395
  %6413 = vst.msk [vmem:[#allocation3 + $0x5f8] sm:$0xff] %vm5677, %v6397
  %6414 = vrot.lane.b32.xlu0 %v5634, 96
  %v6415 = vpop.permute.xlu0 %6414
  %6416 = vrot.lane.b32.xlu0 %v5640, 96
  %v6417 = vpop.permute.xlu0 %6416
  %6418 = vrot.lane.b32.xlu0 %v5646, 96
  %v6419 = vpop.permute.xlu0 %6418
  %6420 = vrot.lane.b32.xlu0 %v5652, 96
  %v6421 = vpop.permute.xlu0 %6420
  %6422 = vrot.lane.b32.xlu0 %v5658, 96
  %v6423 = vpop.permute.xlu0 %6422
  %6424 = vrot.lane.b32.xlu0 %v5664, 96
  %v6425 = vpop.permute.xlu0 %6424
  %6426 = vrot.lane.b32.xlu0 %v5670, 96
  %v6427 = vpop.permute.xlu0 %6426
  %6428 = vrot.lane.b32.xlu0 %v5676, 96
  %v6429 = vpop.permute.xlu0 %6428
  %6438 = vst.msk [vmem:[#allocation3 + $0x600] sm:$0xff] %vm5677, %v6415
  %6439 = vst.msk [vmem:[#allocation3 + $0x608] sm:$0xff] %vm5677, %v6417
  %6440 = vst.msk [vmem:[#allocation3 + $0x610] sm:$0xff] %vm5677, %v6419
  %6441 = vst.msk [vmem:[#allocation3 + $0x618] sm:$0xff] %vm5677, %v6421
  %6442 = vst.msk [vmem:[#allocation3 + $0x620] sm:$0xff] %vm5677, %v6423
  %6443 = vst.msk [vmem:[#allocation3 + $0x628] sm:$0xff] %vm5677, %v6425
  %6444 = vst.msk [vmem:[#allocation3 + $0x630] sm:$0xff] %vm5677, %v6427
  %6445 = vst.msk [vmem:[#allocation3 + $0x638] sm:$0xff] %vm5677, %v6429
  %s6446 = smul.u32 4, 64
  %s6447 = smul.u32 %s6446, 13
  %s6448 = sshll.u32 %s6447, 4
  %6449 = dma.done [#allocation4], %s6448
  %v6450 = vld [vmem:[#allocation3] sm:$0xff]
  %v6451 = vld [vmem:[#allocation3 + $0x8] sm:$0xff]
  %v6452 = vld [vmem:[#allocation3 + $0x10] sm:$0xff]
  %v6453 = vld [vmem:[#allocation3 + $0x18] sm:$0xff]
  %v6454 = vld [vmem:[#allocation3 + $0x20] sm:$0xff]
  %v6455 = vld [vmem:[#allocation3 + $0x28] sm:$0xff]
  %v6456 = vld [vmem:[#allocation3 + $0x30] sm:$0xff]
  %v6457 = vld [vmem:[#allocation3 + $0x38] sm:$0xff]
  %v6458 = vld [vmem:[#allocation3 + $0x40] sm:$0xff]
  %v6459 = vld [vmem:[#allocation3 + $0x48] sm:$0xff]
  %v6460 = vld [vmem:[#allocation3 + $0x50] sm:$0xff]
  %v6461 = vld [vmem:[#allocation3 + $0x58] sm:$0xff]
  %v6462 = vld [vmem:[#allocation3 + $0x60] sm:$0xff]
  %v6463 = vld [vmem:[#allocation3 + $0x68] sm:$0xff]
  %v6464 = vld [vmem:[#allocation3 + $0x70] sm:$0xff]
  %v6465 = vld [vmem:[#allocation3 + $0x78] sm:$0xff]
  %v6466 = vld [vmem:[#allocation3 + $0x80] sm:$0xff]
  %v6467 = vld [vmem:[#allocation3 + $0x88] sm:$0xff]
  %v6468 = vld [vmem:[#allocation3 + $0x90] sm:$0xff]
  %v6469 = vld [vmem:[#allocation3 + $0x98] sm:$0xff]
  %v6470 = vld [vmem:[#allocation3 + $0xa0] sm:$0xff]
  %v6471 = vld [vmem:[#allocation3 + $0xa8] sm:$0xff]
  %v6472 = vld [vmem:[#allocation3 + $0xb0] sm:$0xff]
  %v6473 = vld [vmem:[#allocation3 + $0xb8] sm:$0xff]
  %v6474 = vld [vmem:[#allocation3 + $0xc0] sm:$0xff]
  %v6475 = vld [vmem:[#allocation3 + $0xc8] sm:$0xff]
  %v6476 = vld [vmem:[#allocation3 + $0xd0] sm:$0xff]
  %v6477 = vld [vmem:[#allocation3 + $0xd8] sm:$0xff]
  %v6478 = vld [vmem:[#allocation3 + $0xe0] sm:$0xff]
  %v6479 = vld [vmem:[#allocation3 + $0xe8] sm:$0xff]
  %v6480 = vld [vmem:[#allocation3 + $0xf0] sm:$0xff]
  %v6481 = vld [vmem:[#allocation3 + $0xf8] sm:$0xff]
  %v6482 = vld [vmem:[#allocation3 + $0x100] sm:$0xff]
  %v6483 = vld [vmem:[#allocation3 + $0x108] sm:$0xff]
  %v6484 = vld [vmem:[#allocation3 + $0x110] sm:$0xff]
  %v6485 = vld [vmem:[#allocation3 + $0x118] sm:$0xff]
  %v6486 = vld [vmem:[#allocation3 + $0x120] sm:$0xff]
  %v6487 = vld [vmem:[#allocation3 + $0x128] sm:$0xff]
  %v6488 = vld [vmem:[#allocation3 + $0x130] sm:$0xff]
  %v6489 = vld [vmem:[#allocation3 + $0x138] sm:$0xff]
  %v6490 = vld [vmem:[#allocation3 + $0x140] sm:$0xff]
  %v6491 = vld [vmem:[#allocation3 + $0x148] sm:$0xff]
  %v6492 = vld [vmem:[#allocation3 + $0x150] sm:$0xff]
  %v6493 = vld [vmem:[#allocation3 + $0x158] sm:$0xff]
  %v6494 = vld [vmem:[#allocation3 + $0x160] sm:$0xff]
  %v6495 = vld [vmem:[#allocation3 + $0x168] sm:$0xff]
  %v6496 = vld [vmem:[#allocation3 + $0x170] sm:$0xff]
  %v6497 = vld [vmem:[#allocation3 + $0x178] sm:$0xff]
  %v6498 = vld [vmem:[#allocation3 + $0x180] sm:$0xff]
  %v6499 = vld [vmem:[#allocation3 + $0x188] sm:$0xff]
  %v6500 = vld [vmem:[#allocation3 + $0x190] sm:$0xff]
  %v6501 = vld [vmem:[#allocation3 + $0x198] sm:$0xff]
  %v6502 = vld [vmem:[#allocation3 + $0x1a0] sm:$0xff]
  %v6503 = vld [vmem:[#allocation3 + $0x1a8] sm:$0xff]
  %v6504 = vld [vmem:[#allocation3 + $0x1b0] sm:$0xff]
  %v6505 = vld [vmem:[#allocation3 + $0x1b8] sm:$0xff]
  %v6506 = vld [vmem:[#allocation3 + $0x1c0] sm:$0xff]
  %v6507 = vld [vmem:[#allocation3 + $0x1c8] sm:$0xff]
  %v6508 = vld [vmem:[#allocation3 + $0x1d0] sm:$0xff]
  %v6509 = vld [vmem:[#allocation3 + $0x1d8] sm:$0xff]
  %v6510 = vld [vmem:[#allocation3 + $0x1e0] sm:$0xff]
  %v6511 = vld [vmem:[#allocation3 + $0x1e8] sm:$0xff]
  %v6512 = vld [vmem:[#allocation3 + $0x1f0] sm:$0xff]
  %v6513 = vld [vmem:[#allocation3 + $0x1f8] sm:$0xff]
  %v6514 = vld [vmem:[#allocation3 + $0x200] sm:$0xff]
  %v6515 = vld [vmem:[#allocation3 + $0x208] sm:$0xff]
  %v6516 = vld [vmem:[#allocation3 + $0x210] sm:$0xff]
  %v6517 = vld [vmem:[#allocation3 + $0x218] sm:$0xff]
  %v6518 = vld [vmem:[#allocation3 + $0x220] sm:$0xff]
  %v6519 = vld [vmem:[#allocation3 + $0x228] sm:$0xff]
  %v6520 = vld [vmem:[#allocation3 + $0x230] sm:$0xff]
  %v6521 = vld [vmem:[#allocation3 + $0x238] sm:$0xff]
  %v6522 = vld [vmem:[#allocation3 + $0x240] sm:$0xff]
  %v6523 = vld [vmem:[#allocation3 + $0x248] sm:$0xff]
  %v6524 = vld [vmem:[#allocation3 + $0x250] sm:$0xff]
  %v6525 = vld [vmem:[#allocation3 + $0x258] sm:$0xff]
  %v6526 = vld [vmem:[#allocation3 + $0x260] sm:$0xff]
  %v6527 = vld [vmem:[#allocation3 + $0x268] sm:$0xff]
  %v6528 = vld [vmem:[#allocation3 + $0x270] sm:$0xff]
  %v6529 = vld [vmem:[#allocation3 + $0x278] sm:$0xff]
  %v6530 = vld [vmem:[#allocation3 + $0x280] sm:$0xff]
  %v6531 = vld [vmem:[#allocation3 + $0x288] sm:$0xff]
  %v6532 = vld [vmem:[#allocation3 + $0x290] sm:$0xff]
  %v6533 = vld [vmem:[#allocation3 + $0x298] sm:$0xff]
  %v6534 = vld [vmem:[#allocation3 + $0x2a0] sm:$0xff]
  %v6535 = vld [vmem:[#allocation3 + $0x2a8] sm:$0xff]
  %v6536 = vld [vmem:[#allocation3 + $0x2b0] sm:$0xff]
  %v6537 = vld [vmem:[#allocation3 + $0x2b8] sm:$0xff]
  %v6538 = vld [vmem:[#allocation3 + $0x2c0] sm:$0xff]
  %v6539 = vld [vmem:[#allocation3 + $0x2c8] sm:$0xff]
  %v6540 = vld [vmem:[#allocation3 + $0x2d0] sm:$0xff]
  %v6541 = vld [vmem:[#allocation3 + $0x2d8] sm:$0xff]
  %v6542 = vld [vmem:[#allocation3 + $0x2e0] sm:$0xff]
  %v6543 = vld [vmem:[#allocation3 + $0x2e8] sm:$0xff]
  %v6544 = vld [vmem:[#allocation3 + $0x2f0] sm:$0xff]
  %v6545 = vld [vmem:[#allocation3 + $0x2f8] sm:$0xff]
  %v6546 = vld [vmem:[#allocation3 + $0x300] sm:$0xff]
  %v6547 = vld [vmem:[#allocation3 + $0x308] sm:$0xff]
  %v6548 = vld [vmem:[#allocation3 + $0x310] sm:$0xff]
  %v6549 = vld [vmem:[#allocation3 + $0x318] sm:$0xff]
  %v6550 = vld [vmem:[#allocation3 + $0x320] sm:$0xff]
  %v6551 = vld [vmem:[#allocation3 + $0x328] sm:$0xff]
  %v6552 = vld [vmem:[#allocation3 + $0x330] sm:$0xff]
  %v6553 = vld [vmem:[#allocation3 + $0x338] sm:$0xff]
  %v6554 = vld [vmem:[#allocation3 + $0x340] sm:$0xff]
  %v6555 = vld [vmem:[#allocation3 + $0x348] sm:$0xff]
  %v6556 = vld [vmem:[#allocation3 + $0x350] sm:$0xff]
  %v6557 = vld [vmem:[#allocation3 + $0x358] sm:$0xff]
  %v6558 = vld [vmem:[#allocation3 + $0x360] sm:$0xff]
  %v6559 = vld [vmem:[#allocation3 + $0x368] sm:$0xff]
  %v6560 = vld [vmem:[#allocation3 + $0x370] sm:$0xff]
  %v6561 = vld [vmem:[#allocation3 + $0x378] sm:$0xff]
  %v6562 = vld [vmem:[#allocation3 + $0x380] sm:$0xff]
  %v6563 = vld [vmem:[#allocation3 + $0x388] sm:$0xff]
  %v6564 = vld [vmem:[#allocation3 + $0x390] sm:$0xff]
  %v6565 = vld [vmem:[#allocation3 + $0x398] sm:$0xff]
  %v6566 = vld [vmem:[#allocation3 + $0x3a0] sm:$0xff]
  %v6567 = vld [vmem:[#allocation3 + $0x3a8] sm:$0xff]
  %v6568 = vld [vmem:[#allocation3 + $0x3b0] sm:$0xff]
  %v6569 = vld [vmem:[#allocation3 + $0x3b8] sm:$0xff]
  %v6570 = vld [vmem:[#allocation3 + $0x3c0] sm:$0xff]
  %v6571 = vld [vmem:[#allocation3 + $0x3c8] sm:$0xff]
  %v6572 = vld [vmem:[#allocation3 + $0x3d0] sm:$0xff]
  %v6573 = vld [vmem:[#allocation3 + $0x3d8] sm:$0xff]
  %v6574 = vld [vmem:[#allocation3 + $0x3e0] sm:$0xff]
  %v6575 = vld [vmem:[#allocation3 + $0x3e8] sm:$0xff]
  %v6576 = vld [vmem:[#allocation3 + $0x3f0] sm:$0xff]
  %v6577 = vld [vmem:[#allocation3 + $0x3f8] sm:$0xff]
  %v6578 = vld [vmem:[#allocation3 + $0x400] sm:$0xff]
  %v6579 = vld [vmem:[#allocation3 + $0x408] sm:$0xff]
  %v6580 = vld [vmem:[#allocation3 + $0x410] sm:$0xff]
  %v6581 = vld [vmem:[#allocation3 + $0x418] sm:$0xff]
  %v6582 = vld [vmem:[#allocation3 + $0x420] sm:$0xff]
  %v6583 = vld [vmem:[#allocation3 + $0x428] sm:$0xff]
  %v6584 = vld [vmem:[#allocation3 + $0x430] sm:$0xff]
  %v6585 = vld [vmem:[#allocation3 + $0x438] sm:$0xff]
  %v6586 = vld [vmem:[#allocation3 + $0x440] sm:$0xff]
  %v6587 = vld [vmem:[#allocation3 + $0x448] sm:$0xff]
  %v6588 = vld [vmem:[#allocation3 + $0x450] sm:$0xff]
  %v6589 = vld [vmem:[#allocation3 + $0x458] sm:$0xff]
  %v6590 = vld [vmem:[#allocation3 + $0x460] sm:$0xff]
  %v6591 = vld [vmem:[#allocation3 + $0x468] sm:$0xff]
  %v6592 = vld [vmem:[#allocation3 + $0x470] sm:$0xff]
  %v6593 = vld [vmem:[#allocation3 + $0x478] sm:$0xff]
  %v6594 = vld [vmem:[#allocation3 + $0x480] sm:$0xff]
  %v6595 = vld [vmem:[#allocation3 + $0x488] sm:$0xff]
  %v6596 = vld [vmem:[#allocation3 + $0x490] sm:$0xff]
  %v6597 = vld [vmem:[#allocation3 + $0x498] sm:$0xff]
  %v6598 = vld [vmem:[#allocation3 + $0x4a0] sm:$0xff]
  %v6599 = vld [vmem:[#allocation3 + $0x4a8] sm:$0xff]
  %v6600 = vld [vmem:[#allocation3 + $0x4b0] sm:$0xff]
  %v6601 = vld [vmem:[#allocation3 + $0x4b8] sm:$0xff]
  %v6602 = vld [vmem:[#allocation3 + $0x4c0] sm:$0xff]
  %v6603 = vld [vmem:[#allocation3 + $0x4c8] sm:$0xff]
  %v6604 = vld [vmem:[#allocation3 + $0x4d0] sm:$0xff]
  %v6605 = vld [vmem:[#allocation3 + $0x4d8] sm:$0xff]
  %v6606 = vld [vmem:[#allocation3 + $0x4e0] sm:$0xff]
  %v6607 = vld [vmem:[#allocation3 + $0x4e8] sm:$0xff]
  %v6608 = vld [vmem:[#allocation3 + $0x4f0] sm:$0xff]
  %v6609 = vld [vmem:[#allocation3 + $0x4f8] sm:$0xff]
  %v6610 = vld [vmem:[#allocation3 + $0x500] sm:$0xff]
  %v6611 = vld [vmem:[#allocation3 + $0x508] sm:$0xff]
  %v6612 = vld [vmem:[#allocation3 + $0x510] sm:$0xff]
  %v6613 = vld [vmem:[#allocation3 + $0x518] sm:$0xff]
  %v6614 = vld [vmem:[#allocation3 + $0x520] sm:$0xff]
  %v6615 = vld [vmem:[#allocation3 + $0x528] sm:$0xff]
  %v6616 = vld [vmem:[#allocation3 + $0x530] sm:$0xff]
  %v6617 = vld [vmem:[#allocation3 + $0x538] sm:$0xff]
  %v6618 = vld [vmem:[#allocation3 + $0x540] sm:$0xff]
  %v6619 = vld [vmem:[#allocation3 + $0x548] sm:$0xff]
  %v6620 = vld [vmem:[#allocation3 + $0x550] sm:$0xff]
  %v6621 = vld [vmem:[#allocation3 + $0x558] sm:$0xff]
  %v6622 = vld [vmem:[#allocation3 + $0x560] sm:$0xff]
  %v6623 = vld [vmem:[#allocation3 + $0x568] sm:$0xff]
  %v6624 = vld [vmem:[#allocation3 + $0x570] sm:$0xff]
  %v6625 = vld [vmem:[#allocation3 + $0x578] sm:$0xff]
  %v6626 = vld [vmem:[#allocation3 + $0x580] sm:$0xff]
  %v6627 = vld [vmem:[#allocation3 + $0x588] sm:$0xff]
  %v6628 = vld [vmem:[#allocation3 + $0x590] sm:$0xff]
  %v6629 = vld [vmem:[#allocation3 + $0x598] sm:$0xff]
  %v6630 = vld [vmem:[#allocation3 + $0x5a0] sm:$0xff]
  %v6631 = vld [vmem:[#allocation3 + $0x5a8] sm:$0xff]
  %v6632 = vld [vmem:[#allocation3 + $0x5b0] sm:$0xff]
  %v6633 = vld [vmem:[#allocation3 + $0x5b8] sm:$0xff]
  %v6634 = vld [vmem:[#allocation3 + $0x5c0] sm:$0xff]
  %v6635 = vld [vmem:[#allocation3 + $0x5c8] sm:$0xff]
  %v6636 = vld [vmem:[#allocation3 + $0x5d0] sm:$0xff]
  %v6637 = vld [vmem:[#allocation3 + $0x5d8] sm:$0xff]
  %v6638 = vld [vmem:[#allocation3 + $0x5e0] sm:$0xff]
  %v6639 = vld [vmem:[#allocation3 + $0x5e8] sm:$0xff]
  %v6640 = vld [vmem:[#allocation3 + $0x5f0] sm:$0xff]
  %v6641 = vld [vmem:[#allocation3 + $0x5f8] sm:$0xff]
  %v6642 = vld [vmem:[#allocation3 + $0x600] sm:$0xff]
  %v6643 = vld [vmem:[#allocation3 + $0x608] sm:$0xff]
  %v6644 = vld [vmem:[#allocation3 + $0x610] sm:$0xff]
  %v6645 = vld [vmem:[#allocation3 + $0x618] sm:$0xff]
  %v6646 = vld [vmem:[#allocation3 + $0x620] sm:$0xff]
  %v6647 = vld [vmem:[#allocation3 + $0x628] sm:$0xff]
  %v6648 = vld [vmem:[#allocation3 + $0x630] sm:$0xff]
  %v6649 = vld [vmem:[#allocation3 + $0x638] sm:$0xff]
  %v6650 = vpack.c.bf16 %v6451, %v6450
  %v6651 = vpack.c.bf16 %v6453, %v6452
  %v6652 = vpack.c.bf16 %v6455, %v6454
  %v6653 = vpack.c.bf16 %v6457, %v6456
  %v6654 = vpack.c.bf16 %v6459, %v6458
  %v6655 = vpack.c.bf16 %v6461, %v6460
  %v6656 = vpack.c.bf16 %v6463, %v6462
  %v6657 = vpack.c.bf16 %v6465, %v6464
  %v6658 = vpack.c.bf16 %v6467, %v6466
  %v6659 = vpack.c.bf16 %v6469, %v6468
  %v6660 = vpack.c.bf16 %v6471, %v6470
  %v6661 = vpack.c.bf16 %v6473, %v6472
  %v6662 = vpack.c.bf16 %v6475, %v6474
  %v6663 = vpack.c.bf16 %v6477, %v6476
  %v6664 = vpack.c.bf16 %v6479, %v6478
  %v6665 = vpack.c.bf16 %v6481, %v6480
  %v6666 = vpack.c.bf16 %v6483, %v6482
  %v6667 = vpack.c.bf16 %v6485, %v6484
  %v6668 = vpack.c.bf16 %v6487, %v6486
  %v6669 = vpack.c.bf16 %v6489, %v6488
  %v6670 = vpack.c.bf16 %v6491, %v6490
  %v6671 = vpack.c.bf16 %v6493, %v6492
  %v6672 = vpack.c.bf16 %v6495, %v6494
  %v6673 = vpack.c.bf16 %v6497, %v6496
  %v6674 = vpack.c.bf16 %v6499, %v6498
  %v6675 = vpack.c.bf16 %v6501, %v6500
  %v6676 = vpack.c.bf16 %v6503, %v6502
  %v6677 = vpack.c.bf16 %v6505, %v6504
  %v6678 = vpack.c.bf16 %v6507, %v6506
  %v6679 = vpack.c.bf16 %v6509, %v6508
  %v6680 = vpack.c.bf16 %v6511, %v6510
  %v6681 = vpack.c.bf16 %v6513, %v6512
  %v6682 = vpack.c.bf16 %v6515, %v6514
  %v6683 = vpack.c.bf16 %v6517, %v6516
  %v6684 = vpack.c.bf16 %v6519, %v6518
  %v6685 = vpack.c.bf16 %v6521, %v6520
  %v6686 = vpack.c.bf16 %v6523, %v6522
  %v6687 = vpack.c.bf16 %v6525, %v6524
  %v6688 = vpack.c.bf16 %v6527, %v6526
  %v6689 = vpack.c.bf16 %v6529, %v6528
  %v6690 = vpack.c.bf16 %v6531, %v6530
  %v6691 = vpack.c.bf16 %v6533, %v6532
  %v6692 = vpack.c.bf16 %v6535, %v6534
  %v6693 = vpack.c.bf16 %v6537, %v6536
  %v6694 = vpack.c.bf16 %v6539, %v6538
  %v6695 = vpack.c.bf16 %v6541, %v6540
  %v6696 = vpack.c.bf16 %v6543, %v6542
  %v6697 = vpack.c.bf16 %v6545, %v6544
  %v6698 = vpack.c.bf16 %v6547, %v6546
  %v6699 = vpack.c.bf16 %v6549, %v6548
  %v6700 = vpack.c.bf16 %v6551, %v6550
  %v6701 = vpack.c.bf16 %v6553, %v6552
  %v6702 = vpack.c.bf16 %v6555, %v6554
  %v6703 = vpack.c.bf16 %v6557, %v6556
  %v6704 = vpack.c.bf16 %v6559, %v6558
  %v6705 = vpack.c.bf16 %v6561, %v6560
  %v6706 = vpack.c.bf16 %v6563, %v6562
  %v6707 = vpack.c.bf16 %v6565, %v6564
  %v6708 = vpack.c.bf16 %v6567, %v6566
  %v6709 = vpack.c.bf16 %v6569, %v6568
  %v6710 = vpack.c.bf16 %v6571, %v6570
  %v6711 = vpack.c.bf16 %v6573, %v6572
  %v6712 = vpack.c.bf16 %v6575, %v6574
  %v6713 = vpack.c.bf16 %v6577, %v6576
  %v6714 = vpack.c.bf16 %v6579, %v6578
  %v6715 = vpack.c.bf16 %v6581, %v6580
  %v6716 = vpack.c.bf16 %v6583, %v6582
  %v6717 = vpack.c.bf16 %v6585, %v6584
  %v6718 = vpack.c.bf16 %v6587, %v6586
  %v6719 = vpack.c.bf16 %v6589, %v6588
  %v6720 = vpack.c.bf16 %v6591, %v6590
  %v6721 = vpack.c.bf16 %v6593, %v6592
  %v6722 = vpack.c.bf16 %v6595, %v6594
  %v6723 = vpack.c.bf16 %v6597, %v6596
  %v6724 = vpack.c.bf16 %v6599, %v6598
  %v6725 = vpack.c.bf16 %v6601, %v6600
  %v6726 = vpack.c.bf16 %v6603, %v6602
  %v6727 = vpack.c.bf16 %v6605, %v6604
  %v6728 = vpack.c.bf16 %v6607, %v6606
  %v6729 = vpack.c.bf16 %v6609, %v6608
  %v6730 = vpack.c.bf16 %v6611, %v6610
  %v6731 = vpack.c.bf16 %v6613, %v6612
  %v6732 = vpack.c.bf16 %v6615, %v6614
  %v6733 = vpack.c.bf16 %v6617, %v6616
  %v6734 = vpack.c.bf16 %v6619, %v6618
  %v6735 = vpack.c.bf16 %v6621, %v6620
  %v6736 = vpack.c.bf16 %v6623, %v6622
  %v6737 = vpack.c.bf16 %v6625, %v6624
  %v6738 = vpack.c.bf16 %v6627, %v6626
  %v6739 = vpack.c.bf16 %v6629, %v6628
  %v6740 = vpack.c.bf16 %v6631, %v6630
  %v6741 = vpack.c.bf16 %v6633, %v6632
  %v6742 = vpack.c.bf16 %v6635, %v6634
  %v6743 = vpack.c.bf16 %v6637, %v6636
  %v6744 = vpack.c.bf16 %v6639, %v6638
  %v6745 = vpack.c.bf16 %v6641, %v6640
  %v6746 = vpack.c.bf16 %v6643, %v6642
  %v6747 = vpack.c.bf16 %v6645, %v6644
  %v6748 = vpack.c.bf16 %v6647, %v6646
  %v6749 = vpack.c.bf16 %v6649, %v6648
  %v6750 = vld [vmem:[#allocation2] sm:$0xff]
  %v6751 = vld [vmem:[#allocation2 + $0x8] sm:$0xff]
  %v6752 = vld [vmem:[#allocation2 + $0x10] sm:$0xff]
  %v6753 = vld [vmem:[#allocation2 + $0x18] sm:$0xff]
  %v6754 = vld [vmem:[#allocation2 + $0x20] sm:$0xff]
  %v6755 = vld [vmem:[#allocation2 + $0x28] sm:$0xff]
  %v6756 = vld [vmem:[#allocation2 + $0x30] sm:$0xf]
  %v6757 = vld [vmem:[#allocation2 + $0x34] sm:$0xff]
  %v6758 = vld [vmem:[#allocation2 + $0x3c] sm:$0xff]
  %v6759 = vld [vmem:[#allocation2 + $0x44] sm:$0xff]
  %v6760 = vld [vmem:[#allocation2 + $0x4c] sm:$0xff]
  %v6761 = vld [vmem:[#allocation2 + $0x54] sm:$0xff]
  %v6762 = vld [vmem:[#allocation2 + $0x5c] sm:$0xff]
  %v6763 = vld [vmem:[#allocation2 + $0x64] sm:$0xf]
  %v6764 = vld [vmem:[#allocation2 + $0x68] sm:$0xff]
  %v6765 = vld [vmem:[#allocation2 + $0x70] sm:$0xff]
  %v6766 = vld [vmem:[#allocation2 + $0x78] sm:$0xff]
  %v6767 = vld [vmem:[#allocation2 + $0x80] sm:$0xff]
  %v6768 = vld [vmem:[#allocation2 + $0x88] sm:$0xff]
  %v6769 = vld [vmem:[#allocation2 + $0x90] sm:$0xff]
  %v6770 = vld [vmem:[#allocation2 + $0x98] sm:$0xf]
  %v6771 = vld [vmem:[#allocation2 + $0x9c] sm:$0xff]
  %v6772 = vld [vmem:[#allocation2 + $0xa4] sm:$0xff]
  %v6773 = vld [vmem:[#allocation2 + $0xac] sm:$0xff]
  %v6774 = vld [vmem:[#allocation2 + $0xb4] sm:$0xff]
  %v6775 = vld [vmem:[#allocation2 + $0xbc] sm:$0xff]
  %v6776 = vld [vmem:[#allocation2 + $0xc4] sm:$0xff]
  %v6777 = vld [vmem:[#allocation2 + $0xcc] sm:$0xf]
  %v6778 = vld [vmem:[#allocation2 + $0xd0] sm:$0xff]
  %v6779 = vld [vmem:[#allocation2 + $0xd8] sm:$0xff]
  %v6780 = vld [vmem:[#allocation2 + $0xe0] sm:$0xff]
  %v6781 = vld [vmem:[#allocation2 + $0xe8] sm:$0xff]
  %v6782 = vld [vmem:[#allocation2 + $0xf0] sm:$0xff]
  %v6783 = vld [vmem:[#allocation2 + $0xf8] sm:$0xff]
  %v6784 = vld [vmem:[#allocation2 + $0x100] sm:$0xf]
  %v6785 = vld [vmem:[#allocation2 + $0x104] sm:$0xff]
  %v6786 = vld [vmem:[#allocation2 + $0x10c] sm:$0xff]
  %v6787 = vld [vmem:[#allocation2 + $0x114] sm:$0xff]
  %v6788 = vld [vmem:[#allocation2 + $0x11c] sm:$0xff]
  %v6789 = vld [vmem:[#allocation2 + $0x124] sm:$0xff]
  %v6790 = vld [vmem:[#allocation2 + $0x12c] sm:$0xff]
  %v6791 = vld [vmem:[#allocation2 + $0x134] sm:$0xf]
  %v6792 = vld [vmem:[#allocation2 + $0x138] sm:$0xff]
  %v6793 = vld [vmem:[#allocation2 + $0x140] sm:$0xff]
  %v6794 = vld [vmem:[#allocation2 + $0x148] sm:$0xff]
  %v6795 = vld [vmem:[#allocation2 + $0x150] sm:$0xff]
  %v6796 = vld [vmem:[#allocation2 + $0x158] sm:$0xff]
  %v6797 = vld [vmem:[#allocation2 + $0x160] sm:$0xff]
  %v6798 = vld [vmem:[#allocation2 + $0x168] sm:$0xf]
  %v6799 = vld [vmem:[#allocation2 + $0x16c] sm:$0xff]
  %v6800 = vld [vmem:[#allocation2 + $0x174] sm:$0xff]
  %v6801 = vld [vmem:[#allocation2 + $0x17c] sm:$0xff]
  %v6802 = vld [vmem:[#allocation2 + $0x184] sm:$0xff]
  %v6803 = vld [vmem:[#allocation2 + $0x18c] sm:$0xff]
  %v6804 = vld [vmem:[#allocation2 + $0x194] sm:$0xff]
  %v6805 = vld [vmem:[#allocation2 + $0x19c] sm:$0xf]
  %v6806 = vld [vmem:[#allocation2 + $0x1a0] sm:$0xff]
  %v6807 = vld [vmem:[#allocation2 + $0x1a8] sm:$0xff]
  %v6808 = vld [vmem:[#allocation2 + $0x1b0] sm:$0xff]
  %v6809 = vld [vmem:[#allocation2 + $0x1b8] sm:$0xff]
  %v6810 = vld [vmem:[#allocation2 + $0x1c0] sm:$0xff]
  %v6811 = vld [vmem:[#allocation2 + $0x1c8] sm:$0xff]
  %v6812 = vld [vmem:[#allocation2 + $0x1d0] sm:$0xf]
  %v6813 = vld [vmem:[#allocation2 + $0x1d4] sm:$0xff]
  %v6814 = vld [vmem:[#allocation2 + $0x1dc] sm:$0xff]
  %v6815 = vld [vmem:[#allocation2 + $0x1e4] sm:$0xff]
  %v6816 = vld [vmem:[#allocation2 + $0x1ec] sm:$0xff]
  %v6817 = vld [vmem:[#allocation2 + $0x1f4] sm:$0xff]
  %v6818 = vld [vmem:[#allocation2 + $0x1fc] sm:$0xff]
  %v6819 = vld [vmem:[#allocation2 + $0x204] sm:$0xf]
  %v6820 = vld [vmem:[#allocation2 + $0x208] sm:$0xff]
  %v6821 = vld [vmem:[#allocation2 + $0x210] sm:$0xff]
  %v6822 = vld [vmem:[#allocation2 + $0x218] sm:$0xff]
  %v6823 = vld [vmem:[#allocation2 + $0x220] sm:$0xff]
  %v6824 = vld [vmem:[#allocation2 + $0x228] sm:$0xff]
  %v6825 = vld [vmem:[#allocation2 + $0x230] sm:$0xff]
  %v6826 = vld [vmem:[#allocation2 + $0x238] sm:$0xf]
  %v6827 = vld [vmem:[#allocation2 + $0x23c] sm:$0xff]
  %v6828 = vld [vmem:[#allocation2 + $0x244] sm:$0xff]
  %v6829 = vld [vmem:[#allocation2 + $0x24c] sm:$0xff]
  %v6830 = vld [vmem:[#allocation2 + $0x254] sm:$0xff]
  %v6831 = vld [vmem:[#allocation2 + $0x25c] sm:$0xff]
  %v6832 = vld [vmem:[#allocation2 + $0x264] sm:$0xff]
  %v6833 = vld [vmem:[#allocation2 + $0x26c] sm:$0xf]
  %v6834 = vld [vmem:[#allocation2 + $0x270] sm:$0xff]
  %v6835 = vld [vmem:[#allocation2 + $0x278] sm:$0xff]
  %v6836 = vld [vmem:[#allocation2 + $0x280] sm:$0xff]
  %v6837 = vld [vmem:[#allocation2 + $0x288] sm:$0xff]
  %v6838 = vld [vmem:[#allocation2 + $0x290] sm:$0xff]
  %v6839 = vld [vmem:[#allocation2 + $0x298] sm:$0xff]
  %v6840 = vld [vmem:[#allocation2 + $0x2a0] sm:$0xf]
  %v6841 = vld [vmem:[#allocation2 + $0x2a4] sm:$0xff]
  %v6842 = vld [vmem:[#allocation2 + $0x2ac] sm:$0xff]
  %v6843 = vld [vmem:[#allocation2 + $0x2b4] sm:$0xff]
  %v6844 = vld [vmem:[#allocation2 + $0x2bc] sm:$0xff]
  %v6845 = vld [vmem:[#allocation2 + $0x2c4] sm:$0xff]
  %v6846 = vld [vmem:[#allocation2 + $0x2cc] sm:$0xff]
  %v6847 = vld [vmem:[#allocation2 + $0x2d4] sm:$0xf]
  %v6848 = vld [vmem:[#allocation2 + $0x2d8] sm:$0xff]
  %v6849 = vld [vmem:[#allocation2 + $0x2e0] sm:$0xff]
  %v6850 = vld [vmem:[#allocation2 + $0x2e8] sm:$0xff]
  %v6851 = vld [vmem:[#allocation2 + $0x2f0] sm:$0xff]
  %v6852 = vld [vmem:[#allocation2 + $0x2f8] sm:$0xff]
  %v6853 = vld [vmem:[#allocation2 + $0x300] sm:$0xff]
  %v6854 = vld [vmem:[#allocation2 + $0x308] sm:$0xf]
  %v6855 = vld [vmem:[#allocation2 + $0x30c] sm:$0xff]
  %v6856 = vld [vmem:[#allocation2 + $0x314] sm:$0xff]
  %v6857 = vld [vmem:[#allocation2 + $0x31c] sm:$0xff]
  %v6858 = vld [vmem:[#allocation2 + $0x324] sm:$0xff]
  %v6859 = vld [vmem:[#allocation2 + $0x32c] sm:$0xff]
  %v6860 = vld [vmem:[#allocation2 + $0x334] sm:$0xff]
  %v6861 = vld [vmem:[#allocation2 + $0x33c] sm:$0xf]
  %v6862 = vld [vmem:[#allocation2 + $0x340] sm:$0xff]
  %v6863 = vld [vmem:[#allocation2 + $0x348] sm:$0xff]
  %v6864 = vld [vmem:[#allocation2 + $0x350] sm:$0xff]
  %v6865 = vld [vmem:[#allocation2 + $0x358] sm:$0xff]
  %v6866 = vld [vmem:[#allocation2 + $0x360] sm:$0xff]
  %v6867 = vld [vmem:[#allocation2 + $0x368] sm:$0xff]
  %v6868 = vld [vmem:[#allocation2 + $0x370] sm:$0xf]
  %v6869 = vld [vmem:[#allocation2 + $0x374] sm:$0xff]
  %v6870 = vld [vmem:[#allocation2 + $0x37c] sm:$0xff]
  %v6871 = vld [vmem:[#allocation2 + $0x384] sm:$0xff]
  %v6872 = vld [vmem:[#allocation2 + $0x38c] sm:$0xff]
  %v6873 = vld [vmem:[#allocation2 + $0x394] sm:$0xff]
  %v6874 = vld [vmem:[#allocation2 + $0x39c] sm:$0xff]
  %v6875 = vld [vmem:[#allocation2 + $0x3a4] sm:$0xf]
  %v6876 = vld [vmem:[#allocation2 + $0x3a8] sm:$0xff]
  %v6877 = vld [vmem:[#allocation2 + $0x3b0] sm:$0xff]
  %v6878 = vld [vmem:[#allocation2 + $0x3b8] sm:$0xff]
  %v6879 = vld [vmem:[#allocation2 + $0x3c0] sm:$0xff]
  %v6880 = vld [vmem:[#allocation2 + $0x3c8] sm:$0xff]
  %v6881 = vld [vmem:[#allocation2 + $0x3d0] sm:$0xff]
  %v6882 = vld [vmem:[#allocation2 + $0x3d8] sm:$0xf]
  %v6883 = vld [vmem:[#allocation2 + $0x3dc] sm:$0xff]
  %v6884 = vld [vmem:[#allocation2 + $0x3e4] sm:$0xff]
  %v6885 = vld [vmem:[#allocation2 + $0x3ec] sm:$0xff]
  %v6886 = vld [vmem:[#allocation2 + $0x3f4] sm:$0xff]
  %v6887 = vld [vmem:[#allocation2 + $0x3fc] sm:$0xff]
  %v6888 = vld [vmem:[#allocation2 + $0x404] sm:$0xff]
  %v6889 = vld [vmem:[#allocation2 + $0x40c] sm:$0xf]
  %v6890 = vld [vmem:[#allocation2 + $0x410] sm:$0xff]
  %v6891 = vld [vmem:[#allocation2 + $0x418] sm:$0xff]
  %v6892 = vld [vmem:[#allocation2 + $0x420] sm:$0xff]
  %v6893 = vld [vmem:[#allocation2 + $0x428] sm:$0xff]
  %v6894 = vld [vmem:[#allocation2 + $0x430] sm:$0xff]
  %v6895 = vld [vmem:[#allocation2 + $0x438] sm:$0xff]
  %v6896 = vld [vmem:[#allocation2 + $0x440] sm:$0xf]
  %v6897 = vld [vmem:[#allocation2 + $0x444] sm:$0xff]
  %v6898 = vld [vmem:[#allocation2 + $0x44c] sm:$0xff]
  %v6899 = vld [vmem:[#allocation2 + $0x454] sm:$0xff]
  %v6900 = vld [vmem:[#allocation2 + $0x45c] sm:$0xff]
  %v6901 = vld [vmem:[#allocation2 + $0x464] sm:$0xff]
  %v6902 = vld [vmem:[#allocation2 + $0x46c] sm:$0xff]
  %v6903 = vld [vmem:[#allocation2 + $0x474] sm:$0xf]
  %v6904 = vld [vmem:[#allocation2 + $0x478] sm:$0xff]
  %v6905 = vld [vmem:[#allocation2 + $0x480] sm:$0xff]
  %v6906 = vld [vmem:[#allocation2 + $0x488] sm:$0xff]
  %v6907 = vld [vmem:[#allocation2 + $0x490] sm:$0xff]
  %v6908 = vld [vmem:[#allocation2 + $0x498] sm:$0xff]
  %v6909 = vld [vmem:[#allocation2 + $0x4a0] sm:$0xff]
  %v6910 = vld [vmem:[#allocation2 + $0x4a8] sm:$0xf]
  %v6911 = vld [vmem:[#allocation2 + $0x4ac] sm:$0xff]
  %v6912 = vld [vmem:[#allocation2 + $0x4b4] sm:$0xff]
  %v6913 = vld [vmem:[#allocation2 + $0x4bc] sm:$0xff]
  %v6914 = vld [vmem:[#allocation2 + $0x4c4] sm:$0xff]
  %v6915 = vld [vmem:[#allocation2 + $0x4cc] sm:$0xff]
  %v6916 = vld [vmem:[#allocation2 + $0x4d4] sm:$0xff]
  %v6917 = vld [vmem:[#allocation2 + $0x4dc] sm:$0xf]
  %v6918 = vld [vmem:[#allocation2 + $0x4e0] sm:$0xff]
  %v6919 = vld [vmem:[#allocation2 + $0x4e8] sm:$0xff]
  %v6920 = vld [vmem:[#allocation2 + $0x4f0] sm:$0xff]
  %v6921 = vld [vmem:[#allocation2 + $0x4f8] sm:$0xff]
  %v6922 = vld [vmem:[#allocation2 + $0x500] sm:$0xff]
  %v6923 = vld [vmem:[#allocation2 + $0x508] sm:$0xff]
  %v6924 = vld [vmem:[#allocation2 + $0x510] sm:$0xf]
  %v6925 = vld [vmem:[#allocation2 + $0x514] sm:$0xff]
  %v6926 = vld [vmem:[#allocation2 + $0x51c] sm:$0xff]
  %v6927 = vld [vmem:[#allocation2 + $0x524] sm:$0xff]
  %v6928 = vld [vmem:[#allocation2 + $0x52c] sm:$0xff]
  %v6929 = vld [vmem:[#allocation2 + $0x534] sm:$0xff]
  %v6930 = vld [vmem:[#allocation2 + $0x53c] sm:$0xff]
  %v6931 = vld [vmem:[#allocation2 + $0x544] sm:$0xf]
  %v6932 = vld [vmem:[#allocation2 + $0x548] sm:$0xff]
  %v6933 = vld [vmem:[#allocation2 + $0x550] sm:$0xff]
  %v6934 = vld [vmem:[#allocation2 + $0x558] sm:$0xff]
  %v6935 = vld [vmem:[#allocation2 + $0x560] sm:$0xff]
  %v6936 = vld [vmem:[#allocation2 + $0x568] sm:$0xff]
  %v6937 = vld [vmem:[#allocation2 + $0x570] sm:$0xff]
  %v6938 = vld [vmem:[#allocation2 + $0x578] sm:$0xf]
  %v6939 = vld [vmem:[#allocation2 + $0x57c] sm:$0xff]
  %v6940 = vld [vmem:[#allocation2 + $0x584] sm:$0xff]
  %v6941 = vld [vmem:[#allocation2 + $0x58c] sm:$0xff]
  %v6942 = vld [vmem:[#allocation2 + $0x594] sm:$0xff]
  %v6943 = vld [vmem:[#allocation2 + $0x59c] sm:$0xff]
  %v6944 = vld [vmem:[#allocation2 + $0x5a4] sm:$0xff]
  %v6945 = vld [vmem:[#allocation2 + $0x5ac] sm:$0xf]
  %v6946 = vld [vmem:[#allocation2 + $0x5b0] sm:$0xff]
  %v6947 = vld [vmem:[#allocation2 + $0x5b8] sm:$0xff]
  %v6948 = vld [vmem:[#allocation2 + $0x5c0] sm:$0xff]
  %v6949 = vld [vmem:[#allocation2 + $0x5c8] sm:$0xff]
  %v6950 = vld [vmem:[#allocation2 + $0x5d0] sm:$0xff]
  %v6951 = vld [vmem:[#allocation2 + $0x5d8] sm:$0xff]
  %v6952 = vld [vmem:[#allocation2 + $0x5e0] sm:$0xf]
  %v6953 = vld [vmem:[#allocation2 + $0x5e4] sm:$0xff]
  %v6954 = vld [vmem:[#allocation2 + $0x5ec] sm:$0xff]
  %v6955 = vld [vmem:[#allocation2 + $0x5f4] sm:$0xff]
  %v6956 = vld [vmem:[#allocation2 + $0x5fc] sm:$0xff]
  %v6957 = vld [vmem:[#allocation2 + $0x604] sm:$0xff]
  %v6958 = vld [vmem:[#allocation2 + $0x60c] sm:$0xff]
  %v6959 = vld [vmem:[#allocation2 + $0x614] sm:$0xf]
  %v6960 = vld [vmem:[#allocation2 + $0x618] sm:$0xff]
  %v6961 = vld [vmem:[#allocation2 + $0x620] sm:$0xff]
  %v6962 = vld [vmem:[#allocation2 + $0x628] sm:$0xff]
  %v6963 = vld [vmem:[#allocation2 + $0x630] sm:$0xff]
  %v6964 = vld [vmem:[#allocation2 + $0x638] sm:$0xff]
  %v6965 = vld [vmem:[#allocation2 + $0x640] sm:$0xff]
  %v6966 = vld [vmem:[#allocation2 + $0x648] sm:$0xf]
  %v6967 = vld [vmem:[#allocation2 + $0x64c] sm:$0xff]
  %v6968 = vld [vmem:[#allocation2 + $0x654] sm:$0xff]
  %v6969 = vld [vmem:[#allocation2 + $0x65c] sm:$0xff]
  %v6970 = vld [vmem:[#allocation2 + $0x664] sm:$0xff]
  %v6971 = vld [vmem:[#allocation2 + $0x66c] sm:$0xff]
  %v6972 = vld [vmem:[#allocation2 + $0x674] sm:$0xff]
  %v6973 = vld [vmem:[#allocation2 + $0x67c] sm:$0xf]
  %v6974 = vld [vmem:[#allocation2 + $0x680] sm:$0xff]
  %v6975 = vld [vmem:[#allocation2 + $0x688] sm:$0xff]
  %v6976 = vld [vmem:[#allocation2 + $0x690] sm:$0xff]
  %v6977 = vld [vmem:[#allocation2 + $0x698] sm:$0xff]
  %v6978 = vld [vmem:[#allocation2 + $0x6a0] sm:$0xff]
  %v6979 = vld [vmem:[#allocation2 + $0x6a8] sm:$0xff]
  %v6980 = vld [vmem:[#allocation2 + $0x6b0] sm:$0xf]
  %v6981 = vld [vmem:[#allocation2 + $0x6b4] sm:$0xff]
  %v6982 = vld [vmem:[#allocation2 + $0x6bc] sm:$0xff]
  %v6983 = vld [vmem:[#allocation2 + $0x6c4] sm:$0xff]
  %v6984 = vld [vmem:[#allocation2 + $0x6cc] sm:$0xff]
  %v6985 = vld [vmem:[#allocation2 + $0x6d4] sm:$0xff]
  %v6986 = vld [vmem:[#allocation2 + $0x6dc] sm:$0xff]
  %v6987 = vld [vmem:[#allocation2 + $0x6e4] sm:$0xf]
  %v6988 = vld [vmem:[#allocation2 + $0x6e8] sm:$0xff]
  %v6989 = vld [vmem:[#allocation2 + $0x6f0] sm:$0xff]
  %v6990 = vld [vmem:[#allocation2 + $0x6f8] sm:$0xff]
  %v6991 = vld [vmem:[#allocation2 + $0x700] sm:$0xff]
  %v6992 = vld [vmem:[#allocation2 + $0x708] sm:$0xff]
  %v6993 = vld [vmem:[#allocation2 + $0x710] sm:$0xff]
  %v6994 = vld [vmem:[#allocation2 + $0x718] sm:$0xf]
  %v6995 = vld [vmem:[#allocation2 + $0x71c] sm:$0xff]
  %v6996 = vld [vmem:[#allocation2 + $0x724] sm:$0xff]
  %v6997 = vld [vmem:[#allocation2 + $0x72c] sm:$0xff]
  %v6998 = vld [vmem:[#allocation2 + $0x734] sm:$0xff]
  %v6999 = vld [vmem:[#allocation2 + $0x73c] sm:$0xff]
  %v7000 = vld [vmem:[#allocation2 + $0x744] sm:$0xff]
  %v7001 = vld [vmem:[#allocation2 + $0x74c] sm:$0xf]
  %v7002 = vld [vmem:[#allocation2 + $0x750] sm:$0xff]
  %v7003 = vld [vmem:[#allocation2 + $0x758] sm:$0xff]
  %v7004 = vld [vmem:[#allocation2 + $0x760] sm:$0xff]
  %v7005 = vld [vmem:[#allocation2 + $0x768] sm:$0xff]
  %v7006 = vld [vmem:[#allocation2 + $0x770] sm:$0xff]
  %v7007 = vld [vmem:[#allocation2 + $0x778] sm:$0xff]
  %v7008 = vld [vmem:[#allocation2 + $0x780] sm:$0xf]
  %v7009 = vld [vmem:[#allocation2 + $0x784] sm:$0xff]
  %v7010 = vld [vmem:[#allocation2 + $0x78c] sm:$0xff]
  %v7011 = vld [vmem:[#allocation2 + $0x794] sm:$0xff]
  %v7012 = vld [vmem:[#allocation2 + $0x79c] sm:$0xff]
  %v7013 = vld [vmem:[#allocation2 + $0x7a4] sm:$0xff]
  %v7014 = vld [vmem:[#allocation2 + $0x7ac] sm:$0xff]
  %v7015 = vld [vmem:[#allocation2 + $0x7b4] sm:$0xf]
  %v7016 = vld [vmem:[#allocation2 + $0x7b8] sm:$0xff]
  %v7017 = vld [vmem:[#allocation2 + $0x7c0] sm:$0xff]
  %v7018 = vld [vmem:[#allocation2 + $0x7c8] sm:$0xff]
  %v7019 = vld [vmem:[#allocation2 + $0x7d0] sm:$0xff]
  %v7020 = vld [vmem:[#allocation2 + $0x7d8] sm:$0xff]
  %v7021 = vld [vmem:[#allocation2 + $0x7e0] sm:$0xff]
  %v7022 = vld [vmem:[#allocation2 + $0x7e8] sm:$0xf]
  %v7023 = vld [vmem:[#allocation2 + $0x7ec] sm:$0xff]
  %v7024 = vld [vmem:[#allocation2 + $0x7f4] sm:$0xff]
  %v7025 = vld [vmem:[#allocation2 + $0x7fc] sm:$0xff]
  %v7026 = vld [vmem:[#allocation2 + $0x804] sm:$0xff]
  %v7027 = vld [vmem:[#allocation2 + $0x80c] sm:$0xff]
  %v7028 = vld [vmem:[#allocation2 + $0x814] sm:$0xff]
  %v7029 = vld [vmem:[#allocation2 + $0x81c] sm:$0xf]
  %v7030 = vld [vmem:[#allocation2 + $0x820] sm:$0xff]
  %v7031 = vld [vmem:[#allocation2 + $0x828] sm:$0xff]
  %v7032 = vld [vmem:[#allocation2 + $0x830] sm:$0xff]
  %v7033 = vld [vmem:[#allocation2 + $0x838] sm:$0xff]
  %v7034 = vld [vmem:[#allocation2 + $0x840] sm:$0xff]
  %v7035 = vld [vmem:[#allocation2 + $0x848] sm:$0xff]
  %v7036 = vld [vmem:[#allocation2 + $0x850] sm:$0xf]
  %v7037 = vld [vmem:[#allocation2 + $0x854] sm:$0xff]
  %v7038 = vld [vmem:[#allocation2 + $0x85c] sm:$0xff]
  %v7039 = vld [vmem:[#allocation2 + $0x864] sm:$0xff]
  %v7040 = vld [vmem:[#allocation2 + $0x86c] sm:$0xff]
  %v7041 = vld [vmem:[#allocation2 + $0x874] sm:$0xff]
  %v7042 = vld [vmem:[#allocation2 + $0x87c] sm:$0xff]
  %v7043 = vld [vmem:[#allocation2 + $0x884] sm:$0xf]
  %v7044 = vld [vmem:[#allocation2 + $0x888] sm:$0xff]
  %v7045 = vld [vmem:[#allocation2 + $0x890] sm:$0xff]
  %v7046 = vld [vmem:[#allocation2 + $0x898] sm:$0xff]
  %v7047 = vld [vmem:[#allocation2 + $0x8a0] sm:$0xff]
  %v7048 = vld [vmem:[#allocation2 + $0x8a8] sm:$0xff]
  %v7049 = vld [vmem:[#allocation2 + $0x8b0] sm:$0xff]
  %v7050 = vld [vmem:[#allocation2 + $0x8b8] sm:$0xf]
  %v7051 = vld [vmem:[#allocation2 + $0x8bc] sm:$0xff]
  %v7052 = vld [vmem:[#allocation2 + $0x8c4] sm:$0xff]
  %v7053 = vld [vmem:[#allocation2 + $0x8cc] sm:$0xff]
  %v7054 = vld [vmem:[#allocation2 + $0x8d4] sm:$0xff]
  %v7055 = vld [vmem:[#allocation2 + $0x8dc] sm:$0xff]
  %v7056 = vld [vmem:[#allocation2 + $0x8e4] sm:$0xff]
  %v7057 = vld [vmem:[#allocation2 + $0x8ec] sm:$0xf]
  %v7058 = vld [vmem:[#allocation2 + $0x8f0] sm:$0xff]
  %v7059 = vld [vmem:[#allocation2 + $0x8f8] sm:$0xff]
  %v7060 = vld [vmem:[#allocation2 + $0x900] sm:$0xff]
  %v7061 = vld [vmem:[#allocation2 + $0x908] sm:$0xff]
  %v7062 = vld [vmem:[#allocation2 + $0x910] sm:$0xff]
  %v7063 = vld [vmem:[#allocation2 + $0x918] sm:$0xff]
  %v7064 = vld [vmem:[#allocation2 + $0x920] sm:$0xf]
  %v7065 = vld [vmem:[#allocation2 + $0x924] sm:$0xff]
  %v7066 = vld [vmem:[#allocation2 + $0x92c] sm:$0xff]
  %v7067 = vld [vmem:[#allocation2 + $0x934] sm:$0xff]
  %v7068 = vld [vmem:[#allocation2 + $0x93c] sm:$0xff]
  %v7069 = vld [vmem:[#allocation2 + $0x944] sm:$0xff]
  %v7070 = vld [vmem:[#allocation2 + $0x94c] sm:$0xff]
  %v7071 = vld [vmem:[#allocation2 + $0x954] sm:$0xf]
  %v7072 = vld [vmem:[#allocation2 + $0x958] sm:$0xff]
  %v7073 = vld [vmem:[#allocation2 + $0x960] sm:$0xff]
  %v7074 = vld [vmem:[#allocation2 + $0x968] sm:$0xff]
  %v7075 = vld [vmem:[#allocation2 + $0x970] sm:$0xff]
  %v7076 = vld [vmem:[#allocation2 + $0x978] sm:$0xff]
  %v7077 = vld [vmem:[#allocation2 + $0x980] sm:$0xff]
  %v7078 = vld [vmem:[#allocation2 + $0x988] sm:$0xf]
  %v7079 = vld [vmem:[#allocation2 + $0x98c] sm:$0xff]
  %v7080 = vld [vmem:[#allocation2 + $0x994] sm:$0xff]
  %v7081 = vld [vmem:[#allocation2 + $0x99c] sm:$0xff]
  %v7082 = vld [vmem:[#allocation2 + $0x9a4] sm:$0xff]
  %v7083 = vld [vmem:[#allocation2 + $0x9ac] sm:$0xff]
  %v7084 = vld [vmem:[#allocation2 + $0x9b4] sm:$0xff]
  %v7085 = vld [vmem:[#allocation2 + $0x9bc] sm:$0xf]
  %v7086 = vld [vmem:[#allocation2 + $0x9c0] sm:$0xff]
  %v7087 = vld [vmem:[#allocation2 + $0x9c8] sm:$0xff]
  %v7088 = vld [vmem:[#allocation2 + $0x9d0] sm:$0xff]
  %v7089 = vld [vmem:[#allocation2 + $0x9d8] sm:$0xff]
  %v7090 = vld [vmem:[#allocation2 + $0x9e0] sm:$0xff]
  %v7091 = vld [vmem:[#allocation2 + $0x9e8] sm:$0xff]
  %v7092 = vld [vmem:[#allocation2 + $0x9f0] sm:$0xf]
  %v7093 = vld [vmem:[#allocation2 + $0x9f4] sm:$0xff]
  %v7094 = vld [vmem:[#allocation2 + $0x9fc] sm:$0xff]
  %v7095 = vld [vmem:[#allocation2 + $0xa04] sm:$0xff]
  %v7096 = vld [vmem:[#allocation2 + $0xa0c] sm:$0xff]
  %v7097 = vld [vmem:[#allocation2 + $0xa14] sm:$0xff]
  %v7098 = vld [vmem:[#allocation2 + $0xa1c] sm:$0xff]
  %v7099 = vld [vmem:[#allocation2 + $0xa24] sm:$0xf]
  %v7100 = vld [vmem:[#allocation2 + $0xa28] sm:$0xff]
  %v7101 = vld [vmem:[#allocation2 + $0xa30] sm:$0xff]
  %v7102 = vld [vmem:[#allocation2 + $0xa38] sm:$0xff]
  %v7103 = vld [vmem:[#allocation2 + $0xa40] sm:$0xff]
  %v7104 = vld [vmem:[#allocation2 + $0xa48] sm:$0xff]
  %v7105 = vld [vmem:[#allocation2 + $0xa50] sm:$0xff]
  %v7106 = vld [vmem:[#allocation2 + $0xa58] sm:$0xf]
  %v7107 = vld [vmem:[#allocation2 + $0xa5c] sm:$0xff]
  %v7108 = vld [vmem:[#allocation2 + $0xa64] sm:$0xff]
  %v7109 = vld [vmem:[#allocation2 + $0xa6c] sm:$0xff]
  %v7110 = vld [vmem:[#allocation2 + $0xa74] sm:$0xff]
  %v7111 = vld [vmem:[#allocation2 + $0xa7c] sm:$0xff]
  %v7112 = vld [vmem:[#allocation2 + $0xa84] sm:$0xff]
  %v7113 = vld [vmem:[#allocation2 + $0xa8c] sm:$0xf]
  %v7114 = vld [vmem:[#allocation2 + $0xa90] sm:$0xff]
  %v7115 = vld [vmem:[#allocation2 + $0xa98] sm:$0xff]
  %v7116 = vld [vmem:[#allocation2 + $0xaa0] sm:$0xff]
  %v7117 = vld [vmem:[#allocation2 + $0xaa8] sm:$0xff]
  %v7118 = vld [vmem:[#allocation2 + $0xab0] sm:$0xff]
  %v7119 = vld [vmem:[#allocation2 + $0xab8] sm:$0xff]
  %v7120 = vld [vmem:[#allocation2 + $0xac0] sm:$0xf]
  %v7121 = vld [vmem:[#allocation2 + $0xac4] sm:$0xff]
  %v7122 = vld [vmem:[#allocation2 + $0xacc] sm:$0xff]
  %v7123 = vld [vmem:[#allocation2 + $0xad4] sm:$0xff]
  %v7124 = vld [vmem:[#allocation2 + $0xadc] sm:$0xff]
  %v7125 = vld [vmem:[#allocation2 + $0xae4] sm:$0xff]
  %v7126 = vld [vmem:[#allocation2 + $0xaec] sm:$0xff]
  %v7127 = vld [vmem:[#allocation2 + $0xaf4] sm:$0xf]
  %v7128 = vld [vmem:[#allocation2 + $0xaf8] sm:$0xff]
  %v7129 = vld [vmem:[#allocation2 + $0xb00] sm:$0xff]
  %v7130 = vld [vmem:[#allocation2 + $0xb08] sm:$0xff]
  %v7131 = vld [vmem:[#allocation2 + $0xb10] sm:$0xff]
  %v7132 = vld [vmem:[#allocation2 + $0xb18] sm:$0xff]
  %v7133 = vld [vmem:[#allocation2 + $0xb20] sm:$0xff]
  %v7134 = vld [vmem:[#allocation2 + $0xb28] sm:$0xf]
  %v7135 = vld [vmem:[#allocation2 + $0xb2c] sm:$0xff]
  %v7136 = vld [vmem:[#allocation2 + $0xb34] sm:$0xff]
  %v7137 = vld [vmem:[#allocation2 + $0xb3c] sm:$0xff]
  %v7138 = vld [vmem:[#allocation2 + $0xb44] sm:$0xff]
  %v7139 = vld [vmem:[#allocation2 + $0xb4c] sm:$0xff]
  %v7140 = vld [vmem:[#allocation2 + $0xb54] sm:$0xff]
  %v7141 = vld [vmem:[#allocation2 + $0xb5c] sm:$0xf]
  %v7142 = vld [vmem:[#allocation2 + $0xb60] sm:$0xff]
  %v7143 = vld [vmem:[#allocation2 + $0xb68] sm:$0xff]
  %v7144 = vld [vmem:[#allocation2 + $0xb70] sm:$0xff]
  %v7145 = vld [vmem:[#allocation2 + $0xb78] sm:$0xff]
  %v7146 = vld [vmem:[#allocation2 + $0xb80] sm:$0xff]
  %v7147 = vld [vmem:[#allocation2 + $0xb88] sm:$0xff]
  %v7148 = vld [vmem:[#allocation2 + $0xb90] sm:$0xf]
  %v7149 = vld [vmem:[#allocation2 + $0xb94] sm:$0xff]
  %v7150 = vld [vmem:[#allocation2 + $0xb9c] sm:$0xff]
  %v7151 = vld [vmem:[#allocation2 + $0xba4] sm:$0xff]
  %v7152 = vld [vmem:[#allocation2 + $0xbac] sm:$0xff]
  %v7153 = vld [vmem:[#allocation2 + $0xbb4] sm:$0xff]
  %v7154 = vld [vmem:[#allocation2 + $0xbbc] sm:$0xff]
  %v7155 = vld [vmem:[#allocation2 + $0xbc4] sm:$0xf]
  %v7156 = vld [vmem:[#allocation2 + $0xbc8] sm:$0xff]
  %v7157 = vld [vmem:[#allocation2 + $0xbd0] sm:$0xff]
  %v7158 = vld [vmem:[#allocation2 + $0xbd8] sm:$0xff]
  %v7159 = vld [vmem:[#allocation2 + $0xbe0] sm:$0xff]
  %v7160 = vld [vmem:[#allocation2 + $0xbe8] sm:$0xff]
  %v7161 = vld [vmem:[#allocation2 + $0xbf0] sm:$0xff]
  %v7162 = vld [vmem:[#allocation2 + $0xbf8] sm:$0xf]
  %v7163 = vld [vmem:[#allocation2 + $0xbfc] sm:$0xff]
  %v7164 = vld [vmem:[#allocation2 + $0xc04] sm:$0xff]
  %v7165 = vld [vmem:[#allocation2 + $0xc0c] sm:$0xff]
  %v7166 = vld [vmem:[#allocation2 + $0xc14] sm:$0xff]
  %v7167 = vld [vmem:[#allocation2 + $0xc1c] sm:$0xff]
  %v7168 = vld [vmem:[#allocation2 + $0xc24] sm:$0xff]
  %v7169 = vld [vmem:[#allocation2 + $0xc2c] sm:$0xf]
  %v7170 = vld [vmem:[#allocation2 + $0xc30] sm:$0xff]
  %v7171 = vld [vmem:[#allocation2 + $0xc38] sm:$0xff]
  %v7172 = vld [vmem:[#allocation2 + $0xc40] sm:$0xff]
  %v7173 = vld [vmem:[#allocation2 + $0xc48] sm:$0xff]
  %v7174 = vld [vmem:[#allocation2 + $0xc50] sm:$0xff]
  %v7175 = vld [vmem:[#allocation2 + $0xc58] sm:$0xff]
  %v7176 = vld [vmem:[#allocation2 + $0xc60] sm:$0xf]
  %v7177 = vld [vmem:[#allocation2 + $0xc64] sm:$0xff]
  %v7178 = vld [vmem:[#allocation2 + $0xc6c] sm:$0xff]
  %v7179 = vld [vmem:[#allocation2 + $0xc74] sm:$0xff]
  %v7180 = vld [vmem:[#allocation2 + $0xc7c] sm:$0xff]
  %v7181 = vld [vmem:[#allocation2 + $0xc84] sm:$0xff]
  %v7182 = vld [vmem:[#allocation2 + $0xc8c] sm:$0xff]
  %v7183 = vld [vmem:[#allocation2 + $0xc94] sm:$0xf]
  %v7184 = vld [vmem:[#allocation2 + $0xc98] sm:$0xff]
  %v7185 = vld [vmem:[#allocation2 + $0xca0] sm:$0xff]
  %v7186 = vld [vmem:[#allocation2 + $0xca8] sm:$0xff]
  %v7187 = vld [vmem:[#allocation2 + $0xcb0] sm:$0xff]
  %v7188 = vld [vmem:[#allocation2 + $0xcb8] sm:$0xff]
  %v7189 = vld [vmem:[#allocation2 + $0xcc0] sm:$0xff]
  %v7190 = vld [vmem:[#allocation2 + $0xcc8] sm:$0xf]
  %v7191 = vld [vmem:[#allocation2 + $0xccc] sm:$0xff]
  %v7192 = vld [vmem:[#allocation2 + $0xcd4] sm:$0xff]
  %v7193 = vld [vmem:[#allocation2 + $0xcdc] sm:$0xff]
  %v7194 = vld [vmem:[#allocation2 + $0xce4] sm:$0xff]
  %v7195 = vld [vmem:[#allocation2 + $0xcec] sm:$0xff]
  %v7196 = vld [vmem:[#allocation2 + $0xcf4] sm:$0xff]
  %v7197 = vld [vmem:[#allocation2 + $0xcfc] sm:$0xf]
  %v7198 = vld [vmem:[%s8] sm:$0xff]
  %v7199 = vld [vmem:[%s8 + $0x8] sm:$0xff]
  %v7200 = vld [vmem:[%s8 + $0x10] sm:$0xff]
  %v7201 = vld [vmem:[%s8 + $0x18] sm:$0xff]
  %v7202 = vld [vmem:[%s8 + $0x20] sm:$0xff]
  %v7203 = vld [vmem:[%s8 + $0x28] sm:$0xff]
  %v7204 = vld [vmem:[%s8 + $0x30] sm:$0xff]
  %v7205 = vld [vmem:[%s8 + $0x38] sm:$0xff]
  %v7206 = vld [vmem:[%s8 + $0x40] sm:$0xff]
  %v7207 = vld [vmem:[%s8 + $0x48] sm:$0xff]
  %v7208 = vld [vmem:[%s8 + $0x50] sm:$0xff]
  %v7209 = vld [vmem:[%s8 + $0x58] sm:$0xff]
  %v7210 = vld [vmem:[%s8 + $0x60] sm:$0xff]
  %v7211 = vld [vmem:[%s8 + $0x68] sm:$0xff]
  %v7212 = vld [vmem:[%s8 + $0x70] sm:$0xff]
  %v7213 = vld [vmem:[%s8 + $0x78] sm:$0xff]
  %v7214 = vld [vmem:[%s8 + $0x80] sm:$0xff]
  %v7215 = vld [vmem:[%s8 + $0x88] sm:$0xff]
  %v7216 = vld [vmem:[%s8 + $0x90] sm:$0xff]
  %v7217 = vld [vmem:[%s8 + $0x98] sm:$0xff]
  %v7218 = vld [vmem:[%s8 + $0xa0] sm:$0xff]
  %v7219 = vld [vmem:[%s8 + $0xa8] sm:$0xff]
  %v7220 = vld [vmem:[%s8 + $0xb0] sm:$0xff]
  %v7221 = vld [vmem:[%s8 + $0xb8] sm:$0xff]
  %v7222 = vld [vmem:[%s8 + $0xc0] sm:$0xff]
  %v7223 = vld [vmem:[%s8 + $0xc8] sm:$0xff]
  %v7224 = vld [vmem:[%s8 + $0xd0] sm:$0xff]
  %v7225 = vld [vmem:[%s8 + $0xd8] sm:$0xff]
  %v7226 = vld [vmem:[%s8 + $0xe0] sm:$0xff]
  %v7227 = vld [vmem:[%s8 + $0xe8] sm:$0xff]
  %v7228 = vld [vmem:[%s8 + $0xf0] sm:$0xff]
  %v7229 = vld [vmem:[%s8 + $0xf8] sm:$0xff]
  %v7230 = vld [vmem:[%s8 + $0x100] sm:$0xff]
  %v7231 = vld [vmem:[%s8 + $0x108] sm:$0xff]
  %v7232 = vld [vmem:[%s8 + $0x110] sm:$0xff]
  %v7233 = vld [vmem:[%s8 + $0x118] sm:$0xff]
  %v7234 = vld [vmem:[%s8 + $0x120] sm:$0xff]
  %v7235 = vld [vmem:[%s8 + $0x128] sm:$0xff]
  %v7236 = vld [vmem:[%s8 + $0x130] sm:$0xff]
  %v7237 = vld [vmem:[%s8 + $0x138] sm:$0xff]
  %v7238 = vld [vmem:[%s8 + $0x140] sm:$0xff]
  %v7239 = vld [vmem:[%s8 + $0x148] sm:$0xff]
  %v7240 = vld [vmem:[%s8 + $0x150] sm:$0xff]
  %v7241 = vld [vmem:[%s8 + $0x158] sm:$0xff]
  %v7242 = vld [vmem:[%s8 + $0x160] sm:$0xff]
  %v7243 = vld [vmem:[%s8 + $0x168] sm:$0xff]
  %v7244 = vld [vmem:[%s8 + $0x170] sm:$0xff]
  %v7245 = vld [vmem:[%s8 + $0x178] sm:$0xff]
  %v7246 = vld [vmem:[%s8 + $0x180] sm:$0xff]
  %v7247 = vld [vmem:[%s8 + $0x188] sm:$0xff]
  %v7248 = vld [vmem:[%s8 + $0x190] sm:$0xff]
  %v7249 = vld [vmem:[%s8 + $0x198] sm:$0xff]
  %v7250 = vld [vmem:[%s8 + $0x1a0] sm:$0xff]
  %v7251 = vld [vmem:[%s8 + $0x1a8] sm:$0xff]
  %v7252 = vld [vmem:[%s8 + $0x1b0] sm:$0xff]
  %v7253 = vld [vmem:[%s8 + $0x1b8] sm:$0xff]
  %v7254 = vld [vmem:[%s8 + $0x1c0] sm:$0xff]
  %v7255 = vld [vmem:[%s8 + $0x1c8] sm:$0xff]
  %v7256 = vld [vmem:[%s8 + $0x1d0] sm:$0xff]
  %v7257 = vld [vmem:[%s8 + $0x1d8] sm:$0xff]
  %v7258 = vld [vmem:[%s8 + $0x1e0] sm:$0xff]
  %v7259 = vld [vmem:[%s8 + $0x1e8] sm:$0xff]
  %v7260 = vld [vmem:[%s8 + $0x1f0] sm:$0xff]
  %v7261 = vld [vmem:[%s8 + $0x1f8] sm:$0xff]
  %7263 = vset.pattern.permute.xlu0 0
  %7264 = vperm.xlu0 %7263, %v7198
  %v7265 = vpop.permute.xlu0 %7264
  %7268 = vset.pattern.permute.xlu0 0
  %7269 = vperm.xlu0 %7268, %v7199
  %v7270 = vpop.permute.xlu0 %7269
  %7273 = vset.pattern.permute.xlu0 0
  %7274 = vperm.xlu0 %7273, %v7200
  %v7275 = vpop.permute.xlu0 %7274
  %7278 = vset.pattern.permute.xlu0 0
  %7279 = vperm.xlu0 %7278, %v7201
  %v7280 = vpop.permute.xlu0 %7279
  %7283 = vset.pattern.permute.xlu0 0
  %7284 = vperm.xlu0 %7283, %v7202
  %v7285 = vpop.permute.xlu0 %7284
  %7288 = vset.pattern.permute.xlu0 0
  %7289 = vperm.xlu0 %7288, %v7203
  %v7290 = vpop.permute.xlu0 %7289
  %7293 = vset.pattern.permute.xlu0 0
  %7294 = vperm.xlu0 %7293, %v7204
  %v7295 = vpop.permute.xlu0 %7294
  %7298 = vset.pattern.permute.xlu0 0
  %7299 = vperm.xlu0 %7298, %v7205
  %v7300 = vpop.permute.xlu0 %7299
  %7303 = vset.pattern.permute.xlu0 0
  %7304 = vperm.xlu0 %7303, %v7206
  %v7305 = vpop.permute.xlu0 %7304
  %7308 = vset.pattern.permute.xlu0 0
  %7309 = vperm.xlu0 %7308, %v7207
  %v7310 = vpop.permute.xlu0 %7309
  %7313 = vset.pattern.permute.xlu0 0
  %7314 = vperm.xlu0 %7313, %v7208
  %v7315 = vpop.permute.xlu0 %7314
  %7318 = vset.pattern.permute.xlu0 0
  %7319 = vperm.xlu0 %7318, %v7209
  %v7320 = vpop.permute.xlu0 %7319
  %7323 = vset.pattern.permute.xlu0 0
  %7324 = vperm.xlu0 %7323, %v7210
  %v7325 = vpop.permute.xlu0 %7324
  %7328 = vset.pattern.permute.xlu0 0
  %7329 = vperm.xlu0 %7328, %v7211
  %v7330 = vpop.permute.xlu0 %7329
  %7333 = vset.pattern.permute.xlu0 0
  %7334 = vperm.xlu0 %7333, %v7212
  %v7335 = vpop.permute.xlu0 %7334
  %7338 = vset.pattern.permute.xlu0 0
  %7339 = vperm.xlu0 %7338, %v7213
  %v7340 = vpop.permute.xlu0 %7339
  %7343 = vset.pattern.permute.xlu0 0
  %7344 = vperm.xlu0 %7343, %v7214
  %v7345 = vpop.permute.xlu0 %7344
  %7348 = vset.pattern.permute.xlu0 0
  %7349 = vperm.xlu0 %7348, %v7215
  %v7350 = vpop.permute.xlu0 %7349
  %7353 = vset.pattern.permute.xlu0 0
  %7354 = vperm.xlu0 %7353, %v7216
  %v7355 = vpop.permute.xlu0 %7354
  %7358 = vset.pattern.permute.xlu0 0
  %7359 = vperm.xlu0 %7358, %v7217
  %v7360 = vpop.permute.xlu0 %7359
  %7363 = vset.pattern.permute.xlu0 0
  %7364 = vperm.xlu0 %7363, %v7218
  %v7365 = vpop.permute.xlu0 %7364
  %7368 = vset.pattern.permute.xlu0 0
  %7369 = vperm.xlu0 %7368, %v7219
  %v7370 = vpop.permute.xlu0 %7369
  %7373 = vset.pattern.permute.xlu0 0
  %7374 = vperm.xlu0 %7373, %v7220
  %v7375 = vpop.permute.xlu0 %7374
  %7378 = vset.pattern.permute.xlu0 0
  %7379 = vperm.xlu0 %7378, %v7221
  %v7380 = vpop.permute.xlu0 %7379
  %7383 = vset.pattern.permute.xlu0 0
  %7384 = vperm.xlu0 %7383, %v7222
  %v7385 = vpop.permute.xlu0 %7384
  %7388 = vset.pattern.permute.xlu0 0
  %7389 = vperm.xlu0 %7388, %v7223
  %v7390 = vpop.permute.xlu0 %7389
  %7393 = vset.pattern.permute.xlu0 0
  %7394 = vperm.xlu0 %7393, %v7224
  %v7395 = vpop.permute.xlu0 %7394
  %7398 = vset.pattern.permute.xlu0 0
  %7399 = vperm.xlu0 %7398, %v7225
  %v7400 = vpop.permute.xlu0 %7399
  %7403 = vset.pattern.permute.xlu0 0
  %7404 = vperm.xlu0 %7403, %v7226
  %v7405 = vpop.permute.xlu0 %7404
  %7408 = vset.pattern.permute.xlu0 0
  %7409 = vperm.xlu0 %7408, %v7227
  %v7410 = vpop.permute.xlu0 %7409
  %7413 = vset.pattern.permute.xlu0 0
  %7414 = vperm.xlu0 %7413, %v7228
  %v7415 = vpop.permute.xlu0 %7414
  %7418 = vset.pattern.permute.xlu0 0
  %7419 = vperm.xlu0 %7418, %v7229
  %v7420 = vpop.permute.xlu0 %7419
  %7423 = vset.pattern.permute.xlu0 0
  %7424 = vperm.xlu0 %7423, %v7230
  %v7425 = vpop.permute.xlu0 %7424
  %7428 = vset.pattern.permute.xlu0 0
  %7429 = vperm.xlu0 %7428, %v7231
  %v7430 = vpop.permute.xlu0 %7429
  %7433 = vset.pattern.permute.xlu0 0
  %7434 = vperm.xlu0 %7433, %v7232
  %v7435 = vpop.permute.xlu0 %7434
  %7438 = vset.pattern.permute.xlu0 0
  %7439 = vperm.xlu0 %7438, %v7233
  %v7440 = vpop.permute.xlu0 %7439
  %7443 = vset.pattern.permute.xlu0 0
  %7444 = vperm.xlu0 %7443, %v7234
  %v7445 = vpop.permute.xlu0 %7444
  %7448 = vset.pattern.permute.xlu0 0
  %7449 = vperm.xlu0 %7448, %v7235
  %v7450 = vpop.permute.xlu0 %7449
  %7453 = vset.pattern.permute.xlu0 0
  %7454 = vperm.xlu0 %7453, %v7236
  %v7455 = vpop.permute.xlu0 %7454
  %7458 = vset.pattern.permute.xlu0 0
  %7459 = vperm.xlu0 %7458, %v7237
  %v7460 = vpop.permute.xlu0 %7459
  %7463 = vset.pattern.permute.xlu0 0
  %7464 = vperm.xlu0 %7463, %v7238
  %v7465 = vpop.permute.xlu0 %7464
  %7468 = vset.pattern.permute.xlu0 0
  %7469 = vperm.xlu0 %7468, %v7239
  %v7470 = vpop.permute.xlu0 %7469
  %7473 = vset.pattern.permute.xlu0 0
  %7474 = vperm.xlu0 %7473, %v7240
  %v7475 = vpop.permute.xlu0 %7474
  %7478 = vset.pattern.permute.xlu0 0
  %7479 = vperm.xlu0 %7478, %v7241
  %v7480 = vpop.permute.xlu0 %7479
  %7483 = vset.pattern.permute.xlu0 0
  %7484 = vperm.xlu0 %7483, %v7242
  %v7485 = vpop.permute.xlu0 %7484
  %7488 = vset.pattern.permute.xlu0 0
  %7489 = vperm.xlu0 %7488, %v7243
  %v7490 = vpop.permute.xlu0 %7489
  %7493 = vset.pattern.permute.xlu0 0
  %7494 = vperm.xlu0 %7493, %v7244
  %v7495 = vpop.permute.xlu0 %7494
  %7498 = vset.pattern.permute.xlu0 0
  %7499 = vperm.xlu0 %7498, %v7245
  %v7500 = vpop.permute.xlu0 %7499
  %7503 = vset.pattern.permute.xlu0 0
  %7504 = vperm.xlu0 %7503, %v7246
  %v7505 = vpop.permute.xlu0 %7504
  %7508 = vset.pattern.permute.xlu0 0
  %7509 = vperm.xlu0 %7508, %v7247
  %v7510 = vpop.permute.xlu0 %7509
  %7513 = vset.pattern.permute.xlu0 0
  %7514 = vperm.xlu0 %7513, %v7248
  %v7515 = vpop.permute.xlu0 %7514
  %7518 = vset.pattern.permute.xlu0 0
  %7519 = vperm.xlu0 %7518, %v7249
  %v7520 = vpop.permute.xlu0 %7519
  %7523 = vset.pattern.permute.xlu0 0
  %7524 = vperm.xlu0 %7523, %v7250
  %v7525 = vpop.permute.xlu0 %7524
  %7528 = vset.pattern.permute.xlu0 0
  %7529 = vperm.xlu0 %7528, %v7251
  %v7530 = vpop.permute.xlu0 %7529
  %7533 = vset.pattern.permute.xlu0 0
  %7534 = vperm.xlu0 %7533, %v7252
  %v7535 = vpop.permute.xlu0 %7534
  %7538 = vset.pattern.permute.xlu0 0
  %7539 = vperm.xlu0 %7538, %v7253
  %v7540 = vpop.permute.xlu0 %7539
  %7543 = vset.pattern.permute.xlu0 0
  %7544 = vperm.xlu0 %7543, %v7254
  %v7545 = vpop.permute.xlu0 %7544
  %7548 = vset.pattern.permute.xlu0 0
  %7549 = vperm.xlu0 %7548, %v7255
  %v7550 = vpop.permute.xlu0 %7549
  %7553 = vset.pattern.permute.xlu0 0
  %7554 = vperm.xlu0 %7553, %v7256
  %v7555 = vpop.permute.xlu0 %7554
  %7558 = vset.pattern.permute.xlu0 0
  %7559 = vperm.xlu0 %7558, %v7257
  %v7560 = vpop.permute.xlu0 %7559
  %7563 = vset.pattern.permute.xlu0 0
  %7564 = vperm.xlu0 %7563, %v7258
  %v7565 = vpop.permute.xlu0 %7564
  %7568 = vset.pattern.permute.xlu0 0
  %7569 = vperm.xlu0 %7568, %v7259
  %v7570 = vpop.permute.xlu0 %7569
  %7573 = vset.pattern.permute.xlu0 0
  %7574 = vperm.xlu0 %7573, %v7260
  %v7575 = vpop.permute.xlu0 %7574
  %7578 = vset.pattern.permute.xlu0 0
  %7579 = vperm.xlu0 %7578, %v7261
  %v7580 = vpop.permute.xlu0 %7579
  %v8030 = vunpack.c.l.b16 %v6750
  %v8031 = vunpack.c.h.b16 %v6750
  %v8032 = vunpack.c.l.b16 %v6751
  %v8033 = vunpack.c.h.b16 %v6751
  %v8034 = vunpack.c.l.b16 %v6752
  %v8035 = vunpack.c.h.b16 %v6752
  %v8036 = vunpack.c.l.b16 %v6753
  %v8037 = vunpack.c.h.b16 %v6753
  %v8038 = vunpack.c.l.b16 %v6754
  %v8039 = vunpack.c.h.b16 %v6754
  %v8040 = vunpack.c.l.b16 %v6755
  %v8041 = vunpack.c.h.b16 %v6755
  %v8042 = vunpack.c.l.b16 %v6756
  %v8043 = vunpack.c.l.b16 %v6757
  %v8044 = vunpack.c.h.b16 %v6757
  %v8045 = vunpack.c.l.b16 %v6758
  %v8046 = vunpack.c.h.b16 %v6758
  %v8047 = vunpack.c.l.b16 %v6759
  %v8048 = vunpack.c.h.b16 %v6759
  %v8049 = vunpack.c.l.b16 %v6760
  %v8050 = vunpack.c.h.b16 %v6760
  %v8051 = vunpack.c.l.b16 %v6761
  %v8052 = vunpack.c.h.b16 %v6761
  %v8053 = vunpack.c.l.b16 %v6762
  %v8054 = vunpack.c.h.b16 %v6762
  %v8055 = vunpack.c.l.b16 %v6763
  %v8056 = vunpack.c.l.b16 %v6764
  %v8057 = vunpack.c.h.b16 %v6764
  %v8058 = vunpack.c.l.b16 %v6765
  %v8059 = vunpack.c.h.b16 %v6765
  %v8060 = vunpack.c.l.b16 %v6766
  %v8061 = vunpack.c.h.b16 %v6766
  %v8062 = vunpack.c.l.b16 %v6767
  %v8063 = vunpack.c.h.b16 %v6767
  %v8064 = vunpack.c.l.b16 %v6768
  %v8065 = vunpack.c.h.b16 %v6768
  %v8066 = vunpack.c.l.b16 %v6769
  %v8067 = vunpack.c.h.b16 %v6769
  %v8068 = vunpack.c.l.b16 %v6770
  %v8069 = vunpack.c.l.b16 %v6771
  %v8070 = vunpack.c.h.b16 %v6771
  %v8071 = vunpack.c.l.b16 %v6772
  %v8072 = vunpack.c.h.b16 %v6772
  %v8073 = vunpack.c.l.b16 %v6773
  %v8074 = vunpack.c.h.b16 %v6773
  %v8075 = vunpack.c.l.b16 %v6774
  %v8076 = vunpack.c.h.b16 %v6774
  %v8077 = vunpack.c.l.b16 %v6775
  %v8078 = vunpack.c.h.b16 %v6775
  %v8079 = vunpack.c.l.b16 %v6776
  %v8080 = vunpack.c.h.b16 %v6776
  %v8081 = vunpack.c.l.b16 %v6777
  %v8082 = vunpack.c.l.b16 %v6778
  %v8083 = vunpack.c.h.b16 %v6778
  %v8084 = vunpack.c.l.b16 %v6779
  %v8085 = vunpack.c.h.b16 %v6779
  %v8086 = vunpack.c.l.b16 %v6780
  %v8087 = vunpack.c.h.b16 %v6780
  %v8088 = vunpack.c.l.b16 %v6781
  %v8089 = vunpack.c.h.b16 %v6781
  %v8090 = vunpack.c.l.b16 %v6782
  %v8091 = vunpack.c.h.b16 %v6782
  %v8092 = vunpack.c.l.b16 %v6783
  %v8093 = vunpack.c.h.b16 %v6783
  %v8094 = vunpack.c.l.b16 %v6784
  %v8095 = vunpack.c.l.b16 %v6785
  %v8096 = vunpack.c.h.b16 %v6785
  %v8097 = vunpack.c.l.b16 %v6786
  %v8098 = vunpack.c.h.b16 %v6786
  %v8099 = vunpack.c.l.b16 %v6787
  %v8100 = vunpack.c.h.b16 %v6787
  %v8101 = vunpack.c.l.b16 %v6788
  %v8102 = vunpack.c.h.b16 %v6788
  %v8103 = vunpack.c.l.b16 %v6789
  %v8104 = vunpack.c.h.b16 %v6789
  %v8105 = vunpack.c.l.b16 %v6790
  %v8106 = vunpack.c.h.b16 %v6790
  %v8107 = vunpack.c.l.b16 %v6791
  %v8108 = vunpack.c.l.b16 %v6792
  %v8109 = vunpack.c.h.b16 %v6792
  %v8110 = vunpack.c.l.b16 %v6793
  %v8111 = vunpack.c.h.b16 %v6793
  %v8112 = vunpack.c.l.b16 %v6794
  %v8113 = vunpack.c.h.b16 %v6794
  %v8114 = vunpack.c.l.b16 %v6795
  %v8115 = vunpack.c.h.b16 %v6795
  %v8116 = vunpack.c.l.b16 %v6796
  %v8117 = vunpack.c.h.b16 %v6796
  %v8118 = vunpack.c.l.b16 %v6797
  %v8119 = vunpack.c.h.b16 %v6797
  %v8120 = vunpack.c.l.b16 %v6798
  %v8121 = vunpack.c.l.b16 %v6799
  %v8122 = vunpack.c.h.b16 %v6799
  %v8123 = vunpack.c.l.b16 %v6800
  %v8124 = vunpack.c.h.b16 %v6800
  %v8125 = vunpack.c.l.b16 %v6801
  %v8126 = vunpack.c.h.b16 %v6801
  %v8127 = vunpack.c.l.b16 %v6802
  %v8128 = vunpack.c.h.b16 %v6802
  %v8129 = vunpack.c.l.b16 %v6803
  %v8130 = vunpack.c.h.b16 %v6803
  %v8131 = vunpack.c.l.b16 %v6804
  %v8132 = vunpack.c.h.b16 %v6804
  %v8133 = vunpack.c.l.b16 %v6805
  %v8134 = vunpack.c.l.b16 %v6806
  %v8135 = vunpack.c.h.b16 %v6806
  %v8136 = vunpack.c.l.b16 %v6807
  %v8137 = vunpack.c.h.b16 %v6807
  %v8138 = vunpack.c.l.b16 %v6808
  %v8139 = vunpack.c.h.b16 %v6808
  %v8140 = vunpack.c.l.b16 %v6809
  %v8141 = vunpack.c.h.b16 %v6809
  %v8142 = vunpack.c.l.b16 %v6810
  %v8143 = vunpack.c.h.b16 %v6810
  %v8144 = vunpack.c.l.b16 %v6811
  %v8145 = vunpack.c.h.b16 %v6811
  %v8146 = vunpack.c.l.b16 %v6812
  %v8147 = vunpack.c.l.b16 %v6813
  %v8148 = vunpack.c.h.b16 %v6813
  %v8149 = vunpack.c.l.b16 %v6814
  %v8150 = vunpack.c.h.b16 %v6814
  %v8151 = vunpack.c.l.b16 %v6815
  %v8152 = vunpack.c.h.b16 %v6815
  %v8153 = vunpack.c.l.b16 %v6816
  %v8154 = vunpack.c.h.b16 %v6816
  %v8155 = vunpack.c.l.b16 %v6817
  %v8156 = vunpack.c.h.b16 %v6817
  %v8157 = vunpack.c.l.b16 %v6818
  %v8158 = vunpack.c.h.b16 %v6818
  %v8159 = vunpack.c.l.b16 %v6819
  %v8160 = vunpack.c.l.b16 %v6820
  %v8161 = vunpack.c.h.b16 %v6820
  %v8162 = vunpack.c.l.b16 %v6821
  %v8163 = vunpack.c.h.b16 %v6821
  %v8164 = vunpack.c.l.b16 %v6822
  %v8165 = vunpack.c.h.b16 %v6822
  %v8166 = vunpack.c.l.b16 %v6823
  %v8167 = vunpack.c.h.b16 %v6823
  %v8168 = vunpack.c.l.b16 %v6824
  %v8169 = vunpack.c.h.b16 %v6824
  %v8170 = vunpack.c.l.b16 %v6825
  %v8171 = vunpack.c.h.b16 %v6825
  %v8172 = vunpack.c.l.b16 %v6826
  %v8173 = vunpack.c.l.b16 %v6827
  %v8174 = vunpack.c.h.b16 %v6827
  %v8175 = vunpack.c.l.b16 %v6828
  %v8176 = vunpack.c.h.b16 %v6828
  %v8177 = vunpack.c.l.b16 %v6829
  %v8178 = vunpack.c.h.b16 %v6829
  %v8179 = vunpack.c.l.b16 %v6830
  %v8180 = vunpack.c.h.b16 %v6830
  %v8181 = vunpack.c.l.b16 %v6831
  %v8182 = vunpack.c.h.b16 %v6831
  %v8183 = vunpack.c.l.b16 %v6832
  %v8184 = vunpack.c.h.b16 %v6832
  %v8185 = vunpack.c.l.b16 %v6833
  %v8186 = vunpack.c.l.b16 %v6834
  %v8187 = vunpack.c.h.b16 %v6834
  %v8188 = vunpack.c.l.b16 %v6835
  %v8189 = vunpack.c.h.b16 %v6835
  %v8190 = vunpack.c.l.b16 %v6836
  %v8191 = vunpack.c.h.b16 %v6836
  %v8192 = vunpack.c.l.b16 %v6837
  %v8193 = vunpack.c.h.b16 %v6837
  %v8194 = vunpack.c.l.b16 %v6838
  %v8195 = vunpack.c.h.b16 %v6838
  %v8196 = vunpack.c.l.b16 %v6839
  %v8197 = vunpack.c.h.b16 %v6839
  %v8198 = vunpack.c.l.b16 %v6840
  %v8199 = vunpack.c.l.b16 %v6841
  %v8200 = vunpack.c.h.b16 %v6841
  %v8201 = vunpack.c.l.b16 %v6842
  %v8202 = vunpack.c.h.b16 %v6842
  %v8203 = vunpack.c.l.b16 %v6843
  %v8204 = vunpack.c.h.b16 %v6843
  %v8205 = vunpack.c.l.b16 %v6844
  %v8206 = vunpack.c.h.b16 %v6844
  %v8207 = vunpack.c.l.b16 %v6845
  %v8208 = vunpack.c.h.b16 %v6845
  %v8209 = vunpack.c.l.b16 %v6846
  %v8210 = vunpack.c.h.b16 %v6846
  %v8211 = vunpack.c.l.b16 %v6847
  %v8212 = vunpack.c.l.b16 %v6848
  %v8213 = vunpack.c.h.b16 %v6848
  %v8214 = vunpack.c.l.b16 %v6849
  %v8215 = vunpack.c.h.b16 %v6849
  %v8216 = vunpack.c.l.b16 %v6850
  %v8217 = vunpack.c.h.b16 %v6850
  %v8218 = vunpack.c.l.b16 %v6851
  %v8219 = vunpack.c.h.b16 %v6851
  %v8220 = vunpack.c.l.b16 %v6852
  %v8221 = vunpack.c.h.b16 %v6852
  %v8222 = vunpack.c.l.b16 %v6853
  %v8223 = vunpack.c.h.b16 %v6853
  %v8224 = vunpack.c.l.b16 %v6854
  %v8225 = vunpack.c.l.b16 %v6855
  %v8226 = vunpack.c.h.b16 %v6855
  %v8227 = vunpack.c.l.b16 %v6856
  %v8228 = vunpack.c.h.b16 %v6856
  %v8229 = vunpack.c.l.b16 %v6857
  %v8230 = vunpack.c.h.b16 %v6857
  %v8231 = vunpack.c.l.b16 %v6858
  %v8232 = vunpack.c.h.b16 %v6858
  %v8233 = vunpack.c.l.b16 %v6859
  %v8234 = vunpack.c.h.b16 %v6859
  %v8235 = vunpack.c.l.b16 %v6860
  %v8236 = vunpack.c.h.b16 %v6860
  %v8237 = vunpack.c.l.b16 %v6861
  %v8238 = vunpack.c.l.b16 %v6862
  %v8239 = vunpack.c.h.b16 %v6862
  %v8240 = vunpack.c.l.b16 %v6863
  %v8241 = vunpack.c.h.b16 %v6863
  %v8242 = vunpack.c.l.b16 %v6864
  %v8243 = vunpack.c.h.b16 %v6864
  %v8244 = vunpack.c.l.b16 %v6865
  %v8245 = vunpack.c.h.b16 %v6865
  %v8246 = vunpack.c.l.b16 %v6866
  %v8247 = vunpack.c.h.b16 %v6866
  %v8248 = vunpack.c.l.b16 %v6867
  %v8249 = vunpack.c.h.b16 %v6867
  %v8250 = vunpack.c.l.b16 %v6868
  %v8251 = vunpack.c.l.b16 %v6869
  %v8252 = vunpack.c.h.b16 %v6869
  %v8253 = vunpack.c.l.b16 %v6870
  %v8254 = vunpack.c.h.b16 %v6870
  %v8255 = vunpack.c.l.b16 %v6871
  %v8256 = vunpack.c.h.b16 %v6871
  %v8257 = vunpack.c.l.b16 %v6872
  %v8258 = vunpack.c.h.b16 %v6872
  %v8259 = vunpack.c.l.b16 %v6873
  %v8260 = vunpack.c.h.b16 %v6873
  %v8261 = vunpack.c.l.b16 %v6874
  %v8262 = vunpack.c.h.b16 %v6874
  %v8263 = vunpack.c.l.b16 %v6875
  %v8264 = vunpack.c.l.b16 %v6876
  %v8265 = vunpack.c.h.b16 %v6876
  %v8266 = vunpack.c.l.b16 %v6877
  %v8267 = vunpack.c.h.b16 %v6877
  %v8268 = vunpack.c.l.b16 %v6878
  %v8269 = vunpack.c.h.b16 %v6878
  %v8270 = vunpack.c.l.b16 %v6879
  %v8271 = vunpack.c.h.b16 %v6879
  %v8272 = vunpack.c.l.b16 %v6880
  %v8273 = vunpack.c.h.b16 %v6880
  %v8274 = vunpack.c.l.b16 %v6881
  %v8275 = vunpack.c.h.b16 %v6881
  %v8276 = vunpack.c.l.b16 %v6882
  %v8277 = vunpack.c.l.b16 %v6883
  %v8278 = vunpack.c.h.b16 %v6883
  %v8279 = vunpack.c.l.b16 %v6884
  %v8280 = vunpack.c.h.b16 %v6884
  %v8281 = vunpack.c.l.b16 %v6885
  %v8282 = vunpack.c.h.b16 %v6885
  %v8283 = vunpack.c.l.b16 %v6886
  %v8284 = vunpack.c.h.b16 %v6886
  %v8285 = vunpack.c.l.b16 %v6887
  %v8286 = vunpack.c.h.b16 %v6887
  %v8287 = vunpack.c.l.b16 %v6888
  %v8288 = vunpack.c.h.b16 %v6888
  %v8289 = vunpack.c.l.b16 %v6889
  %v8290 = vunpack.c.l.b16 %v6890
  %v8291 = vunpack.c.h.b16 %v6890
  %v8292 = vunpack.c.l.b16 %v6891
  %v8293 = vunpack.c.h.b16 %v6891
  %v8294 = vunpack.c.l.b16 %v6892
  %v8295 = vunpack.c.h.b16 %v6892
  %v8296 = vunpack.c.l.b16 %v6893
  %v8297 = vunpack.c.h.b16 %v6893
  %v8298 = vunpack.c.l.b16 %v6894
  %v8299 = vunpack.c.h.b16 %v6894
  %v8300 = vunpack.c.l.b16 %v6895
  %v8301 = vunpack.c.h.b16 %v6895
  %v8302 = vunpack.c.l.b16 %v6896
  %v8303 = vunpack.c.l.b16 %v6897
  %v8304 = vunpack.c.h.b16 %v6897
  %v8305 = vunpack.c.l.b16 %v6898
  %v8306 = vunpack.c.h.b16 %v6898
  %v8307 = vunpack.c.l.b16 %v6899
  %v8308 = vunpack.c.h.b16 %v6899
  %v8309 = vunpack.c.l.b16 %v6900
  %v8310 = vunpack.c.h.b16 %v6900
  %v8311 = vunpack.c.l.b16 %v6901
  %v8312 = vunpack.c.h.b16 %v6901
  %v8313 = vunpack.c.l.b16 %v6902
  %v8314 = vunpack.c.h.b16 %v6902
  %v8315 = vunpack.c.l.b16 %v6903
  %v8316 = vunpack.c.l.b16 %v6904
  %v8317 = vunpack.c.h.b16 %v6904
  %v8318 = vunpack.c.l.b16 %v6905
  %v8319 = vunpack.c.h.b16 %v6905
  %v8320 = vunpack.c.l.b16 %v6906
  %v8321 = vunpack.c.h.b16 %v6906
  %v8322 = vunpack.c.l.b16 %v6907
  %v8323 = vunpack.c.h.b16 %v6907
  %v8324 = vunpack.c.l.b16 %v6908
  %v8325 = vunpack.c.h.b16 %v6908
  %v8326 = vunpack.c.l.b16 %v6909
  %v8327 = vunpack.c.h.b16 %v6909
  %v8328 = vunpack.c.l.b16 %v6910
  %v8329 = vunpack.c.l.b16 %v6911
  %v8330 = vunpack.c.h.b16 %v6911
  %v8331 = vunpack.c.l.b16 %v6912
  %v8332 = vunpack.c.h.b16 %v6912
  %v8333 = vunpack.c.l.b16 %v6913
  %v8334 = vunpack.c.h.b16 %v6913
  %v8335 = vunpack.c.l.b16 %v6914
  %v8336 = vunpack.c.h.b16 %v6914
  %v8337 = vunpack.c.l.b16 %v6915
  %v8338 = vunpack.c.h.b16 %v6915
  %v8339 = vunpack.c.l.b16 %v6916
  %v8340 = vunpack.c.h.b16 %v6916
  %v8341 = vunpack.c.l.b16 %v6917
  %v8342 = vunpack.c.l.b16 %v6918
  %v8343 = vunpack.c.h.b16 %v6918
  %v8344 = vunpack.c.l.b16 %v6919
  %v8345 = vunpack.c.h.b16 %v6919
  %v8346 = vunpack.c.l.b16 %v6920
  %v8347 = vunpack.c.h.b16 %v6920
  %v8348 = vunpack.c.l.b16 %v6921
  %v8349 = vunpack.c.h.b16 %v6921
  %v8350 = vunpack.c.l.b16 %v6922
  %v8351 = vunpack.c.h.b16 %v6922
  %v8352 = vunpack.c.l.b16 %v6923
  %v8353 = vunpack.c.h.b16 %v6923
  %v8354 = vunpack.c.l.b16 %v6924
  %v8355 = vunpack.c.l.b16 %v6925
  %v8356 = vunpack.c.h.b16 %v6925
  %v8357 = vunpack.c.l.b16 %v6926
  %v8358 = vunpack.c.h.b16 %v6926
  %v8359 = vunpack.c.l.b16 %v6927
  %v8360 = vunpack.c.h.b16 %v6927
  %v8361 = vunpack.c.l.b16 %v6928
  %v8362 = vunpack.c.h.b16 %v6928
  %v8363 = vunpack.c.l.b16 %v6929
  %v8364 = vunpack.c.h.b16 %v6929
  %v8365 = vunpack.c.l.b16 %v6930
  %v8366 = vunpack.c.h.b16 %v6930
  %v8367 = vunpack.c.l.b16 %v6931
  %v8368 = vunpack.c.l.b16 %v6932
  %v8369 = vunpack.c.h.b16 %v6932
  %v8370 = vunpack.c.l.b16 %v6933
  %v8371 = vunpack.c.h.b16 %v6933
  %v8372 = vunpack.c.l.b16 %v6934
  %v8373 = vunpack.c.h.b16 %v6934
  %v8374 = vunpack.c.l.b16 %v6935
  %v8375 = vunpack.c.h.b16 %v6935
  %v8376 = vunpack.c.l.b16 %v6936
  %v8377 = vunpack.c.h.b16 %v6936
  %v8378 = vunpack.c.l.b16 %v6937
  %v8379 = vunpack.c.h.b16 %v6937
  %v8380 = vunpack.c.l.b16 %v6938
  %v8381 = vunpack.c.l.b16 %v6939
  %v8382 = vunpack.c.h.b16 %v6939
  %v8383 = vunpack.c.l.b16 %v6940
  %v8384 = vunpack.c.h.b16 %v6940
  %v8385 = vunpack.c.l.b16 %v6941
  %v8386 = vunpack.c.h.b16 %v6941
  %v8387 = vunpack.c.l.b16 %v6942
  %v8388 = vunpack.c.h.b16 %v6942
  %v8389 = vunpack.c.l.b16 %v6943
  %v8390 = vunpack.c.h.b16 %v6943
  %v8391 = vunpack.c.l.b16 %v6944
  %v8392 = vunpack.c.h.b16 %v6944
  %v8393 = vunpack.c.l.b16 %v6945
  %v8394 = vunpack.c.l.b16 %v6946
  %v8395 = vunpack.c.h.b16 %v6946
  %v8396 = vunpack.c.l.b16 %v6947
  %v8397 = vunpack.c.h.b16 %v6947
  %v8398 = vunpack.c.l.b16 %v6948
  %v8399 = vunpack.c.h.b16 %v6948
  %v8400 = vunpack.c.l.b16 %v6949
  %v8401 = vunpack.c.h.b16 %v6949
  %v8402 = vunpack.c.l.b16 %v6950
  %v8403 = vunpack.c.h.b16 %v6950
  %v8404 = vunpack.c.l.b16 %v6951
  %v8405 = vunpack.c.h.b16 %v6951
  %v8406 = vunpack.c.l.b16 %v6952
  %v8407 = vunpack.c.l.b16 %v6953
  %v8408 = vunpack.c.h.b16 %v6953
  %v8409 = vunpack.c.l.b16 %v6954
  %v8410 = vunpack.c.h.b16 %v6954
  %v8411 = vunpack.c.l.b16 %v6955
  %v8412 = vunpack.c.h.b16 %v6955
  %v8413 = vunpack.c.l.b16 %v6956
  %v8414 = vunpack.c.h.b16 %v6956
  %v8415 = vunpack.c.l.b16 %v6957
  %v8416 = vunpack.c.h.b16 %v6957
  %v8417 = vunpack.c.l.b16 %v6958
  %v8418 = vunpack.c.h.b16 %v6958
  %v8419 = vunpack.c.l.b16 %v6959
  %v8420 = vunpack.c.l.b16 %v6960
  %v8421 = vunpack.c.h.b16 %v6960
  %v8422 = vunpack.c.l.b16 %v6961
  %v8423 = vunpack.c.h.b16 %v6961
  %v8424 = vunpack.c.l.b16 %v6962
  %v8425 = vunpack.c.h.b16 %v6962
  %v8426 = vunpack.c.l.b16 %v6963
  %v8427 = vunpack.c.h.b16 %v6963
  %v8428 = vunpack.c.l.b16 %v6964
  %v8429 = vunpack.c.h.b16 %v6964
  %v8430 = vunpack.c.l.b16 %v6965
  %v8431 = vunpack.c.h.b16 %v6965
  %v8432 = vunpack.c.l.b16 %v6966
  %v8433 = vunpack.c.l.b16 %v6967
  %v8434 = vunpack.c.h.b16 %v6967
  %v8435 = vunpack.c.l.b16 %v6968
  %v8436 = vunpack.c.h.b16 %v6968
  %v8437 = vunpack.c.l.b16 %v6969
  %v8438 = vunpack.c.h.b16 %v6969
  %v8439 = vunpack.c.l.b16 %v6970
  %v8440 = vunpack.c.h.b16 %v6970
  %v8441 = vunpack.c.l.b16 %v6971
  %v8442 = vunpack.c.h.b16 %v6971
  %v8443 = vunpack.c.l.b16 %v6972
  %v8444 = vunpack.c.h.b16 %v6972
  %v8445 = vunpack.c.l.b16 %v6973
  %v8446 = vunpack.c.l.b16 %v6974
  %v8447 = vunpack.c.h.b16 %v6974
  %v8448 = vunpack.c.l.b16 %v6975
  %v8449 = vunpack.c.h.b16 %v6975
  %v8450 = vunpack.c.l.b16 %v6976
  %v8451 = vunpack.c.h.b16 %v6976
  %v8452 = vunpack.c.l.b16 %v6977
  %v8453 = vunpack.c.h.b16 %v6977
  %v8454 = vunpack.c.l.b16 %v6978
  %v8455 = vunpack.c.h.b16 %v6978
  %v8456 = vunpack.c.l.b16 %v6979
  %v8457 = vunpack.c.h.b16 %v6979
  %v8458 = vunpack.c.l.b16 %v6980
  %v8459 = vunpack.c.l.b16 %v6981
  %v8460 = vunpack.c.h.b16 %v6981
  %v8461 = vunpack.c.l.b16 %v6982
  %v8462 = vunpack.c.h.b16 %v6982
  %v8463 = vunpack.c.l.b16 %v6983
  %v8464 = vunpack.c.h.b16 %v6983
  %v8465 = vunpack.c.l.b16 %v6984
  %v8466 = vunpack.c.h.b16 %v6984
  %v8467 = vunpack.c.l.b16 %v6985
  %v8468 = vunpack.c.h.b16 %v6985
  %v8469 = vunpack.c.l.b16 %v6986
  %v8470 = vunpack.c.h.b16 %v6986
  %v8471 = vunpack.c.l.b16 %v6987
  %v8472 = vunpack.c.l.b16 %v6988
  %v8473 = vunpack.c.h.b16 %v6988
  %v8474 = vunpack.c.l.b16 %v6989
  %v8475 = vunpack.c.h.b16 %v6989
  %v8476 = vunpack.c.l.b16 %v6990
  %v8477 = vunpack.c.h.b16 %v6990
  %v8478 = vunpack.c.l.b16 %v6991
  %v8479 = vunpack.c.h.b16 %v6991
  %v8480 = vunpack.c.l.b16 %v6992
  %v8481 = vunpack.c.h.b16 %v6992
  %v8482 = vunpack.c.l.b16 %v6993
  %v8483 = vunpack.c.h.b16 %v6993
  %v8484 = vunpack.c.l.b16 %v6994
  %v8485 = vunpack.c.l.b16 %v6995
  %v8486 = vunpack.c.h.b16 %v6995
  %v8487 = vunpack.c.l.b16 %v6996
  %v8488 = vunpack.c.h.b16 %v6996
  %v8489 = vunpack.c.l.b16 %v6997
  %v8490 = vunpack.c.h.b16 %v6997
  %v8491 = vunpack.c.l.b16 %v6998
  %v8492 = vunpack.c.h.b16 %v6998
  %v8493 = vunpack.c.l.b16 %v6999
  %v8494 = vunpack.c.h.b16 %v6999
  %v8495 = vunpack.c.l.b16 %v7000
  %v8496 = vunpack.c.h.b16 %v7000
  %v8497 = vunpack.c.l.b16 %v7001
  %v8498 = vunpack.c.l.b16 %v7002
  %v8499 = vunpack.c.h.b16 %v7002
  %v8500 = vunpack.c.l.b16 %v7003
  %v8501 = vunpack.c.h.b16 %v7003
  %v8502 = vunpack.c.l.b16 %v7004
  %v8503 = vunpack.c.h.b16 %v7004
  %v8504 = vunpack.c.l.b16 %v7005
  %v8505 = vunpack.c.h.b16 %v7005
  %v8506 = vunpack.c.l.b16 %v7006
  %v8507 = vunpack.c.h.b16 %v7006
  %v8508 = vunpack.c.l.b16 %v7007
  %v8509 = vunpack.c.h.b16 %v7007
  %v8510 = vunpack.c.l.b16 %v7008
  %v8511 = vunpack.c.l.b16 %v7009
  %v8512 = vunpack.c.h.b16 %v7009
  %v8513 = vunpack.c.l.b16 %v7010
  %v8514 = vunpack.c.h.b16 %v7010
  %v8515 = vunpack.c.l.b16 %v7011
  %v8516 = vunpack.c.h.b16 %v7011
  %v8517 = vunpack.c.l.b16 %v7012
  %v8518 = vunpack.c.h.b16 %v7012
  %v8519 = vunpack.c.l.b16 %v7013
  %v8520 = vunpack.c.h.b16 %v7013
  %v8521 = vunpack.c.l.b16 %v7014
  %v8522 = vunpack.c.h.b16 %v7014
  %v8523 = vunpack.c.l.b16 %v7015
  %v8524 = vunpack.c.l.b16 %v7016
  %v8525 = vunpack.c.h.b16 %v7016
  %v8526 = vunpack.c.l.b16 %v7017
  %v8527 = vunpack.c.h.b16 %v7017
  %v8528 = vunpack.c.l.b16 %v7018
  %v8529 = vunpack.c.h.b16 %v7018
  %v8530 = vunpack.c.l.b16 %v7019
  %v8531 = vunpack.c.h.b16 %v7019
  %v8532 = vunpack.c.l.b16 %v7020
  %v8533 = vunpack.c.h.b16 %v7020
  %v8534 = vunpack.c.l.b16 %v7021
  %v8535 = vunpack.c.h.b16 %v7021
  %v8536 = vunpack.c.l.b16 %v7022
  %v8537 = vunpack.c.l.b16 %v7023
  %v8538 = vunpack.c.h.b16 %v7023
  %v8539 = vunpack.c.l.b16 %v7024
  %v8540 = vunpack.c.h.b16 %v7024
  %v8541 = vunpack.c.l.b16 %v7025
  %v8542 = vunpack.c.h.b16 %v7025
  %v8543 = vunpack.c.l.b16 %v7026
  %v8544 = vunpack.c.h.b16 %v7026
  %v8545 = vunpack.c.l.b16 %v7027
  %v8546 = vunpack.c.h.b16 %v7027
  %v8547 = vunpack.c.l.b16 %v7028
  %v8548 = vunpack.c.h.b16 %v7028
  %v8549 = vunpack.c.l.b16 %v7029
  %v8550 = vunpack.c.l.b16 %v7030
  %v8551 = vunpack.c.h.b16 %v7030
  %v8552 = vunpack.c.l.b16 %v7031
  %v8553 = vunpack.c.h.b16 %v7031
  %v8554 = vunpack.c.l.b16 %v7032
  %v8555 = vunpack.c.h.b16 %v7032
  %v8556 = vunpack.c.l.b16 %v7033
  %v8557 = vunpack.c.h.b16 %v7033
  %v8558 = vunpack.c.l.b16 %v7034
  %v8559 = vunpack.c.h.b16 %v7034
  %v8560 = vunpack.c.l.b16 %v7035
  %v8561 = vunpack.c.h.b16 %v7035
  %v8562 = vunpack.c.l.b16 %v7036
  %v8563 = vunpack.c.l.b16 %v7037
  %v8564 = vunpack.c.h.b16 %v7037
  %v8565 = vunpack.c.l.b16 %v7038
  %v8566 = vunpack.c.h.b16 %v7038
  %v8567 = vunpack.c.l.b16 %v7039
  %v8568 = vunpack.c.h.b16 %v7039
  %v8569 = vunpack.c.l.b16 %v7040
  %v8570 = vunpack.c.h.b16 %v7040
  %v8571 = vunpack.c.l.b16 %v7041
  %v8572 = vunpack.c.h.b16 %v7041
  %v8573 = vunpack.c.l.b16 %v7042
  %v8574 = vunpack.c.h.b16 %v7042
  %v8575 = vunpack.c.l.b16 %v7043
  %v8576 = vunpack.c.l.b16 %v7044
  %v8577 = vunpack.c.h.b16 %v7044
  %v8578 = vunpack.c.l.b16 %v7045
  %v8579 = vunpack.c.h.b16 %v7045
  %v8580 = vunpack.c.l.b16 %v7046
  %v8581 = vunpack.c.h.b16 %v7046
  %v8582 = vunpack.c.l.b16 %v7047
  %v8583 = vunpack.c.h.b16 %v7047
  %v8584 = vunpack.c.l.b16 %v7048
  %v8585 = vunpack.c.h.b16 %v7048
  %v8586 = vunpack.c.l.b16 %v7049
  %v8587 = vunpack.c.h.b16 %v7049
  %v8588 = vunpack.c.l.b16 %v7050
  %v8589 = vunpack.c.l.b16 %v7051
  %v8590 = vunpack.c.h.b16 %v7051
  %v8591 = vunpack.c.l.b16 %v7052
  %v8592 = vunpack.c.h.b16 %v7052
  %v8593 = vunpack.c.l.b16 %v7053
  %v8594 = vunpack.c.h.b16 %v7053
  %v8595 = vunpack.c.l.b16 %v7054
  %v8596 = vunpack.c.h.b16 %v7054
  %v8597 = vunpack.c.l.b16 %v7055
  %v8598 = vunpack.c.h.b16 %v7055
  %v8599 = vunpack.c.l.b16 %v7056
  %v8600 = vunpack.c.h.b16 %v7056
  %v8601 = vunpack.c.l.b16 %v7057
  %v8602 = vunpack.c.l.b16 %v7058
  %v8603 = vunpack.c.h.b16 %v7058
  %v8604 = vunpack.c.l.b16 %v7059
  %v8605 = vunpack.c.h.b16 %v7059
  %v8606 = vunpack.c.l.b16 %v7060
  %v8607 = vunpack.c.h.b16 %v7060
  %v8608 = vunpack.c.l.b16 %v7061
  %v8609 = vunpack.c.h.b16 %v7061
  %v8610 = vunpack.c.l.b16 %v7062
  %v8611 = vunpack.c.h.b16 %v7062
  %v8612 = vunpack.c.l.b16 %v7063
  %v8613 = vunpack.c.h.b16 %v7063
  %v8614 = vunpack.c.l.b16 %v7064
  %v8615 = vunpack.c.l.b16 %v7065
  %v8616 = vunpack.c.h.b16 %v7065
  %v8617 = vunpack.c.l.b16 %v7066
  %v8618 = vunpack.c.h.b16 %v7066
  %v8619 = vunpack.c.l.b16 %v7067
  %v8620 = vunpack.c.h.b16 %v7067
  %v8621 = vunpack.c.l.b16 %v7068
  %v8622 = vunpack.c.h.b16 %v7068
  %v8623 = vunpack.c.l.b16 %v7069
  %v8624 = vunpack.c.h.b16 %v7069
  %v8625 = vunpack.c.l.b16 %v7070
  %v8626 = vunpack.c.h.b16 %v7070
  %v8627 = vunpack.c.l.b16 %v7071
  %v8628 = vunpack.c.l.b16 %v7072
  %v8629 = vunpack.c.h.b16 %v7072
  %v8630 = vunpack.c.l.b16 %v7073
  %v8631 = vunpack.c.h.b16 %v7073
  %v8632 = vunpack.c.l.b16 %v7074
  %v8633 = vunpack.c.h.b16 %v7074
  %v8634 = vunpack.c.l.b16 %v7075
  %v8635 = vunpack.c.h.b16 %v7075
  %v8636 = vunpack.c.l.b16 %v7076
  %v8637 = vunpack.c.h.b16 %v7076
  %v8638 = vunpack.c.l.b16 %v7077
  %v8639 = vunpack.c.h.b16 %v7077
  %v8640 = vunpack.c.l.b16 %v7078
  %v8641 = vunpack.c.l.b16 %v7079
  %v8642 = vunpack.c.h.b16 %v7079
  %v8643 = vunpack.c.l.b16 %v7080
  %v8644 = vunpack.c.h.b16 %v7080
  %v8645 = vunpack.c.l.b16 %v7081
  %v8646 = vunpack.c.h.b16 %v7081
  %v8647 = vunpack.c.l.b16 %v7082
  %v8648 = vunpack.c.h.b16 %v7082
  %v8649 = vunpack.c.l.b16 %v7083
  %v8650 = vunpack.c.h.b16 %v7083
  %v8651 = vunpack.c.l.b16 %v7084
  %v8652 = vunpack.c.h.b16 %v7084
  %v8653 = vunpack.c.l.b16 %v7085
  %v8654 = vunpack.c.l.b16 %v7086
  %v8655 = vunpack.c.h.b16 %v7086
  %v8656 = vunpack.c.l.b16 %v7087
  %v8657 = vunpack.c.h.b16 %v7087
  %v8658 = vunpack.c.l.b16 %v7088
  %v8659 = vunpack.c.h.b16 %v7088
  %v8660 = vunpack.c.l.b16 %v7089
  %v8661 = vunpack.c.h.b16 %v7089
  %v8662 = vunpack.c.l.b16 %v7090
  %v8663 = vunpack.c.h.b16 %v7090
  %v8664 = vunpack.c.l.b16 %v7091
  %v8665 = vunpack.c.h.b16 %v7091
  %v8666 = vunpack.c.l.b16 %v7092
  %v8667 = vunpack.c.l.b16 %v7093
  %v8668 = vunpack.c.h.b16 %v7093
  %v8669 = vunpack.c.l.b16 %v7094
  %v8670 = vunpack.c.h.b16 %v7094
  %v8671 = vunpack.c.l.b16 %v7095
  %v8672 = vunpack.c.h.b16 %v7095
  %v8673 = vunpack.c.l.b16 %v7096
  %v8674 = vunpack.c.h.b16 %v7096
  %v8675 = vunpack.c.l.b16 %v7097
  %v8676 = vunpack.c.h.b16 %v7097
  %v8677 = vunpack.c.l.b16 %v7098
  %v8678 = vunpack.c.h.b16 %v7098
  %v8679 = vunpack.c.l.b16 %v7099
  %v8680 = vunpack.c.l.b16 %v7100
  %v8681 = vunpack.c.h.b16 %v7100
  %v8682 = vunpack.c.l.b16 %v7101
  %v8683 = vunpack.c.h.b16 %v7101
  %v8684 = vunpack.c.l.b16 %v7102
  %v8685 = vunpack.c.h.b16 %v7102
  %v8686 = vunpack.c.l.b16 %v7103
  %v8687 = vunpack.c.h.b16 %v7103
  %v8688 = vunpack.c.l.b16 %v7104
  %v8689 = vunpack.c.h.b16 %v7104
  %v8690 = vunpack.c.l.b16 %v7105
  %v8691 = vunpack.c.h.b16 %v7105
  %v8692 = vunpack.c.l.b16 %v7106
  %v8693 = vunpack.c.l.b16 %v7107
  %v8694 = vunpack.c.h.b16 %v7107
  %v8695 = vunpack.c.l.b16 %v7108
  %v8696 = vunpack.c.h.b16 %v7108
  %v8697 = vunpack.c.l.b16 %v7109
  %v8698 = vunpack.c.h.b16 %v7109
  %v8699 = vunpack.c.l.b16 %v7110
  %v8700 = vunpack.c.h.b16 %v7110
  %v8701 = vunpack.c.l.b16 %v7111
  %v8702 = vunpack.c.h.b16 %v7111
  %v8703 = vunpack.c.l.b16 %v7112
  %v8704 = vunpack.c.h.b16 %v7112
  %v8705 = vunpack.c.l.b16 %v7113
  %v8706 = vunpack.c.l.b16 %v7114
  %v8707 = vunpack.c.h.b16 %v7114
  %v8708 = vunpack.c.l.b16 %v7115
  %v8709 = vunpack.c.h.b16 %v7115
  %v8710 = vunpack.c.l.b16 %v7116
  %v8711 = vunpack.c.h.b16 %v7116
  %v8712 = vunpack.c.l.b16 %v7117
  %v8713 = vunpack.c.h.b16 %v7117
  %v8714 = vunpack.c.l.b16 %v7118
  %v8715 = vunpack.c.h.b16 %v7118
  %v8716 = vunpack.c.l.b16 %v7119
  %v8717 = vunpack.c.h.b16 %v7119
  %v8718 = vunpack.c.l.b16 %v7120
  %v8719 = vunpack.c.l.b16 %v7121
  %v8720 = vunpack.c.h.b16 %v7121
  %v8721 = vunpack.c.l.b16 %v7122
  %v8722 = vunpack.c.h.b16 %v7122
  %v8723 = vunpack.c.l.b16 %v7123
  %v8724 = vunpack.c.h.b16 %v7123
  %v8725 = vunpack.c.l.b16 %v7124
  %v8726 = vunpack.c.h.b16 %v7124
  %v8727 = vunpack.c.l.b16 %v7125
  %v8728 = vunpack.c.h.b16 %v7125
  %v8729 = vunpack.c.l.b16 %v7126
  %v8730 = vunpack.c.h.b16 %v7126
  %v8731 = vunpack.c.l.b16 %v7127
  %v8732 = vunpack.c.l.b16 %v7128
  %v8733 = vunpack.c.h.b16 %v7128
  %v8734 = vunpack.c.l.b16 %v7129
  %v8735 = vunpack.c.h.b16 %v7129
  %v8736 = vunpack.c.l.b16 %v7130
  %v8737 = vunpack.c.h.b16 %v7130
  %v8738 = vunpack.c.l.b16 %v7131
  %v8739 = vunpack.c.h.b16 %v7131
  %v8740 = vunpack.c.l.b16 %v7132
  %v8741 = vunpack.c.h.b16 %v7132
  %v8742 = vunpack.c.l.b16 %v7133
  %v8743 = vunpack.c.h.b16 %v7133
  %v8744 = vunpack.c.l.b16 %v7134
  %v8745 = vunpack.c.l.b16 %v7135
  %v8746 = vunpack.c.h.b16 %v7135
  %v8747 = vunpack.c.l.b16 %v7136
  %v8748 = vunpack.c.h.b16 %v7136
  %v8749 = vunpack.c.l.b16 %v7137
  %v8750 = vunpack.c.h.b16 %v7137
  %v8751 = vunpack.c.l.b16 %v7138
  %v8752 = vunpack.c.h.b16 %v7138
  %v8753 = vunpack.c.l.b16 %v7139
  %v8754 = vunpack.c.h.b16 %v7139
  %v8755 = vunpack.c.l.b16 %v7140
  %v8756 = vunpack.c.h.b16 %v7140
  %v8757 = vunpack.c.l.b16 %v7141
  %v8758 = vunpack.c.l.b16 %v7142
  %v8759 = vunpack.c.h.b16 %v7142
  %v8760 = vunpack.c.l.b16 %v7143
  %v8761 = vunpack.c.h.b16 %v7143
  %v8762 = vunpack.c.l.b16 %v7144
  %v8763 = vunpack.c.h.b16 %v7144
  %v8764 = vunpack.c.l.b16 %v7145
  %v8765 = vunpack.c.h.b16 %v7145
  %v8766 = vunpack.c.l.b16 %v7146
  %v8767 = vunpack.c.h.b16 %v7146
  %v8768 = vunpack.c.l.b16 %v7147
  %v8769 = vunpack.c.h.b16 %v7147
  %v8770 = vunpack.c.l.b16 %v7148
  %v8771 = vunpack.c.l.b16 %v7149
  %v8772 = vunpack.c.h.b16 %v7149
  %v8773 = vunpack.c.l.b16 %v7150
  %v8774 = vunpack.c.h.b16 %v7150
  %v8775 = vunpack.c.l.b16 %v7151
  %v8776 = vunpack.c.h.b16 %v7151
  %v8777 = vunpack.c.l.b16 %v7152
  %v8778 = vunpack.c.h.b16 %v7152
  %v8779 = vunpack.c.l.b16 %v7153
  %v8780 = vunpack.c.h.b16 %v7153
  %v8781 = vunpack.c.l.b16 %v7154
  %v8782 = vunpack.c.h.b16 %v7154
  %v8783 = vunpack.c.l.b16 %v7155
  %v8784 = vunpack.c.l.b16 %v7156
  %v8785 = vunpack.c.h.b16 %v7156
  %v8786 = vunpack.c.l.b16 %v7157
  %v8787 = vunpack.c.h.b16 %v7157
  %v8788 = vunpack.c.l.b16 %v7158
  %v8789 = vunpack.c.h.b16 %v7158
  %v8790 = vunpack.c.l.b16 %v7159
  %v8791 = vunpack.c.h.b16 %v7159
  %v8792 = vunpack.c.l.b16 %v7160
  %v8793 = vunpack.c.h.b16 %v7160
  %v8794 = vunpack.c.l.b16 %v7161
  %v8795 = vunpack.c.h.b16 %v7161
  %v8796 = vunpack.c.l.b16 %v7162
  %v8797 = vunpack.c.l.b16 %v7163
  %v8798 = vunpack.c.h.b16 %v7163
  %v8799 = vunpack.c.l.b16 %v7164
  %v8800 = vunpack.c.h.b16 %v7164
  %v8801 = vunpack.c.l.b16 %v7165
  %v8802 = vunpack.c.h.b16 %v7165
  %v8803 = vunpack.c.l.b16 %v7166
  %v8804 = vunpack.c.h.b16 %v7166
  %v8805 = vunpack.c.l.b16 %v7167
  %v8806 = vunpack.c.h.b16 %v7167
  %v8807 = vunpack.c.l.b16 %v7168
  %v8808 = vunpack.c.h.b16 %v7168
  %v8809 = vunpack.c.l.b16 %v7169
  %v8810 = vunpack.c.l.b16 %v7170
  %v8811 = vunpack.c.h.b16 %v7170
  %v8812 = vunpack.c.l.b16 %v7171
  %v8813 = vunpack.c.h.b16 %v7171
  %v8814 = vunpack.c.l.b16 %v7172
  %v8815 = vunpack.c.h.b16 %v7172
  %v8816 = vunpack.c.l.b16 %v7173
  %v8817 = vunpack.c.h.b16 %v7173
  %v8818 = vunpack.c.l.b16 %v7174
  %v8819 = vunpack.c.h.b16 %v7174
  %v8820 = vunpack.c.l.b16 %v7175
  %v8821 = vunpack.c.h.b16 %v7175
  %v8822 = vunpack.c.l.b16 %v7176
  %v8823 = vunpack.c.l.b16 %v7177
  %v8824 = vunpack.c.h.b16 %v7177
  %v8825 = vunpack.c.l.b16 %v7178
  %v8826 = vunpack.c.h.b16 %v7178
  %v8827 = vunpack.c.l.b16 %v7179
  %v8828 = vunpack.c.h.b16 %v7179
  %v8829 = vunpack.c.l.b16 %v7180
  %v8830 = vunpack.c.h.b16 %v7180
  %v8831 = vunpack.c.l.b16 %v7181
  %v8832 = vunpack.c.h.b16 %v7181
  %v8833 = vunpack.c.l.b16 %v7182
  %v8834 = vunpack.c.h.b16 %v7182
  %v8835 = vunpack.c.l.b16 %v7183
  %v8836 = vunpack.c.l.b16 %v7184
  %v8837 = vunpack.c.h.b16 %v7184
  %v8838 = vunpack.c.l.b16 %v7185
  %v8839 = vunpack.c.h.b16 %v7185
  %v8840 = vunpack.c.l.b16 %v7186
  %v8841 = vunpack.c.h.b16 %v7186
  %v8842 = vunpack.c.l.b16 %v7187
  %v8843 = vunpack.c.h.b16 %v7187
  %v8844 = vunpack.c.l.b16 %v7188
  %v8845 = vunpack.c.h.b16 %v7188
  %v8846 = vunpack.c.l.b16 %v7189
  %v8847 = vunpack.c.h.b16 %v7189
  %v8848 = vunpack.c.l.b16 %v7190
  %v8849 = vunpack.c.l.b16 %v7191
  %v8850 = vunpack.c.h.b16 %v7191
  %v8851 = vunpack.c.l.b16 %v7192
  %v8852 = vunpack.c.h.b16 %v7192
  %v8853 = vunpack.c.l.b16 %v7193
  %v8854 = vunpack.c.h.b16 %v7193
  %v8855 = vunpack.c.l.b16 %v7194
  %v8856 = vunpack.c.h.b16 %v7194
  %v8857 = vunpack.c.l.b16 %v7195
  %v8858 = vunpack.c.h.b16 %v7195
  %v8859 = vunpack.c.l.b16 %v7196
  %v8860 = vunpack.c.h.b16 %v7196
  %v8861 = vunpack.c.l.b16 %v7197
  %v8862 = vpack.c.b16 %v8043, %v8030
  %v8863 = vpack.c.b16 %v8044, %v8031
  %v8864 = vpack.c.b16 %v8045, %v8032
  %v8865 = vpack.c.b16 %v8046, %v8033
  %v8866 = vpack.c.b16 %v8047, %v8034
  %v8867 = vpack.c.b16 %v8048, %v8035
  %v8868 = vpack.c.b16 %v8049, %v8036
  %v8869 = vpack.c.b16 %v8050, %v8037
  %v8870 = vpack.c.b16 %v8051, %v8038
  %v8871 = vpack.c.b16 %v8052, %v8039
  %v8872 = vpack.c.b16 %v8053, %v8040
  %v8873 = vpack.c.b16 %v8054, %v8041
  %v8874 = vpack.c.b16 %v8055, %v8042
  %v8875 = vpack.c.b16 %v8069, %v8056
  %v8876 = vpack.c.b16 %v8070, %v8057
  %v8877 = vpack.c.b16 %v8071, %v8058
  %v8878 = vpack.c.b16 %v8072, %v8059
  %v8879 = vpack.c.b16 %v8073, %v8060
  %v8880 = vpack.c.b16 %v8074, %v8061
  %v8881 = vpack.c.b16 %v8075, %v8062
  %v8882 = vpack.c.b16 %v8076, %v8063
  %v8883 = vpack.c.b16 %v8077, %v8064
  %v8884 = vpack.c.b16 %v8078, %v8065
  %v8885 = vpack.c.b16 %v8079, %v8066
  %v8886 = vpack.c.b16 %v8080, %v8067
  %v8887 = vpack.c.b16 %v8081, %v8068
  %v8888 = vpack.c.b16 %v8095, %v8082
  %v8889 = vpack.c.b16 %v8096, %v8083
  %v8890 = vpack.c.b16 %v8097, %v8084
  %v8891 = vpack.c.b16 %v8098, %v8085
  %v8892 = vpack.c.b16 %v8099, %v8086
  %v8893 = vpack.c.b16 %v8100, %v8087
  %v8894 = vpack.c.b16 %v8101, %v8088
  %v8895 = vpack.c.b16 %v8102, %v8089
  %v8896 = vpack.c.b16 %v8103, %v8090
  %v8897 = vpack.c.b16 %v8104, %v8091
  %v8898 = vpack.c.b16 %v8105, %v8092
  %v8899 = vpack.c.b16 %v8106, %v8093
  %v8900 = vpack.c.b16 %v8107, %v8094
  %v8901 = vpack.c.b16 %v8121, %v8108
  %v8902 = vpack.c.b16 %v8122, %v8109
  %v8903 = vpack.c.b16 %v8123, %v8110
  %v8904 = vpack.c.b16 %v8124, %v8111
  %v8905 = vpack.c.b16 %v8125, %v8112
  %v8906 = vpack.c.b16 %v8126, %v8113
  %v8907 = vpack.c.b16 %v8127, %v8114
  %v8908 = vpack.c.b16 %v8128, %v8115
  %v8909 = vpack.c.b16 %v8129, %v8116
  %v8910 = vpack.c.b16 %v8130, %v8117
  %v8911 = vpack.c.b16 %v8131, %v8118
  %v8912 = vpack.c.b16 %v8132, %v8119
  %v8913 = vpack.c.b16 %v8133, %v8120
  %v8914 = vpack.c.b16 %v8147, %v8134
  %v8915 = vpack.c.b16 %v8148, %v8135
  %v8916 = vpack.c.b16 %v8149, %v8136
  %v8917 = vpack.c.b16 %v8150, %v8137
  %v8918 = vpack.c.b16 %v8151, %v8138
  %v8919 = vpack.c.b16 %v8152, %v8139
  %v8920 = vpack.c.b16 %v8153, %v8140
  %v8921 = vpack.c.b16 %v8154, %v8141
  %v8922 = vpack.c.b16 %v8155, %v8142
  %v8923 = vpack.c.b16 %v8156, %v8143
  %v8924 = vpack.c.b16 %v8157, %v8144
  %v8925 = vpack.c.b16 %v8158, %v8145
  %v8926 = vpack.c.b16 %v8159, %v8146
  %v8927 = vpack.c.b16 %v8173, %v8160
  %v8928 = vpack.c.b16 %v8174, %v8161
  %v8929 = vpack.c.b16 %v8175, %v8162
  %v8930 = vpack.c.b16 %v8176, %v8163
  %v8931 = vpack.c.b16 %v8177, %v8164
  %v8932 = vpack.c.b16 %v8178, %v8165
  %v8933 = vpack.c.b16 %v8179, %v8166
  %v8934 = vpack.c.b16 %v8180, %v8167
  %v8935 = vpack.c.b16 %v8181, %v8168
  %v8936 = vpack.c.b16 %v8182, %v8169
  %v8937 = vpack.c.b16 %v8183, %v8170
  %v8938 = vpack.c.b16 %v8184, %v8171
  %v8939 = vpack.c.b16 %v8185, %v8172
  %v8940 = vpack.c.b16 %v8199, %v8186
  %v8941 = vpack.c.b16 %v8200, %v8187
  %v8942 = vpack.c.b16 %v8201, %v8188
  %v8943 = vpack.c.b16 %v8202, %v8189
  %v8944 = vpack.c.b16 %v8203, %v8190
  %v8945 = vpack.c.b16 %v8204, %v8191
  %v8946 = vpack.c.b16 %v8205, %v8192
  %v8947 = vpack.c.b16 %v8206, %v8193
  %v8948 = vpack.c.b16 %v8207, %v8194
  %v8949 = vpack.c.b16 %v8208, %v8195
  %v8950 = vpack.c.b16 %v8209, %v8196
  %v8951 = vpack.c.b16 %v8210, %v8197
  %v8952 = vpack.c.b16 %v8211, %v8198
  %v8953 = vpack.c.b16 %v8225, %v8212
  %v8954 = vpack.c.b16 %v8226, %v8213
  %v8955 = vpack.c.b16 %v8227, %v8214
  %v8956 = vpack.c.b16 %v8228, %v8215
  %v8957 = vpack.c.b16 %v8229, %v8216
  %v8958 = vpack.c.b16 %v8230, %v8217
  %v8959 = vpack.c.b16 %v8231, %v8218
  %v8960 = vpack.c.b16 %v8232, %v8219
  %v8961 = vpack.c.b16 %v8233, %v8220
  %v8962 = vpack.c.b16 %v8234, %v8221
  %v8963 = vpack.c.b16 %v8235, %v8222
  %v8964 = vpack.c.b16 %v8236, %v8223
  %v8965 = vpack.c.b16 %v8237, %v8224
  %v8966 = vpack.c.b16 %v8251, %v8238
  %v8967 = vpack.c.b16 %v8252, %v8239
  %v8968 = vpack.c.b16 %v8253, %v8240
  %v8969 = vpack.c.b16 %v8254, %v8241
  %v8970 = vpack.c.b16 %v8255, %v8242
  %v8971 = vpack.c.b16 %v8256, %v8243
  %v8972 = vpack.c.b16 %v8257, %v8244
  %v8973 = vpack.c.b16 %v8258, %v8245
  %v8974 = vpack.c.b16 %v8259, %v8246
  %v8975 = vpack.c.b16 %v8260, %v8247
  %v8976 = vpack.c.b16 %v8261, %v8248
  %v8977 = vpack.c.b16 %v8262, %v8249
  %v8978 = vpack.c.b16 %v8263, %v8250
  %v8979 = vpack.c.b16 %v8277, %v8264
  %v8980 = vpack.c.b16 %v8278, %v8265
  %v8981 = vpack.c.b16 %v8279, %v8266
  %v8982 = vpack.c.b16 %v8280, %v8267
  %v8983 = vpack.c.b16 %v8281, %v8268
  %v8984 = vpack.c.b16 %v8282, %v8269
  %v8985 = vpack.c.b16 %v8283, %v8270
  %v8986 = vpack.c.b16 %v8284, %v8271
  %v8987 = vpack.c.b16 %v8285, %v8272
  %v8988 = vpack.c.b16 %v8286, %v8273
  %v8989 = vpack.c.b16 %v8287, %v8274
  %v8990 = vpack.c.b16 %v8288, %v8275
  %v8991 = vpack.c.b16 %v8289, %v8276
  %v8992 = vpack.c.b16 %v8303, %v8290
  %v8993 = vpack.c.b16 %v8304, %v8291
  %v8994 = vpack.c.b16 %v8305, %v8292
  %v8995 = vpack.c.b16 %v8306, %v8293
  %v8996 = vpack.c.b16 %v8307, %v8294
  %v8997 = vpack.c.b16 %v8308, %v8295
  %v8998 = vpack.c.b16 %v8309, %v8296
  %v8999 = vpack.c.b16 %v8310, %v8297
  %v9000 = vpack.c.b16 %v8311, %v8298
  %v9001 = vpack.c.b16 %v8312, %v8299
  %v9002 = vpack.c.b16 %v8313, %v8300
  %v9003 = vpack.c.b16 %v8314, %v8301
  %v9004 = vpack.c.b16 %v8315, %v8302
  %v9005 = vpack.c.b16 %v8329, %v8316
  %v9006 = vpack.c.b16 %v8330, %v8317
  %v9007 = vpack.c.b16 %v8331, %v8318
  %v9008 = vpack.c.b16 %v8332, %v8319
  %v9009 = vpack.c.b16 %v8333, %v8320
  %v9010 = vpack.c.b16 %v8334, %v8321
  %v9011 = vpack.c.b16 %v8335, %v8322
  %v9012 = vpack.c.b16 %v8336, %v8323
  %v9013 = vpack.c.b16 %v8337, %v8324
  %v9014 = vpack.c.b16 %v8338, %v8325
  %v9015 = vpack.c.b16 %v8339, %v8326
  %v9016 = vpack.c.b16 %v8340, %v8327
  %v9017 = vpack.c.b16 %v8341, %v8328
  %v9018 = vpack.c.b16 %v8355, %v8342
  %v9019 = vpack.c.b16 %v8356, %v8343
  %v9020 = vpack.c.b16 %v8357, %v8344
  %v9021 = vpack.c.b16 %v8358, %v8345
  %v9022 = vpack.c.b16 %v8359, %v8346
  %v9023 = vpack.c.b16 %v8360, %v8347
  %v9024 = vpack.c.b16 %v8361, %v8348
  %v9025 = vpack.c.b16 %v8362, %v8349
  %v9026 = vpack.c.b16 %v8363, %v8350
  %v9027 = vpack.c.b16 %v8364, %v8351
  %v9028 = vpack.c.b16 %v8365, %v8352
  %v9029 = vpack.c.b16 %v8366, %v8353
  %v9030 = vpack.c.b16 %v8367, %v8354
  %v9031 = vpack.c.b16 %v8381, %v8368
  %v9032 = vpack.c.b16 %v8382, %v8369
  %v9033 = vpack.c.b16 %v8383, %v8370
  %v9034 = vpack.c.b16 %v8384, %v8371
  %v9035 = vpack.c.b16 %v8385, %v8372
  %v9036 = vpack.c.b16 %v8386, %v8373
  %v9037 = vpack.c.b16 %v8387, %v8374
  %v9038 = vpack.c.b16 %v8388, %v8375
  %v9039 = vpack.c.b16 %v8389, %v8376
  %v9040 = vpack.c.b16 %v8390, %v8377
  %v9041 = vpack.c.b16 %v8391, %v8378
  %v9042 = vpack.c.b16 %v8392, %v8379
  %v9043 = vpack.c.b16 %v8393, %v8380
  %v9044 = vpack.c.b16 %v8407, %v8394
  %v9045 = vpack.c.b16 %v8408, %v8395
  %v9046 = vpack.c.b16 %v8409, %v8396
  %v9047 = vpack.c.b16 %v8410, %v8397
  %v9048 = vpack.c.b16 %v8411, %v8398
  %v9049 = vpack.c.b16 %v8412, %v8399
  %v9050 = vpack.c.b16 %v8413, %v8400
  %v9051 = vpack.c.b16 %v8414, %v8401
  %v9052 = vpack.c.b16 %v8415, %v8402
  %v9053 = vpack.c.b16 %v8416, %v8403
  %v9054 = vpack.c.b16 %v8417, %v8404
  %v9055 = vpack.c.b16 %v8418, %v8405
  %v9056 = vpack.c.b16 %v8419, %v8406
  %v9057 = vpack.c.b16 %v8433, %v8420
  %v9058 = vpack.c.b16 %v8434, %v8421
  %v9059 = vpack.c.b16 %v8435, %v8422
  %v9060 = vpack.c.b16 %v8436, %v8423
  %v9061 = vpack.c.b16 %v8437, %v8424
  %v9062 = vpack.c.b16 %v8438, %v8425
  %v9063 = vpack.c.b16 %v8439, %v8426
  %v9064 = vpack.c.b16 %v8440, %v8427
  %v9065 = vpack.c.b16 %v8441, %v8428
  %v9066 = vpack.c.b16 %v8442, %v8429
  %v9067 = vpack.c.b16 %v8443, %v8430
  %v9068 = vpack.c.b16 %v8444, %v8431
  %v9069 = vpack.c.b16 %v8445, %v8432
  %v9070 = vpack.c.b16 %v8459, %v8446
  %v9071 = vpack.c.b16 %v8460, %v8447
  %v9072 = vpack.c.b16 %v8461, %v8448
  %v9073 = vpack.c.b16 %v8462, %v8449
  %v9074 = vpack.c.b16 %v8463, %v8450
  %v9075 = vpack.c.b16 %v8464, %v8451
  %v9076 = vpack.c.b16 %v8465, %v8452
  %v9077 = vpack.c.b16 %v8466, %v8453
  %v9078 = vpack.c.b16 %v8467, %v8454
  %v9079 = vpack.c.b16 %v8468, %v8455
  %v9080 = vpack.c.b16 %v8469, %v8456
  %v9081 = vpack.c.b16 %v8470, %v8457
  %v9082 = vpack.c.b16 %v8471, %v8458
  %v9083 = vpack.c.b16 %v8485, %v8472
  %v9084 = vpack.c.b16 %v8486, %v8473
  %v9085 = vpack.c.b16 %v8487, %v8474
  %v9086 = vpack.c.b16 %v8488, %v8475
  %v9087 = vpack.c.b16 %v8489, %v8476
  %v9088 = vpack.c.b16 %v8490, %v8477
  %v9089 = vpack.c.b16 %v8491, %v8478
  %v9090 = vpack.c.b16 %v8492, %v8479
  %v9091 = vpack.c.b16 %v8493, %v8480
  %v9092 = vpack.c.b16 %v8494, %v8481
  %v9093 = vpack.c.b16 %v8495, %v8482
  %v9094 = vpack.c.b16 %v8496, %v8483
  %v9095 = vpack.c.b16 %v8497, %v8484
  %v9096 = vpack.c.b16 %v8511, %v8498
  %v9097 = vpack.c.b16 %v8512, %v8499
  %v9098 = vpack.c.b16 %v8513, %v8500
  %v9099 = vpack.c.b16 %v8514, %v8501
  %v9100 = vpack.c.b16 %v8515, %v8502
  %v9101 = vpack.c.b16 %v8516, %v8503
  %v9102 = vpack.c.b16 %v8517, %v8504
  %v9103 = vpack.c.b16 %v8518, %v8505
  %v9104 = vpack.c.b16 %v8519, %v8506
  %v9105 = vpack.c.b16 %v8520, %v8507
  %v9106 = vpack.c.b16 %v8521, %v8508
  %v9107 = vpack.c.b16 %v8522, %v8509
  %v9108 = vpack.c.b16 %v8523, %v8510
  %v9109 = vpack.c.b16 %v8537, %v8524
  %v9110 = vpack.c.b16 %v8538, %v8525
  %v9111 = vpack.c.b16 %v8539, %v8526
  %v9112 = vpack.c.b16 %v8540, %v8527
  %v9113 = vpack.c.b16 %v8541, %v8528
  %v9114 = vpack.c.b16 %v8542, %v8529
  %v9115 = vpack.c.b16 %v8543, %v8530
  %v9116 = vpack.c.b16 %v8544, %v8531
  %v9117 = vpack.c.b16 %v8545, %v8532
  %v9118 = vpack.c.b16 %v8546, %v8533
  %v9119 = vpack.c.b16 %v8547, %v8534
  %v9120 = vpack.c.b16 %v8548, %v8535
  %v9121 = vpack.c.b16 %v8549, %v8536
  %v9122 = vpack.c.b16 %v8563, %v8550
  %v9123 = vpack.c.b16 %v8564, %v8551
  %v9124 = vpack.c.b16 %v8565, %v8552
  %v9125 = vpack.c.b16 %v8566, %v8553
  %v9126 = vpack.c.b16 %v8567, %v8554
  %v9127 = vpack.c.b16 %v8568, %v8555
  %v9128 = vpack.c.b16 %v8569, %v8556
  %v9129 = vpack.c.b16 %v8570, %v8557
  %v9130 = vpack.c.b16 %v8571, %v8558
  %v9131 = vpack.c.b16 %v8572, %v8559
  %v9132 = vpack.c.b16 %v8573, %v8560
  %v9133 = vpack.c.b16 %v8574, %v8561
  %v9134 = vpack.c.b16 %v8575, %v8562
  %v9135 = vpack.c.b16 %v8589, %v8576
  %v9136 = vpack.c.b16 %v8590, %v8577
  %v9137 = vpack.c.b16 %v8591, %v8578
  %v9138 = vpack.c.b16 %v8592, %v8579
  %v9139 = vpack.c.b16 %v8593, %v8580
  %v9140 = vpack.c.b16 %v8594, %v8581
  %v9141 = vpack.c.b16 %v8595, %v8582
  %v9142 = vpack.c.b16 %v8596, %v8583
  %v9143 = vpack.c.b16 %v8597, %v8584
  %v9144 = vpack.c.b16 %v8598, %v8585
  %v9145 = vpack.c.b16 %v8599, %v8586
  %v9146 = vpack.c.b16 %v8600, %v8587
  %v9147 = vpack.c.b16 %v8601, %v8588
  %v9148 = vpack.c.b16 %v8615, %v8602
  %v9149 = vpack.c.b16 %v8616, %v8603
  %v9150 = vpack.c.b16 %v8617, %v8604
  %v9151 = vpack.c.b16 %v8618, %v8605
  %v9152 = vpack.c.b16 %v8619, %v8606
  %v9153 = vpack.c.b16 %v8620, %v8607
  %v9154 = vpack.c.b16 %v8621, %v8608
  %v9155 = vpack.c.b16 %v8622, %v8609
  %v9156 = vpack.c.b16 %v8623, %v8610
  %v9157 = vpack.c.b16 %v8624, %v8611
  %v9158 = vpack.c.b16 %v8625, %v8612
  %v9159 = vpack.c.b16 %v8626, %v8613
  %v9160 = vpack.c.b16 %v8627, %v8614
  %v9161 = vpack.c.b16 %v8641, %v8628
  %v9162 = vpack.c.b16 %v8642, %v8629
  %v9163 = vpack.c.b16 %v8643, %v8630
  %v9164 = vpack.c.b16 %v8644, %v8631
  %v9165 = vpack.c.b16 %v8645, %v8632
  %v9166 = vpack.c.b16 %v8646, %v8633
  %v9167 = vpack.c.b16 %v8647, %v8634
  %v9168 = vpack.c.b16 %v8648, %v8635
  %v9169 = vpack.c.b16 %v8649, %v8636
  %v9170 = vpack.c.b16 %v8650, %v8637
  %v9171 = vpack.c.b16 %v8651, %v8638
  %v9172 = vpack.c.b16 %v8652, %v8639
  %v9173 = vpack.c.b16 %v8653, %v8640
  %v9174 = vpack.c.b16 %v8667, %v8654
  %v9175 = vpack.c.b16 %v8668, %v8655
  %v9176 = vpack.c.b16 %v8669, %v8656
  %v9177 = vpack.c.b16 %v8670, %v8657
  %v9178 = vpack.c.b16 %v8671, %v8658
  %v9179 = vpack.c.b16 %v8672, %v8659
  %v9180 = vpack.c.b16 %v8673, %v8660
  %v9181 = vpack.c.b16 %v8674, %v8661
  %v9182 = vpack.c.b16 %v8675, %v8662
  %v9183 = vpack.c.b16 %v8676, %v8663
  %v9184 = vpack.c.b16 %v8677, %v8664
  %v9185 = vpack.c.b16 %v8678, %v8665
  %v9186 = vpack.c.b16 %v8679, %v8666
  %v9187 = vpack.c.b16 %v8693, %v8680
  %v9188 = vpack.c.b16 %v8694, %v8681
  %v9189 = vpack.c.b16 %v8695, %v8682
  %v9190 = vpack.c.b16 %v8696, %v8683
  %v9191 = vpack.c.b16 %v8697, %v8684
  %v9192 = vpack.c.b16 %v8698, %v8685
  %v9193 = vpack.c.b16 %v8699, %v8686
  %v9194 = vpack.c.b16 %v8700, %v8687
  %v9195 = vpack.c.b16 %v8701, %v8688
  %v9196 = vpack.c.b16 %v8702, %v8689
  %v9197 = vpack.c.b16 %v8703, %v8690
  %v9198 = vpack.c.b16 %v8704, %v8691
  %v9199 = vpack.c.b16 %v8705, %v8692
  %v9200 = vpack.c.b16 %v8719, %v8706
  %v9201 = vpack.c.b16 %v8720, %v8707
  %v9202 = vpack.c.b16 %v8721, %v8708
  %v9203 = vpack.c.b16 %v8722, %v8709
  %v9204 = vpack.c.b16 %v8723, %v8710
  %v9205 = vpack.c.b16 %v8724, %v8711
  %v9206 = vpack.c.b16 %v8725, %v8712
  %v9207 = vpack.c.b16 %v8726, %v8713
  %v9208 = vpack.c.b16 %v8727, %v8714
  %v9209 = vpack.c.b16 %v8728, %v8715
  %v9210 = vpack.c.b16 %v8729, %v8716
  %v9211 = vpack.c.b16 %v8730, %v8717
  %v9212 = vpack.c.b16 %v8731, %v8718
  %v9213 = vpack.c.b16 %v8745, %v8732
  %v9214 = vpack.c.b16 %v8746, %v8733
  %v9215 = vpack.c.b16 %v8747, %v8734
  %v9216 = vpack.c.b16 %v8748, %v8735
  %v9217 = vpack.c.b16 %v8749, %v8736
  %v9218 = vpack.c.b16 %v8750, %v8737
  %v9219 = vpack.c.b16 %v8751, %v8738
  %v9220 = vpack.c.b16 %v8752, %v8739
  %v9221 = vpack.c.b16 %v8753, %v8740
  %v9222 = vpack.c.b16 %v8754, %v8741
  %v9223 = vpack.c.b16 %v8755, %v8742
  %v9224 = vpack.c.b16 %v8756, %v8743
  %v9225 = vpack.c.b16 %v8757, %v8744
  %v9226 = vpack.c.b16 %v8771, %v8758
  %v9227 = vpack.c.b16 %v8772, %v8759
  %v9228 = vpack.c.b16 %v8773, %v8760
  %v9229 = vpack.c.b16 %v8774, %v8761
  %v9230 = vpack.c.b16 %v8775, %v8762
  %v9231 = vpack.c.b16 %v8776, %v8763
  %v9232 = vpack.c.b16 %v8777, %v8764
  %v9233 = vpack.c.b16 %v8778, %v8765
  %v9234 = vpack.c.b16 %v8779, %v8766
  %v9235 = vpack.c.b16 %v8780, %v8767
  %v9236 = vpack.c.b16 %v8781, %v8768
  %v9237 = vpack.c.b16 %v8782, %v8769
  %v9238 = vpack.c.b16 %v8783, %v8770
  %v9239 = vpack.c.b16 %v8797, %v8784
  %v9240 = vpack.c.b16 %v8798, %v8785
  %v9241 = vpack.c.b16 %v8799, %v8786
  %v9242 = vpack.c.b16 %v8800, %v8787
  %v9243 = vpack.c.b16 %v8801, %v8788
  %v9244 = vpack.c.b16 %v8802, %v8789
  %v9245 = vpack.c.b16 %v8803, %v8790
  %v9246 = vpack.c.b16 %v8804, %v8791
  %v9247 = vpack.c.b16 %v8805, %v8792
  %v9248 = vpack.c.b16 %v8806, %v8793
  %v9249 = vpack.c.b16 %v8807, %v8794
  %v9250 = vpack.c.b16 %v8808, %v8795
  %v9251 = vpack.c.b16 %v8809, %v8796
  %v9252 = vpack.c.b16 %v8823, %v8810
  %v9253 = vpack.c.b16 %v8824, %v8811
  %v9254 = vpack.c.b16 %v8825, %v8812
  %v9255 = vpack.c.b16 %v8826, %v8813
  %v9256 = vpack.c.b16 %v8827, %v8814
  %v9257 = vpack.c.b16 %v8828, %v8815
  %v9258 = vpack.c.b16 %v8829, %v8816
  %v9259 = vpack.c.b16 %v8830, %v8817
  %v9260 = vpack.c.b16 %v8831, %v8818
  %v9261 = vpack.c.b16 %v8832, %v8819
  %v9262 = vpack.c.b16 %v8833, %v8820
  %v9263 = vpack.c.b16 %v8834, %v8821
  %v9264 = vpack.c.b16 %v8835, %v8822
  %v9265 = vpack.c.b16 %v8849, %v8836
  %v9266 = vpack.c.b16 %v8850, %v8837
  %v9267 = vpack.c.b16 %v8851, %v8838
  %v9268 = vpack.c.b16 %v8852, %v8839
  %v9269 = vpack.c.b16 %v8853, %v8840
  %v9270 = vpack.c.b16 %v8854, %v8841
  %v9271 = vpack.c.b16 %v8855, %v8842
  %v9272 = vpack.c.b16 %v8856, %v8843
  %v9273 = vpack.c.b16 %v8857, %v8844
  %v9274 = vpack.c.b16 %v8858, %v8845
  %v9275 = vpack.c.b16 %v8859, %v8846
  %v9276 = vpack.c.b16 %v8860, %v8847
  %v9277 = vpack.c.b16 %v8861, %v8848
  %vm9662 = vcmask 523264
  %v9664 = vsel %vm9662, %v8874, 0
  %v9667 = vsel %vm9662, %v8887, 0
  %v9670 = vsel %vm9662, %v8900, 0
  %v9673 = vsel %vm9662, %v8913, 0
  %v9676 = vsel %vm9662, %v8926, 0
  %v9679 = vsel %vm9662, %v8939, 0
  %v9682 = vsel %vm9662, %v8952, 0
  %v9685 = vsel %vm9662, %v8965, 0
  %v9688 = vsel %vm9662, %v8978, 0
  %v9691 = vsel %vm9662, %v8991, 0
  %v9694 = vsel %vm9662, %v9004, 0
  %v9697 = vsel %vm9662, %v9017, 0
  %v9700 = vsel %vm9662, %v9030, 0
  %v9703 = vsel %vm9662, %v9043, 0
  %v9706 = vsel %vm9662, %v9056, 0
  %v9709 = vsel %vm9662, %v9069, 0
  %v9712 = vsel %vm9662, %v9082, 0
  %v9715 = vsel %vm9662, %v9095, 0
  %v9718 = vsel %vm9662, %v9108, 0
  %v9721 = vsel %vm9662, %v9121, 0
  %v9724 = vsel %vm9662, %v9134, 0
  %v9727 = vsel %vm9662, %v9147, 0
  %v9730 = vsel %vm9662, %v9160, 0
  %v9733 = vsel %vm9662, %v9173, 0
  %v9736 = vsel %vm9662, %v9186, 0
  %v9739 = vsel %vm9662, %v9199, 0
  %v9742 = vsel %vm9662, %v9212, 0
  %v9745 = vsel %vm9662, %v9225, 0
  %v9748 = vsel %vm9662, %v9238, 0
  %v9751 = vsel %vm9662, %v9251, 0
  %v9754 = vsel %vm9662, %v9264, 0
  %v9757 = vsel %vm9662, %v9277, 0
  %9759 = vmatpush.bf16.msra.mxu0 %v6657
  %9760 = vmatpush.bf16.msra.mxu0 %v6656
  %9761 = vmatpush.bf16.msra.mxu0 %v6655
  %9762 = vmatpush.bf16.msra.mxu0 %v6654
  %9763 = vmatpush.bf16.msra.mxu0 %v6653
  %9764 = vmatpush.bf16.msra.mxu0 %v6652
  %9765 = vmatpush.bf16.msra.mxu0 %v6651
  %9766 = vmatpush.bf16.msra.mxu0 %v6650
  %9767 = vmatmul.bf16.gmra.mxu0 %v8862
  %v9768 = vpop.f32.mrf.mxu0
  %v9769 = vadd.f32 %v7265, %v9768
  %v9770 = vpop.f32.mrf.mxu0
  %v9771 = vadd.f32 %v7270, %v9770
  %9772 = vmatmul.bf16.gmra.mxu0 %v8875
  %v9773 = vpop.f32.mrf.mxu0
  %v9774 = vadd.f32 %v7275, %v9773
  %v9775 = vpop.f32.mrf.mxu0
  %v9776 = vadd.f32 %v7280, %v9775
  %9777 = vmatmul.bf16.gmra.mxu0 %v8888
  %v9778 = vpop.f32.mrf.mxu0
  %v9779 = vadd.f32 %v7285, %v9778
  %v9780 = vpop.f32.mrf.mxu0
  %v9781 = vadd.f32 %v7290, %v9780
  %9782 = vmatmul.bf16.gmra.mxu0 %v8901
  %v9783 = vpop.f32.mrf.mxu0
  %v9784 = vadd.f32 %v7295, %v9783
  %v9785 = vpop.f32.mrf.mxu0
  %v9786 = vadd.f32 %v7300, %v9785
  %9787 = vmatmul.bf16.gmra.mxu0 %v8914
  %v9788 = vpop.f32.mrf.mxu0
  %v9789 = vadd.f32 %v7305, %v9788
  %v9790 = vpop.f32.mrf.mxu0
  %v9791 = vadd.f32 %v7310, %v9790
  %9792 = vmatmul.bf16.gmra.mxu0 %v8927
  %v9793 = vpop.f32.mrf.mxu0
  %v9794 = vadd.f32 %v7315, %v9793
  %v9795 = vpop.f32.mrf.mxu0
  %v9796 = vadd.f32 %v7320, %v9795
  %9797 = vmatmul.bf16.gmra.mxu0 %v8940
  %v9798 = vpop.f32.mrf.mxu0
  %v9799 = vadd.f32 %v7325, %v9798
  %v9800 = vpop.f32.mrf.mxu0
  %v9801 = vadd.f32 %v7330, %v9800
  %9802 = vmatmul.bf16.gmra.mxu0 %v8953
  %v9803 = vpop.f32.mrf.mxu0
  %v9804 = vadd.f32 %v7335, %v9803
  %v9805 = vpop.f32.mrf.mxu0
  %v9806 = vadd.f32 %v7340, %v9805
  %9807 = vmatmul.bf16.gmra.mxu0 %v8966
  %v9808 = vpop.f32.mrf.mxu0
  %v9809 = vadd.f32 %v7345, %v9808
  %v9810 = vpop.f32.mrf.mxu0
  %v9811 = vadd.f32 %v7350, %v9810
  %9812 = vmatmul.bf16.gmra.mxu0 %v8979
  %v9813 = vpop.f32.mrf.mxu0
  %v9814 = vadd.f32 %v7355, %v9813
  %v9815 = vpop.f32.mrf.mxu0
  %v9816 = vadd.f32 %v7360, %v9815
  %9817 = vmatmul.bf16.gmra.mxu0 %v8992
  %v9818 = vpop.f32.mrf.mxu0
  %v9819 = vadd.f32 %v7365, %v9818
  %v9820 = vpop.f32.mrf.mxu0
  %v9821 = vadd.f32 %v7370, %v9820
  %9822 = vmatmul.bf16.gmra.mxu0 %v9005
  %v9823 = vpop.f32.mrf.mxu0
  %v9824 = vadd.f32 %v7375, %v9823
  %v9825 = vpop.f32.mrf.mxu0
  %v9826 = vadd.f32 %v7380, %v9825
  %9827 = vmatmul.bf16.gmra.mxu0 %v9018
  %v9828 = vpop.f32.mrf.mxu0
  %v9829 = vadd.f32 %v7385, %v9828
  %v9830 = vpop.f32.mrf.mxu0
  %v9831 = vadd.f32 %v7390, %v9830
  %9832 = vmatmul.bf16.gmra.mxu0 %v9031
  %v9833 = vpop.f32.mrf.mxu0
  %v9834 = vadd.f32 %v7395, %v9833
  %v9835 = vpop.f32.mrf.mxu0
  %v9836 = vadd.f32 %v7400, %v9835
  %9837 = vmatmul.bf16.gmra.mxu0 %v9044
  %v9838 = vpop.f32.mrf.mxu0
  %v9839 = vadd.f32 %v7405, %v9838
  %v9840 = vpop.f32.mrf.mxu0
  %v9841 = vadd.f32 %v7410, %v9840
  %9842 = vmatmul.bf16.gmra.mxu0 %v9057
  %v9843 = vpop.f32.mrf.mxu0
  %v9844 = vadd.f32 %v7415, %v9843
  %v9845 = vpop.f32.mrf.mxu0
  %v9846 = vadd.f32 %v7420, %v9845
  %9847 = vmatmul.bf16.gmra.mxu0 %v9070
  %v9848 = vpop.f32.mrf.mxu0
  %v9849 = vadd.f32 %v7425, %v9848
  %v9850 = vpop.f32.mrf.mxu0
  %v9851 = vadd.f32 %v7430, %v9850
  %9852 = vmatmul.bf16.gmra.mxu0 %v9083
  %v9853 = vpop.f32.mrf.mxu0
  %v9854 = vadd.f32 %v7435, %v9853
  %v9855 = vpop.f32.mrf.mxu0
  %v9856 = vadd.f32 %v7440, %v9855
  %9857 = vmatmul.bf16.gmra.mxu0 %v9096
  %v9858 = vpop.f32.mrf.mxu0
  %v9859 = vadd.f32 %v7445, %v9858
  %v9860 = vpop.f32.mrf.mxu0
  %v9861 = vadd.f32 %v7450, %v9860
  %9862 = vmatmul.bf16.gmra.mxu0 %v9109
  %v9863 = vpop.f32.mrf.mxu0
  %v9864 = vadd.f32 %v7455, %v9863
  %v9865 = vpop.f32.mrf.mxu0
  %v9866 = vadd.f32 %v7460, %v9865
  %9867 = vmatmul.bf16.gmra.mxu0 %v9122
  %v9868 = vpop.f32.mrf.mxu0
  %v9869 = vadd.f32 %v7465, %v9868
  %v9870 = vpop.f32.mrf.mxu0
  %v9871 = vadd.f32 %v7470, %v9870
  %9872 = vmatmul.bf16.gmra.mxu0 %v9135
  %v9873 = vpop.f32.mrf.mxu0
  %v9874 = vadd.f32 %v7475, %v9873
  %v9875 = vpop.f32.mrf.mxu0
  %v9876 = vadd.f32 %v7480, %v9875
  %9877 = vmatmul.bf16.gmra.mxu0 %v9148
  %v9878 = vpop.f32.mrf.mxu0
  %v9879 = vadd.f32 %v7485, %v9878
  %v9880 = vpop.f32.mrf.mxu0
  %v9881 = vadd.f32 %v7490, %v9880
  %9882 = vmatmul.bf16.gmra.mxu0 %v9161
  %v9883 = vpop.f32.mrf.mxu0
  %v9884 = vadd.f32 %v7495, %v9883
  %v9885 = vpop.f32.mrf.mxu0
  %v9886 = vadd.f32 %v7500, %v9885
  %9887 = vmatmul.bf16.gmra.mxu0 %v9174
  %v9888 = vpop.f32.mrf.mxu0
  %v9889 = vadd.f32 %v7505, %v9888
  %v9890 = vpop.f32.mrf.mxu0
  %v9891 = vadd.f32 %v7510, %v9890
  %9892 = vmatmul.bf16.gmra.mxu0 %v9187
  %v9893 = vpop.f32.mrf.mxu0
  %v9894 = vadd.f32 %v7515, %v9893
  %v9895 = vpop.f32.mrf.mxu0
  %v9896 = vadd.f32 %v7520, %v9895
  %9897 = vmatmul.bf16.gmra.mxu0 %v9200
  %v9898 = vpop.f32.mrf.mxu0
  %v9899 = vadd.f32 %v7525, %v9898
  %v9900 = vpop.f32.mrf.mxu0
  %v9901 = vadd.f32 %v7530, %v9900
  %9902 = vmatmul.bf16.gmra.mxu0 %v9213
  %v9903 = vpop.f32.mrf.mxu0
  %v9904 = vadd.f32 %v7535, %v9903
  %v9905 = vpop.f32.mrf.mxu0
  %v9906 = vadd.f32 %v7540, %v9905
  %9907 = vmatmul.bf16.gmra.mxu0 %v9226
  %v9908 = vpop.f32.mrf.mxu0
  %v9909 = vadd.f32 %v7545, %v9908
  %v9910 = vpop.f32.mrf.mxu0
  %v9911 = vadd.f32 %v7550, %v9910
  %9912 = vmatmul.bf16.gmra.mxu0 %v9239
  %v9913 = vpop.f32.mrf.mxu0
  %v9914 = vadd.f32 %v7555, %v9913
  %v9915 = vpop.f32.mrf.mxu0
  %v9916 = vadd.f32 %v7560, %v9915
  %9917 = vmatmul.bf16.gmra.mxu0 %v9252
  %v9918 = vpop.f32.mrf.mxu0
  %v9919 = vadd.f32 %v7565, %v9918
  %v9920 = vpop.f32.mrf.mxu0
  %v9921 = vadd.f32 %v7570, %v9920
  %9922 = vmatmul.bf16.gmra.mxu0 %v9265
  %v9923 = vpop.f32.mrf.mxu0
  %v9924 = vadd.f32 %v7575, %v9923
  %v9925 = vpop.f32.mrf.mxu0
  %v9926 = vadd.f32 %v7580, %v9925
  %9927 = vdwg.mxu0
  %9928 = vmatpush.bf16.msra.mxu0 %v6665
  %9929 = vmatpush.bf16.msra.mxu0 %v6664
  %9930 = vmatpush.bf16.msra.mxu0 %v6663
  %9931 = vmatpush.bf16.msra.mxu0 %v6662
  %9932 = vmatpush.bf16.msra.mxu0 %v6661
  %9933 = vmatpush.bf16.msra.mxu0 %v6660
  %9934 = vmatpush.bf16.msra.mxu0 %v6659
  %9935 = vmatpush.bf16.msra.mxu0 %v6658
  %9936 = vmatmul.bf16.gmra.mxu0 %v8863
  %v9937 = vpop.f32.mrf.mxu0
  %v9938 = vadd.f32 %v9769, %v9937
  %v9939 = vpop.f32.mrf.mxu0
  %v9940 = vadd.f32 %v9771, %v9939
  %9941 = vmatmul.bf16.gmra.mxu0 %v8876
  %v9942 = vpop.f32.mrf.mxu0
  %v9943 = vadd.f32 %v9774, %v9942
  %v9944 = vpop.f32.mrf.mxu0
  %v9945 = vadd.f32 %v9776, %v9944
  %9946 = vmatmul.bf16.gmra.mxu0 %v8889
  %v9947 = vpop.f32.mrf.mxu0
  %v9948 = vadd.f32 %v9779, %v9947
  %v9949 = vpop.f32.mrf.mxu0
  %v9950 = vadd.f32 %v9781, %v9949
  %9951 = vmatmul.bf16.gmra.mxu0 %v8902
  %v9952 = vpop.f32.mrf.mxu0
  %v9953 = vadd.f32 %v9784, %v9952
  %v9954 = vpop.f32.mrf.mxu0
  %v9955 = vadd.f32 %v9786, %v9954
  %9956 = vmatmul.bf16.gmra.mxu0 %v8915
  %v9957 = vpop.f32.mrf.mxu0
  %v9958 = vadd.f32 %v9789, %v9957
  %v9959 = vpop.f32.mrf.mxu0
  %v9960 = vadd.f32 %v9791, %v9959
  %9961 = vmatmul.bf16.gmra.mxu0 %v8928
  %v9962 = vpop.f32.mrf.mxu0
  %v9963 = vadd.f32 %v9794, %v9962
  %v9964 = vpop.f32.mrf.mxu0
  %v9965 = vadd.f32 %v9796, %v9964
  %9966 = vmatmul.bf16.gmra.mxu0 %v8941
  %v9967 = vpop.f32.mrf.mxu0
  %v9968 = vadd.f32 %v9799, %v9967
  %v9969 = vpop.f32.mrf.mxu0
  %v9970 = vadd.f32 %v9801, %v9969
  %9971 = vmatmul.bf16.gmra.mxu0 %v8954
  %v9972 = vpop.f32.mrf.mxu0
  %v9973 = vadd.f32 %v9804, %v9972
  %v9974 = vpop.f32.mrf.mxu0
  %v9975 = vadd.f32 %v9806, %v9974
  %9976 = vmatmul.bf16.gmra.mxu0 %v8967
  %v9977 = vpop.f32.mrf.mxu0
  %v9978 = vadd.f32 %v9809, %v9977
  %v9979 = vpop.f32.mrf.mxu0
  %v9980 = vadd.f32 %v9811, %v9979
  %9981 = vmatmul.bf16.gmra.mxu0 %v8980
  %v9982 = vpop.f32.mrf.mxu0
  %v9983 = vadd.f32 %v9814, %v9982
  %v9984 = vpop.f32.mrf.mxu0
  %v9985 = vadd.f32 %v9816, %v9984
  %9986 = vmatmul.bf16.gmra.mxu0 %v8993
  %v9987 = vpop.f32.mrf.mxu0
  %v9988 = vadd.f32 %v9819, %v9987
  %v9989 = vpop.f32.mrf.mxu0
  %v9990 = vadd.f32 %v9821, %v9989
  %9991 = vmatmul.bf16.gmra.mxu0 %v9006
  %v9992 = vpop.f32.mrf.mxu0
  %v9993 = vadd.f32 %v9824, %v9992
  %v9994 = vpop.f32.mrf.mxu0
  %v9995 = vadd.f32 %v9826, %v9994
  %9996 = vmatmul.bf16.gmra.mxu0 %v9019
  %v9997 = vpop.f32.mrf.mxu0
  %v9998 = vadd.f32 %v9829, %v9997
  %v9999 = vpop.f32.mrf.mxu0
  %v10000 = vadd.f32 %v9831, %v9999
  %10001 = vmatmul.bf16.gmra.mxu0 %v9032
  %v10002 = vpop.f32.mrf.mxu0
  %v10003 = vadd.f32 %v9834, %v10002
  %v10004 = vpop.f32.mrf.mxu0
  %v10005 = vadd.f32 %v9836, %v10004
  %10006 = vmatmul.bf16.gmra.mxu0 %v9045
  %v10007 = vpop.f32.mrf.mxu0
  %v10008 = vadd.f32 %v9839, %v10007
  %v10009 = vpop.f32.mrf.mxu0
  %v10010 = vadd.f32 %v9841, %v10009
  %10011 = vmatmul.bf16.gmra.mxu0 %v9058
  %v10012 = vpop.f32.mrf.mxu0
  %v10013 = vadd.f32 %v9844, %v10012
  %v10014 = vpop.f32.mrf.mxu0
  %v10015 = vadd.f32 %v9846, %v10014
  %10016 = vmatmul.bf16.gmra.mxu0 %v9071
  %v10017 = vpop.f32.mrf.mxu0
  %v10018 = vadd.f32 %v9849, %v10017
  %v10019 = vpop.f32.mrf.mxu0
  %v10020 = vadd.f32 %v9851, %v10019
  %10021 = vmatmul.bf16.gmra.mxu0 %v9084
  %v10022 = vpop.f32.mrf.mxu0
  %v10023 = vadd.f32 %v9854, %v10022
  %v10024 = vpop.f32.mrf.mxu0
  %v10025 = vadd.f32 %v9856, %v10024
  %10026 = vmatmul.bf16.gmra.mxu0 %v9097
  %v10027 = vpop.f32.mrf.mxu0
  %v10028 = vadd.f32 %v9859, %v10027
  %v10029 = vpop.f32.mrf.mxu0
  %v10030 = vadd.f32 %v9861, %v10029
  %10031 = vmatmul.bf16.gmra.mxu0 %v9110
  %v10032 = vpop.f32.mrf.mxu0
  %v10033 = vadd.f32 %v9864, %v10032
  %v10034 = vpop.f32.mrf.mxu0
  %v10035 = vadd.f32 %v9866, %v10034
  %10036 = vmatmul.bf16.gmra.mxu0 %v9123
  %v10037 = vpop.f32.mrf.mxu0
  %v10038 = vadd.f32 %v9869, %v10037
  %v10039 = vpop.f32.mrf.mxu0
  %v10040 = vadd.f32 %v9871, %v10039
  %10041 = vmatmul.bf16.gmra.mxu0 %v9136
  %v10042 = vpop.f32.mrf.mxu0
  %v10043 = vadd.f32 %v9874, %v10042
  %v10044 = vpop.f32.mrf.mxu0
  %v10045 = vadd.f32 %v9876, %v10044
  %10046 = vmatmul.bf16.gmra.mxu0 %v9149
  %v10047 = vpop.f32.mrf.mxu0
  %v10048 = vadd.f32 %v9879, %v10047
  %v10049 = vpop.f32.mrf.mxu0
  %v10050 = vadd.f32 %v9881, %v10049
  %10051 = vmatmul.bf16.gmra.mxu0 %v9162
  %v10052 = vpop.f32.mrf.mxu0
  %v10053 = vadd.f32 %v9884, %v10052
  %v10054 = vpop.f32.mrf.mxu0
  %v10055 = vadd.f32 %v9886, %v10054
  %10056 = vmatmul.bf16.gmra.mxu0 %v9175
  %v10057 = vpop.f32.mrf.mxu0
  %v10058 = vadd.f32 %v9889, %v10057
  %v10059 = vpop.f32.mrf.mxu0
  %v10060 = vadd.f32 %v9891, %v10059
  %10061 = vmatmul.bf16.gmra.mxu0 %v9188
  %v10062 = vpop.f32.mrf.mxu0
  %v10063 = vadd.f32 %v9894, %v10062
  %v10064 = vpop.f32.mrf.mxu0
  %v10065 = vadd.f32 %v9896, %v10064
  %10066 = vmatmul.bf16.gmra.mxu0 %v9201
  %v10067 = vpop.f32.mrf.mxu0
  %v10068 = vadd.f32 %v9899, %v10067
  %v10069 = vpop.f32.mrf.mxu0
  %v10070 = vadd.f32 %v9901, %v10069
  %10071 = vmatmul.bf16.gmra.mxu0 %v9214
  %v10072 = vpop.f32.mrf.mxu0
  %v10073 = vadd.f32 %v9904, %v10072
  %v10074 = vpop.f32.mrf.mxu0
  %v10075 = vadd.f32 %v9906, %v10074
  %10076 = vmatmul.bf16.gmra.mxu0 %v9227
  %v10077 = vpop.f32.mrf.mxu0
  %v10078 = vadd.f32 %v9909, %v10077
  %v10079 = vpop.f32.mrf.mxu0
  %v10080 = vadd.f32 %v9911, %v10079
  %10081 = vmatmul.bf16.gmra.mxu0 %v9240
  %v10082 = vpop.f32.mrf.mxu0
  %v10083 = vadd.f32 %v9914, %v10082
  %v10084 = vpop.f32.mrf.mxu0
  %v10085 = vadd.f32 %v9916, %v10084
  %10086 = vmatmul.bf16.gmra.mxu0 %v9253
  %v10087 = vpop.f32.mrf.mxu0
  %v10088 = vadd.f32 %v9919, %v10087
  %v10089 = vpop.f32.mrf.mxu0
  %v10090 = vadd.f32 %v9921, %v10089
  %10091 = vmatmul.bf16.gmra.mxu0 %v9266
  %v10092 = vpop.f32.mrf.mxu0
  %v10093 = vadd.f32 %v9924, %v10092
  %v10094 = vpop.f32.mrf.mxu0
  %v10095 = vadd.f32 %v9926, %v10094
  %10096 = vdwg.mxu0
  %10097 = vmatpush.bf16.msra.mxu0 %v6673
  %10098 = vmatpush.bf16.msra.mxu0 %v6672
  %10099 = vmatpush.bf16.msra.mxu0 %v6671
  %10100 = vmatpush.bf16.msra.mxu0 %v6670
  %10101 = vmatpush.bf16.msra.mxu0 %v6669
  %10102 = vmatpush.bf16.msra.mxu0 %v6668
  %10103 = vmatpush.bf16.msra.mxu0 %v6667
  %10104 = vmatpush.bf16.msra.mxu0 %v6666
  %10105 = vmatmul.bf16.gmra.mxu0 %v8864
  %v10106 = vpop.f32.mrf.mxu0
  %v10107 = vadd.f32 %v9938, %v10106
  %v10108 = vpop.f32.mrf.mxu0
  %v10109 = vadd.f32 %v9940, %v10108
  %10110 = vmatmul.bf16.gmra.mxu0 %v8877
  %v10111 = vpop.f32.mrf.mxu0
  %v10112 = vadd.f32 %v9943, %v10111
  %v10113 = vpop.f32.mrf.mxu0
  %v10114 = vadd.f32 %v9945, %v10113
  %10115 = vmatmul.bf16.gmra.mxu0 %v8890
  %v10116 = vpop.f32.mrf.mxu0
  %v10117 = vadd.f32 %v9948, %v10116
  %v10118 = vpop.f32.mrf.mxu0
  %v10119 = vadd.f32 %v9950, %v10118
  %10120 = vmatmul.bf16.gmra.mxu0 %v8903
  %v10121 = vpop.f32.mrf.mxu0
  %v10122 = vadd.f32 %v9953, %v10121
  %v10123 = vpop.f32.mrf.mxu0
  %v10124 = vadd.f32 %v9955, %v10123
  %10125 = vmatmul.bf16.gmra.mxu0 %v8916
  %v10126 = vpop.f32.mrf.mxu0
  %v10127 = vadd.f32 %v9958, %v10126
  %v10128 = vpop.f32.mrf.mxu0
  %v10129 = vadd.f32 %v9960, %v10128
  %10130 = vmatmul.bf16.gmra.mxu0 %v8929
  %v10131 = vpop.f32.mrf.mxu0
  %v10132 = vadd.f32 %v9963, %v10131
  %v10133 = vpop.f32.mrf.mxu0
  %v10134 = vadd.f32 %v9965, %v10133
  %10135 = vmatmul.bf16.gmra.mxu0 %v8942
  %v10136 = vpop.f32.mrf.mxu0
  %v10137 = vadd.f32 %v9968, %v10136
  %v10138 = vpop.f32.mrf.mxu0
  %v10139 = vadd.f32 %v9970, %v10138
  %10140 = vmatmul.bf16.gmra.mxu0 %v8955
  %v10141 = vpop.f32.mrf.mxu0
  %v10142 = vadd.f32 %v9973, %v10141
  %v10143 = vpop.f32.mrf.mxu0
  %v10144 = vadd.f32 %v9975, %v10143
  %10145 = vmatmul.bf16.gmra.mxu0 %v8968
  %v10146 = vpop.f32.mrf.mxu0
  %v10147 = vadd.f32 %v9978, %v10146
  %v10148 = vpop.f32.mrf.mxu0
  %v10149 = vadd.f32 %v9980, %v10148
  %10150 = vmatmul.bf16.gmra.mxu0 %v8981
  %v10151 = vpop.f32.mrf.mxu0
  %v10152 = vadd.f32 %v9983, %v10151
  %v10153 = vpop.f32.mrf.mxu0
  %v10154 = vadd.f32 %v9985, %v10153
  %10155 = vmatmul.bf16.gmra.mxu0 %v8994
  %v10156 = vpop.f32.mrf.mxu0
  %v10157 = vadd.f32 %v9988, %v10156
  %v10158 = vpop.f32.mrf.mxu0
  %v10159 = vadd.f32 %v9990, %v10158
  %10160 = vmatmul.bf16.gmra.mxu0 %v9007
  %v10161 = vpop.f32.mrf.mxu0
  %v10162 = vadd.f32 %v9993, %v10161
  %v10163 = vpop.f32.mrf.mxu0
  %v10164 = vadd.f32 %v9995, %v10163
  %10165 = vmatmul.bf16.gmra.mxu0 %v9020
  %v10166 = vpop.f32.mrf.mxu0
  %v10167 = vadd.f32 %v9998, %v10166
  %v10168 = vpop.f32.mrf.mxu0
  %v10169 = vadd.f32 %v10000, %v10168
  %10170 = vmatmul.bf16.gmra.mxu0 %v9033
  %v10171 = vpop.f32.mrf.mxu0
  %v10172 = vadd.f32 %v10003, %v10171
  %v10173 = vpop.f32.mrf.mxu0
  %v10174 = vadd.f32 %v10005, %v10173
  %10175 = vmatmul.bf16.gmra.mxu0 %v9046
  %v10176 = vpop.f32.mrf.mxu0
  %v10177 = vadd.f32 %v10008, %v10176
  %v10178 = vpop.f32.mrf.mxu0
  %v10179 = vadd.f32 %v10010, %v10178
  %10180 = vmatmul.bf16.gmra.mxu0 %v9059
  %v10181 = vpop.f32.mrf.mxu0
  %v10182 = vadd.f32 %v10013, %v10181
  %v10183 = vpop.f32.mrf.mxu0
  %v10184 = vadd.f32 %v10015, %v10183
  %10185 = vmatmul.bf16.gmra.mxu0 %v9072
  %v10186 = vpop.f32.mrf.mxu0
  %v10187 = vadd.f32 %v10018, %v10186
  %v10188 = vpop.f32.mrf.mxu0
  %v10189 = vadd.f32 %v10020, %v10188
  %10190 = vmatmul.bf16.gmra.mxu0 %v9085
  %v10191 = vpop.f32.mrf.mxu0
  %v10192 = vadd.f32 %v10023, %v10191
  %v10193 = vpop.f32.mrf.mxu0
  %v10194 = vadd.f32 %v10025, %v10193
  %10195 = vmatmul.bf16.gmra.mxu0 %v9098
  %v10196 = vpop.f32.mrf.mxu0
  %v10197 = vadd.f32 %v10028, %v10196
  %v10198 = vpop.f32.mrf.mxu0
  %v10199 = vadd.f32 %v10030, %v10198
  %10200 = vmatmul.bf16.gmra.mxu0 %v9111
  %v10201 = vpop.f32.mrf.mxu0
  %v10202 = vadd.f32 %v10033, %v10201
  %v10203 = vpop.f32.mrf.mxu0
  %v10204 = vadd.f32 %v10035, %v10203
  %10205 = vmatmul.bf16.gmra.mxu0 %v9124
  %v10206 = vpop.f32.mrf.mxu0
  %v10207 = vadd.f32 %v10038, %v10206
  %v10208 = vpop.f32.mrf.mxu0
  %v10209 = vadd.f32 %v10040, %v10208
  %10210 = vmatmul.bf16.gmra.mxu0 %v9137
  %v10211 = vpop.f32.mrf.mxu0
  %v10212 = vadd.f32 %v10043, %v10211
  %v10213 = vpop.f32.mrf.mxu0
  %v10214 = vadd.f32 %v10045, %v10213
  %10215 = vmatmul.bf16.gmra.mxu0 %v9150
  %v10216 = vpop.f32.mrf.mxu0
  %v10217 = vadd.f32 %v10048, %v10216
  %v10218 = vpop.f32.mrf.mxu0
  %v10219 = vadd.f32 %v10050, %v10218
  %10220 = vmatmul.bf16.gmra.mxu0 %v9163
  %v10221 = vpop.f32.mrf.mxu0
  %v10222 = vadd.f32 %v10053, %v10221
  %v10223 = vpop.f32.mrf.mxu0
  %v10224 = vadd.f32 %v10055, %v10223
  %10225 = vmatmul.bf16.gmra.mxu0 %v9176
  %v10226 = vpop.f32.mrf.mxu0
  %v10227 = vadd.f32 %v10058, %v10226
  %v10228 = vpop.f32.mrf.mxu0
  %v10229 = vadd.f32 %v10060, %v10228
  %10230 = vmatmul.bf16.gmra.mxu0 %v9189
  %v10231 = vpop.f32.mrf.mxu0
  %v10232 = vadd.f32 %v10063, %v10231
  %v10233 = vpop.f32.mrf.mxu0
  %v10234 = vadd.f32 %v10065, %v10233
  %10235 = vmatmul.bf16.gmra.mxu0 %v9202
  %v10236 = vpop.f32.mrf.mxu0
  %v10237 = vadd.f32 %v10068, %v10236
  %v10238 = vpop.f32.mrf.mxu0
  %v10239 = vadd.f32 %v10070, %v10238
  %10240 = vmatmul.bf16.gmra.mxu0 %v9215
  %v10241 = vpop.f32.mrf.mxu0
  %v10242 = vadd.f32 %v10073, %v10241
  %v10243 = vpop.f32.mrf.mxu0
  %v10244 = vadd.f32 %v10075, %v10243
  %10245 = vmatmul.bf16.gmra.mxu0 %v9228
  %v10246 = vpop.f32.mrf.mxu0
  %v10247 = vadd.f32 %v10078, %v10246
  %v10248 = vpop.f32.mrf.mxu0
  %v10249 = vadd.f32 %v10080, %v10248
  %10250 = vmatmul.bf16.gmra.mxu0 %v9241
  %v10251 = vpop.f32.mrf.mxu0
  %v10252 = vadd.f32 %v10083, %v10251
  %v10253 = vpop.f32.mrf.mxu0
  %v10254 = vadd.f32 %v10085, %v10253
  %10255 = vmatmul.bf16.gmra.mxu0 %v9254
  %v10256 = vpop.f32.mrf.mxu0
  %v10257 = vadd.f32 %v10088, %v10256
  %v10258 = vpop.f32.mrf.mxu0
  %v10259 = vadd.f32 %v10090, %v10258
  %10260 = vmatmul.bf16.gmra.mxu0 %v9267
  %v10261 = vpop.f32.mrf.mxu0
  %v10262 = vadd.f32 %v10093, %v10261
  %v10263 = vpop.f32.mrf.mxu0
  %v10264 = vadd.f32 %v10095, %v10263
  %10265 = vdwg.mxu0
  %10266 = vmatpush.bf16.msra.mxu0 %v6681
  %10267 = vmatpush.bf16.msra.mxu0 %v6680
  %10268 = vmatpush.bf16.msra.mxu0 %v6679
  %10269 = vmatpush.bf16.msra.mxu0 %v6678
  %10270 = vmatpush.bf16.msra.mxu0 %v6677
  %10271 = vmatpush.bf16.msra.mxu0 %v6676
  %10272 = vmatpush.bf16.msra.mxu0 %v6675
  %10273 = vmatpush.bf16.msra.mxu0 %v6674
  %10274 = vmatmul.bf16.gmra.mxu0 %v8865
  %v10275 = vpop.f32.mrf.mxu0
  %v10276 = vadd.f32 %v10107, %v10275
  %v10277 = vpop.f32.mrf.mxu0
  %v10278 = vadd.f32 %v10109, %v10277
  %10279 = vmatmul.bf16.gmra.mxu0 %v8878
  %v10280 = vpop.f32.mrf.mxu0
  %v10281 = vadd.f32 %v10112, %v10280
  %v10282 = vpop.f32.mrf.mxu0
  %v10283 = vadd.f32 %v10114, %v10282
  %10284 = vmatmul.bf16.gmra.mxu0 %v8891
  %v10285 = vpop.f32.mrf.mxu0
  %v10286 = vadd.f32 %v10117, %v10285
  %v10287 = vpop.f32.mrf.mxu0
  %v10288 = vadd.f32 %v10119, %v10287
  %10289 = vmatmul.bf16.gmra.mxu0 %v8904
  %v10290 = vpop.f32.mrf.mxu0
  %v10291 = vadd.f32 %v10122, %v10290
  %v10292 = vpop.f32.mrf.mxu0
  %v10293 = vadd.f32 %v10124, %v10292
  %10294 = vmatmul.bf16.gmra.mxu0 %v8917
  %v10295 = vpop.f32.mrf.mxu0
  %v10296 = vadd.f32 %v10127, %v10295
  %v10297 = vpop.f32.mrf.mxu0
  %v10298 = vadd.f32 %v10129, %v10297
  %10299 = vmatmul.bf16.gmra.mxu0 %v8930
  %v10300 = vpop.f32.mrf.mxu0
  %v10301 = vadd.f32 %v10132, %v10300
  %v10302 = vpop.f32.mrf.mxu0
  %v10303 = vadd.f32 %v10134, %v10302
  %10304 = vmatmul.bf16.gmra.mxu0 %v8943
  %v10305 = vpop.f32.mrf.mxu0
  %v10306 = vadd.f32 %v10137, %v10305
  %v10307 = vpop.f32.mrf.mxu0
  %v10308 = vadd.f32 %v10139, %v10307
  %10309 = vmatmul.bf16.gmra.mxu0 %v8956
  %v10310 = vpop.f32.mrf.mxu0
  %v10311 = vadd.f32 %v10142, %v10310
  %v10312 = vpop.f32.mrf.mxu0
  %v10313 = vadd.f32 %v10144, %v10312
  %10314 = vmatmul.bf16.gmra.mxu0 %v8969
  %v10315 = vpop.f32.mrf.mxu0
  %v10316 = vadd.f32 %v10147, %v10315
  %v10317 = vpop.f32.mrf.mxu0
  %v10318 = vadd.f32 %v10149, %v10317
  %10319 = vmatmul.bf16.gmra.mxu0 %v8982
  %v10320 = vpop.f32.mrf.mxu0
  %v10321 = vadd.f32 %v10152, %v10320
  %v10322 = vpop.f32.mrf.mxu0
  %v10323 = vadd.f32 %v10154, %v10322
  %10324 = vmatmul.bf16.gmra.mxu0 %v8995
  %v10325 = vpop.f32.mrf.mxu0
  %v10326 = vadd.f32 %v10157, %v10325
  %v10327 = vpop.f32.mrf.mxu0
  %v10328 = vadd.f32 %v10159, %v10327
  %10329 = vmatmul.bf16.gmra.mxu0 %v9008
  %v10330 = vpop.f32.mrf.mxu0
  %v10331 = vadd.f32 %v10162, %v10330
  %v10332 = vpop.f32.mrf.mxu0
  %v10333 = vadd.f32 %v10164, %v10332
  %10334 = vmatmul.bf16.gmra.mxu0 %v9021
  %v10335 = vpop.f32.mrf.mxu0
  %v10336 = vadd.f32 %v10167, %v10335
  %v10337 = vpop.f32.mrf.mxu0
  %v10338 = vadd.f32 %v10169, %v10337
  %10339 = vmatmul.bf16.gmra.mxu0 %v9034
  %v10340 = vpop.f32.mrf.mxu0
  %v10341 = vadd.f32 %v10172, %v10340
  %v10342 = vpop.f32.mrf.mxu0
  %v10343 = vadd.f32 %v10174, %v10342
  %10344 = vmatmul.bf16.gmra.mxu0 %v9047
  %v10345 = vpop.f32.mrf.mxu0
  %v10346 = vadd.f32 %v10177, %v10345
  %v10347 = vpop.f32.mrf.mxu0
  %v10348 = vadd.f32 %v10179, %v10347
  %10349 = vmatmul.bf16.gmra.mxu0 %v9060
  %v10350 = vpop.f32.mrf.mxu0
  %v10351 = vadd.f32 %v10182, %v10350
  %v10352 = vpop.f32.mrf.mxu0
  %v10353 = vadd.f32 %v10184, %v10352
  %10354 = vmatmul.bf16.gmra.mxu0 %v9073
  %v10355 = vpop.f32.mrf.mxu0
  %v10356 = vadd.f32 %v10187, %v10355
  %v10357 = vpop.f32.mrf.mxu0
  %v10358 = vadd.f32 %v10189, %v10357
  %10359 = vmatmul.bf16.gmra.mxu0 %v9086
  %v10360 = vpop.f32.mrf.mxu0
  %v10361 = vadd.f32 %v10192, %v10360
  %v10362 = vpop.f32.mrf.mxu0
  %v10363 = vadd.f32 %v10194, %v10362
  %10364 = vmatmul.bf16.gmra.mxu0 %v9099
  %v10365 = vpop.f32.mrf.mxu0
  %v10366 = vadd.f32 %v10197, %v10365
  %v10367 = vpop.f32.mrf.mxu0
  %v10368 = vadd.f32 %v10199, %v10367
  %10369 = vmatmul.bf16.gmra.mxu0 %v9112
  %v10370 = vpop.f32.mrf.mxu0
  %v10371 = vadd.f32 %v10202, %v10370
  %v10372 = vpop.f32.mrf.mxu0
  %v10373 = vadd.f32 %v10204, %v10372
  %10374 = vmatmul.bf16.gmra.mxu0 %v9125
  %v10375 = vpop.f32.mrf.mxu0
  %v10376 = vadd.f32 %v10207, %v10375
  %v10377 = vpop.f32.mrf.mxu0
  %v10378 = vadd.f32 %v10209, %v10377
  %10379 = vmatmul.bf16.gmra.mxu0 %v9138
  %v10380 = vpop.f32.mrf.mxu0
  %v10381 = vadd.f32 %v10212, %v10380
  %v10382 = vpop.f32.mrf.mxu0
  %v10383 = vadd.f32 %v10214, %v10382
  %10384 = vmatmul.bf16.gmra.mxu0 %v9151
  %v10385 = vpop.f32.mrf.mxu0
  %v10386 = vadd.f32 %v10217, %v10385
  %v10387 = vpop.f32.mrf.mxu0
  %v10388 = vadd.f32 %v10219, %v10387
  %10389 = vmatmul.bf16.gmra.mxu0 %v9164
  %v10390 = vpop.f32.mrf.mxu0
  %v10391 = vadd.f32 %v10222, %v10390
  %v10392 = vpop.f32.mrf.mxu0
  %v10393 = vadd.f32 %v10224, %v10392
  %10394 = vmatmul.bf16.gmra.mxu0 %v9177
  %v10395 = vpop.f32.mrf.mxu0
  %v10396 = vadd.f32 %v10227, %v10395
  %v10397 = vpop.f32.mrf.mxu0
  %v10398 = vadd.f32 %v10229, %v10397
  %10399 = vmatmul.bf16.gmra.mxu0 %v9190
  %v10400 = vpop.f32.mrf.mxu0
  %v10401 = vadd.f32 %v10232, %v10400
  %v10402 = vpop.f32.mrf.mxu0
  %v10403 = vadd.f32 %v10234, %v10402
  %10404 = vmatmul.bf16.gmra.mxu0 %v9203
  %v10405 = vpop.f32.mrf.mxu0
  %v10406 = vadd.f32 %v10237, %v10405
  %v10407 = vpop.f32.mrf.mxu0
  %v10408 = vadd.f32 %v10239, %v10407
  %10409 = vmatmul.bf16.gmra.mxu0 %v9216
  %v10410 = vpop.f32.mrf.mxu0
  %v10411 = vadd.f32 %v10242, %v10410
  %v10412 = vpop.f32.mrf.mxu0
  %v10413 = vadd.f32 %v10244, %v10412
  %10414 = vmatmul.bf16.gmra.mxu0 %v9229
  %v10415 = vpop.f32.mrf.mxu0
  %v10416 = vadd.f32 %v10247, %v10415
  %v10417 = vpop.f32.mrf.mxu0
  %v10418 = vadd.f32 %v10249, %v10417
  %10419 = vmatmul.bf16.gmra.mxu0 %v9242
  %v10420 = vpop.f32.mrf.mxu0
  %v10421 = vadd.f32 %v10252, %v10420
  %v10422 = vpop.f32.mrf.mxu0
  %v10423 = vadd.f32 %v10254, %v10422
  %10424 = vmatmul.bf16.gmra.mxu0 %v9255
  %v10425 = vpop.f32.mrf.mxu0
  %v10426 = vadd.f32 %v10257, %v10425
  %v10427 = vpop.f32.mrf.mxu0
  %v10428 = vadd.f32 %v10259, %v10427
  %10429 = vmatmul.bf16.gmra.mxu0 %v9268
  %v10430 = vpop.f32.mrf.mxu0
  %v10431 = vadd.f32 %v10262, %v10430
  %v10432 = vpop.f32.mrf.mxu0
  %v10433 = vadd.f32 %v10264, %v10432
  %10434 = vdwg.mxu0
  %10435 = vmatpush.bf16.msra.mxu0 %v6689
  %10436 = vmatpush.bf16.msra.mxu0 %v6688
  %10437 = vmatpush.bf16.msra.mxu0 %v6687
  %10438 = vmatpush.bf16.msra.mxu0 %v6686
  %10439 = vmatpush.bf16.msra.mxu0 %v6685
  %10440 = vmatpush.bf16.msra.mxu0 %v6684
  %10441 = vmatpush.bf16.msra.mxu0 %v6683
  %10442 = vmatpush.bf16.msra.mxu0 %v6682
  %10443 = vmatmul.bf16.gmra.mxu0 %v8866
  %v10444 = vpop.f32.mrf.mxu0
  %v10445 = vadd.f32 %v10276, %v10444
  %v10446 = vpop.f32.mrf.mxu0
  %v10447 = vadd.f32 %v10278, %v10446
  %10448 = vmatmul.bf16.gmra.mxu0 %v8879
  %v10449 = vpop.f32.mrf.mxu0
  %v10450 = vadd.f32 %v10281, %v10449
  %v10451 = vpop.f32.mrf.mxu0
  %v10452 = vadd.f32 %v10283, %v10451
  %10453 = vmatmul.bf16.gmra.mxu0 %v8892
  %v10454 = vpop.f32.mrf.mxu0
  %v10455 = vadd.f32 %v10286, %v10454
  %v10456 = vpop.f32.mrf.mxu0
  %v10457 = vadd.f32 %v10288, %v10456
  %10458 = vmatmul.bf16.gmra.mxu0 %v8905
  %v10459 = vpop.f32.mrf.mxu0
  %v10460 = vadd.f32 %v10291, %v10459
  %v10461 = vpop.f32.mrf.mxu0
  %v10462 = vadd.f32 %v10293, %v10461
  %10463 = vmatmul.bf16.gmra.mxu0 %v8918
  %v10464 = vpop.f32.mrf.mxu0
  %v10465 = vadd.f32 %v10296, %v10464
  %v10466 = vpop.f32.mrf.mxu0
  %v10467 = vadd.f32 %v10298, %v10466
  %10468 = vmatmul.bf16.gmra.mxu0 %v8931
  %v10469 = vpop.f32.mrf.mxu0
  %v10470 = vadd.f32 %v10301, %v10469
  %v10471 = vpop.f32.mrf.mxu0
  %v10472 = vadd.f32 %v10303, %v10471
  %10473 = vmatmul.bf16.gmra.mxu0 %v8944
  %v10474 = vpop.f32.mrf.mxu0
  %v10475 = vadd.f32 %v10306, %v10474
  %v10476 = vpop.f32.mrf.mxu0
  %v10477 = vadd.f32 %v10308, %v10476
  %10478 = vmatmul.bf16.gmra.mxu0 %v8957
  %v10479 = vpop.f32.mrf.mxu0
  %v10480 = vadd.f32 %v10311, %v10479
  %v10481 = vpop.f32.mrf.mxu0
  %v10482 = vadd.f32 %v10313, %v10481
  %10483 = vmatmul.bf16.gmra.mxu0 %v8970
  %v10484 = vpop.f32.mrf.mxu0
  %v10485 = vadd.f32 %v10316, %v10484
  %v10486 = vpop.f32.mrf.mxu0
  %v10487 = vadd.f32 %v10318, %v10486
  %10488 = vmatmul.bf16.gmra.mxu0 %v8983
  %v10489 = vpop.f32.mrf.mxu0
  %v10490 = vadd.f32 %v10321, %v10489
  %v10491 = vpop.f32.mrf.mxu0
  %v10492 = vadd.f32 %v10323, %v10491
  %10493 = vmatmul.bf16.gmra.mxu0 %v8996
  %v10494 = vpop.f32.mrf.mxu0
  %v10495 = vadd.f32 %v10326, %v10494
  %v10496 = vpop.f32.mrf.mxu0
  %v10497 = vadd.f32 %v10328, %v10496
  %10498 = vmatmul.bf16.gmra.mxu0 %v9009
  %v10499 = vpop.f32.mrf.mxu0
  %v10500 = vadd.f32 %v10331, %v10499
  %v10501 = vpop.f32.mrf.mxu0
  %v10502 = vadd.f32 %v10333, %v10501
  %10503 = vmatmul.bf16.gmra.mxu0 %v9022
  %v10504 = vpop.f32.mrf.mxu0
  %v10505 = vadd.f32 %v10336, %v10504
  %v10506 = vpop.f32.mrf.mxu0
  %v10507 = vadd.f32 %v10338, %v10506
  %10508 = vmatmul.bf16.gmra.mxu0 %v9035
  %v10509 = vpop.f32.mrf.mxu0
  %v10510 = vadd.f32 %v10341, %v10509
  %v10511 = vpop.f32.mrf.mxu0
  %v10512 = vadd.f32 %v10343, %v10511
  %10513 = vmatmul.bf16.gmra.mxu0 %v9048
  %v10514 = vpop.f32.mrf.mxu0
  %v10515 = vadd.f32 %v10346, %v10514
  %v10516 = vpop.f32.mrf.mxu0
  %v10517 = vadd.f32 %v10348, %v10516
  %10518 = vmatmul.bf16.gmra.mxu0 %v9061
  %v10519 = vpop.f32.mrf.mxu0
  %v10520 = vadd.f32 %v10351, %v10519
  %v10521 = vpop.f32.mrf.mxu0
  %v10522 = vadd.f32 %v10353, %v10521
  %10523 = vmatmul.bf16.gmra.mxu0 %v9074
  %v10524 = vpop.f32.mrf.mxu0
  %v10525 = vadd.f32 %v10356, %v10524
  %v10526 = vpop.f32.mrf.mxu0
  %v10527 = vadd.f32 %v10358, %v10526
  %10528 = vmatmul.bf16.gmra.mxu0 %v9087
  %v10529 = vpop.f32.mrf.mxu0
  %v10530 = vadd.f32 %v10361, %v10529
  %v10531 = vpop.f32.mrf.mxu0
  %v10532 = vadd.f32 %v10363, %v10531
  %10533 = vmatmul.bf16.gmra.mxu0 %v9100
  %v10534 = vpop.f32.mrf.mxu0
  %v10535 = vadd.f32 %v10366, %v10534
  %v10536 = vpop.f32.mrf.mxu0
  %v10537 = vadd.f32 %v10368, %v10536
  %10538 = vmatmul.bf16.gmra.mxu0 %v9113
  %v10539 = vpop.f32.mrf.mxu0
  %v10540 = vadd.f32 %v10371, %v10539
  %v10541 = vpop.f32.mrf.mxu0
  %v10542 = vadd.f32 %v10373, %v10541
  %10543 = vmatmul.bf16.gmra.mxu0 %v9126
  %v10544 = vpop.f32.mrf.mxu0
  %v10545 = vadd.f32 %v10376, %v10544
  %v10546 = vpop.f32.mrf.mxu0
  %v10547 = vadd.f32 %v10378, %v10546
  %10548 = vmatmul.bf16.gmra.mxu0 %v9139
  %v10549 = vpop.f32.mrf.mxu0
  %v10550 = vadd.f32 %v10381, %v10549
  %v10551 = vpop.f32.mrf.mxu0
  %v10552 = vadd.f32 %v10383, %v10551
  %10553 = vmatmul.bf16.gmra.mxu0 %v9152
  %v10554 = vpop.f32.mrf.mxu0
  %v10555 = vadd.f32 %v10386, %v10554
  %v10556 = vpop.f32.mrf.mxu0
  %v10557 = vadd.f32 %v10388, %v10556
  %10558 = vmatmul.bf16.gmra.mxu0 %v9165
  %v10559 = vpop.f32.mrf.mxu0
  %v10560 = vadd.f32 %v10391, %v10559
  %v10561 = vpop.f32.mrf.mxu0
  %v10562 = vadd.f32 %v10393, %v10561
  %10563 = vmatmul.bf16.gmra.mxu0 %v9178
  %v10564 = vpop.f32.mrf.mxu0
  %v10565 = vadd.f32 %v10396, %v10564
  %v10566 = vpop.f32.mrf.mxu0
  %v10567 = vadd.f32 %v10398, %v10566
  %10568 = vmatmul.bf16.gmra.mxu0 %v9191
  %v10569 = vpop.f32.mrf.mxu0
  %v10570 = vadd.f32 %v10401, %v10569
  %v10571 = vpop.f32.mrf.mxu0
  %v10572 = vadd.f32 %v10403, %v10571
  %10573 = vmatmul.bf16.gmra.mxu0 %v9204
  %v10574 = vpop.f32.mrf.mxu0
  %v10575 = vadd.f32 %v10406, %v10574
  %v10576 = vpop.f32.mrf.mxu0
  %v10577 = vadd.f32 %v10408, %v10576
  %10578 = vmatmul.bf16.gmra.mxu0 %v9217
  %v10579 = vpop.f32.mrf.mxu0
  %v10580 = vadd.f32 %v10411, %v10579
  %v10581 = vpop.f32.mrf.mxu0
  %v10582 = vadd.f32 %v10413, %v10581
  %10583 = vmatmul.bf16.gmra.mxu0 %v9230
  %v10584 = vpop.f32.mrf.mxu0
  %v10585 = vadd.f32 %v10416, %v10584
  %v10586 = vpop.f32.mrf.mxu0
  %v10587 = vadd.f32 %v10418, %v10586
  %10588 = vmatmul.bf16.gmra.mxu0 %v9243
  %v10589 = vpop.f32.mrf.mxu0
  %v10590 = vadd.f32 %v10421, %v10589
  %v10591 = vpop.f32.mrf.mxu0
  %v10592 = vadd.f32 %v10423, %v10591
  %10593 = vmatmul.bf16.gmra.mxu0 %v9256
  %v10594 = vpop.f32.mrf.mxu0
  %v10595 = vadd.f32 %v10426, %v10594
  %v10596 = vpop.f32.mrf.mxu0
  %v10597 = vadd.f32 %v10428, %v10596
  %10598 = vmatmul.bf16.gmra.mxu0 %v9269
  %v10599 = vpop.f32.mrf.mxu0
  %v10600 = vadd.f32 %v10431, %v10599
  %v10601 = vpop.f32.mrf.mxu0
  %v10602 = vadd.f32 %v10433, %v10601
  %10603 = vdwg.mxu0
  %10604 = vmatpush.bf16.msra.mxu0 %v6697
  %10605 = vmatpush.bf16.msra.mxu0 %v6696
  %10606 = vmatpush.bf16.msra.mxu0 %v6695
  %10607 = vmatpush.bf16.msra.mxu0 %v6694
  %10608 = vmatpush.bf16.msra.mxu0 %v6693
  %10609 = vmatpush.bf16.msra.mxu0 %v6692
  %10610 = vmatpush.bf16.msra.mxu0 %v6691
  %10611 = vmatpush.bf16.msra.mxu0 %v6690
  %10612 = vmatmul.bf16.gmra.mxu0 %v8867
  %v10613 = vpop.f32.mrf.mxu0
  %v10614 = vadd.f32 %v10445, %v10613
  %v10615 = vpop.f32.mrf.mxu0
  %v10616 = vadd.f32 %v10447, %v10615
  %10617 = vmatmul.bf16.gmra.mxu0 %v8880
  %v10618 = vpop.f32.mrf.mxu0
  %v10619 = vadd.f32 %v10450, %v10618
  %v10620 = vpop.f32.mrf.mxu0
  %v10621 = vadd.f32 %v10452, %v10620
  %10622 = vmatmul.bf16.gmra.mxu0 %v8893
  %v10623 = vpop.f32.mrf.mxu0
  %v10624 = vadd.f32 %v10455, %v10623
  %v10625 = vpop.f32.mrf.mxu0
  %v10626 = vadd.f32 %v10457, %v10625
  %10627 = vmatmul.bf16.gmra.mxu0 %v8906
  %v10628 = vpop.f32.mrf.mxu0
  %v10629 = vadd.f32 %v10460, %v10628
  %v10630 = vpop.f32.mrf.mxu0
  %v10631 = vadd.f32 %v10462, %v10630
  %10632 = vmatmul.bf16.gmra.mxu0 %v8919
  %v10633 = vpop.f32.mrf.mxu0
  %v10634 = vadd.f32 %v10465, %v10633
  %v10635 = vpop.f32.mrf.mxu0
  %v10636 = vadd.f32 %v10467, %v10635
  %10637 = vmatmul.bf16.gmra.mxu0 %v8932
  %v10638 = vpop.f32.mrf.mxu0
  %v10639 = vadd.f32 %v10470, %v10638
  %v10640 = vpop.f32.mrf.mxu0
  %v10641 = vadd.f32 %v10472, %v10640
  %10642 = vmatmul.bf16.gmra.mxu0 %v8945
  %v10643 = vpop.f32.mrf.mxu0
  %v10644 = vadd.f32 %v10475, %v10643
  %v10645 = vpop.f32.mrf.mxu0
  %v10646 = vadd.f32 %v10477, %v10645
  %10647 = vmatmul.bf16.gmra.mxu0 %v8958
  %v10648 = vpop.f32.mrf.mxu0
  %v10649 = vadd.f32 %v10480, %v10648
  %v10650 = vpop.f32.mrf.mxu0
  %v10651 = vadd.f32 %v10482, %v10650
  %10652 = vmatmul.bf16.gmra.mxu0 %v8971
  %v10653 = vpop.f32.mrf.mxu0
  %v10654 = vadd.f32 %v10485, %v10653
  %v10655 = vpop.f32.mrf.mxu0
  %v10656 = vadd.f32 %v10487, %v10655
  %10657 = vmatmul.bf16.gmra.mxu0 %v8984
  %v10658 = vpop.f32.mrf.mxu0
  %v10659 = vadd.f32 %v10490, %v10658
  %v10660 = vpop.f32.mrf.mxu0
  %v10661 = vadd.f32 %v10492, %v10660
  %10662 = vmatmul.bf16.gmra.mxu0 %v8997
  %v10663 = vpop.f32.mrf.mxu0
  %v10664 = vadd.f32 %v10495, %v10663
  %v10665 = vpop.f32.mrf.mxu0
  %v10666 = vadd.f32 %v10497, %v10665
  %10667 = vmatmul.bf16.gmra.mxu0 %v9010
  %v10668 = vpop.f32.mrf.mxu0
  %v10669 = vadd.f32 %v10500, %v10668
  %v10670 = vpop.f32.mrf.mxu0
  %v10671 = vadd.f32 %v10502, %v10670
  %10672 = vmatmul.bf16.gmra.mxu0 %v9023
  %v10673 = vpop.f32.mrf.mxu0
  %v10674 = vadd.f32 %v10505, %v10673
  %v10675 = vpop.f32.mrf.mxu0
  %v10676 = vadd.f32 %v10507, %v10675
  %10677 = vmatmul.bf16.gmra.mxu0 %v9036
  %v10678 = vpop.f32.mrf.mxu0
  %v10679 = vadd.f32 %v10510, %v10678
  %v10680 = vpop.f32.mrf.mxu0
  %v10681 = vadd.f32 %v10512, %v10680
  %10682 = vmatmul.bf16.gmra.mxu0 %v9049
  %v10683 = vpop.f32.mrf.mxu0
  %v10684 = vadd.f32 %v10515, %v10683
  %v10685 = vpop.f32.mrf.mxu0
  %v10686 = vadd.f32 %v10517, %v10685
  %10687 = vmatmul.bf16.gmra.mxu0 %v9062
  %v10688 = vpop.f32.mrf.mxu0
  %v10689 = vadd.f32 %v10520, %v10688
  %v10690 = vpop.f32.mrf.mxu0
  %v10691 = vadd.f32 %v10522, %v10690
  %10692 = vmatmul.bf16.gmra.mxu0 %v9075
  %v10693 = vpop.f32.mrf.mxu0
  %v10694 = vadd.f32 %v10525, %v10693
  %v10695 = vpop.f32.mrf.mxu0
  %v10696 = vadd.f32 %v10527, %v10695
  %10697 = vmatmul.bf16.gmra.mxu0 %v9088
  %v10698 = vpop.f32.mrf.mxu0
  %v10699 = vadd.f32 %v10530, %v10698
  %v10700 = vpop.f32.mrf.mxu0
  %v10701 = vadd.f32 %v10532, %v10700
  %10702 = vmatmul.bf16.gmra.mxu0 %v9101
  %v10703 = vpop.f32.mrf.mxu0
  %v10704 = vadd.f32 %v10535, %v10703
  %v10705 = vpop.f32.mrf.mxu0
  %v10706 = vadd.f32 %v10537, %v10705
  %10707 = vmatmul.bf16.gmra.mxu0 %v9114
  %v10708 = vpop.f32.mrf.mxu0
  %v10709 = vadd.f32 %v10540, %v10708
  %v10710 = vpop.f32.mrf.mxu0
  %v10711 = vadd.f32 %v10542, %v10710
  %10712 = vmatmul.bf16.gmra.mxu0 %v9127
  %v10713 = vpop.f32.mrf.mxu0
  %v10714 = vadd.f32 %v10545, %v10713
  %v10715 = vpop.f32.mrf.mxu0
  %v10716 = vadd.f32 %v10547, %v10715
  %10717 = vmatmul.bf16.gmra.mxu0 %v9140
  %v10718 = vpop.f32.mrf.mxu0
  %v10719 = vadd.f32 %v10550, %v10718
  %v10720 = vpop.f32.mrf.mxu0
  %v10721 = vadd.f32 %v10552, %v10720
  %10722 = vmatmul.bf16.gmra.mxu0 %v9153
  %v10723 = vpop.f32.mrf.mxu0
  %v10724 = vadd.f32 %v10555, %v10723
  %v10725 = vpop.f32.mrf.mxu0
  %v10726 = vadd.f32 %v10557, %v10725
  %10727 = vmatmul.bf16.gmra.mxu0 %v9166
  %v10728 = vpop.f32.mrf.mxu0
  %v10729 = vadd.f32 %v10560, %v10728
  %v10730 = vpop.f32.mrf.mxu0
  %v10731 = vadd.f32 %v10562, %v10730
  %10732 = vmatmul.bf16.gmra.mxu0 %v9179
  %v10733 = vpop.f32.mrf.mxu0
  %v10734 = vadd.f32 %v10565, %v10733
  %v10735 = vpop.f32.mrf.mxu0
  %v10736 = vadd.f32 %v10567, %v10735
  %10737 = vmatmul.bf16.gmra.mxu0 %v9192
  %v10738 = vpop.f32.mrf.mxu0
  %v10739 = vadd.f32 %v10570, %v10738
  %v10740 = vpop.f32.mrf.mxu0
  %v10741 = vadd.f32 %v10572, %v10740
  %10742 = vmatmul.bf16.gmra.mxu0 %v9205
  %v10743 = vpop.f32.mrf.mxu0
  %v10744 = vadd.f32 %v10575, %v10743
  %v10745 = vpop.f32.mrf.mxu0
  %v10746 = vadd.f32 %v10577, %v10745
  %10747 = vmatmul.bf16.gmra.mxu0 %v9218
  %v10748 = vpop.f32.mrf.mxu0
  %v10749 = vadd.f32 %v10580, %v10748
  %v10750 = vpop.f32.mrf.mxu0
  %v10751 = vadd.f32 %v10582, %v10750
  %10752 = vmatmul.bf16.gmra.mxu0 %v9231
  %v10753 = vpop.f32.mrf.mxu0
  %v10754 = vadd.f32 %v10585, %v10753
  %v10755 = vpop.f32.mrf.mxu0
  %v10756 = vadd.f32 %v10587, %v10755
  %10757 = vmatmul.bf16.gmra.mxu0 %v9244
  %v10758 = vpop.f32.mrf.mxu0
  %v10759 = vadd.f32 %v10590, %v10758
  %v10760 = vpop.f32.mrf.mxu0
  %v10761 = vadd.f32 %v10592, %v10760
  %10762 = vmatmul.bf16.gmra.mxu0 %v9257
  %v10763 = vpop.f32.mrf.mxu0
  %v10764 = vadd.f32 %v10595, %v10763
  %v10765 = vpop.f32.mrf.mxu0
  %v10766 = vadd.f32 %v10597, %v10765
  %10767 = vmatmul.bf16.gmra.mxu0 %v9270
  %v10768 = vpop.f32.mrf.mxu0
  %v10769 = vadd.f32 %v10600, %v10768
  %v10770 = vpop.f32.mrf.mxu0
  %v10771 = vadd.f32 %v10602, %v10770
  %10772 = vdwg.mxu0
  %10773 = vmatpush.bf16.msra.mxu0 %v6705
  %10774 = vmatpush.bf16.msra.mxu0 %v6704
  %10775 = vmatpush.bf16.msra.mxu0 %v6703
  %10776 = vmatpush.bf16.msra.mxu0 %v6702
  %10777 = vmatpush.bf16.msra.mxu0 %v6701
  %10778 = vmatpush.bf16.msra.mxu0 %v6700
  %10779 = vmatpush.bf16.msra.mxu0 %v6699
  %10780 = vmatpush.bf16.msra.mxu0 %v6698
  %10781 = vmatmul.bf16.gmra.mxu0 %v8868
  %v10782 = vpop.f32.mrf.mxu0
  %v10783 = vadd.f32 %v10614, %v10782
  %v10784 = vpop.f32.mrf.mxu0
  %v10785 = vadd.f32 %v10616, %v10784
  %10786 = vmatmul.bf16.gmra.mxu0 %v8881
  %v10787 = vpop.f32.mrf.mxu0
  %v10788 = vadd.f32 %v10619, %v10787
  %v10789 = vpop.f32.mrf.mxu0
  %v10790 = vadd.f32 %v10621, %v10789
  %10791 = vmatmul.bf16.gmra.mxu0 %v8894
  %v10792 = vpop.f32.mrf.mxu0
  %v10793 = vadd.f32 %v10624, %v10792
  %v10794 = vpop.f32.mrf.mxu0
  %v10795 = vadd.f32 %v10626, %v10794
  %10796 = vmatmul.bf16.gmra.mxu0 %v8907
  %v10797 = vpop.f32.mrf.mxu0
  %v10798 = vadd.f32 %v10629, %v10797
  %v10799 = vpop.f32.mrf.mxu0
  %v10800 = vadd.f32 %v10631, %v10799
  %10801 = vmatmul.bf16.gmra.mxu0 %v8920
  %v10802 = vpop.f32.mrf.mxu0
  %v10803 = vadd.f32 %v10634, %v10802
  %v10804 = vpop.f32.mrf.mxu0
  %v10805 = vadd.f32 %v10636, %v10804
  %10806 = vmatmul.bf16.gmra.mxu0 %v8933
  %v10807 = vpop.f32.mrf.mxu0
  %v10808 = vadd.f32 %v10639, %v10807
  %v10809 = vpop.f32.mrf.mxu0
  %v10810 = vadd.f32 %v10641, %v10809
  %10811 = vmatmul.bf16.gmra.mxu0 %v8946
  %v10812 = vpop.f32.mrf.mxu0
  %v10813 = vadd.f32 %v10644, %v10812
  %v10814 = vpop.f32.mrf.mxu0
  %v10815 = vadd.f32 %v10646, %v10814
  %10816 = vmatmul.bf16.gmra.mxu0 %v8959
  %v10817 = vpop.f32.mrf.mxu0
  %v10818 = vadd.f32 %v10649, %v10817
  %v10819 = vpop.f32.mrf.mxu0
  %v10820 = vadd.f32 %v10651, %v10819
  %10821 = vmatmul.bf16.gmra.mxu0 %v8972
  %v10822 = vpop.f32.mrf.mxu0
  %v10823 = vadd.f32 %v10654, %v10822
  %v10824 = vpop.f32.mrf.mxu0
  %v10825 = vadd.f32 %v10656, %v10824
  %10826 = vmatmul.bf16.gmra.mxu0 %v8985
  %v10827 = vpop.f32.mrf.mxu0
  %v10828 = vadd.f32 %v10659, %v10827
  %v10829 = vpop.f32.mrf.mxu0
  %v10830 = vadd.f32 %v10661, %v10829
  %10831 = vmatmul.bf16.gmra.mxu0 %v8998
  %v10832 = vpop.f32.mrf.mxu0
  %v10833 = vadd.f32 %v10664, %v10832
  %v10834 = vpop.f32.mrf.mxu0
  %v10835 = vadd.f32 %v10666, %v10834
  %10836 = vmatmul.bf16.gmra.mxu0 %v9011
  %v10837 = vpop.f32.mrf.mxu0
  %v10838 = vadd.f32 %v10669, %v10837
  %v10839 = vpop.f32.mrf.mxu0
  %v10840 = vadd.f32 %v10671, %v10839
  %10841 = vmatmul.bf16.gmra.mxu0 %v9024
  %v10842 = vpop.f32.mrf.mxu0
  %v10843 = vadd.f32 %v10674, %v10842
  %v10844 = vpop.f32.mrf.mxu0
  %v10845 = vadd.f32 %v10676, %v10844
  %10846 = vmatmul.bf16.gmra.mxu0 %v9037
  %v10847 = vpop.f32.mrf.mxu0
  %v10848 = vadd.f32 %v10679, %v10847
  %v10849 = vpop.f32.mrf.mxu0
  %v10850 = vadd.f32 %v10681, %v10849
  %10851 = vmatmul.bf16.gmra.mxu0 %v9050
  %v10852 = vpop.f32.mrf.mxu0
  %v10853 = vadd.f32 %v10684, %v10852
  %v10854 = vpop.f32.mrf.mxu0
  %v10855 = vadd.f32 %v10686, %v10854
  %10856 = vmatmul.bf16.gmra.mxu0 %v9063
  %v10857 = vpop.f32.mrf.mxu0
  %v10858 = vadd.f32 %v10689, %v10857
  %v10859 = vpop.f32.mrf.mxu0
  %v10860 = vadd.f32 %v10691, %v10859
  %10861 = vmatmul.bf16.gmra.mxu0 %v9076
  %v10862 = vpop.f32.mrf.mxu0
  %v10863 = vadd.f32 %v10694, %v10862
  %v10864 = vpop.f32.mrf.mxu0
  %v10865 = vadd.f32 %v10696, %v10864
  %10866 = vmatmul.bf16.gmra.mxu0 %v9089
  %v10867 = vpop.f32.mrf.mxu0
  %v10868 = vadd.f32 %v10699, %v10867
  %v10869 = vpop.f32.mrf.mxu0
  %v10870 = vadd.f32 %v10701, %v10869
  %10871 = vmatmul.bf16.gmra.mxu0 %v9102
  %v10872 = vpop.f32.mrf.mxu0
  %v10873 = vadd.f32 %v10704, %v10872
  %v10874 = vpop.f32.mrf.mxu0
  %v10875 = vadd.f32 %v10706, %v10874
  %10876 = vmatmul.bf16.gmra.mxu0 %v9115
  %v10877 = vpop.f32.mrf.mxu0
  %v10878 = vadd.f32 %v10709, %v10877
  %v10879 = vpop.f32.mrf.mxu0
  %v10880 = vadd.f32 %v10711, %v10879
  %10881 = vmatmul.bf16.gmra.mxu0 %v9128
  %v10882 = vpop.f32.mrf.mxu0
  %v10883 = vadd.f32 %v10714, %v10882
  %v10884 = vpop.f32.mrf.mxu0
  %v10885 = vadd.f32 %v10716, %v10884
  %10886 = vmatmul.bf16.gmra.mxu0 %v9141
  %v10887 = vpop.f32.mrf.mxu0
  %v10888 = vadd.f32 %v10719, %v10887
  %v10889 = vpop.f32.mrf.mxu0
  %v10890 = vadd.f32 %v10721, %v10889
  %10891 = vmatmul.bf16.gmra.mxu0 %v9154
  %v10892 = vpop.f32.mrf.mxu0
  %v10893 = vadd.f32 %v10724, %v10892
  %v10894 = vpop.f32.mrf.mxu0
  %v10895 = vadd.f32 %v10726, %v10894
  %10896 = vmatmul.bf16.gmra.mxu0 %v9167
  %v10897 = vpop.f32.mrf.mxu0
  %v10898 = vadd.f32 %v10729, %v10897
  %v10899 = vpop.f32.mrf.mxu0
  %v10900 = vadd.f32 %v10731, %v10899
  %10901 = vmatmul.bf16.gmra.mxu0 %v9180
  %v10902 = vpop.f32.mrf.mxu0
  %v10903 = vadd.f32 %v10734, %v10902
  %v10904 = vpop.f32.mrf.mxu0
  %v10905 = vadd.f32 %v10736, %v10904
  %10906 = vmatmul.bf16.gmra.mxu0 %v9193
  %v10907 = vpop.f32.mrf.mxu0
  %v10908 = vadd.f32 %v10739, %v10907
  %v10909 = vpop.f32.mrf.mxu0
  %v10910 = vadd.f32 %v10741, %v10909
  %10911 = vmatmul.bf16.gmra.mxu0 %v9206
  %v10912 = vpop.f32.mrf.mxu0
  %v10913 = vadd.f32 %v10744, %v10912
  %v10914 = vpop.f32.mrf.mxu0
  %v10915 = vadd.f32 %v10746, %v10914
  %10916 = vmatmul.bf16.gmra.mxu0 %v9219
  %v10917 = vpop.f32.mrf.mxu0
  %v10918 = vadd.f32 %v10749, %v10917
  %v10919 = vpop.f32.mrf.mxu0
  %v10920 = vadd.f32 %v10751, %v10919
  %10921 = vmatmul.bf16.gmra.mxu0 %v9232
  %v10922 = vpop.f32.mrf.mxu0
  %v10923 = vadd.f32 %v10754, %v10922
  %v10924 = vpop.f32.mrf.mxu0
  %v10925 = vadd.f32 %v10756, %v10924
  %10926 = vmatmul.bf16.gmra.mxu0 %v9245
  %v10927 = vpop.f32.mrf.mxu0
  %v10928 = vadd.f32 %v10759, %v10927
  %v10929 = vpop.f32.mrf.mxu0
  %v10930 = vadd.f32 %v10761, %v10929
  %10931 = vmatmul.bf16.gmra.mxu0 %v9258
  %v10932 = vpop.f32.mrf.mxu0
  %v10933 = vadd.f32 %v10764, %v10932
  %v10934 = vpop.f32.mrf.mxu0
  %v10935 = vadd.f32 %v10766, %v10934
  %10936 = vmatmul.bf16.gmra.mxu0 %v9271
  %v10937 = vpop.f32.mrf.mxu0
  %v10938 = vadd.f32 %v10769, %v10937
  %v10939 = vpop.f32.mrf.mxu0
  %v10940 = vadd.f32 %v10771, %v10939
  %10941 = vdwg.mxu0
  %10942 = vmatpush.bf16.msra.mxu0 %v6713
  %10943 = vmatpush.bf16.msra.mxu0 %v6712
  %10944 = vmatpush.bf16.msra.mxu0 %v6711
  %10945 = vmatpush.bf16.msra.mxu0 %v6710
  %10946 = vmatpush.bf16.msra.mxu0 %v6709
  %10947 = vmatpush.bf16.msra.mxu0 %v6708
  %10948 = vmatpush.bf16.msra.mxu0 %v6707
  %10949 = vmatpush.bf16.msra.mxu0 %v6706
  %10950 = vmatmul.bf16.gmra.mxu0 %v8869
  %v10951 = vpop.f32.mrf.mxu0
  %v10952 = vadd.f32 %v10783, %v10951
  %v10953 = vpop.f32.mrf.mxu0
  %v10954 = vadd.f32 %v10785, %v10953
  %10955 = vmatmul.bf16.gmra.mxu0 %v8882
  %v10956 = vpop.f32.mrf.mxu0
  %v10957 = vadd.f32 %v10788, %v10956
  %v10958 = vpop.f32.mrf.mxu0
  %v10959 = vadd.f32 %v10790, %v10958
  %10960 = vmatmul.bf16.gmra.mxu0 %v8895
  %v10961 = vpop.f32.mrf.mxu0
  %v10962 = vadd.f32 %v10793, %v10961
  %v10963 = vpop.f32.mrf.mxu0
  %v10964 = vadd.f32 %v10795, %v10963
  %10965 = vmatmul.bf16.gmra.mxu0 %v8908
  %v10966 = vpop.f32.mrf.mxu0
  %v10967 = vadd.f32 %v10798, %v10966
  %v10968 = vpop.f32.mrf.mxu0
  %v10969 = vadd.f32 %v10800, %v10968
  %10970 = vmatmul.bf16.gmra.mxu0 %v8921
  %v10971 = vpop.f32.mrf.mxu0
  %v10972 = vadd.f32 %v10803, %v10971
  %v10973 = vpop.f32.mrf.mxu0
  %v10974 = vadd.f32 %v10805, %v10973
  %10975 = vmatmul.bf16.gmra.mxu0 %v8934
  %v10976 = vpop.f32.mrf.mxu0
  %v10977 = vadd.f32 %v10808, %v10976
  %v10978 = vpop.f32.mrf.mxu0
  %v10979 = vadd.f32 %v10810, %v10978
  %10980 = vmatmul.bf16.gmra.mxu0 %v8947
  %v10981 = vpop.f32.mrf.mxu0
  %v10982 = vadd.f32 %v10813, %v10981
  %v10983 = vpop.f32.mrf.mxu0
  %v10984 = vadd.f32 %v10815, %v10983
  %10985 = vmatmul.bf16.gmra.mxu0 %v8960
  %v10986 = vpop.f32.mrf.mxu0
  %v10987 = vadd.f32 %v10818, %v10986
  %v10988 = vpop.f32.mrf.mxu0
  %v10989 = vadd.f32 %v10820, %v10988
  %10990 = vmatmul.bf16.gmra.mxu0 %v8973
  %v10991 = vpop.f32.mrf.mxu0
  %v10992 = vadd.f32 %v10823, %v10991
  %v10993 = vpop.f32.mrf.mxu0
  %v10994 = vadd.f32 %v10825, %v10993
  %10995 = vmatmul.bf16.gmra.mxu0 %v8986
  %v10996 = vpop.f32.mrf.mxu0
  %v10997 = vadd.f32 %v10828, %v10996
  %v10998 = vpop.f32.mrf.mxu0
  %v10999 = vadd.f32 %v10830, %v10998
  %11000 = vmatmul.bf16.gmra.mxu0 %v8999
  %v11001 = vpop.f32.mrf.mxu0
  %v11002 = vadd.f32 %v10833, %v11001
  %v11003 = vpop.f32.mrf.mxu0
  %v11004 = vadd.f32 %v10835, %v11003
  %11005 = vmatmul.bf16.gmra.mxu0 %v9012
  %v11006 = vpop.f32.mrf.mxu0
  %v11007 = vadd.f32 %v10838, %v11006
  %v11008 = vpop.f32.mrf.mxu0
  %v11009 = vadd.f32 %v10840, %v11008
  %11010 = vmatmul.bf16.gmra.mxu0 %v9025
  %v11011 = vpop.f32.mrf.mxu0
  %v11012 = vadd.f32 %v10843, %v11011
  %v11013 = vpop.f32.mrf.mxu0
  %v11014 = vadd.f32 %v10845, %v11013
  %11015 = vmatmul.bf16.gmra.mxu0 %v9038
  %v11016 = vpop.f32.mrf.mxu0
  %v11017 = vadd.f32 %v10848, %v11016
  %v11018 = vpop.f32.mrf.mxu0
  %v11019 = vadd.f32 %v10850, %v11018
  %11020 = vmatmul.bf16.gmra.mxu0 %v9051
  %v11021 = vpop.f32.mrf.mxu0
  %v11022 = vadd.f32 %v10853, %v11021
  %v11023 = vpop.f32.mrf.mxu0
  %v11024 = vadd.f32 %v10855, %v11023
  %11025 = vmatmul.bf16.gmra.mxu0 %v9064
  %v11026 = vpop.f32.mrf.mxu0
  %v11027 = vadd.f32 %v10858, %v11026
  %v11028 = vpop.f32.mrf.mxu0
  %v11029 = vadd.f32 %v10860, %v11028
  %11030 = vmatmul.bf16.gmra.mxu0 %v9077
  %v11031 = vpop.f32.mrf.mxu0
  %v11032 = vadd.f32 %v10863, %v11031
  %v11033 = vpop.f32.mrf.mxu0
  %v11034 = vadd.f32 %v10865, %v11033
  %11035 = vmatmul.bf16.gmra.mxu0 %v9090
  %v11036 = vpop.f32.mrf.mxu0
  %v11037 = vadd.f32 %v10868, %v11036
  %v11038 = vpop.f32.mrf.mxu0
  %v11039 = vadd.f32 %v10870, %v11038
  %11040 = vmatmul.bf16.gmra.mxu0 %v9103
  %v11041 = vpop.f32.mrf.mxu0
  %v11042 = vadd.f32 %v10873, %v11041
  %v11043 = vpop.f32.mrf.mxu0
  %v11044 = vadd.f32 %v10875, %v11043
  %11045 = vmatmul.bf16.gmra.mxu0 %v9116
  %v11046 = vpop.f32.mrf.mxu0
  %v11047 = vadd.f32 %v10878, %v11046
  %v11048 = vpop.f32.mrf.mxu0
  %v11049 = vadd.f32 %v10880, %v11048
  %11050 = vmatmul.bf16.gmra.mxu0 %v9129
  %v11051 = vpop.f32.mrf.mxu0
  %v11052 = vadd.f32 %v10883, %v11051
  %v11053 = vpop.f32.mrf.mxu0
  %v11054 = vadd.f32 %v10885, %v11053
  %11055 = vmatmul.bf16.gmra.mxu0 %v9142
  %v11056 = vpop.f32.mrf.mxu0
  %v11057 = vadd.f32 %v10888, %v11056
  %v11058 = vpop.f32.mrf.mxu0
  %v11059 = vadd.f32 %v10890, %v11058
  %11060 = vmatmul.bf16.gmra.mxu0 %v9155
  %v11061 = vpop.f32.mrf.mxu0
  %v11062 = vadd.f32 %v10893, %v11061
  %v11063 = vpop.f32.mrf.mxu0
  %v11064 = vadd.f32 %v10895, %v11063
  %11065 = vmatmul.bf16.gmra.mxu0 %v9168
  %v11066 = vpop.f32.mrf.mxu0
  %v11067 = vadd.f32 %v10898, %v11066
  %v11068 = vpop.f32.mrf.mxu0
  %v11069 = vadd.f32 %v10900, %v11068
  %11070 = vmatmul.bf16.gmra.mxu0 %v9181
  %v11071 = vpop.f32.mrf.mxu0
  %v11072 = vadd.f32 %v10903, %v11071
  %v11073 = vpop.f32.mrf.mxu0
  %v11074 = vadd.f32 %v10905, %v11073
  %11075 = vmatmul.bf16.gmra.mxu0 %v9194
  %v11076 = vpop.f32.mrf.mxu0
  %v11077 = vadd.f32 %v10908, %v11076
  %v11078 = vpop.f32.mrf.mxu0
  %v11079 = vadd.f32 %v10910, %v11078
  %11080 = vmatmul.bf16.gmra.mxu0 %v9207
  %v11081 = vpop.f32.mrf.mxu0
  %v11082 = vadd.f32 %v10913, %v11081
  %v11083 = vpop.f32.mrf.mxu0
  %v11084 = vadd.f32 %v10915, %v11083
  %11085 = vmatmul.bf16.gmra.mxu0 %v9220
  %v11086 = vpop.f32.mrf.mxu0
  %v11087 = vadd.f32 %v10918, %v11086
  %v11088 = vpop.f32.mrf.mxu0
  %v11089 = vadd.f32 %v10920, %v11088
  %11090 = vmatmul.bf16.gmra.mxu0 %v9233
  %v11091 = vpop.f32.mrf.mxu0
  %v11092 = vadd.f32 %v10923, %v11091
  %v11093 = vpop.f32.mrf.mxu0
  %v11094 = vadd.f32 %v10925, %v11093
  %11095 = vmatmul.bf16.gmra.mxu0 %v9246
  %v11096 = vpop.f32.mrf.mxu0
  %v11097 = vadd.f32 %v10928, %v11096
  %v11098 = vpop.f32.mrf.mxu0
  %v11099 = vadd.f32 %v10930, %v11098
  %11100 = vmatmul.bf16.gmra.mxu0 %v9259
  %v11101 = vpop.f32.mrf.mxu0
  %v11102 = vadd.f32 %v10933, %v11101
  %v11103 = vpop.f32.mrf.mxu0
  %v11104 = vadd.f32 %v10935, %v11103
  %11105 = vmatmul.bf16.gmra.mxu0 %v9272
  %v11106 = vpop.f32.mrf.mxu0
  %v11107 = vadd.f32 %v10938, %v11106
  %v11108 = vpop.f32.mrf.mxu0
  %v11109 = vadd.f32 %v10940, %v11108
  %11110 = vdwg.mxu0
  %11111 = vmatpush.bf16.msra.mxu0 %v6721
  %11112 = vmatpush.bf16.msra.mxu0 %v6720
  %11113 = vmatpush.bf16.msra.mxu0 %v6719
  %11114 = vmatpush.bf16.msra.mxu0 %v6718
  %11115 = vmatpush.bf16.msra.mxu0 %v6717
  %11116 = vmatpush.bf16.msra.mxu0 %v6716
  %11117 = vmatpush.bf16.msra.mxu0 %v6715
  %11118 = vmatpush.bf16.msra.mxu0 %v6714
  %11119 = vmatmul.bf16.gmra.mxu0 %v8870
  %v11120 = vpop.f32.mrf.mxu0
  %v11121 = vadd.f32 %v10952, %v11120
  %v11122 = vpop.f32.mrf.mxu0
  %v11123 = vadd.f32 %v10954, %v11122
  %11124 = vmatmul.bf16.gmra.mxu0 %v8883
  %v11125 = vpop.f32.mrf.mxu0
  %v11126 = vadd.f32 %v10957, %v11125
  %v11127 = vpop.f32.mrf.mxu0
  %v11128 = vadd.f32 %v10959, %v11127
  %11129 = vmatmul.bf16.gmra.mxu0 %v8896
  %v11130 = vpop.f32.mrf.mxu0
  %v11131 = vadd.f32 %v10962, %v11130
  %v11132 = vpop.f32.mrf.mxu0
  %v11133 = vadd.f32 %v10964, %v11132
  %11134 = vmatmul.bf16.gmra.mxu0 %v8909
  %v11135 = vpop.f32.mrf.mxu0
  %v11136 = vadd.f32 %v10967, %v11135
  %v11137 = vpop.f32.mrf.mxu0
  %v11138 = vadd.f32 %v10969, %v11137
  %11139 = vmatmul.bf16.gmra.mxu0 %v8922
  %v11140 = vpop.f32.mrf.mxu0
  %v11141 = vadd.f32 %v10972, %v11140
  %v11142 = vpop.f32.mrf.mxu0
  %v11143 = vadd.f32 %v10974, %v11142
  %11144 = vmatmul.bf16.gmra.mxu0 %v8935
  %v11145 = vpop.f32.mrf.mxu0
  %v11146 = vadd.f32 %v10977, %v11145
  %v11147 = vpop.f32.mrf.mxu0
  %v11148 = vadd.f32 %v10979, %v11147
  %11149 = vmatmul.bf16.gmra.mxu0 %v8948
  %v11150 = vpop.f32.mrf.mxu0
  %v11151 = vadd.f32 %v10982, %v11150
  %v11152 = vpop.f32.mrf.mxu0
  %v11153 = vadd.f32 %v10984, %v11152
  %11154 = vmatmul.bf16.gmra.mxu0 %v8961
  %v11155 = vpop.f32.mrf.mxu0
  %v11156 = vadd.f32 %v10987, %v11155
  %v11157 = vpop.f32.mrf.mxu0
  %v11158 = vadd.f32 %v10989, %v11157
  %11159 = vmatmul.bf16.gmra.mxu0 %v8974
  %v11160 = vpop.f32.mrf.mxu0
  %v11161 = vadd.f32 %v10992, %v11160
  %v11162 = vpop.f32.mrf.mxu0
  %v11163 = vadd.f32 %v10994, %v11162
  %11164 = vmatmul.bf16.gmra.mxu0 %v8987
  %v11165 = vpop.f32.mrf.mxu0
  %v11166 = vadd.f32 %v10997, %v11165
  %v11167 = vpop.f32.mrf.mxu0
  %v11168 = vadd.f32 %v10999, %v11167
  %11169 = vmatmul.bf16.gmra.mxu0 %v9000
  %v11170 = vpop.f32.mrf.mxu0
  %v11171 = vadd.f32 %v11002, %v11170
  %v11172 = vpop.f32.mrf.mxu0
  %v11173 = vadd.f32 %v11004, %v11172
  %11174 = vmatmul.bf16.gmra.mxu0 %v9013
  %v11175 = vpop.f32.mrf.mxu0
  %v11176 = vadd.f32 %v11007, %v11175
  %v11177 = vpop.f32.mrf.mxu0
  %v11178 = vadd.f32 %v11009, %v11177
  %11179 = vmatmul.bf16.gmra.mxu0 %v9026
  %v11180 = vpop.f32.mrf.mxu0
  %v11181 = vadd.f32 %v11012, %v11180
  %v11182 = vpop.f32.mrf.mxu0
  %v11183 = vadd.f32 %v11014, %v11182
  %11184 = vmatmul.bf16.gmra.mxu0 %v9039
  %v11185 = vpop.f32.mrf.mxu0
  %v11186 = vadd.f32 %v11017, %v11185
  %v11187 = vpop.f32.mrf.mxu0
  %v11188 = vadd.f32 %v11019, %v11187
  %11189 = vmatmul.bf16.gmra.mxu0 %v9052
  %v11190 = vpop.f32.mrf.mxu0
  %v11191 = vadd.f32 %v11022, %v11190
  %v11192 = vpop.f32.mrf.mxu0
  %v11193 = vadd.f32 %v11024, %v11192
  %11194 = vmatmul.bf16.gmra.mxu0 %v9065
  %v11195 = vpop.f32.mrf.mxu0
  %v11196 = vadd.f32 %v11027, %v11195
  %v11197 = vpop.f32.mrf.mxu0
  %v11198 = vadd.f32 %v11029, %v11197
  %11199 = vmatmul.bf16.gmra.mxu0 %v9078
  %v11200 = vpop.f32.mrf.mxu0
  %v11201 = vadd.f32 %v11032, %v11200
  %v11202 = vpop.f32.mrf.mxu0
  %v11203 = vadd.f32 %v11034, %v11202
  %11204 = vmatmul.bf16.gmra.mxu0 %v9091
  %v11205 = vpop.f32.mrf.mxu0
  %v11206 = vadd.f32 %v11037, %v11205
  %v11207 = vpop.f32.mrf.mxu0
  %v11208 = vadd.f32 %v11039, %v11207
  %11209 = vmatmul.bf16.gmra.mxu0 %v9104
  %v11210 = vpop.f32.mrf.mxu0
  %v11211 = vadd.f32 %v11042, %v11210
  %v11212 = vpop.f32.mrf.mxu0
  %v11213 = vadd.f32 %v11044, %v11212
  %11214 = vmatmul.bf16.gmra.mxu0 %v9117
  %v11215 = vpop.f32.mrf.mxu0
  %v11216 = vadd.f32 %v11047, %v11215
  %v11217 = vpop.f32.mrf.mxu0
  %v11218 = vadd.f32 %v11049, %v11217
  %11219 = vmatmul.bf16.gmra.mxu0 %v9130
  %v11220 = vpop.f32.mrf.mxu0
  %v11221 = vadd.f32 %v11052, %v11220
  %v11222 = vpop.f32.mrf.mxu0
  %v11223 = vadd.f32 %v11054, %v11222
  %11224 = vmatmul.bf16.gmra.mxu0 %v9143
  %v11225 = vpop.f32.mrf.mxu0
  %v11226 = vadd.f32 %v11057, %v11225
  %v11227 = vpop.f32.mrf.mxu0
  %v11228 = vadd.f32 %v11059, %v11227
  %11229 = vmatmul.bf16.gmra.mxu0 %v9156
  %v11230 = vpop.f32.mrf.mxu0
  %v11231 = vadd.f32 %v11062, %v11230
  %v11232 = vpop.f32.mrf.mxu0
  %v11233 = vadd.f32 %v11064, %v11232
  %11234 = vmatmul.bf16.gmra.mxu0 %v9169
  %v11235 = vpop.f32.mrf.mxu0
  %v11236 = vadd.f32 %v11067, %v11235
  %v11237 = vpop.f32.mrf.mxu0
  %v11238 = vadd.f32 %v11069, %v11237
  %11239 = vmatmul.bf16.gmra.mxu0 %v9182
  %v11240 = vpop.f32.mrf.mxu0
  %v11241 = vadd.f32 %v11072, %v11240
  %v11242 = vpop.f32.mrf.mxu0
  %v11243 = vadd.f32 %v11074, %v11242
  %11244 = vmatmul.bf16.gmra.mxu0 %v9195
  %v11245 = vpop.f32.mrf.mxu0
  %v11246 = vadd.f32 %v11077, %v11245
  %v11247 = vpop.f32.mrf.mxu0
  %v11248 = vadd.f32 %v11079, %v11247
  %11249 = vmatmul.bf16.gmra.mxu0 %v9208
  %v11250 = vpop.f32.mrf.mxu0
  %v11251 = vadd.f32 %v11082, %v11250
  %v11252 = vpop.f32.mrf.mxu0
  %v11253 = vadd.f32 %v11084, %v11252
  %11254 = vmatmul.bf16.gmra.mxu0 %v9221
  %v11255 = vpop.f32.mrf.mxu0
  %v11256 = vadd.f32 %v11087, %v11255
  %v11257 = vpop.f32.mrf.mxu0
  %v11258 = vadd.f32 %v11089, %v11257
  %11259 = vmatmul.bf16.gmra.mxu0 %v9234
  %v11260 = vpop.f32.mrf.mxu0
  %v11261 = vadd.f32 %v11092, %v11260
  %v11262 = vpop.f32.mrf.mxu0
  %v11263 = vadd.f32 %v11094, %v11262
  %11264 = vmatmul.bf16.gmra.mxu0 %v9247
  %v11265 = vpop.f32.mrf.mxu0
  %v11266 = vadd.f32 %v11097, %v11265
  %v11267 = vpop.f32.mrf.mxu0
  %v11268 = vadd.f32 %v11099, %v11267
  %11269 = vmatmul.bf16.gmra.mxu0 %v9260
  %v11270 = vpop.f32.mrf.mxu0
  %v11271 = vadd.f32 %v11102, %v11270
  %v11272 = vpop.f32.mrf.mxu0
  %v11273 = vadd.f32 %v11104, %v11272
  %11274 = vmatmul.bf16.gmra.mxu0 %v9273
  %v11275 = vpop.f32.mrf.mxu0
  %v11276 = vadd.f32 %v11107, %v11275
  %v11277 = vpop.f32.mrf.mxu0
  %v11278 = vadd.f32 %v11109, %v11277
  %11279 = vdwg.mxu0
  %11280 = vmatpush.bf16.msra.mxu0 %v6729
  %11281 = vmatpush.bf16.msra.mxu0 %v6728
  %11282 = vmatpush.bf16.msra.mxu0 %v6727
  %11283 = vmatpush.bf16.msra.mxu0 %v6726
  %11284 = vmatpush.bf16.msra.mxu0 %v6725
  %11285 = vmatpush.bf16.msra.mxu0 %v6724
  %11286 = vmatpush.bf16.msra.mxu0 %v6723
  %11287 = vmatpush.bf16.msra.mxu0 %v6722
  %11288 = vmatmul.bf16.gmra.mxu0 %v8871
  %v11289 = vpop.f32.mrf.mxu0
  %v11290 = vadd.f32 %v11121, %v11289
  %v11291 = vpop.f32.mrf.mxu0
  %v11292 = vadd.f32 %v11123, %v11291
  %11293 = vmatmul.bf16.gmra.mxu0 %v8884
  %v11294 = vpop.f32.mrf.mxu0
  %v11295 = vadd.f32 %v11126, %v11294
  %v11296 = vpop.f32.mrf.mxu0
  %v11297 = vadd.f32 %v11128, %v11296
  %11298 = vmatmul.bf16.gmra.mxu0 %v8897
  %v11299 = vpop.f32.mrf.mxu0
  %v11300 = vadd.f32 %v11131, %v11299
  %v11301 = vpop.f32.mrf.mxu0
  %v11302 = vadd.f32 %v11133, %v11301
  %11303 = vmatmul.bf16.gmra.mxu0 %v8910
  %v11304 = vpop.f32.mrf.mxu0
  %v11305 = vadd.f32 %v11136, %v11304
  %v11306 = vpop.f32.mrf.mxu0
  %v11307 = vadd.f32 %v11138, %v11306
  %11308 = vmatmul.bf16.gmra.mxu0 %v8923
  %v11309 = vpop.f32.mrf.mxu0
  %v11310 = vadd.f32 %v11141, %v11309
  %v11311 = vpop.f32.mrf.mxu0
  %v11312 = vadd.f32 %v11143, %v11311
  %11313 = vmatmul.bf16.gmra.mxu0 %v8936
  %v11314 = vpop.f32.mrf.mxu0
  %v11315 = vadd.f32 %v11146, %v11314
  %v11316 = vpop.f32.mrf.mxu0
  %v11317 = vadd.f32 %v11148, %v11316
  %11318 = vmatmul.bf16.gmra.mxu0 %v8949
  %v11319 = vpop.f32.mrf.mxu0
  %v11320 = vadd.f32 %v11151, %v11319
  %v11321 = vpop.f32.mrf.mxu0
  %v11322 = vadd.f32 %v11153, %v11321
  %11323 = vmatmul.bf16.gmra.mxu0 %v8962
  %v11324 = vpop.f32.mrf.mxu0
  %v11325 = vadd.f32 %v11156, %v11324
  %v11326 = vpop.f32.mrf.mxu0
  %v11327 = vadd.f32 %v11158, %v11326
  %11328 = vmatmul.bf16.gmra.mxu0 %v8975
  %v11329 = vpop.f32.mrf.mxu0
  %v11330 = vadd.f32 %v11161, %v11329
  %v11331 = vpop.f32.mrf.mxu0
  %v11332 = vadd.f32 %v11163, %v11331
  %11333 = vmatmul.bf16.gmra.mxu0 %v8988
  %v11334 = vpop.f32.mrf.mxu0
  %v11335 = vadd.f32 %v11166, %v11334
  %v11336 = vpop.f32.mrf.mxu0
  %v11337 = vadd.f32 %v11168, %v11336
  %11338 = vmatmul.bf16.gmra.mxu0 %v9001
  %v11339 = vpop.f32.mrf.mxu0
  %v11340 = vadd.f32 %v11171, %v11339
  %v11341 = vpop.f32.mrf.mxu0
  %v11342 = vadd.f32 %v11173, %v11341
  %11343 = vmatmul.bf16.gmra.mxu0 %v9014
  %v11344 = vpop.f32.mrf.mxu0
  %v11345 = vadd.f32 %v11176, %v11344
  %v11346 = vpop.f32.mrf.mxu0
  %v11347 = vadd.f32 %v11178, %v11346
  %11348 = vmatmul.bf16.gmra.mxu0 %v9027
  %v11349 = vpop.f32.mrf.mxu0
  %v11350 = vadd.f32 %v11181, %v11349
  %v11351 = vpop.f32.mrf.mxu0
  %v11352 = vadd.f32 %v11183, %v11351
  %11353 = vmatmul.bf16.gmra.mxu0 %v9040
  %v11354 = vpop.f32.mrf.mxu0
  %v11355 = vadd.f32 %v11186, %v11354
  %v11356 = vpop.f32.mrf.mxu0
  %v11357 = vadd.f32 %v11188, %v11356
  %11358 = vmatmul.bf16.gmra.mxu0 %v9053
  %v11359 = vpop.f32.mrf.mxu0
  %v11360 = vadd.f32 %v11191, %v11359
  %v11361 = vpop.f32.mrf.mxu0
  %v11362 = vadd.f32 %v11193, %v11361
  %11363 = vmatmul.bf16.gmra.mxu0 %v9066
  %v11364 = vpop.f32.mrf.mxu0
  %v11365 = vadd.f32 %v11196, %v11364
  %v11366 = vpop.f32.mrf.mxu0
  %v11367 = vadd.f32 %v11198, %v11366
  %11368 = vmatmul.bf16.gmra.mxu0 %v9079
  %v11369 = vpop.f32.mrf.mxu0
  %v11370 = vadd.f32 %v11201, %v11369
  %v11371 = vpop.f32.mrf.mxu0
  %v11372 = vadd.f32 %v11203, %v11371
  %11373 = vmatmul.bf16.gmra.mxu0 %v9092
  %v11374 = vpop.f32.mrf.mxu0
  %v11375 = vadd.f32 %v11206, %v11374
  %v11376 = vpop.f32.mrf.mxu0
  %v11377 = vadd.f32 %v11208, %v11376
  %11378 = vmatmul.bf16.gmra.mxu0 %v9105
  %v11379 = vpop.f32.mrf.mxu0
  %v11380 = vadd.f32 %v11211, %v11379
  %v11381 = vpop.f32.mrf.mxu0
  %v11382 = vadd.f32 %v11213, %v11381
  %11383 = vmatmul.bf16.gmra.mxu0 %v9118
  %v11384 = vpop.f32.mrf.mxu0
  %v11385 = vadd.f32 %v11216, %v11384
  %v11386 = vpop.f32.mrf.mxu0
  %v11387 = vadd.f32 %v11218, %v11386
  %11388 = vmatmul.bf16.gmra.mxu0 %v9131
  %v11389 = vpop.f32.mrf.mxu0
  %v11390 = vadd.f32 %v11221, %v11389
  %v11391 = vpop.f32.mrf.mxu0
  %v11392 = vadd.f32 %v11223, %v11391
  %11393 = vmatmul.bf16.gmra.mxu0 %v9144
  %v11394 = vpop.f32.mrf.mxu0
  %v11395 = vadd.f32 %v11226, %v11394
  %v11396 = vpop.f32.mrf.mxu0
  %v11397 = vadd.f32 %v11228, %v11396
  %11398 = vmatmul.bf16.gmra.mxu0 %v9157
  %v11399 = vpop.f32.mrf.mxu0
  %v11400 = vadd.f32 %v11231, %v11399
  %v11401 = vpop.f32.mrf.mxu0
  %v11402 = vadd.f32 %v11233, %v11401
  %11403 = vmatmul.bf16.gmra.mxu0 %v9170
  %v11404 = vpop.f32.mrf.mxu0
  %v11405 = vadd.f32 %v11236, %v11404
  %v11406 = vpop.f32.mrf.mxu0
  %v11407 = vadd.f32 %v11238, %v11406
  %11408 = vmatmul.bf16.gmra.mxu0 %v9183
  %v11409 = vpop.f32.mrf.mxu0
  %v11410 = vadd.f32 %v11241, %v11409
  %v11411 = vpop.f32.mrf.mxu0
  %v11412 = vadd.f32 %v11243, %v11411
  %11413 = vmatmul.bf16.gmra.mxu0 %v9196
  %v11414 = vpop.f32.mrf.mxu0
  %v11415 = vadd.f32 %v11246, %v11414
  %v11416 = vpop.f32.mrf.mxu0
  %v11417 = vadd.f32 %v11248, %v11416
  %11418 = vmatmul.bf16.gmra.mxu0 %v9209
  %v11419 = vpop.f32.mrf.mxu0
  %v11420 = vadd.f32 %v11251, %v11419
  %v11421 = vpop.f32.mrf.mxu0
  %v11422 = vadd.f32 %v11253, %v11421
  %11423 = vmatmul.bf16.gmra.mxu0 %v9222
  %v11424 = vpop.f32.mrf.mxu0
  %v11425 = vadd.f32 %v11256, %v11424
  %v11426 = vpop.f32.mrf.mxu0
  %v11427 = vadd.f32 %v11258, %v11426
  %11428 = vmatmul.bf16.gmra.mxu0 %v9235
  %v11429 = vpop.f32.mrf.mxu0
  %v11430 = vadd.f32 %v11261, %v11429
  %v11431 = vpop.f32.mrf.mxu0
  %v11432 = vadd.f32 %v11263, %v11431
  %11433 = vmatmul.bf16.gmra.mxu0 %v9248
  %v11434 = vpop.f32.mrf.mxu0
  %v11435 = vadd.f32 %v11266, %v11434
  %v11436 = vpop.f32.mrf.mxu0
  %v11437 = vadd.f32 %v11268, %v11436
  %11438 = vmatmul.bf16.gmra.mxu0 %v9261
  %v11439 = vpop.f32.mrf.mxu0
  %v11440 = vadd.f32 %v11271, %v11439
  %v11441 = vpop.f32.mrf.mxu0
  %v11442 = vadd.f32 %v11273, %v11441
  %11443 = vmatmul.bf16.gmra.mxu0 %v9274
  %v11444 = vpop.f32.mrf.mxu0
  %v11445 = vadd.f32 %v11276, %v11444
  %v11446 = vpop.f32.mrf.mxu0
  %v11447 = vadd.f32 %v11278, %v11446
  %11448 = vdwg.mxu0
  %11449 = vmatpush.bf16.msra.mxu0 %v6737
  %11450 = vmatpush.bf16.msra.mxu0 %v6736
  %11451 = vmatpush.bf16.msra.mxu0 %v6735
  %11452 = vmatpush.bf16.msra.mxu0 %v6734
  %11453 = vmatpush.bf16.msra.mxu0 %v6733
  %11454 = vmatpush.bf16.msra.mxu0 %v6732
  %11455 = vmatpush.bf16.msra.mxu0 %v6731
  %11456 = vmatpush.bf16.msra.mxu0 %v6730
  %11457 = vmatmul.bf16.gmra.mxu0 %v8872
  %v11458 = vpop.f32.mrf.mxu0
  %v11459 = vadd.f32 %v11290, %v11458
  %v11460 = vpop.f32.mrf.mxu0
  %v11461 = vadd.f32 %v11292, %v11460
  %11462 = vmatmul.bf16.gmra.mxu0 %v8885
  %v11463 = vpop.f32.mrf.mxu0
  %v11464 = vadd.f32 %v11295, %v11463
  %v11465 = vpop.f32.mrf.mxu0
  %v11466 = vadd.f32 %v11297, %v11465
  %11467 = vmatmul.bf16.gmra.mxu0 %v8898
  %v11468 = vpop.f32.mrf.mxu0
  %v11469 = vadd.f32 %v11300, %v11468
  %v11470 = vpop.f32.mrf.mxu0
  %v11471 = vadd.f32 %v11302, %v11470
  %11472 = vmatmul.bf16.gmra.mxu0 %v8911
  %v11473 = vpop.f32.mrf.mxu0
  %v11474 = vadd.f32 %v11305, %v11473
  %v11475 = vpop.f32.mrf.mxu0
  %v11476 = vadd.f32 %v11307, %v11475
  %11477 = vmatmul.bf16.gmra.mxu0 %v8924
  %v11478 = vpop.f32.mrf.mxu0
  %v11479 = vadd.f32 %v11310, %v11478
  %v11480 = vpop.f32.mrf.mxu0
  %v11481 = vadd.f32 %v11312, %v11480
  %11482 = vmatmul.bf16.gmra.mxu0 %v8937
  %v11483 = vpop.f32.mrf.mxu0
  %v11484 = vadd.f32 %v11315, %v11483
  %v11485 = vpop.f32.mrf.mxu0
  %v11486 = vadd.f32 %v11317, %v11485
  %11487 = vmatmul.bf16.gmra.mxu0 %v8950
  %v11488 = vpop.f32.mrf.mxu0
  %v11489 = vadd.f32 %v11320, %v11488
  %v11490 = vpop.f32.mrf.mxu0
  %v11491 = vadd.f32 %v11322, %v11490
  %11492 = vmatmul.bf16.gmra.mxu0 %v8963
  %v11493 = vpop.f32.mrf.mxu0
  %v11494 = vadd.f32 %v11325, %v11493
  %v11495 = vpop.f32.mrf.mxu0
  %v11496 = vadd.f32 %v11327, %v11495
  %11497 = vmatmul.bf16.gmra.mxu0 %v8976
  %v11498 = vpop.f32.mrf.mxu0
  %v11499 = vadd.f32 %v11330, %v11498
  %v11500 = vpop.f32.mrf.mxu0
  %v11501 = vadd.f32 %v11332, %v11500
  %11502 = vmatmul.bf16.gmra.mxu0 %v8989
  %v11503 = vpop.f32.mrf.mxu0
  %v11504 = vadd.f32 %v11335, %v11503
  %v11505 = vpop.f32.mrf.mxu0
  %v11506 = vadd.f32 %v11337, %v11505
  %11507 = vmatmul.bf16.gmra.mxu0 %v9002
  %v11508 = vpop.f32.mrf.mxu0
  %v11509 = vadd.f32 %v11340, %v11508
  %v11510 = vpop.f32.mrf.mxu0
  %v11511 = vadd.f32 %v11342, %v11510
  %11512 = vmatmul.bf16.gmra.mxu0 %v9015
  %v11513 = vpop.f32.mrf.mxu0
  %v11514 = vadd.f32 %v11345, %v11513
  %v11515 = vpop.f32.mrf.mxu0
  %v11516 = vadd.f32 %v11347, %v11515
  %11517 = vmatmul.bf16.gmra.mxu0 %v9028
  %v11518 = vpop.f32.mrf.mxu0
  %v11519 = vadd.f32 %v11350, %v11518
  %v11520 = vpop.f32.mrf.mxu0
  %v11521 = vadd.f32 %v11352, %v11520
  %11522 = vmatmul.bf16.gmra.mxu0 %v9041
  %v11523 = vpop.f32.mrf.mxu0
  %v11524 = vadd.f32 %v11355, %v11523
  %v11525 = vpop.f32.mrf.mxu0
  %v11526 = vadd.f32 %v11357, %v11525
  %11527 = vmatmul.bf16.gmra.mxu0 %v9054
  %v11528 = vpop.f32.mrf.mxu0
  %v11529 = vadd.f32 %v11360, %v11528
  %v11530 = vpop.f32.mrf.mxu0
  %v11531 = vadd.f32 %v11362, %v11530
  %11532 = vmatmul.bf16.gmra.mxu0 %v9067
  %v11533 = vpop.f32.mrf.mxu0
  %v11534 = vadd.f32 %v11365, %v11533
  %v11535 = vpop.f32.mrf.mxu0
  %v11536 = vadd.f32 %v11367, %v11535
  %11537 = vmatmul.bf16.gmra.mxu0 %v9080
  %v11538 = vpop.f32.mrf.mxu0
  %v11539 = vadd.f32 %v11370, %v11538
  %v11540 = vpop.f32.mrf.mxu0
  %v11541 = vadd.f32 %v11372, %v11540
  %11542 = vmatmul.bf16.gmra.mxu0 %v9093
  %v11543 = vpop.f32.mrf.mxu0
  %v11544 = vadd.f32 %v11375, %v11543
  %v11545 = vpop.f32.mrf.mxu0
  %v11546 = vadd.f32 %v11377, %v11545
  %11547 = vmatmul.bf16.gmra.mxu0 %v9106
  %v11548 = vpop.f32.mrf.mxu0
  %v11549 = vadd.f32 %v11380, %v11548
  %v11550 = vpop.f32.mrf.mxu0
  %v11551 = vadd.f32 %v11382, %v11550
  %11552 = vmatmul.bf16.gmra.mxu0 %v9119
  %v11553 = vpop.f32.mrf.mxu0
  %v11554 = vadd.f32 %v11385, %v11553
  %v11555 = vpop.f32.mrf.mxu0
  %v11556 = vadd.f32 %v11387, %v11555
  %11557 = vmatmul.bf16.gmra.mxu0 %v9132
  %v11558 = vpop.f32.mrf.mxu0
  %v11559 = vadd.f32 %v11390, %v11558
  %v11560 = vpop.f32.mrf.mxu0
  %v11561 = vadd.f32 %v11392, %v11560
  %11562 = vmatmul.bf16.gmra.mxu0 %v9145
  %v11563 = vpop.f32.mrf.mxu0
  %v11564 = vadd.f32 %v11395, %v11563
  %v11565 = vpop.f32.mrf.mxu0
  %v11566 = vadd.f32 %v11397, %v11565
  %11567 = vmatmul.bf16.gmra.mxu0 %v9158
  %v11568 = vpop.f32.mrf.mxu0
  %v11569 = vadd.f32 %v11400, %v11568
  %v11570 = vpop.f32.mrf.mxu0
  %v11571 = vadd.f32 %v11402, %v11570
  %11572 = vmatmul.bf16.gmra.mxu0 %v9171
  %v11573 = vpop.f32.mrf.mxu0
  %v11574 = vadd.f32 %v11405, %v11573
  %v11575 = vpop.f32.mrf.mxu0
  %v11576 = vadd.f32 %v11407, %v11575
  %11577 = vmatmul.bf16.gmra.mxu0 %v9184
  %v11578 = vpop.f32.mrf.mxu0
  %v11579 = vadd.f32 %v11410, %v11578
  %v11580 = vpop.f32.mrf.mxu0
  %v11581 = vadd.f32 %v11412, %v11580
  %11582 = vmatmul.bf16.gmra.mxu0 %v9197
  %v11583 = vpop.f32.mrf.mxu0
  %v11584 = vadd.f32 %v11415, %v11583
  %v11585 = vpop.f32.mrf.mxu0
  %v11586 = vadd.f32 %v11417, %v11585
  %11587 = vmatmul.bf16.gmra.mxu0 %v9210
  %v11588 = vpop.f32.mrf.mxu0
  %v11589 = vadd.f32 %v11420, %v11588
  %v11590 = vpop.f32.mrf.mxu0
  %v11591 = vadd.f32 %v11422, %v11590
  %11592 = vmatmul.bf16.gmra.mxu0 %v9223
  %v11593 = vpop.f32.mrf.mxu0
  %v11594 = vadd.f32 %v11425, %v11593
  %v11595 = vpop.f32.mrf.mxu0
  %v11596 = vadd.f32 %v11427, %v11595
  %11597 = vmatmul.bf16.gmra.mxu0 %v9236
  %v11598 = vpop.f32.mrf.mxu0
  %v11599 = vadd.f32 %v11430, %v11598
  %v11600 = vpop.f32.mrf.mxu0
  %v11601 = vadd.f32 %v11432, %v11600
  %11602 = vmatmul.bf16.gmra.mxu0 %v9249
  %v11603 = vpop.f32.mrf.mxu0
  %v11604 = vadd.f32 %v11435, %v11603
  %v11605 = vpop.f32.mrf.mxu0
  %v11606 = vadd.f32 %v11437, %v11605
  %11607 = vmatmul.bf16.gmra.mxu0 %v9262
  %v11608 = vpop.f32.mrf.mxu0
  %v11609 = vadd.f32 %v11440, %v11608
  %v11610 = vpop.f32.mrf.mxu0
  %v11611 = vadd.f32 %v11442, %v11610
  %11612 = vmatmul.bf16.gmra.mxu0 %v9275
  %v11613 = vpop.f32.mrf.mxu0
  %v11614 = vadd.f32 %v11445, %v11613
  %v11615 = vpop.f32.mrf.mxu0
  %v11616 = vadd.f32 %v11447, %v11615
  %11617 = vdwg.mxu0
  %11618 = vmatpush.bf16.msra.mxu0 %v6745
  %11619 = vmatpush.bf16.msra.mxu0 %v6744
  %11620 = vmatpush.bf16.msra.mxu0 %v6743
  %11621 = vmatpush.bf16.msra.mxu0 %v6742
  %11622 = vmatpush.bf16.msra.mxu0 %v6741
  %11623 = vmatpush.bf16.msra.mxu0 %v6740
  %11624 = vmatpush.bf16.msra.mxu0 %v6739
  %11625 = vmatpush.bf16.msra.mxu0 %v6738
  %11626 = vmatmul.bf16.gmra.mxu0 %v8873
  %v11627 = vpop.f32.mrf.mxu0
  %v11628 = vadd.f32 %v11459, %v11627
  %v11629 = vpop.f32.mrf.mxu0
  %v11630 = vadd.f32 %v11461, %v11629
  %11631 = vmatmul.bf16.gmra.mxu0 %v8886
  %v11632 = vpop.f32.mrf.mxu0
  %v11633 = vadd.f32 %v11464, %v11632
  %v11634 = vpop.f32.mrf.mxu0
  %v11635 = vadd.f32 %v11466, %v11634
  %11636 = vmatmul.bf16.gmra.mxu0 %v8899
  %v11637 = vpop.f32.mrf.mxu0
  %v11638 = vadd.f32 %v11469, %v11637
  %v11639 = vpop.f32.mrf.mxu0
  %v11640 = vadd.f32 %v11471, %v11639
  %11641 = vmatmul.bf16.gmra.mxu0 %v8912
  %v11642 = vpop.f32.mrf.mxu0
  %v11643 = vadd.f32 %v11474, %v11642
  %v11644 = vpop.f32.mrf.mxu0
  %v11645 = vadd.f32 %v11476, %v11644
  %11646 = vmatmul.bf16.gmra.mxu0 %v8925
  %v11647 = vpop.f32.mrf.mxu0
  %v11648 = vadd.f32 %v11479, %v11647
  %v11649 = vpop.f32.mrf.mxu0
  %v11650 = vadd.f32 %v11481, %v11649
  %11651 = vmatmul.bf16.gmra.mxu0 %v8938
  %v11652 = vpop.f32.mrf.mxu0
  %v11653 = vadd.f32 %v11484, %v11652
  %v11654 = vpop.f32.mrf.mxu0
  %v11655 = vadd.f32 %v11486, %v11654
  %11656 = vmatmul.bf16.gmra.mxu0 %v8951
  %v11657 = vpop.f32.mrf.mxu0
  %v11658 = vadd.f32 %v11489, %v11657
  %v11659 = vpop.f32.mrf.mxu0
  %v11660 = vadd.f32 %v11491, %v11659
  %11661 = vmatmul.bf16.gmra.mxu0 %v8964
  %v11662 = vpop.f32.mrf.mxu0
  %v11663 = vadd.f32 %v11494, %v11662
  %v11664 = vpop.f32.mrf.mxu0
  %v11665 = vadd.f32 %v11496, %v11664
  %11666 = vmatmul.bf16.gmra.mxu0 %v8977
  %v11667 = vpop.f32.mrf.mxu0
  %v11668 = vadd.f32 %v11499, %v11667
  %v11669 = vpop.f32.mrf.mxu0
  %v11670 = vadd.f32 %v11501, %v11669
  %11671 = vmatmul.bf16.gmra.mxu0 %v8990
  %v11672 = vpop.f32.mrf.mxu0
  %v11673 = vadd.f32 %v11504, %v11672
  %v11674 = vpop.f32.mrf.mxu0
  %v11675 = vadd.f32 %v11506, %v11674
  %11676 = vmatmul.bf16.gmra.mxu0 %v9003
  %v11677 = vpop.f32.mrf.mxu0
  %v11678 = vadd.f32 %v11509, %v11677
  %v11679 = vpop.f32.mrf.mxu0
  %v11680 = vadd.f32 %v11511, %v11679
  %11681 = vmatmul.bf16.gmra.mxu0 %v9016
  %v11682 = vpop.f32.mrf.mxu0
  %v11683 = vadd.f32 %v11514, %v11682
  %v11684 = vpop.f32.mrf.mxu0
  %v11685 = vadd.f32 %v11516, %v11684
  %11686 = vmatmul.bf16.gmra.mxu0 %v9029
  %v11687 = vpop.f32.mrf.mxu0
  %v11688 = vadd.f32 %v11519, %v11687
  %v11689 = vpop.f32.mrf.mxu0
  %v11690 = vadd.f32 %v11521, %v11689
  %11691 = vmatmul.bf16.gmra.mxu0 %v9042
  %v11692 = vpop.f32.mrf.mxu0
  %v11693 = vadd.f32 %v11524, %v11692
  %v11694 = vpop.f32.mrf.mxu0
  %v11695 = vadd.f32 %v11526, %v11694
  %11696 = vmatmul.bf16.gmra.mxu0 %v9055
  %v11697 = vpop.f32.mrf.mxu0
  %v11698 = vadd.f32 %v11529, %v11697
  %v11699 = vpop.f32.mrf.mxu0
  %v11700 = vadd.f32 %v11531, %v11699
  %11701 = vmatmul.bf16.gmra.mxu0 %v9068
  %v11702 = vpop.f32.mrf.mxu0
  %v11703 = vadd.f32 %v11534, %v11702
  %v11704 = vpop.f32.mrf.mxu0
  %v11705 = vadd.f32 %v11536, %v11704
  %11706 = vmatmul.bf16.gmra.mxu0 %v9081
  %v11707 = vpop.f32.mrf.mxu0
  %v11708 = vadd.f32 %v11539, %v11707
  %v11709 = vpop.f32.mrf.mxu0
  %v11710 = vadd.f32 %v11541, %v11709
  %11711 = vmatmul.bf16.gmra.mxu0 %v9094
  %v11712 = vpop.f32.mrf.mxu0
  %v11713 = vadd.f32 %v11544, %v11712
  %v11714 = vpop.f32.mrf.mxu0
  %v11715 = vadd.f32 %v11546, %v11714
  %11716 = vmatmul.bf16.gmra.mxu0 %v9107
  %v11717 = vpop.f32.mrf.mxu0
  %v11718 = vadd.f32 %v11549, %v11717
  %v11719 = vpop.f32.mrf.mxu0
  %v11720 = vadd.f32 %v11551, %v11719
  %11721 = vmatmul.bf16.gmra.mxu0 %v9120
  %v11722 = vpop.f32.mrf.mxu0
  %v11723 = vadd.f32 %v11554, %v11722
  %v11724 = vpop.f32.mrf.mxu0
  %v11725 = vadd.f32 %v11556, %v11724
  %11726 = vmatmul.bf16.gmra.mxu0 %v9133
  %v11727 = vpop.f32.mrf.mxu0
  %v11728 = vadd.f32 %v11559, %v11727
  %v11729 = vpop.f32.mrf.mxu0
  %v11730 = vadd.f32 %v11561, %v11729
  %11731 = vmatmul.bf16.gmra.mxu0 %v9146
  %v11732 = vpop.f32.mrf.mxu0
  %v11733 = vadd.f32 %v11564, %v11732
  %v11734 = vpop.f32.mrf.mxu0
  %v11735 = vadd.f32 %v11566, %v11734
  %11736 = vmatmul.bf16.gmra.mxu0 %v9159
  %v11737 = vpop.f32.mrf.mxu0
  %v11738 = vadd.f32 %v11569, %v11737
  %v11739 = vpop.f32.mrf.mxu0
  %v11740 = vadd.f32 %v11571, %v11739
  %11741 = vmatmul.bf16.gmra.mxu0 %v9172
  %v11742 = vpop.f32.mrf.mxu0
  %v11743 = vadd.f32 %v11574, %v11742
  %v11744 = vpop.f32.mrf.mxu0
  %v11745 = vadd.f32 %v11576, %v11744
  %11746 = vmatmul.bf16.gmra.mxu0 %v9185
  %v11747 = vpop.f32.mrf.mxu0
  %v11748 = vadd.f32 %v11579, %v11747
  %v11749 = vpop.f32.mrf.mxu0
  %v11750 = vadd.f32 %v11581, %v11749
  %11751 = vmatmul.bf16.gmra.mxu0 %v9198
  %v11752 = vpop.f32.mrf.mxu0
  %v11753 = vadd.f32 %v11584, %v11752
  %v11754 = vpop.f32.mrf.mxu0
  %v11755 = vadd.f32 %v11586, %v11754
  %11756 = vmatmul.bf16.gmra.mxu0 %v9211
  %v11757 = vpop.f32.mrf.mxu0
  %v11758 = vadd.f32 %v11589, %v11757
  %v11759 = vpop.f32.mrf.mxu0
  %v11760 = vadd.f32 %v11591, %v11759
  %11761 = vmatmul.bf16.gmra.mxu0 %v9224
  %v11762 = vpop.f32.mrf.mxu0
  %v11763 = vadd.f32 %v11594, %v11762
  %v11764 = vpop.f32.mrf.mxu0
  %v11765 = vadd.f32 %v11596, %v11764
  %11766 = vmatmul.bf16.gmra.mxu0 %v9237
  %v11767 = vpop.f32.mrf.mxu0
  %v11768 = vadd.f32 %v11599, %v11767
  %v11769 = vpop.f32.mrf.mxu0
  %v11770 = vadd.f32 %v11601, %v11769
  %11771 = vmatmul.bf16.gmra.mxu0 %v9250
  %v11772 = vpop.f32.mrf.mxu0
  %v11773 = vadd.f32 %v11604, %v11772
  %v11774 = vpop.f32.mrf.mxu0
  %v11775 = vadd.f32 %v11606, %v11774
  %11776 = vmatmul.bf16.gmra.mxu0 %v9263
  %v11777 = vpop.f32.mrf.mxu0
  %v11778 = vadd.f32 %v11609, %v11777
  %v11779 = vpop.f32.mrf.mxu0
  %v11780 = vadd.f32 %v11611, %v11779
  %11781 = vmatmul.bf16.gmra.mxu0 %v9276
  %v11782 = vpop.f32.mrf.mxu0
  %v11783 = vadd.f32 %v11614, %v11782
  %v11784 = vpop.f32.mrf.mxu0
  %v11785 = vadd.f32 %v11616, %v11784
  %11786 = vdwg.mxu0
  %11787 = vmatpush.bf16.msra.mxu0 0
  %11788 = vmatpush.bf16.msra.mxu0 0
  %11789 = vmatpush.bf16.msra.mxu0 0
  %11790 = vmatpush.bf16.msra.mxu0 0
  %11791 = vmatpush.bf16.msra.mxu0 %v6749
  %11792 = vmatpush.bf16.msra.mxu0 %v6748
  %11793 = vmatpush.bf16.msra.mxu0 %v6747
  %11794 = vmatpush.bf16.msra.mxu0 %v6746
  %11795 = vmatmul.bf16.gmra.mxu0 %v9664
  %v11796 = vpop.f32.mrf.mxu0
  %v11797 = vadd.f32 %v11628, %v11796
  %v11798 = vpop.f32.mrf.mxu0
  %v11799 = vadd.f32 %v11630, %v11798
  %11800 = vmatmul.bf16.gmra.mxu0 %v9667
  %v11801 = vpop.f32.mrf.mxu0
  %v11802 = vadd.f32 %v11633, %v11801
  %v11803 = vpop.f32.mrf.mxu0
  %v11804 = vadd.f32 %v11635, %v11803
  %11805 = vmatmul.bf16.gmra.mxu0 %v9670
  %v11806 = vpop.f32.mrf.mxu0
  %v11807 = vadd.f32 %v11638, %v11806
  %v11808 = vpop.f32.mrf.mxu0
  %v11809 = vadd.f32 %v11640, %v11808
  %11810 = vmatmul.bf16.gmra.mxu0 %v9673
  %v11811 = vpop.f32.mrf.mxu0
  %v11812 = vadd.f32 %v11643, %v11811
  %v11813 = vpop.f32.mrf.mxu0
  %v11814 = vadd.f32 %v11645, %v11813
  %11815 = vmatmul.bf16.gmra.mxu0 %v9676
  %v11816 = vpop.f32.mrf.mxu0
  %v11817 = vadd.f32 %v11648, %v11816
  %v11818 = vpop.f32.mrf.mxu0
  %v11819 = vadd.f32 %v11650, %v11818
  %11820 = vmatmul.bf16.gmra.mxu0 %v9679
  %v11821 = vpop.f32.mrf.mxu0
  %v11822 = vadd.f32 %v11653, %v11821
  %v11823 = vpop.f32.mrf.mxu0
  %v11824 = vadd.f32 %v11655, %v11823
  %11825 = vmatmul.bf16.gmra.mxu0 %v9682
  %v11826 = vpop.f32.mrf.mxu0
  %v11827 = vadd.f32 %v11658, %v11826
  %v11828 = vpop.f32.mrf.mxu0
  %v11829 = vadd.f32 %v11660, %v11828
  %11830 = vmatmul.bf16.gmra.mxu0 %v9685
  %v11831 = vpop.f32.mrf.mxu0
  %v11832 = vadd.f32 %v11663, %v11831
  %v11833 = vpop.f32.mrf.mxu0
  %v11834 = vadd.f32 %v11665, %v11833
  %11835 = vmatmul.bf16.gmra.mxu0 %v9688
  %v11836 = vpop.f32.mrf.mxu0
  %v11837 = vadd.f32 %v11668, %v11836
  %v11838 = vpop.f32.mrf.mxu0
  %v11839 = vadd.f32 %v11670, %v11838
  %11840 = vmatmul.bf16.gmra.mxu0 %v9691
  %v11841 = vpop.f32.mrf.mxu0
  %v11842 = vadd.f32 %v11673, %v11841
  %v11843 = vpop.f32.mrf.mxu0
  %v11844 = vadd.f32 %v11675, %v11843
  %11845 = vmatmul.bf16.gmra.mxu0 %v9694
  %v11846 = vpop.f32.mrf.mxu0
  %v11847 = vadd.f32 %v11678, %v11846
  %v11848 = vpop.f32.mrf.mxu0
  %v11849 = vadd.f32 %v11680, %v11848
  %11850 = vmatmul.bf16.gmra.mxu0 %v9697
  %v11851 = vpop.f32.mrf.mxu0
  %v11852 = vadd.f32 %v11683, %v11851
  %v11853 = vpop.f32.mrf.mxu0
  %v11854 = vadd.f32 %v11685, %v11853
  %11855 = vmatmul.bf16.gmra.mxu0 %v9700
  %v11856 = vpop.f32.mrf.mxu0
  %v11857 = vadd.f32 %v11688, %v11856
  %v11858 = vpop.f32.mrf.mxu0
  %v11859 = vadd.f32 %v11690, %v11858
  %11860 = vmatmul.bf16.gmra.mxu0 %v9703
  %v11861 = vpop.f32.mrf.mxu0
  %v11862 = vadd.f32 %v11693, %v11861
  %v11863 = vpop.f32.mrf.mxu0
  %v11864 = vadd.f32 %v11695, %v11863
  %11865 = vmatmul.bf16.gmra.mxu0 %v9706
  %v11866 = vpop.f32.mrf.mxu0
  %v11867 = vadd.f32 %v11698, %v11866
  %v11868 = vpop.f32.mrf.mxu0
  %v11869 = vadd.f32 %v11700, %v11868
  %11870 = vmatmul.bf16.gmra.mxu0 %v9709
  %v11871 = vpop.f32.mrf.mxu0
  %v11872 = vadd.f32 %v11703, %v11871
  %v11873 = vpop.f32.mrf.mxu0
  %v11874 = vadd.f32 %v11705, %v11873
  %11875 = vmatmul.bf16.gmra.mxu0 %v9712
  %v11876 = vpop.f32.mrf.mxu0
  %v11877 = vadd.f32 %v11708, %v11876
  %v11878 = vpop.f32.mrf.mxu0
  %v11879 = vadd.f32 %v11710, %v11878
  %11880 = vmatmul.bf16.gmra.mxu0 %v9715
  %v11881 = vpop.f32.mrf.mxu0
  %v11882 = vadd.f32 %v11713, %v11881
  %v11883 = vpop.f32.mrf.mxu0
  %v11884 = vadd.f32 %v11715, %v11883
  %11885 = vmatmul.bf16.gmra.mxu0 %v9718
  %v11886 = vpop.f32.mrf.mxu0
  %v11887 = vadd.f32 %v11718, %v11886
  %v11888 = vpop.f32.mrf.mxu0
  %v11889 = vadd.f32 %v11720, %v11888
  %11890 = vmatmul.bf16.gmra.mxu0 %v9721
  %v11891 = vpop.f32.mrf.mxu0
  %v11892 = vadd.f32 %v11723, %v11891
  %v11893 = vpop.f32.mrf.mxu0
  %v11894 = vadd.f32 %v11725, %v11893
  %11895 = vmatmul.bf16.gmra.mxu0 %v9724
  %v11896 = vpop.f32.mrf.mxu0
  %v11897 = vadd.f32 %v11728, %v11896
  %v11898 = vpop.f32.mrf.mxu0
  %v11899 = vadd.f32 %v11730, %v11898
  %11900 = vmatmul.bf16.gmra.mxu0 %v9727
  %v11901 = vpop.f32.mrf.mxu0
  %v11902 = vadd.f32 %v11733, %v11901
  %v11903 = vpop.f32.mrf.mxu0
  %v11904 = vadd.f32 %v11735, %v11903
  %11905 = vmatmul.bf16.gmra.mxu0 %v9730
  %v11906 = vpop.f32.mrf.mxu0
  %v11907 = vadd.f32 %v11738, %v11906
  %v11908 = vpop.f32.mrf.mxu0
  %v11909 = vadd.f32 %v11740, %v11908
  %11910 = vmatmul.bf16.gmra.mxu0 %v9733
  %v11911 = vpop.f32.mrf.mxu0
  %v11912 = vadd.f32 %v11743, %v11911
  %v11913 = vpop.f32.mrf.mxu0
  %v11914 = vadd.f32 %v11745, %v11913
  %11915 = vmatmul.bf16.gmra.mxu0 %v9736
  %v11916 = vpop.f32.mrf.mxu0
  %v11917 = vadd.f32 %v11748, %v11916
  %v11918 = vpop.f32.mrf.mxu0
  %v11919 = vadd.f32 %v11750, %v11918
  %11920 = vmatmul.bf16.gmra.mxu0 %v9739
  %v11921 = vpop.f32.mrf.mxu0
  %v11922 = vadd.f32 %v11753, %v11921
  %v11923 = vpop.f32.mrf.mxu0
  %v11924 = vadd.f32 %v11755, %v11923
  %11925 = vmatmul.bf16.gmra.mxu0 %v9742
  %v11926 = vpop.f32.mrf.mxu0
  %v11927 = vadd.f32 %v11758, %v11926
  %v11928 = vpop.f32.mrf.mxu0
  %v11929 = vadd.f32 %v11760, %v11928
  %11930 = vmatmul.bf16.gmra.mxu0 %v9745
  %v11931 = vpop.f32.mrf.mxu0
  %v11932 = vadd.f32 %v11763, %v11931
  %v11933 = vpop.f32.mrf.mxu0
  %v11934 = vadd.f32 %v11765, %v11933
  %11935 = vmatmul.bf16.gmra.mxu0 %v9748
  %v11936 = vpop.f32.mrf.mxu0
  %v11937 = vadd.f32 %v11768, %v11936
  %v11938 = vpop.f32.mrf.mxu0
  %v11939 = vadd.f32 %v11770, %v11938
  %11940 = vmatmul.bf16.gmra.mxu0 %v9751
  %v11941 = vpop.f32.mrf.mxu0
  %v11942 = vadd.f32 %v11773, %v11941
  %v11943 = vpop.f32.mrf.mxu0
  %v11944 = vadd.f32 %v11775, %v11943
  %11945 = vmatmul.bf16.gmra.mxu0 %v9754
  %v11946 = vpop.f32.mrf.mxu0
  %v11947 = vadd.f32 %v11778, %v11946
  %v11948 = vpop.f32.mrf.mxu0
  %v11949 = vadd.f32 %v11780, %v11948
  %11950 = vmatmul.bf16.gmra.mxu0 %v9757
  %v11951 = vpop.f32.mrf.mxu0
  %v11952 = vadd.f32 %v11783, %v11951
  %v11953 = vpop.f32.mrf.mxu0
  %v11954 = vadd.f32 %v11785, %v11953
  %11955 = vdwg.mxu0
  %v11956 = vmax.f32 %v11797, 0.0
  %v11957 = vmax.f32 %v11799, 0.0
  %v11958 = vmax.f32 %v11802, 0.0
  %v11959 = vmax.f32 %v11804, 0.0
  %v11960 = vmax.f32 %v11807, 0.0
  %v11961 = vmax.f32 %v11809, 0.0
  %v11962 = vmax.f32 %v11812, 0.0
  %v11963 = vmax.f32 %v11814, 0.0
  %v11964 = vmax.f32 %v11817, 0.0
  %v11965 = vmax.f32 %v11819, 0.0
  %v11966 = vmax.f32 %v11822, 0.0
  %v11967 = vmax.f32 %v11824, 0.0
  %v11968 = vmax.f32 %v11827, 0.0
  %v11969 = vmax.f32 %v11829, 0.0
  %v11970 = vmax.f32 %v11832, 0.0
  %v11971 = vmax.f32 %v11834, 0.0
  %v11972 = vmax.f32 %v11837, 0.0
  %v11973 = vmax.f32 %v11839, 0.0
  %v11974 = vmax.f32 %v11842, 0.0
  %v11975 = vmax.f32 %v11844, 0.0
  %v11976 = vmax.f32 %v11847, 0.0
  %v11977 = vmax.f32 %v11849, 0.0
  %v11978 = vmax.f32 %v11852, 0.0
  %v11979 = vmax.f32 %v11854, 0.0
  %v11980 = vmax.f32 %v11857, 0.0
  %v11981 = vmax.f32 %v11859, 0.0
  %v11982 = vmax.f32 %v11862, 0.0
  %v11983 = vmax.f32 %v11864, 0.0
  %v11984 = vmax.f32 %v11867, 0.0
  %v11985 = vmax.f32 %v11869, 0.0
  %v11986 = vmax.f32 %v11872, 0.0
  %v11987 = vmax.f32 %v11874, 0.0
  %v11988 = vmax.f32 %v11877, 0.0
  %v11989 = vmax.f32 %v11879, 0.0
  %v11990 = vmax.f32 %v11882, 0.0
  %v11991 = vmax.f32 %v11884, 0.0
  %v11992 = vmax.f32 %v11887, 0.0
  %v11993 = vmax.f32 %v11889, 0.0
  %v11994 = vmax.f32 %v11892, 0.0
  %v11995 = vmax.f32 %v11894, 0.0
  %v11996 = vmax.f32 %v11897, 0.0
  %v11997 = vmax.f32 %v11899, 0.0
  %v11998 = vmax.f32 %v11902, 0.0
  %v11999 = vmax.f32 %v11904, 0.0
  %v12000 = vmax.f32 %v11907, 0.0
  %v12001 = vmax.f32 %v11909, 0.0
  %v12002 = vmax.f32 %v11912, 0.0
  %v12003 = vmax.f32 %v11914, 0.0
  %v12004 = vmax.f32 %v11917, 0.0
  %v12005 = vmax.f32 %v11919, 0.0
  %v12006 = vmax.f32 %v11922, 0.0
  %v12007 = vmax.f32 %v11924, 0.0
  %v12008 = vmax.f32 %v11927, 0.0
  %v12009 = vmax.f32 %v11929, 0.0
  %v12010 = vmax.f32 %v11932, 0.0
  %v12011 = vmax.f32 %v11934, 0.0
  %v12012 = vmax.f32 %v11937, 0.0
  %v12013 = vmax.f32 %v11939, 0.0
  %v12014 = vmax.f32 %v11942, 0.0
  %v12015 = vmax.f32 %v11944, 0.0
  %v12016 = vmax.f32 %v11947, 0.0
  %v12017 = vmax.f32 %v11949, 0.0
  %v12018 = vmax.f32 %v11952, 0.0
  %v12019 = vmax.f32 %v11954, 0.0
  %v12020 = vld [vmem:[%s9] sm:$0xff]
  %v12021 = vld [vmem:[%s9 + $0x8] sm:$0xff]
  %v12022 = vld [vmem:[%s9 + $0x10] sm:$0xff]
  %v12023 = vld [vmem:[%s9 + $0x18] sm:$0xff]
  %v12024 = vld [vmem:[%s9 + $0x20] sm:$0xff]
  %v12025 = vld [vmem:[%s9 + $0x28] sm:$0xff]
  %v12026 = vld [vmem:[%s9 + $0x30] sm:$0xff]
  %v12027 = vld [vmem:[%s9 + $0x38] sm:$0xff]
  %v12028 = vld [vmem:[%s9 + $0x40] sm:$0xff]
  %v12029 = vld [vmem:[%s9 + $0x48] sm:$0xff]
  %v12030 = vld [vmem:[%s9 + $0x50] sm:$0xff]
  %v12031 = vld [vmem:[%s9 + $0x58] sm:$0xff]
  %v12032 = vld [vmem:[%s9 + $0x60] sm:$0xff]
  %v12033 = vld [vmem:[%s9 + $0x68] sm:$0xff]
  %v12034 = vld [vmem:[%s9 + $0x70] sm:$0xff]
  %v12035 = vld [vmem:[%s9 + $0x78] sm:$0xff]
  %v12036 = vld [vmem:[%s9 + $0x80] sm:$0xff]
  %v12037 = vld [vmem:[%s9 + $0x88] sm:$0xff]
  %v12038 = vld [vmem:[%s9 + $0x90] sm:$0xff]
  %v12039 = vld [vmem:[%s9 + $0x98] sm:$0xff]
  %v12040 = vld [vmem:[%s9 + $0xa0] sm:$0xff]
  %v12041 = vld [vmem:[%s9 + $0xa8] sm:$0xff]
  %v12042 = vld [vmem:[%s9 + $0xb0] sm:$0xff]
  %v12043 = vld [vmem:[%s9 + $0xb8] sm:$0xff]
  %v12044 = vld [vmem:[%s9 + $0xc0] sm:$0xff]
  %v12045 = vld [vmem:[%s9 + $0xc8] sm:$0xff]
  %v12046 = vld [vmem:[%s9 + $0xd0] sm:$0xff]
  %v12047 = vld [vmem:[%s9 + $0xd8] sm:$0xff]
  %v12048 = vld [vmem:[%s9 + $0xe0] sm:$0xff]
  %v12049 = vld [vmem:[%s9 + $0xe8] sm:$0xff]
  %v12050 = vld [vmem:[%s9 + $0xf0] sm:$0xff]
  %v12051 = vld [vmem:[%s9 + $0xf8] sm:$0xff]
  %v12052 = vld [vmem:[%s9 + $0x100] sm:$0xff]
  %v12053 = vld [vmem:[%s9 + $0x108] sm:$0xff]
  %v12054 = vld [vmem:[%s9 + $0x110] sm:$0xff]
  %v12055 = vld [vmem:[%s9 + $0x118] sm:$0xff]
  %v12056 = vld [vmem:[%s9 + $0x120] sm:$0xff]
  %v12057 = vld [vmem:[%s9 + $0x128] sm:$0xff]
  %v12058 = vld [vmem:[%s9 + $0x130] sm:$0xff]
  %v12059 = vld [vmem:[%s9 + $0x138] sm:$0xff]
  %v12060 = vld [vmem:[%s9 + $0x140] sm:$0xff]
  %v12061 = vld [vmem:[%s9 + $0x148] sm:$0xff]
  %v12062 = vld [vmem:[%s9 + $0x150] sm:$0xff]
  %v12063 = vld [vmem:[%s9 + $0x158] sm:$0xff]
  %v12064 = vld [vmem:[%s9 + $0x160] sm:$0xff]
  %v12065 = vld [vmem:[%s9 + $0x168] sm:$0xff]
  %v12066 = vld [vmem:[%s9 + $0x170] sm:$0xff]
  %v12067 = vld [vmem:[%s9 + $0x178] sm:$0xff]
  %v12068 = vld [vmem:[%s9 + $0x180] sm:$0xff]
  %v12069 = vld [vmem:[%s9 + $0x188] sm:$0xff]
  %v12070 = vld [vmem:[%s9 + $0x190] sm:$0xff]
  %v12071 = vld [vmem:[%s9 + $0x198] sm:$0xff]
  %v12072 = vld [vmem:[%s9 + $0x1a0] sm:$0xff]
  %v12073 = vld [vmem:[%s9 + $0x1a8] sm:$0xff]
  %v12074 = vld [vmem:[%s9 + $0x1b0] sm:$0xff]
  %v12075 = vld [vmem:[%s9 + $0x1b8] sm:$0xff]
  %v12076 = vld [vmem:[%s9 + $0x1c0] sm:$0xff]
  %v12077 = vld [vmem:[%s9 + $0x1c8] sm:$0xff]
  %v12078 = vld [vmem:[%s9 + $0x1d0] sm:$0xff]
  %v12079 = vld [vmem:[%s9 + $0x1d8] sm:$0xff]
  %v12080 = vld [vmem:[%s9 + $0x1e0] sm:$0xff]
  %v12081 = vld [vmem:[%s9 + $0x1e8] sm:$0xff]
  %v12082 = vld [vmem:[%s9 + $0x1f0] sm:$0xff]
  %v12083 = vld [vmem:[%s9 + $0x1f8] sm:$0xff]
  %v12084 = vpack.c.bf16 %v11957, %v11956
  %v12085 = vpack.c.bf16 %v11959, %v11958
  %v12086 = vpack.c.bf16 %v11961, %v11960
  %v12087 = vpack.c.bf16 %v11963, %v11962
  %v12088 = vpack.c.bf16 %v11965, %v11964
  %v12089 = vpack.c.bf16 %v11967, %v11966
  %v12090 = vpack.c.bf16 %v11969, %v11968
  %v12091 = vpack.c.bf16 %v11971, %v11970
  %v12092 = vpack.c.bf16 %v11973, %v11972
  %v12093 = vpack.c.bf16 %v11975, %v11974
  %v12094 = vpack.c.bf16 %v11977, %v11976
  %v12095 = vpack.c.bf16 %v11979, %v11978
  %v12096 = vpack.c.bf16 %v11981, %v11980
  %v12097 = vpack.c.bf16 %v11983, %v11982
  %v12098 = vpack.c.bf16 %v11985, %v11984
  %v12099 = vpack.c.bf16 %v11987, %v11986
  %v12100 = vpack.c.bf16 %v11989, %v11988
  %v12101 = vpack.c.bf16 %v11991, %v11990
  %v12102 = vpack.c.bf16 %v11993, %v11992
  %v12103 = vpack.c.bf16 %v11995, %v11994
  %v12104 = vpack.c.bf16 %v11997, %v11996
  %v12105 = vpack.c.bf16 %v11999, %v11998
  %v12106 = vpack.c.bf16 %v12001, %v12000
  %v12107 = vpack.c.bf16 %v12003, %v12002
  %v12108 = vpack.c.bf16 %v12005, %v12004
  %v12109 = vpack.c.bf16 %v12007, %v12006
  %v12110 = vpack.c.bf16 %v12009, %v12008
  %v12111 = vpack.c.bf16 %v12011, %v12010
  %v12112 = vpack.c.bf16 %v12013, %v12012
  %v12113 = vpack.c.bf16 %v12015, %v12014
  %v12114 = vpack.c.bf16 %v12017, %v12016
  %v12115 = vpack.c.bf16 %v12019, %v12018
  %v12116 = vld [vmem:[%s10] sm:$0xff]
  %v12117 = vld [vmem:[%s10 + $0x8] sm:$0xff]
  %v12118 = vld [vmem:[%s10 + $0x10] sm:$0xff]
  %v12119 = vld [vmem:[%s10 + $0x18] sm:$0xff]
  %v12120 = vld [vmem:[%s10 + $0x20] sm:$0xff]
  %v12121 = vld [vmem:[%s10 + $0x28] sm:$0xff]
  %v12122 = vld [vmem:[%s10 + $0x30] sm:$0xff]
  %v12123 = vld [vmem:[%s10 + $0x38] sm:$0xff]
  %v12124 = vld [vmem:[%s10 + $0x40] sm:$0xff]
  %v12125 = vld [vmem:[%s10 + $0x48] sm:$0xff]
  %v12126 = vld [vmem:[%s10 + $0x50] sm:$0xff]
  %v12127 = vld [vmem:[%s10 + $0x58] sm:$0xff]
  %v12128 = vld [vmem:[%s10 + $0x60] sm:$0xff]
  %v12129 = vld [vmem:[%s10 + $0x68] sm:$0xff]
  %v12130 = vld [vmem:[%s10 + $0x70] sm:$0xff]
  %v12131 = vld [vmem:[%s10 + $0x78] sm:$0xff]
  %v12132 = vld [vmem:[%s10 + $0x80] sm:$0xff]
  %v12133 = vld [vmem:[%s10 + $0x88] sm:$0xff]
  %v12134 = vld [vmem:[%s10 + $0x90] sm:$0xff]
  %v12135 = vld [vmem:[%s10 + $0x98] sm:$0xff]
  %v12136 = vld [vmem:[%s10 + $0xa0] sm:$0xff]
  %v12137 = vld [vmem:[%s10 + $0xa8] sm:$0xff]
  %v12138 = vld [vmem:[%s10 + $0xb0] sm:$0xff]
  %v12139 = vld [vmem:[%s10 + $0xb8] sm:$0xff]
  %v12140 = vld [vmem:[%s10 + $0xc0] sm:$0xff]
  %v12141 = vld [vmem:[%s10 + $0xc8] sm:$0xff]
  %v12142 = vld [vmem:[%s10 + $0xd0] sm:$0xff]
  %v12143 = vld [vmem:[%s10 + $0xd8] sm:$0xff]
  %v12144 = vld [vmem:[%s10 + $0xe0] sm:$0xff]
  %v12145 = vld [vmem:[%s10 + $0xe8] sm:$0xff]
  %v12146 = vld [vmem:[%s10 + $0xf0] sm:$0xff]
  %v12147 = vld [vmem:[%s10 + $0xf8] sm:$0xff]
  %12149 = vset.pattern.permute.xlu0 0
  %12150 = vperm.xlu0 %12149, %v12116
  %v12151 = vpop.permute.xlu0 %12150
  %12154 = vset.pattern.permute.xlu0 0
  %12155 = vperm.xlu0 %12154, %v12117
  %v12156 = vpop.permute.xlu0 %12155
  %12159 = vset.pattern.permute.xlu0 0
  %12160 = vperm.xlu0 %12159, %v12118
  %v12161 = vpop.permute.xlu0 %12160
  %12164 = vset.pattern.permute.xlu0 0
  %12165 = vperm.xlu0 %12164, %v12119
  %v12166 = vpop.permute.xlu0 %12165
  %12169 = vset.pattern.permute.xlu0 0
  %12170 = vperm.xlu0 %12169, %v12120
  %v12171 = vpop.permute.xlu0 %12170
  %12174 = vset.pattern.permute.xlu0 0
  %12175 = vperm.xlu0 %12174, %v12121
  %v12176 = vpop.permute.xlu0 %12175
  %12179 = vset.pattern.permute.xlu0 0
  %12180 = vperm.xlu0 %12179, %v12122
  %v12181 = vpop.permute.xlu0 %12180
  %12184 = vset.pattern.permute.xlu0 0
  %12185 = vperm.xlu0 %12184, %v12123
  %v12186 = vpop.permute.xlu0 %12185
  %12189 = vset.pattern.permute.xlu0 0
  %12190 = vperm.xlu0 %12189, %v12124
  %v12191 = vpop.permute.xlu0 %12190
  %12194 = vset.pattern.permute.xlu0 0
  %12195 = vperm.xlu0 %12194, %v12125
  %v12196 = vpop.permute.xlu0 %12195
  %12199 = vset.pattern.permute.xlu0 0
  %12200 = vperm.xlu0 %12199, %v12126
  %v12201 = vpop.permute.xlu0 %12200
  %12204 = vset.pattern.permute.xlu0 0
  %12205 = vperm.xlu0 %12204, %v12127
  %v12206 = vpop.permute.xlu0 %12205
  %12209 = vset.pattern.permute.xlu0 0
  %12210 = vperm.xlu0 %12209, %v12128
  %v12211 = vpop.permute.xlu0 %12210
  %12214 = vset.pattern.permute.xlu0 0
  %12215 = vperm.xlu0 %12214, %v12129
  %v12216 = vpop.permute.xlu0 %12215
  %12219 = vset.pattern.permute.xlu0 0
  %12220 = vperm.xlu0 %12219, %v12130
  %v12221 = vpop.permute.xlu0 %12220
  %12224 = vset.pattern.permute.xlu0 0
  %12225 = vperm.xlu0 %12224, %v12131
  %v12226 = vpop.permute.xlu0 %12225
  %12229 = vset.pattern.permute.xlu0 0
  %12230 = vperm.xlu0 %12229, %v12132
  %v12231 = vpop.permute.xlu0 %12230
  %12234 = vset.pattern.permute.xlu0 0
  %12235 = vperm.xlu0 %12234, %v12133
  %v12236 = vpop.permute.xlu0 %12235
  %12239 = vset.pattern.permute.xlu0 0
  %12240 = vperm.xlu0 %12239, %v12134
  %v12241 = vpop.permute.xlu0 %12240
  %12244 = vset.pattern.permute.xlu0 0
  %12245 = vperm.xlu0 %12244, %v12135
  %v12246 = vpop.permute.xlu0 %12245
  %12249 = vset.pattern.permute.xlu0 0
  %12250 = vperm.xlu0 %12249, %v12136
  %v12251 = vpop.permute.xlu0 %12250
  %12254 = vset.pattern.permute.xlu0 0
  %12255 = vperm.xlu0 %12254, %v12137
  %v12256 = vpop.permute.xlu0 %12255
  %12259 = vset.pattern.permute.xlu0 0
  %12260 = vperm.xlu0 %12259, %v12138
  %v12261 = vpop.permute.xlu0 %12260
  %12264 = vset.pattern.permute.xlu0 0
  %12265 = vperm.xlu0 %12264, %v12139
  %v12266 = vpop.permute.xlu0 %12265
  %12269 = vset.pattern.permute.xlu0 0
  %12270 = vperm.xlu0 %12269, %v12140
  %v12271 = vpop.permute.xlu0 %12270
  %12274 = vset.pattern.permute.xlu0 0
  %12275 = vperm.xlu0 %12274, %v12141
  %v12276 = vpop.permute.xlu0 %12275
  %12279 = vset.pattern.permute.xlu0 0
  %12280 = vperm.xlu0 %12279, %v12142
  %v12281 = vpop.permute.xlu0 %12280
  %12284 = vset.pattern.permute.xlu0 0
  %12285 = vperm.xlu0 %12284, %v12143
  %v12286 = vpop.permute.xlu0 %12285
  %12289 = vset.pattern.permute.xlu0 0
  %12290 = vperm.xlu0 %12289, %v12144
  %v12291 = vpop.permute.xlu0 %12290
  %12294 = vset.pattern.permute.xlu0 0
  %12295 = vperm.xlu0 %12294, %v12145
  %v12296 = vpop.permute.xlu0 %12295
  %12299 = vset.pattern.permute.xlu0 0
  %12300 = vperm.xlu0 %12299, %v12146
  %v12301 = vpop.permute.xlu0 %12300
  %12304 = vset.pattern.permute.xlu0 0
  %12305 = vperm.xlu0 %12304, %v12147
  %v12306 = vpop.permute.xlu0 %12305
  %v12372 = vunpack.c.l.b16 %v12020
  %v12373 = vunpack.c.h.b16 %v12020
  %v12374 = vunpack.c.l.b16 %v12021
  %v12375 = vunpack.c.h.b16 %v12021
  %v12376 = vunpack.c.l.b16 %v12022
  %v12377 = vunpack.c.h.b16 %v12022
  %v12378 = vunpack.c.l.b16 %v12023
  %v12379 = vunpack.c.h.b16 %v12023
  %v12380 = vunpack.c.l.b16 %v12024
  %v12381 = vunpack.c.h.b16 %v12024
  %v12382 = vunpack.c.l.b16 %v12025
  %v12383 = vunpack.c.h.b16 %v12025
  %v12384 = vunpack.c.l.b16 %v12026
  %v12385 = vunpack.c.h.b16 %v12026
  %v12386 = vunpack.c.l.b16 %v12027
  %v12387 = vunpack.c.h.b16 %v12027
  %v12388 = vunpack.c.l.b16 %v12028
  %v12389 = vunpack.c.h.b16 %v12028
  %v12390 = vunpack.c.l.b16 %v12029
  %v12391 = vunpack.c.h.b16 %v12029
  %v12392 = vunpack.c.l.b16 %v12030
  %v12393 = vunpack.c.h.b16 %v12030
  %v12394 = vunpack.c.l.b16 %v12031
  %v12395 = vunpack.c.h.b16 %v12031
  %v12396 = vunpack.c.l.b16 %v12032
  %v12397 = vunpack.c.h.b16 %v12032
  %v12398 = vunpack.c.l.b16 %v12033
  %v12399 = vunpack.c.h.b16 %v12033
  %v12400 = vunpack.c.l.b16 %v12034
  %v12401 = vunpack.c.h.b16 %v12034
  %v12402 = vunpack.c.l.b16 %v12035
  %v12403 = vunpack.c.h.b16 %v12035
  %v12404 = vunpack.c.l.b16 %v12036
  %v12405 = vunpack.c.h.b16 %v12036
  %v12406 = vunpack.c.l.b16 %v12037
  %v12407 = vunpack.c.h.b16 %v12037
  %v12408 = vunpack.c.l.b16 %v12038
  %v12409 = vunpack.c.h.b16 %v12038
  %v12410 = vunpack.c.l.b16 %v12039
  %v12411 = vunpack.c.h.b16 %v12039
  %v12412 = vunpack.c.l.b16 %v12040
  %v12413 = vunpack.c.h.b16 %v12040
  %v12414 = vunpack.c.l.b16 %v12041
  %v12415 = vunpack.c.h.b16 %v12041
  %v12416 = vunpack.c.l.b16 %v12042
  %v12417 = vunpack.c.h.b16 %v12042
  %v12418 = vunpack.c.l.b16 %v12043
  %v12419 = vunpack.c.h.b16 %v12043
  %v12420 = vunpack.c.l.b16 %v12044
  %v12421 = vunpack.c.h.b16 %v12044
  %v12422 = vunpack.c.l.b16 %v12045
  %v12423 = vunpack.c.h.b16 %v12045
  %v12424 = vunpack.c.l.b16 %v12046
  %v12425 = vunpack.c.h.b16 %v12046
  %v12426 = vunpack.c.l.b16 %v12047
  %v12427 = vunpack.c.h.b16 %v12047
  %v12428 = vunpack.c.l.b16 %v12048
  %v12429 = vunpack.c.h.b16 %v12048
  %v12430 = vunpack.c.l.b16 %v12049
  %v12431 = vunpack.c.h.b16 %v12049
  %v12432 = vunpack.c.l.b16 %v12050
  %v12433 = vunpack.c.h.b16 %v12050
  %v12434 = vunpack.c.l.b16 %v12051
  %v12435 = vunpack.c.h.b16 %v12051
  %v12436 = vunpack.c.l.b16 %v12052
  %v12437 = vunpack.c.h.b16 %v12052
  %v12438 = vunpack.c.l.b16 %v12053
  %v12439 = vunpack.c.h.b16 %v12053
  %v12440 = vunpack.c.l.b16 %v12054
  %v12441 = vunpack.c.h.b16 %v12054
  %v12442 = vunpack.c.l.b16 %v12055
  %v12443 = vunpack.c.h.b16 %v12055
  %v12444 = vunpack.c.l.b16 %v12056
  %v12445 = vunpack.c.h.b16 %v12056
  %v12446 = vunpack.c.l.b16 %v12057
  %v12447 = vunpack.c.h.b16 %v12057
  %v12448 = vunpack.c.l.b16 %v12058
  %v12449 = vunpack.c.h.b16 %v12058
  %v12450 = vunpack.c.l.b16 %v12059
  %v12451 = vunpack.c.h.b16 %v12059
  %v12452 = vunpack.c.l.b16 %v12060
  %v12453 = vunpack.c.h.b16 %v12060
  %v12454 = vunpack.c.l.b16 %v12061
  %v12455 = vunpack.c.h.b16 %v12061
  %v12456 = vunpack.c.l.b16 %v12062
  %v12457 = vunpack.c.h.b16 %v12062
  %v12458 = vunpack.c.l.b16 %v12063
  %v12459 = vunpack.c.h.b16 %v12063
  %v12460 = vunpack.c.l.b16 %v12064
  %v12461 = vunpack.c.h.b16 %v12064
  %v12462 = vunpack.c.l.b16 %v12065
  %v12463 = vunpack.c.h.b16 %v12065
  %v12464 = vunpack.c.l.b16 %v12066
  %v12465 = vunpack.c.h.b16 %v12066
  %v12466 = vunpack.c.l.b16 %v12067
  %v12467 = vunpack.c.h.b16 %v12067
  %v12468 = vunpack.c.l.b16 %v12068
  %v12469 = vunpack.c.h.b16 %v12068
  %v12470 = vunpack.c.l.b16 %v12069
  %v12471 = vunpack.c.h.b16 %v12069
  %v12472 = vunpack.c.l.b16 %v12070
  %v12473 = vunpack.c.h.b16 %v12070
  %v12474 = vunpack.c.l.b16 %v12071
  %v12475 = vunpack.c.h.b16 %v12071
  %v12476 = vunpack.c.l.b16 %v12072
  %v12477 = vunpack.c.h.b16 %v12072
  %v12478 = vunpack.c.l.b16 %v12073
  %v12479 = vunpack.c.h.b16 %v12073
  %v12480 = vunpack.c.l.b16 %v12074
  %v12481 = vunpack.c.h.b16 %v12074
  %v12482 = vunpack.c.l.b16 %v12075
  %v12483 = vunpack.c.h.b16 %v12075
  %v12484 = vunpack.c.l.b16 %v12076
  %v12485 = vunpack.c.h.b16 %v12076
  %v12486 = vunpack.c.l.b16 %v12077
  %v12487 = vunpack.c.h.b16 %v12077
  %v12488 = vunpack.c.l.b16 %v12078
  %v12489 = vunpack.c.h.b16 %v12078
  %v12490 = vunpack.c.l.b16 %v12079
  %v12491 = vunpack.c.h.b16 %v12079
  %v12492 = vunpack.c.l.b16 %v12080
  %v12493 = vunpack.c.h.b16 %v12080
  %v12494 = vunpack.c.l.b16 %v12081
  %v12495 = vunpack.c.h.b16 %v12081
  %v12496 = vunpack.c.l.b16 %v12082
  %v12497 = vunpack.c.h.b16 %v12082
  %v12498 = vunpack.c.l.b16 %v12083
  %v12499 = vunpack.c.h.b16 %v12083
  %v12500 = vpack.c.b16 %v12376, %v12372
  %v12501 = vpack.c.b16 %v12377, %v12373
  %v12502 = vpack.c.b16 %v12378, %v12374
  %v12503 = vpack.c.b16 %v12379, %v12375
  %v12504 = vpack.c.b16 %v12384, %v12380
  %v12505 = vpack.c.b16 %v12385, %v12381
  %v12506 = vpack.c.b16 %v12386, %v12382
  %v12507 = vpack.c.b16 %v12387, %v12383
  %v12508 = vpack.c.b16 %v12392, %v12388
  %v12509 = vpack.c.b16 %v12393, %v12389
  %v12510 = vpack.c.b16 %v12394, %v12390
  %v12511 = vpack.c.b16 %v12395, %v12391
  %v12512 = vpack.c.b16 %v12400, %v12396
  %v12513 = vpack.c.b16 %v12401, %v12397
  %v12514 = vpack.c.b16 %v12402, %v12398
  %v12515 = vpack.c.b16 %v12403, %v12399
  %v12516 = vpack.c.b16 %v12408, %v12404
  %v12517 = vpack.c.b16 %v12409, %v12405
  %v12518 = vpack.c.b16 %v12410, %v12406
  %v12519 = vpack.c.b16 %v12411, %v12407
  %v12520 = vpack.c.b16 %v12416, %v12412
  %v12521 = vpack.c.b16 %v12417, %v12413
  %v12522 = vpack.c.b16 %v12418, %v12414
  %v12523 = vpack.c.b16 %v12419, %v12415
  %v12524 = vpack.c.b16 %v12424, %v12420
  %v12525 = vpack.c.b16 %v12425, %v12421
  %v12526 = vpack.c.b16 %v12426, %v12422
  %v12527 = vpack.c.b16 %v12427, %v12423
  %v12528 = vpack.c.b16 %v12432, %v12428
  %v12529 = vpack.c.b16 %v12433, %v12429
  %v12530 = vpack.c.b16 %v12434, %v12430
  %v12531 = vpack.c.b16 %v12435, %v12431
  %v12532 = vpack.c.b16 %v12440, %v12436
  %v12533 = vpack.c.b16 %v12441, %v12437
  %v12534 = vpack.c.b16 %v12442, %v12438
  %v12535 = vpack.c.b16 %v12443, %v12439
  %v12536 = vpack.c.b16 %v12448, %v12444
  %v12537 = vpack.c.b16 %v12449, %v12445
  %v12538 = vpack.c.b16 %v12450, %v12446
  %v12539 = vpack.c.b16 %v12451, %v12447
  %v12540 = vpack.c.b16 %v12456, %v12452
  %v12541 = vpack.c.b16 %v12457, %v12453
  %v12542 = vpack.c.b16 %v12458, %v12454
  %v12543 = vpack.c.b16 %v12459, %v12455
  %v12544 = vpack.c.b16 %v12464, %v12460
  %v12545 = vpack.c.b16 %v12465, %v12461
  %v12546 = vpack.c.b16 %v12466, %v12462
  %v12547 = vpack.c.b16 %v12467, %v12463
  %v12548 = vpack.c.b16 %v12472, %v12468
  %v12549 = vpack.c.b16 %v12473, %v12469
  %v12550 = vpack.c.b16 %v12474, %v12470
  %v12551 = vpack.c.b16 %v12475, %v12471
  %v12552 = vpack.c.b16 %v12480, %v12476
  %v12553 = vpack.c.b16 %v12481, %v12477
  %v12554 = vpack.c.b16 %v12482, %v12478
  %v12555 = vpack.c.b16 %v12483, %v12479
  %v12556 = vpack.c.b16 %v12488, %v12484
  %v12557 = vpack.c.b16 %v12489, %v12485
  %v12558 = vpack.c.b16 %v12490, %v12486
  %v12559 = vpack.c.b16 %v12491, %v12487
  %v12560 = vpack.c.b16 %v12496, %v12492
  %v12561 = vpack.c.b16 %v12497, %v12493
  %v12562 = vpack.c.b16 %v12498, %v12494
  %v12563 = vpack.c.b16 %v12499, %v12495
  %12628 = vmatpush.bf16.msra.mxu0 %v12091
  %12629 = vmatpush.bf16.msra.mxu0 %v12090
  %12630 = vmatpush.bf16.msra.mxu0 %v12089
  %12631 = vmatpush.bf16.msra.mxu0 %v12088
  %12632 = vmatpush.bf16.msra.mxu0 %v12087
  %12633 = vmatpush.bf16.msra.mxu0 %v12086
  %12634 = vmatpush.bf16.msra.mxu0 %v12085
  %12635 = vmatpush.bf16.msra.mxu0 %v12084
  %12636 = vmatmul.bf16.gmra.mxu0 %v12500
  %v12637 = vpop.f32.mrf.mxu0
  %v12638 = vadd.f32 %v12151, %v12637
  %v12639 = vpop.f32.mrf.mxu0
  %v12640 = vadd.f32 %v12156, %v12639
  %12641 = vmatmul.bf16.gmra.mxu0 %v12504
  %v12642 = vpop.f32.mrf.mxu0
  %v12643 = vadd.f32 %v12161, %v12642
  %v12644 = vpop.f32.mrf.mxu0
  %v12645 = vadd.f32 %v12166, %v12644
  %12646 = vmatmul.bf16.gmra.mxu0 %v12508
  %v12647 = vpop.f32.mrf.mxu0
  %v12648 = vadd.f32 %v12171, %v12647
  %v12649 = vpop.f32.mrf.mxu0
  %v12650 = vadd.f32 %v12176, %v12649
  %12651 = vmatmul.bf16.gmra.mxu0 %v12512
  %v12652 = vpop.f32.mrf.mxu0
  %v12653 = vadd.f32 %v12181, %v12652
  %v12654 = vpop.f32.mrf.mxu0
  %v12655 = vadd.f32 %v12186, %v12654
  %12656 = vmatmul.bf16.gmra.mxu0 %v12516
  %v12657 = vpop.f32.mrf.mxu0
  %v12658 = vadd.f32 %v12191, %v12657
  %v12659 = vpop.f32.mrf.mxu0
  %v12660 = vadd.f32 %v12196, %v12659
  %12661 = vmatmul.bf16.gmra.mxu0 %v12520
  %v12662 = vpop.f32.mrf.mxu0
  %v12663 = vadd.f32 %v12201, %v12662
  %v12664 = vpop.f32.mrf.mxu0
  %v12665 = vadd.f32 %v12206, %v12664
  %12666 = vmatmul.bf16.gmra.mxu0 %v12524
  %v12667 = vpop.f32.mrf.mxu0
  %v12668 = vadd.f32 %v12211, %v12667
  %v12669 = vpop.f32.mrf.mxu0
  %v12670 = vadd.f32 %v12216, %v12669
  %12671 = vmatmul.bf16.gmra.mxu0 %v12528
  %v12672 = vpop.f32.mrf.mxu0
  %v12673 = vadd.f32 %v12221, %v12672
  %v12674 = vpop.f32.mrf.mxu0
  %v12675 = vadd.f32 %v12226, %v12674
  %12676 = vmatmul.bf16.gmra.mxu0 %v12532
  %v12677 = vpop.f32.mrf.mxu0
  %v12678 = vadd.f32 %v12231, %v12677
  %v12679 = vpop.f32.mrf.mxu0
  %v12680 = vadd.f32 %v12236, %v12679
  %12681 = vmatmul.bf16.gmra.mxu0 %v12536
  %v12682 = vpop.f32.mrf.mxu0
  %v12683 = vadd.f32 %v12241, %v12682
  %v12684 = vpop.f32.mrf.mxu0
  %v12685 = vadd.f32 %v12246, %v12684
  %12686 = vmatmul.bf16.gmra.mxu0 %v12540
  %v12687 = vpop.f32.mrf.mxu0
  %v12688 = vadd.f32 %v12251, %v12687
  %v12689 = vpop.f32.mrf.mxu0
  %v12690 = vadd.f32 %v12256, %v12689
  %12691 = vmatmul.bf16.gmra.mxu0 %v12544
  %v12692 = vpop.f32.mrf.mxu0
  %v12693 = vadd.f32 %v12261, %v12692
  %v12694 = vpop.f32.mrf.mxu0
  %v12695 = vadd.f32 %v12266, %v12694
  %12696 = vmatmul.bf16.gmra.mxu0 %v12548
  %v12697 = vpop.f32.mrf.mxu0
  %v12698 = vadd.f32 %v12271, %v12697
  %v12699 = vpop.f32.mrf.mxu0
  %v12700 = vadd.f32 %v12276, %v12699
  %12701 = vmatmul.bf16.gmra.mxu0 %v12552
  %v12702 = vpop.f32.mrf.mxu0
  %v12703 = vadd.f32 %v12281, %v12702
  %v12704 = vpop.f32.mrf.mxu0
  %v12705 = vadd.f32 %v12286, %v12704
  %12706 = vmatmul.bf16.gmra.mxu0 %v12556
  %v12707 = vpop.f32.mrf.mxu0
  %v12708 = vadd.f32 %v12291, %v12707
  %v12709 = vpop.f32.mrf.mxu0
  %v12710 = vadd.f32 %v12296, %v12709
  %12711 = vmatmul.bf16.gmra.mxu0 %v12560
  %v12712 = vpop.f32.mrf.mxu0
  %v12713 = vadd.f32 %v12301, %v12712
  %v12714 = vpop.f32.mrf.mxu0
  %v12715 = vadd.f32 %v12306, %v12714
  %12716 = vdwg.mxu0
  %12717 = vmatpush.bf16.msra.mxu0 %v12099
  %12718 = vmatpush.bf16.msra.mxu0 %v12098
  %12719 = vmatpush.bf16.msra.mxu0 %v12097
  %12720 = vmatpush.bf16.msra.mxu0 %v12096
  %12721 = vmatpush.bf16.msra.mxu0 %v12095
  %12722 = vmatpush.bf16.msra.mxu0 %v12094
  %12723 = vmatpush.bf16.msra.mxu0 %v12093
  %12724 = vmatpush.bf16.msra.mxu0 %v12092
  %12725 = vmatmul.bf16.gmra.mxu0 %v12501
  %v12726 = vpop.f32.mrf.mxu0
  %v12727 = vadd.f32 %v12638, %v12726
  %v12728 = vpop.f32.mrf.mxu0
  %v12729 = vadd.f32 %v12640, %v12728
  %12730 = vmatmul.bf16.gmra.mxu0 %v12505
  %v12731 = vpop.f32.mrf.mxu0
  %v12732 = vadd.f32 %v12643, %v12731
  %v12733 = vpop.f32.mrf.mxu0
  %v12734 = vadd.f32 %v12645, %v12733
  %12735 = vmatmul.bf16.gmra.mxu0 %v12509
  %v12736 = vpop.f32.mrf.mxu0
  %v12737 = vadd.f32 %v12648, %v12736
  %v12738 = vpop.f32.mrf.mxu0
  %v12739 = vadd.f32 %v12650, %v12738
  %12740 = vmatmul.bf16.gmra.mxu0 %v12513
  %v12741 = vpop.f32.mrf.mxu0
  %v12742 = vadd.f32 %v12653, %v12741
  %v12743 = vpop.f32.mrf.mxu0
  %v12744 = vadd.f32 %v12655, %v12743
  %12745 = vmatmul.bf16.gmra.mxu0 %v12517
  %v12746 = vpop.f32.mrf.mxu0
  %v12747 = vadd.f32 %v12658, %v12746
  %v12748 = vpop.f32.mrf.mxu0
  %v12749 = vadd.f32 %v12660, %v12748
  %12750 = vmatmul.bf16.gmra.mxu0 %v12521
  %v12751 = vpop.f32.mrf.mxu0
  %v12752 = vadd.f32 %v12663, %v12751
  %v12753 = vpop.f32.mrf.mxu0
  %v12754 = vadd.f32 %v12665, %v12753
  %12755 = vmatmul.bf16.gmra.mxu0 %v12525
  %v12756 = vpop.f32.mrf.mxu0
  %v12757 = vadd.f32 %v12668, %v12756
  %v12758 = vpop.f32.mrf.mxu0
  %v12759 = vadd.f32 %v12670, %v12758
  %12760 = vmatmul.bf16.gmra.mxu0 %v12529
  %v12761 = vpop.f32.mrf.mxu0
  %v12762 = vadd.f32 %v12673, %v12761
  %v12763 = vpop.f32.mrf.mxu0
  %v12764 = vadd.f32 %v12675, %v12763
  %12765 = vmatmul.bf16.gmra.mxu0 %v12533
  %v12766 = vpop.f32.mrf.mxu0
  %v12767 = vadd.f32 %v12678, %v12766
  %v12768 = vpop.f32.mrf.mxu0
  %v12769 = vadd.f32 %v12680, %v12768
  %12770 = vmatmul.bf16.gmra.mxu0 %v12537
  %v12771 = vpop.f32.mrf.mxu0
  %v12772 = vadd.f32 %v12683, %v12771
  %v12773 = vpop.f32.mrf.mxu0
  %v12774 = vadd.f32 %v12685, %v12773
  %12775 = vmatmul.bf16.gmra.mxu0 %v12541
  %v12776 = vpop.f32.mrf.mxu0
  %v12777 = vadd.f32 %v12688, %v12776
  %v12778 = vpop.f32.mrf.mxu0
  %v12779 = vadd.f32 %v12690, %v12778
  %12780 = vmatmul.bf16.gmra.mxu0 %v12545
  %v12781 = vpop.f32.mrf.mxu0
  %v12782 = vadd.f32 %v12693, %v12781
  %v12783 = vpop.f32.mrf.mxu0
  %v12784 = vadd.f32 %v12695, %v12783
  %12785 = vmatmul.bf16.gmra.mxu0 %v12549
  %v12786 = vpop.f32.mrf.mxu0
  %v12787 = vadd.f32 %v12698, %v12786
  %v12788 = vpop.f32.mrf.mxu0
  %v12789 = vadd.f32 %v12700, %v12788
  %12790 = vmatmul.bf16.gmra.mxu0 %v12553
  %v12791 = vpop.f32.mrf.mxu0
  %v12792 = vadd.f32 %v12703, %v12791
  %v12793 = vpop.f32.mrf.mxu0
  %v12794 = vadd.f32 %v12705, %v12793
  %12795 = vmatmul.bf16.gmra.mxu0 %v12557
  %v12796 = vpop.f32.mrf.mxu0
  %v12797 = vadd.f32 %v12708, %v12796
  %v12798 = vpop.f32.mrf.mxu0
  %v12799 = vadd.f32 %v12710, %v12798
  %12800 = vmatmul.bf16.gmra.mxu0 %v12561
  %v12801 = vpop.f32.mrf.mxu0
  %v12802 = vadd.f32 %v12713, %v12801
  %v12803 = vpop.f32.mrf.mxu0
  %v12804 = vadd.f32 %v12715, %v12803
  %12805 = vdwg.mxu0
  %12806 = vmatpush.bf16.msra.mxu0 %v12107
  %12807 = vmatpush.bf16.msra.mxu0 %v12106
  %12808 = vmatpush.bf16.msra.mxu0 %v12105
  %12809 = vmatpush.bf16.msra.mxu0 %v12104
  %12810 = vmatpush.bf16.msra.mxu0 %v12103
  %12811 = vmatpush.bf16.msra.mxu0 %v12102
  %12812 = vmatpush.bf16.msra.mxu0 %v12101
  %12813 = vmatpush.bf16.msra.mxu0 %v12100
  %12814 = vmatmul.bf16.gmra.mxu0 %v12502
  %v12815 = vpop.f32.mrf.mxu0
  %v12816 = vadd.f32 %v12727, %v12815
  %v12817 = vpop.f32.mrf.mxu0
  %v12818 = vadd.f32 %v12729, %v12817
  %12819 = vmatmul.bf16.gmra.mxu0 %v12506
  %v12820 = vpop.f32.mrf.mxu0
  %v12821 = vadd.f32 %v12732, %v12820
  %v12822 = vpop.f32.mrf.mxu0
  %v12823 = vadd.f32 %v12734, %v12822
  %12824 = vmatmul.bf16.gmra.mxu0 %v12510
  %v12825 = vpop.f32.mrf.mxu0
  %v12826 = vadd.f32 %v12737, %v12825
  %v12827 = vpop.f32.mrf.mxu0
  %v12828 = vadd.f32 %v12739, %v12827
  %12829 = vmatmul.bf16.gmra.mxu0 %v12514
  %v12830 = vpop.f32.mrf.mxu0
  %v12831 = vadd.f32 %v12742, %v12830
  %v12832 = vpop.f32.mrf.mxu0
  %v12833 = vadd.f32 %v12744, %v12832
  %12834 = vmatmul.bf16.gmra.mxu0 %v12518
  %v12835 = vpop.f32.mrf.mxu0
  %v12836 = vadd.f32 %v12747, %v12835
  %v12837 = vpop.f32.mrf.mxu0
  %v12838 = vadd.f32 %v12749, %v12837
  %12839 = vmatmul.bf16.gmra.mxu0 %v12522
  %v12840 = vpop.f32.mrf.mxu0
  %v12841 = vadd.f32 %v12752, %v12840
  %v12842 = vpop.f32.mrf.mxu0
  %v12843 = vadd.f32 %v12754, %v12842
  %12844 = vmatmul.bf16.gmra.mxu0 %v12526
  %v12845 = vpop.f32.mrf.mxu0
  %v12846 = vadd.f32 %v12757, %v12845
  %v12847 = vpop.f32.mrf.mxu0
  %v12848 = vadd.f32 %v12759, %v12847
  %12849 = vmatmul.bf16.gmra.mxu0 %v12530
  %v12850 = vpop.f32.mrf.mxu0
  %v12851 = vadd.f32 %v12762, %v12850
  %v12852 = vpop.f32.mrf.mxu0
  %v12853 = vadd.f32 %v12764, %v12852
  %12854 = vmatmul.bf16.gmra.mxu0 %v12534
  %v12855 = vpop.f32.mrf.mxu0
  %v12856 = vadd.f32 %v12767, %v12855
  %v12857 = vpop.f32.mrf.mxu0
  %v12858 = vadd.f32 %v12769, %v12857
  %12859 = vmatmul.bf16.gmra.mxu0 %v12538
  %v12860 = vpop.f32.mrf.mxu0
  %v12861 = vadd.f32 %v12772, %v12860
  %v12862 = vpop.f32.mrf.mxu0
  %v12863 = vadd.f32 %v12774, %v12862
  %12864 = vmatmul.bf16.gmra.mxu0 %v12542
  %v12865 = vpop.f32.mrf.mxu0
  %v12866 = vadd.f32 %v12777, %v12865
  %v12867 = vpop.f32.mrf.mxu0
  %v12868 = vadd.f32 %v12779, %v12867
  %12869 = vmatmul.bf16.gmra.mxu0 %v12546
  %v12870 = vpop.f32.mrf.mxu0
  %v12871 = vadd.f32 %v12782, %v12870
  %v12872 = vpop.f32.mrf.mxu0
  %v12873 = vadd.f32 %v12784, %v12872
  %12874 = vmatmul.bf16.gmra.mxu0 %v12550
  %v12875 = vpop.f32.mrf.mxu0
  %v12876 = vadd.f32 %v12787, %v12875
  %v12877 = vpop.f32.mrf.mxu0
  %v12878 = vadd.f32 %v12789, %v12877
  %12879 = vmatmul.bf16.gmra.mxu0 %v12554
  %v12880 = vpop.f32.mrf.mxu0
  %v12881 = vadd.f32 %v12792, %v12880
  %v12882 = vpop.f32.mrf.mxu0
  %v12883 = vadd.f32 %v12794, %v12882
  %12884 = vmatmul.bf16.gmra.mxu0 %v12558
  %v12885 = vpop.f32.mrf.mxu0
  %v12886 = vadd.f32 %v12797, %v12885
  %v12887 = vpop.f32.mrf.mxu0
  %v12888 = vadd.f32 %v12799, %v12887
  %12889 = vmatmul.bf16.gmra.mxu0 %v12562
  %v12890 = vpop.f32.mrf.mxu0
  %v12891 = vadd.f32 %v12802, %v12890
  %v12892 = vpop.f32.mrf.mxu0
  %v12893 = vadd.f32 %v12804, %v12892
  %12894 = vdwg.mxu0
  %12895 = vmatpush.bf16.msra.mxu0 %v12115
  %12896 = vmatpush.bf16.msra.mxu0 %v12114
  %12897 = vmatpush.bf16.msra.mxu0 %v12113
  %12898 = vmatpush.bf16.msra.mxu0 %v12112
  %12899 = vmatpush.bf16.msra.mxu0 %v12111
  %12900 = vmatpush.bf16.msra.mxu0 %v12110
  %12901 = vmatpush.bf16.msra.mxu0 %v12109
  %12902 = vmatpush.bf16.msra.mxu0 %v12108
  %12903 = vmatmul.bf16.gmra.mxu0 %v12503
  %v12904 = vpop.f32.mrf.mxu0
  %v12905 = vadd.f32 %v12816, %v12904
  %v12906 = vpop.f32.mrf.mxu0
  %v12907 = vadd.f32 %v12818, %v12906
  %12908 = vmatmul.bf16.gmra.mxu0 %v12507
  %v12909 = vpop.f32.mrf.mxu0
  %v12910 = vadd.f32 %v12821, %v12909
  %v12911 = vpop.f32.mrf.mxu0
  %v12912 = vadd.f32 %v12823, %v12911
  %12913 = vmatmul.bf16.gmra.mxu0 %v12511
  %v12914 = vpop.f32.mrf.mxu0
  %v12915 = vadd.f32 %v12826, %v12914
  %v12916 = vpop.f32.mrf.mxu0
  %v12917 = vadd.f32 %v12828, %v12916
  %12918 = vmatmul.bf16.gmra.mxu0 %v12515
  %v12919 = vpop.f32.mrf.mxu0
  %v12920 = vadd.f32 %v12831, %v12919
  %v12921 = vpop.f32.mrf.mxu0
  %v12922 = vadd.f32 %v12833, %v12921
  %12923 = vmatmul.bf16.gmra.mxu0 %v12519
  %v12924 = vpop.f32.mrf.mxu0
  %v12925 = vadd.f32 %v12836, %v12924
  %v12926 = vpop.f32.mrf.mxu0
  %v12927 = vadd.f32 %v12838, %v12926
  %12928 = vmatmul.bf16.gmra.mxu0 %v12523
  %v12929 = vpop.f32.mrf.mxu0
  %v12930 = vadd.f32 %v12841, %v12929
  %v12931 = vpop.f32.mrf.mxu0
  %v12932 = vadd.f32 %v12843, %v12931
  %12933 = vmatmul.bf16.gmra.mxu0 %v12527
  %v12934 = vpop.f32.mrf.mxu0
  %v12935 = vadd.f32 %v12846, %v12934
  %v12936 = vpop.f32.mrf.mxu0
  %v12937 = vadd.f32 %v12848, %v12936
  %12938 = vmatmul.bf16.gmra.mxu0 %v12531
  %v12939 = vpop.f32.mrf.mxu0
  %v12940 = vadd.f32 %v12851, %v12939
  %v12941 = vpop.f32.mrf.mxu0
  %v12942 = vadd.f32 %v12853, %v12941
  %12943 = vmatmul.bf16.gmra.mxu0 %v12535
  %v12944 = vpop.f32.mrf.mxu0
  %v12945 = vadd.f32 %v12856, %v12944
  %v12946 = vpop.f32.mrf.mxu0
  %v12947 = vadd.f32 %v12858, %v12946
  %12948 = vmatmul.bf16.gmra.mxu0 %v12539
  %v12949 = vpop.f32.mrf.mxu0
  %v12950 = vadd.f32 %v12861, %v12949
  %v12951 = vpop.f32.mrf.mxu0
  %v12952 = vadd.f32 %v12863, %v12951
  %12953 = vmatmul.bf16.gmra.mxu0 %v12543
  %v12954 = vpop.f32.mrf.mxu0
  %v12955 = vadd.f32 %v12866, %v12954
  %v12956 = vpop.f32.mrf.mxu0
  %v12957 = vadd.f32 %v12868, %v12956
  %12958 = vmatmul.bf16.gmra.mxu0 %v12547
  %v12959 = vpop.f32.mrf.mxu0
  %v12960 = vadd.f32 %v12871, %v12959
  %v12961 = vpop.f32.mrf.mxu0
  %v12962 = vadd.f32 %v12873, %v12961
  %12963 = vmatmul.bf16.gmra.mxu0 %v12551
  %v12964 = vpop.f32.mrf.mxu0
  %v12965 = vadd.f32 %v12876, %v12964
  %v12966 = vpop.f32.mrf.mxu0
  %v12967 = vadd.f32 %v12878, %v12966
  %12968 = vmatmul.bf16.gmra.mxu0 %v12555
  %v12969 = vpop.f32.mrf.mxu0
  %v12970 = vadd.f32 %v12881, %v12969
  %v12971 = vpop.f32.mrf.mxu0
  %v12972 = vadd.f32 %v12883, %v12971
  %12973 = vmatmul.bf16.gmra.mxu0 %v12559
  %v12974 = vpop.f32.mrf.mxu0
  %v12975 = vadd.f32 %v12886, %v12974
  %v12976 = vpop.f32.mrf.mxu0
  %v12977 = vadd.f32 %v12888, %v12976
  %12978 = vmatmul.bf16.gmra.mxu0 %v12563
  %v12979 = vpop.f32.mrf.mxu0
  %v12980 = vadd.f32 %v12891, %v12979
  %v12981 = vpop.f32.mrf.mxu0
  %v12982 = vadd.f32 %v12893, %v12981
  %12983 = vdwg.mxu0
  %v12984 = vmax.f32 %v12905, 0.0
  %v12985 = vmax.f32 %v12907, 0.0
  %v12986 = vmax.f32 %v12910, 0.0
  %v12987 = vmax.f32 %v12912, 0.0
  %v12988 = vmax.f32 %v12915, 0.0
  %v12989 = vmax.f32 %v12917, 0.0
  %v12990 = vmax.f32 %v12920, 0.0
  %v12991 = vmax.f32 %v12922, 0.0
  %v12992 = vmax.f32 %v12925, 0.0
  %v12993 = vmax.f32 %v12927, 0.0
  %v12994 = vmax.f32 %v12930, 0.0
  %v12995 = vmax.f32 %v12932, 0.0
  %v12996 = vmax.f32 %v12935, 0.0
  %v12997 = vmax.f32 %v12937, 0.0
  %v12998 = vmax.f32 %v12940, 0.0
  %v12999 = vmax.f32 %v12942, 0.0
  %v13000 = vmax.f32 %v12945, 0.0
  %v13001 = vmax.f32 %v12947, 0.0
  %v13002 = vmax.f32 %v12950, 0.0
  %v13003 = vmax.f32 %v12952, 0.0
  %v13004 = vmax.f32 %v12955, 0.0
  %v13005 = vmax.f32 %v12957, 0.0
  %v13006 = vmax.f32 %v12960, 0.0
  %v13007 = vmax.f32 %v12962, 0.0
  %v13008 = vmax.f32 %v12965, 0.0
  %v13009 = vmax.f32 %v12967, 0.0
  %v13010 = vmax.f32 %v12970, 0.0
  %v13011 = vmax.f32 %v12972, 0.0
  %v13012 = vmax.f32 %v12975, 0.0
  %v13013 = vmax.f32 %v12977, 0.0
  %v13014 = vmax.f32 %v12980, 0.0
  %v13015 = vmax.f32 %v12982, 0.0
  %v13016 = vld [vmem:[%s11] sm:$0xff]
  %v13017 = vld [vmem:[%s11 + $0x8] sm:$0xff]
  %v13018 = vld [vmem:[%s11 + $0x10] sm:$0xff]
  %v13019 = vld [vmem:[%s11 + $0x18] sm:$0xff]
  %v13020 = vld [vmem:[%s11 + $0x20] sm:$0xff]
  %v13021 = vld [vmem:[%s11 + $0x28] sm:$0xff]
  %v13022 = vld [vmem:[%s11 + $0x30] sm:$0xff]
  %v13023 = vld [vmem:[%s11 + $0x38] sm:$0xff]
  %v13024 = vld [vmem:[%s11 + $0x40] sm:$0xff]
  %v13025 = vld [vmem:[%s11 + $0x48] sm:$0xff]
  %v13026 = vld [vmem:[%s11 + $0x50] sm:$0xff]
  %v13027 = vld [vmem:[%s11 + $0x58] sm:$0xff]
  %v13028 = vld [vmem:[%s11 + $0x60] sm:$0xff]
  %v13029 = vld [vmem:[%s11 + $0x68] sm:$0xff]
  %v13030 = vld [vmem:[%s11 + $0x70] sm:$0xff]
  %v13031 = vld [vmem:[%s11 + $0x78] sm:$0xff]
  %v13032 = vpack.c.bf16 %v12985, %v12984
  %v13033 = vpack.c.bf16 %v12987, %v12986
  %v13034 = vpack.c.bf16 %v12989, %v12988
  %v13035 = vpack.c.bf16 %v12991, %v12990
  %v13036 = vpack.c.bf16 %v12993, %v12992
  %v13037 = vpack.c.bf16 %v12995, %v12994
  %v13038 = vpack.c.bf16 %v12997, %v12996
  %v13039 = vpack.c.bf16 %v12999, %v12998
  %v13040 = vpack.c.bf16 %v13001, %v13000
  %v13041 = vpack.c.bf16 %v13003, %v13002
  %v13042 = vpack.c.bf16 %v13005, %v13004
  %v13043 = vpack.c.bf16 %v13007, %v13006
  %v13044 = vpack.c.bf16 %v13009, %v13008
  %v13045 = vpack.c.bf16 %v13011, %v13010
  %v13046 = vpack.c.bf16 %v13013, %v13012
  %v13047 = vpack.c.bf16 %v13015, %v13014
  %v13048 = vld [vmem:[%s12] sm:$0xff]
  %v13049 = vld [vmem:[%s12 + $0x8] sm:$0xff]
  %v13050 = vld [vmem:[%s12 + $0x10] sm:$0xff]
  %v13051 = vld [vmem:[%s12 + $0x18] sm:$0xff]
  %v13052 = vld [vmem:[%s12 + $0x20] sm:$0xff]
  %v13053 = vld [vmem:[%s12 + $0x28] sm:$0xff]
  %v13054 = vld [vmem:[%s12 + $0x30] sm:$0xff]
  %v13055 = vld [vmem:[%s12 + $0x38] sm:$0xff]
  %v13056 = vld [vmem:[%s12 + $0x40] sm:$0xff]
  %v13057 = vld [vmem:[%s12 + $0x48] sm:$0xff]
  %v13058 = vld [vmem:[%s12 + $0x50] sm:$0xff]
  %v13059 = vld [vmem:[%s12 + $0x58] sm:$0xff]
  %v13060 = vld [vmem:[%s12 + $0x60] sm:$0xff]
  %v13061 = vld [vmem:[%s12 + $0x68] sm:$0xff]
  %v13062 = vld [vmem:[%s12 + $0x70] sm:$0xff]
  %v13063 = vld [vmem:[%s12 + $0x78] sm:$0xff]
  %13065 = vset.pattern.permute.xlu0 0
  %13066 = vperm.xlu0 %13065, %v13048
  %v13067 = vpop.permute.xlu0 %13066
  %13070 = vset.pattern.permute.xlu0 0
  %13071 = vperm.xlu0 %13070, %v13049
  %v13072 = vpop.permute.xlu0 %13071
  %13075 = vset.pattern.permute.xlu0 0
  %13076 = vperm.xlu0 %13075, %v13050
  %v13077 = vpop.permute.xlu0 %13076
  %13080 = vset.pattern.permute.xlu0 0
  %13081 = vperm.xlu0 %13080, %v13051
  %v13082 = vpop.permute.xlu0 %13081
  %13085 = vset.pattern.permute.xlu0 0
  %13086 = vperm.xlu0 %13085, %v13052
  %v13087 = vpop.permute.xlu0 %13086
  %13090 = vset.pattern.permute.xlu0 0
  %13091 = vperm.xlu0 %13090, %v13053
  %v13092 = vpop.permute.xlu0 %13091
  %13095 = vset.pattern.permute.xlu0 0
  %13096 = vperm.xlu0 %13095, %v13054
  %v13097 = vpop.permute.xlu0 %13096
  %13100 = vset.pattern.permute.xlu0 0
  %13101 = vperm.xlu0 %13100, %v13055
  %v13102 = vpop.permute.xlu0 %13101
  %13105 = vset.pattern.permute.xlu0 0
  %13106 = vperm.xlu0 %13105, %v13056
  %v13107 = vpop.permute.xlu0 %13106
  %13110 = vset.pattern.permute.xlu0 0
  %13111 = vperm.xlu0 %13110, %v13057
  %v13112 = vpop.permute.xlu0 %13111
  %13115 = vset.pattern.permute.xlu0 0
  %13116 = vperm.xlu0 %13115, %v13058
  %v13117 = vpop.permute.xlu0 %13116
  %13120 = vset.pattern.permute.xlu0 0
  %13121 = vperm.xlu0 %13120, %v13059
  %v13122 = vpop.permute.xlu0 %13121
  %13125 = vset.pattern.permute.xlu0 0
  %13126 = vperm.xlu0 %13125, %v13060
  %v13127 = vpop.permute.xlu0 %13126
  %13130 = vset.pattern.permute.xlu0 0
  %13131 = vperm.xlu0 %13130, %v13061
  %v13132 = vpop.permute.xlu0 %13131
  %13135 = vset.pattern.permute.xlu0 0
  %13136 = vperm.xlu0 %13135, %v13062
  %v13137 = vpop.permute.xlu0 %13136
  %13140 = vset.pattern.permute.xlu0 0
  %13141 = vperm.xlu0 %13140, %v13063
  %v13142 = vpop.permute.xlu0 %13141
  %v13160 = vunpack.c.l.b16 %v13016
  %v13161 = vunpack.c.h.b16 %v13016
  %v13162 = vunpack.c.l.b16 %v13017
  %v13163 = vunpack.c.h.b16 %v13017
  %v13164 = vunpack.c.l.b16 %v13018
  %v13165 = vunpack.c.h.b16 %v13018
  %v13166 = vunpack.c.l.b16 %v13019
  %v13167 = vunpack.c.h.b16 %v13019
  %v13168 = vunpack.c.l.b16 %v13020
  %v13169 = vunpack.c.h.b16 %v13020
  %v13170 = vunpack.c.l.b16 %v13021
  %v13171 = vunpack.c.h.b16 %v13021
  %v13172 = vunpack.c.l.b16 %v13022
  %v13173 = vunpack.c.h.b16 %v13022
  %v13174 = vunpack.c.l.b16 %v13023
  %v13175 = vunpack.c.h.b16 %v13023
  %v13176 = vunpack.c.l.b16 %v13024
  %v13177 = vunpack.c.h.b16 %v13024
  %v13178 = vunpack.c.l.b16 %v13025
  %v13179 = vunpack.c.h.b16 %v13025
  %v13180 = vunpack.c.l.b16 %v13026
  %v13181 = vunpack.c.h.b16 %v13026
  %v13182 = vunpack.c.l.b16 %v13027
  %v13183 = vunpack.c.h.b16 %v13027
  %v13184 = vunpack.c.l.b16 %v13028
  %v13185 = vunpack.c.h.b16 %v13028
  %v13186 = vunpack.c.l.b16 %v13029
  %v13187 = vunpack.c.h.b16 %v13029
  %v13188 = vunpack.c.l.b16 %v13030
  %v13189 = vunpack.c.h.b16 %v13030
  %v13190 = vunpack.c.l.b16 %v13031
  %v13191 = vunpack.c.h.b16 %v13031
  %v13192 = vpack.c.b16 %v13162, %v13160
  %v13193 = vpack.c.b16 %v13163, %v13161
  %v13194 = vpack.c.b16 %v13166, %v13164
  %v13195 = vpack.c.b16 %v13167, %v13165
  %v13196 = vpack.c.b16 %v13170, %v13168
  %v13197 = vpack.c.b16 %v13171, %v13169
  %v13198 = vpack.c.b16 %v13174, %v13172
  %v13199 = vpack.c.b16 %v13175, %v13173
  %v13200 = vpack.c.b16 %v13178, %v13176
  %v13201 = vpack.c.b16 %v13179, %v13177
  %v13202 = vpack.c.b16 %v13182, %v13180
  %v13203 = vpack.c.b16 %v13183, %v13181
  %v13204 = vpack.c.b16 %v13186, %v13184
  %v13205 = vpack.c.b16 %v13187, %v13185
  %v13206 = vpack.c.b16 %v13190, %v13188
  %v13207 = vpack.c.b16 %v13191, %v13189
  %13224 = vmatpush.bf16.msra.mxu0 %v13039
  %13225 = vmatpush.bf16.msra.mxu0 %v13038
  %13226 = vmatpush.bf16.msra.mxu0 %v13037
  %13227 = vmatpush.bf16.msra.mxu0 %v13036
  %13228 = vmatpush.bf16.msra.mxu0 %v13035
  %13229 = vmatpush.bf16.msra.mxu0 %v13034
  %13230 = vmatpush.bf16.msra.mxu0 %v13033
  %13231 = vmatpush.bf16.msra.mxu0 %v13032
  %13232 = vmatmul.bf16.gmra.mxu0 %v13192
  %v13233 = vpop.f32.mrf.mxu0
  %v13234 = vadd.f32 %v13067, %v13233
  %v13235 = vpop.f32.mrf.mxu0
  %v13236 = vadd.f32 %v13072, %v13235
  %13237 = vmatmul.bf16.gmra.mxu0 %v13194
  %v13238 = vpop.f32.mrf.mxu0
  %v13239 = vadd.f32 %v13077, %v13238
  %v13240 = vpop.f32.mrf.mxu0
  %v13241 = vadd.f32 %v13082, %v13240
  %13242 = vmatmul.bf16.gmra.mxu0 %v13196
  %v13243 = vpop.f32.mrf.mxu0
  %v13244 = vadd.f32 %v13087, %v13243
  %v13245 = vpop.f32.mrf.mxu0
  %v13246 = vadd.f32 %v13092, %v13245
  %13247 = vmatmul.bf16.gmra.mxu0 %v13198
  %v13248 = vpop.f32.mrf.mxu0
  %v13249 = vadd.f32 %v13097, %v13248
  %v13250 = vpop.f32.mrf.mxu0
  %v13251 = vadd.f32 %v13102, %v13250
  %13252 = vmatmul.bf16.gmra.mxu0 %v13200
  %v13253 = vpop.f32.mrf.mxu0
  %v13254 = vadd.f32 %v13107, %v13253
  %v13255 = vpop.f32.mrf.mxu0
  %v13256 = vadd.f32 %v13112, %v13255
  %13257 = vmatmul.bf16.gmra.mxu0 %v13202
  %v13258 = vpop.f32.mrf.mxu0
  %v13259 = vadd.f32 %v13117, %v13258
  %v13260 = vpop.f32.mrf.mxu0
  %v13261 = vadd.f32 %v13122, %v13260
  %13262 = vmatmul.bf16.gmra.mxu0 %v13204
  %v13263 = vpop.f32.mrf.mxu0
  %v13264 = vadd.f32 %v13127, %v13263
  %v13265 = vpop.f32.mrf.mxu0
  %v13266 = vadd.f32 %v13132, %v13265
  %13267 = vmatmul.bf16.gmra.mxu0 %v13206
  %v13268 = vpop.f32.mrf.mxu0
  %v13269 = vadd.f32 %v13137, %v13268
  %v13270 = vpop.f32.mrf.mxu0
  %v13271 = vadd.f32 %v13142, %v13270
  %13272 = vdwg.mxu0
  %13273 = vmatpush.bf16.msra.mxu0 %v13047
  %13274 = vmatpush.bf16.msra.mxu0 %v13046
  %13275 = vmatpush.bf16.msra.mxu0 %v13045
  %13276 = vmatpush.bf16.msra.mxu0 %v13044
  %13277 = vmatpush.bf16.msra.mxu0 %v13043
  %13278 = vmatpush.bf16.msra.mxu0 %v13042
  %13279 = vmatpush.bf16.msra.mxu0 %v13041
  %13280 = vmatpush.bf16.msra.mxu0 %v13040
  %13281 = vmatmul.bf16.gmra.mxu0 %v13193
  %v13282 = vpop.f32.mrf.mxu0
  %v13283 = vadd.f32 %v13234, %v13282
  %v13284 = vpop.f32.mrf.mxu0
  %v13285 = vadd.f32 %v13236, %v13284
  %13286 = vmatmul.bf16.gmra.mxu0 %v13195
  %v13287 = vpop.f32.mrf.mxu0
  %v13288 = vadd.f32 %v13239, %v13287
  %v13289 = vpop.f32.mrf.mxu0
  %v13290 = vadd.f32 %v13241, %v13289
  %13291 = vmatmul.bf16.gmra.mxu0 %v13197
  %v13292 = vpop.f32.mrf.mxu0
  %v13293 = vadd.f32 %v13244, %v13292
  %v13294 = vpop.f32.mrf.mxu0
  %v13295 = vadd.f32 %v13246, %v13294
  %13296 = vmatmul.bf16.gmra.mxu0 %v13199
  %v13297 = vpop.f32.mrf.mxu0
  %v13298 = vadd.f32 %v13249, %v13297
  %v13299 = vpop.f32.mrf.mxu0
  %v13300 = vadd.f32 %v13251, %v13299
  %13301 = vmatmul.bf16.gmra.mxu0 %v13201
  %v13302 = vpop.f32.mrf.mxu0
  %v13303 = vadd.f32 %v13254, %v13302
  %v13304 = vpop.f32.mrf.mxu0
  %v13305 = vadd.f32 %v13256, %v13304
  %13306 = vmatmul.bf16.gmra.mxu0 %v13203
  %v13307 = vpop.f32.mrf.mxu0
  %v13308 = vadd.f32 %v13259, %v13307
  %v13309 = vpop.f32.mrf.mxu0
  %v13310 = vadd.f32 %v13261, %v13309
  %13311 = vmatmul.bf16.gmra.mxu0 %v13205
  %v13312 = vpop.f32.mrf.mxu0
  %v13313 = vadd.f32 %v13264, %v13312
  %v13314 = vpop.f32.mrf.mxu0
  %v13315 = vadd.f32 %v13266, %v13314
  %13316 = vmatmul.bf16.gmra.mxu0 %v13207
  %v13317 = vpop.f32.mrf.mxu0
  %v13318 = vadd.f32 %v13269, %v13317
  %v13319 = vpop.f32.mrf.mxu0
  %v13320 = vadd.f32 %v13271, %v13319
  %13321 = vdwg.mxu0
  %v13322 = vmax.f32 %v13283, 0.0
  %v13323 = vmax.f32 %v13285, 0.0
  %v13324 = vmax.f32 %v13288, 0.0
  %v13325 = vmax.f32 %v13290, 0.0
  %v13326 = vmax.f32 %v13293, 0.0
  %v13327 = vmax.f32 %v13295, 0.0
  %v13328 = vmax.f32 %v13298, 0.0
  %v13329 = vmax.f32 %v13300, 0.0
  %v13330 = vmax.f32 %v13303, 0.0
  %v13331 = vmax.f32 %v13305, 0.0
  %v13332 = vmax.f32 %v13308, 0.0
  %v13333 = vmax.f32 %v13310, 0.0
  %v13334 = vmax.f32 %v13313, 0.0
  %v13335 = vmax.f32 %v13315, 0.0
  %v13336 = vmax.f32 %v13318, 0.0
  %v13337 = vmax.f32 %v13320, 0.0
  %v13338 = vld [vmem:[%s13] sm:$0xf]
  %v13339 = vpack.c.bf16 %v13323, %v13322
  %v13340 = vpack.c.bf16 %v13325, %v13324
  %v13341 = vpack.c.bf16 %v13327, %v13326
  %v13342 = vpack.c.bf16 %v13329, %v13328
  %v13343 = vpack.c.bf16 %v13331, %v13330
  %v13344 = vpack.c.bf16 %v13333, %v13332
  %v13345 = vpack.c.bf16 %v13335, %v13334
  %v13346 = vpack.c.bf16 %v13337, %v13336
  %v13347 = vld [vmem:[%s14] sm:$0xff]
  %13349 = vset.pattern.permute.xlu0 0
  %13350 = vperm.xlu0 %13349, %v13347
  %v13351 = vpop.permute.xlu0 %13350
  %13353 = vmatpush.bf16.msra.mxu0 %v13346
  %13354 = vmatpush.bf16.msra.mxu0 %v13345
  %13355 = vmatpush.bf16.msra.mxu0 %v13344
  %13356 = vmatpush.bf16.msra.mxu0 %v13343
  %13357 = vmatpush.bf16.msra.mxu0 %v13342
  %13358 = vmatpush.bf16.msra.mxu0 %v13341
  %13359 = vmatpush.bf16.msra.mxu0 %v13340
  %13360 = vmatpush.bf16.msra.mxu0 %v13339
  %13361 = vmatmul.bf16.gmra.mxu0 %v13338
  %v13362 = vpop.f32.mrf.mxu0
  %v13363 = vadd.f32 %v13351, %v13362
  %v13364 = vpop.f32.mrf.mxu0
  %13365 = vdwg.mxu0
  %13366 = vst.msk [vmem:[%s15] sm:$0xff] %vm5677, %v13363
  // Predicated region
  $region77: #{forward.1} parent=0 // pred_check
    _
  $region78: #{forward.1} parent=0 // pred_check_branch
    %13368 = sbr.rel (0) target = $region80
  $region79: #{forward.1} parent=0 // pred_region
    _
  $region80: #{forward.1} parent=0 // pred_fallthru
    _
  // Predicated region
  $region81: #{forward.1} parent=0 // pred_check
    _
  $region82: #{forward.1} parent=0 // pred_check_branch
    %13370 = sbr.rel (0) target = $region84
  $region83: #{forward.1} parent=0 // pred_region
    _
  $region84: #{forward.1} parent=0 // pred_fallthru
    _
  %13371 = vsyncmov [#allocation4]
  %s13372 = vpop.sfrf %13371
  %p13373 = scmp.eq.s32.totalorder %s13372, 0
  %p13374 = pneg %p13373
  %13376 = shalt.err (%p13374)

</llo_original>
